<compile_context>
chip_gen: v7x
topology: tpu7x:2x2x1
jax: 0.10.0
libtpu: 0.0.40
codegen_flags: <defaults>
</compile_context>

<pallas_src>
import functools

import jax
import jax.numpy as jnp
import numpy as np
from jax import lax
from jax.experimental import pallas as pl
from jax.experimental.pallas import tpu as pltpu

EPS = 1e-5
LANE = 128


def _round_up(x, m):
    return (x + m - 1) // m * m


def _vmem_limit_bytes():
    """Generation-aware VMEM budget: ~3/4 of physical VMEM clamped to
    [32 MiB, 96 MiB] (96 MiB on v5e/v6e, 48 MiB on v7x), 32 MiB fallback."""
    base = 32 * 1024 * 1024
    get_info = getattr(pltpu, "get_tpu_info", None)
    if get_info is None:
        return base
    try:
        cap = getattr(get_info(), "vmem_capacity_bytes", 0) or 0
    except Exception:
        cap = 0
    if not cap:
        return base
    return int(min(96 * 1024 * 1024, max(base, (cap * 3) // 4)))


_CPARAMS = pltpu.CompilerParams(
    dimension_semantics=("parallel",),          # all grid steps independent
    vmem_limit_bytes=_vmem_limit_bytes(),
)


def _pick_tile(m, max_tile=1024):
    """Largest row tile (multiple of 8) dividing m, capped, preferring >= 2
    grid steps so both v7x TensorCores get work."""
    cap = min(max_tile, m)
    if m > 8:
        cap = min(cap, m // 2)
    best = 8
    for d in range(8, cap + 1, 8):
        if m % d == 0:
            best = d
    return best


# --------------------------------------------------------------------------- #
# kernel bodies
# --------------------------------------------------------------------------- #

def _emit_stats(stats_ref, y):
    """Per-tile (sum, sum-of-squares) BN partials written as ONE unmasked
    (8, C) store: row 0 = sum, row 1 = sumsq, rows 2-7 = 0."""
    c = y.shape[-1]
    s = jnp.sum(y, axis=0, keepdims=True)                  # (1, C)
    sq = jnp.sum(y * y, axis=0, keepdims=True)             # (1, C)
    row = lax.broadcasted_iota(jnp.int32, (8, c), 0)
    blk = jnp.where(row == 0, jnp.broadcast_to(s, (8, c)),
                    jnp.where(row == 1, jnp.broadcast_to(sq, (8, c)),
                              jnp.float32(0.0)))
    stats_ref[0] = blk


def _conv1_stats_kernel(x_ref, w1_ref, y1_ref, stats_ref):
    """conv1 (1x1): bf16 operands, f32 accumulate.  y1 is stored in bf16 and
    BN1 partials are computed from the stored (bf16-rounded) values."""
    y1 = jnp.dot(x_ref[...], w1_ref[...], preferred_element_type=jnp.float32)
    y1q = y1.astype(jnp.bfloat16)
    y1_ref[...] = y1q
    _emit_stats(stats_ref, y1q.astype(jnp.float32))


def _bn1_conv2_stats_kernel(H, W, P, y1_ref, scale_ref, shift_ref, w2_ref,
                            mask_ref, y2_ref, stats_ref, hpad_ref):
    """BN1(affine)+ReLU -> 3x3 conv as 9 accumulating MXU dots over a flat
    row-shifted bf16 halo buffer (no materialized im2col) -> bf16 y2 +
    BN2 partial sums."""
    HW = H * W
    Cp = y2_ref.shape[-1]
    HP = hpad_ref.shape[0]

    # BN1 affine + ReLU in f32 (scale/shift folded on host), one bf16 cast.
    h1 = jnp.maximum(
        y1_ref[...].astype(jnp.float32) * scale_ref[...] + shift_ref[...], 0.0)

    # Row-padded bf16 copy so a (dy, dx) tap is a flat row shift of dy*W + dx.
    # Only the halo rows are zeroed each step; the interior offset P is
    # 16-aligned so the bulk store (and dx=1 taps when W % 16 == 0) are
    # unmasked.  Nothing of this touches HBM.
    hpad_ref[0:P, :] = jnp.zeros((P, Cp), jnp.bfloat16)
    hpad_ref[P + HW:HP, :] = jnp.zeros((HP - P - HW, Cp), jnp.bfloat16)
    hpad_ref[P:P + HW, :] = h1.astype(jnp.bfloat16)

    # Edge masks handle the left/right column wrap of the flat shift.
    # bf16 masks are exact ({0,1}) so the masked products are exact.
    left_m = mask_ref[:, 0:1].astype(jnp.bfloat16)     # 0 where col == 0
    right_m = mask_ref[:, 1:2].astype(jnp.bfloat16)    # 0 where col == W-1

    acc = None
    for t in range(9):                                 # static unroll, 3x3 taps
        dy, dx = t // 3, t % 3
        start = P + (dy - 1) * W + (dx - 1)            # static offset
        tap = hpad_ref[start:start + HW, :]            # bf16 (HW, Cp)
        if dx == 0:
            tap = tap * left_m
        elif dx == 2:
            tap = tap * right_m
        d = jnp.dot(tap, w2_ref[t * Cp:(t + 1) * Cp, :],
                    preferred_element_type=jnp.float32)
        acc = d if acc is None else acc + d

    y2q = acc.astype(jnp.bfloat16)
    y2_ref[...] = y2q
    _emit_stats(stats_ref, y2q.astype(jnp.float32))


def _bn2_conv3_stats_kernel(y2_ref, scale_ref, shift_ref, w3_ref, stats_ref):
    """BN2+ReLU -> conv3 -> BN3 partial sums only (y3 never touches HBM)."""
    h2 = jnp.maximum(
        y2_ref[...].astype(jnp.float32) * scale_ref[...] + shift_ref[...], 0.0)
    y3 = jnp.dot(h2.astype(jnp.bfloat16), w3_ref[...],
                 preferred_element_type=jnp.float32)
    _emit_stats(stats_ref, y3)


def _bn2_conv3_bn3_residual_kernel(y2_ref, scale2_ref, shift2_ref, w3_ref,
                                   scale3_ref, shift3_ref, res_ref, o_ref):
    """Recompute conv3 (cheaper than round-tripping the 4x-wide y3 via HBM),
    then fused BN3 + residual add (f32) + final ReLU."""
    h2 = jnp.maximum(
        y2_ref[...].astype(jnp.float32) * scale2_ref[...] + shift2_ref[...], 0.0)
    y3 = jnp.dot(h2.astype(jnp.bfloat16), w3_ref[...],
                 preferred_element_type=jnp.float32)
    o_ref[...] = jnp.maximum(
        y3 * scale3_ref[...] + shift3_ref[...] + res_ref[...], 0.0)


# --------------------------------------------------------------------------- #
# pallas_call wrappers
# --------------------------------------------------------------------------- #

def _conv1_stats(x_bf, w1, tm):
    M, Cin_p = x_bf.shape
    Cp = w1.shape[1]
    nt = M // tm
    return pl.pallas_call(
        _conv1_stats_kernel,
        out_shape=(jax.ShapeDtypeStruct((M, Cp), jnp.bfloat16),
                   jax.ShapeDtypeStruct((nt, 8, Cp), jnp.float32)),
        grid=(nt,),
        in_specs=[pl.BlockSpec((tm, Cin_p), lambda i: (i, 0)),
                  pl.BlockSpec((Cin_p, Cp), lambda i: (0, 0))],
        out_specs=(pl.BlockSpec((tm, Cp), lambda i: (i, 0)),
                   pl.BlockSpec((1, 8, Cp), lambda i: (i, 0, 0))),
        compiler_params=_CPARAMS,
        cost_estimate=pl.CostEstimate(
            flops=2 * M * Cin_p * Cp, transcendentals=0,
            bytes_accessed=2 * M * (Cin_p + Cp) + 2 * Cin_p * Cp
                           + 4 * nt * 8 * Cp),
    )(x_bf, w1)


def _bn1_conv2_stats(y1, scale1, shift1, w2f, edge_mask, N, H, W):
    # TODO(synk): for v7x at real ResNet sizes (HW >= ~3k) add a second
    # "parallel" grid axis over row tiles (with a 1-row halo) so VMEM scales
    # with the tile and a single-image batch still uses both TensorCores.
    M, Cp = y1.shape
    HW = H * W
    P = _round_up(W + 1, 16)                  # 16-aligned interior offset
    HP = _round_up(P + HW + W + 1, 16)        # room for the bottom halo
    kernel = functools.partial(_bn1_conv2_stats_kernel, H, W, P)
    return pl.pallas_call(
        kernel,
        out_shape=(jax.ShapeDtypeStruct((M, Cp), jnp.bfloat16),
                   jax.ShapeDtypeStruct((N, 8, Cp), jnp.float32)),
        grid=(N,),
        in_specs=[pl.BlockSpec((HW, Cp), lambda n: (n, 0)),
                  pl.BlockSpec((1, Cp), lambda n: (0, 0)),
                  pl.BlockSpec((1, Cp), lambda n: (0, 0)),
                  pl.BlockSpec((9 * Cp, Cp), lambda n: (0, 0)),
                  pl.BlockSpec((HW, 2), lambda n: (0, 0))],
        out_specs=(pl.BlockSpec((HW, Cp), lambda n: (n, 0)),
                   pl.BlockSpec((1, 8, Cp), lambda n: (n, 0, 0))),
        scratch_shapes=[pltpu.VMEM((HP, Cp), jnp.bfloat16)],   # halo buffer
        compiler_params=_CPARAMS,
        cost_estimate=pl.CostEstimate(
            flops=2 * M * 9 * Cp * Cp + 6 * M * Cp, transcendentals=0,
            bytes_accessed=4 * M * Cp + 2 * 9 * Cp * Cp + 4 * N * 8 * Cp),
    )(y1, scale1, shift1, w2f, edge_mask)


def _bn2_conv3_stats(y2, scale2, shift2, w3, tm):
    M, Cp = y2.shape
    Co_p = w3.shape[1]
    nt = M // tm
    return pl.pallas_call(
        _bn2_conv3_stats_kernel,
        out_shape=jax.ShapeDtypeStruct((nt, 8, Co_p), jnp.float32),
        grid=(nt,),
        in_specs=[pl.BlockSpec((tm, Cp), lambda i: (i, 0)),
                  pl.BlockSpec((1, Cp), lambda i: (0, 0)),
                  pl.BlockSpec((1, Cp), lambda i: (0, 0)),
                  pl.BlockSpec((Cp, Co_p), lambda i: (0, 0))],
        out_specs=pl.BlockSpec((1, 8, Co_p), lambda i: (i, 0, 0)),
        compiler_params=_CPARAMS,
        cost_estimate=pl.CostEstimate(
            flops=2 * M * Cp * Co_p + 4 * M * Cp, transcendentals=0,
            bytes_accessed=2 * M * Cp + 2 * Cp * Co_p + 4 * nt * 8 * Co_p),
    )(y2, scale2, shift2, w3)


def _final_stage(y2, scale2, shift2, w3, scale3, shift3, res, tm):
    M, Cp = y2.shape
    Co_p = w3.shape[1]
    nt = M // tm
    return pl.pallas_call(
        _bn2_conv3_bn3_residual_kernel,
        out_shape=jax.ShapeDtypeStruct((M, Co_p), jnp.float32),
        grid=(nt,),
        in_specs=[pl.BlockSpec((tm, Cp), lambda i: (i, 0)),
                  pl.BlockSpec((1, Cp), lambda i: (0, 0)),
                  pl.BlockSpec((1, Cp), lambda i: (0, 0)),
                  pl.BlockSpec((Cp, Co_p), lambda i: (0, 0)),
                  pl.BlockSpec((1, Co_p), lambda i: (0, 0)),
                  pl.BlockSpec((1, Co_p), lambda i: (0, 0)),
                  pl.BlockSpec((tm, Co_p), lambda i: (i, 0))],
        out_specs=pl.BlockSpec((tm, Co_p), lambda i: (i, 0)),
        compiler_params=_CPARAMS,
        cost_estimate=pl.CostEstimate(
            flops=2 * M * Cp * Co_p + 7 * M * Co_p, transcendentals=0,
            bytes_accessed=2 * M * Cp + 8 * M * Co_p + 2 * Cp * Co_p),
    )(y2, scale2, shift2, w3, scale3, shift3, res)


# --------------------------------------------------------------------------- #
# host-side glue
# --------------------------------------------------------------------------- #

def _bn_affine(stats, gamma, beta, count):
    """Reduce per-tile (sum, sumsq) partials to per-channel scale/shift so BN
    becomes one fused affine inside the next kernel (biased variance, as in
    PyTorch's training-mode forward normalization)."""
    s = jnp.sum(stats[:, 0, :], axis=0, keepdims=True)
    sq = jnp.sum(stats[:, 1, :], axis=0, keepdims=True)
    mean = s / count
    var = jnp.maximum(sq / count - mean * mean, 0.0)
    scale = gamma * lax.rsqrt(var + EPS)
    shift = beta - mean * scale
    return scale, shift


def bottleneck_forward(x_nchw, params):
    """Bottleneck forward (stride=1, downsample=None). NCHW in / NCHW out."""
    # TODO(synk): hoist the NCHW<->NHWC transposes to the network boundary when
    # chaining many blocks; kept here to preserve the single-module interface.
    x = jnp.transpose(x_nchw, (0, 2, 3, 1)).astype(jnp.float32)      # NHWC
    N, H, W, Cin = x.shape
    planes = params["w1"].shape[1]
    Cout = planes * 4
    assert Cin == Cout, "downsample=None requires inplanes == planes * 4"
    HW = H * W
    M = N * HW
    assert HW % 8 == 0, "H*W must be a multiple of 8 (sublane tiling)"
    # TODO(synk): support ragged H*W (e.g. 7x7, 14x14) via image row padding.

    Cin_p = _round_up(Cin, LANE)
    Cp = _round_up(planes, LANE)
    Co_p = _round_up(Cout, LANE)
    assert Cin_p == Co_p

    # Lane-dense, flattened (N*H*W, C) layout.  conv1 operand in bf16 (halves
    # the widest read); residual kept f32 for exact residual math.
    xp = jnp.pad(x, ((0, 0), (0, 0), (0, 0), (0, Cin_p - Cin))
                 ).reshape(M, Cin_p)
    x_bf = xp.astype(jnp.bfloat16)

    w1 = jnp.pad(params["w1"], ((0, Cin_p - Cin), (0, Cp - planes))
                 ).astype(jnp.bfloat16)
    w2f = jnp.pad(params["w2"], ((0, 0), (0, 0), (0, Cp - planes),
                                 (0, Cp - planes))
                  ).reshape(9 * Cp, Cp).astype(jnp.bfloat16)
    w3 = jnp.pad(params["w3"], ((0, Cp - planes), (0, Co_p - Cout))
                 ).astype(jnp.bfloat16)

    g1 = jnp.pad(params["g1"], ((0, 0), (0, Cp - planes)))
    b1 = jnp.pad(params["b1"], ((0, 0), (0, Cp - planes)))
    g2 = jnp.pad(params["g2"], ((0, 0), (0, Cp - planes)))
    b2 = jnp.pad(params["b2"], ((0, 0), (0, Cp - planes)))
    g3 = jnp.pad(params["g3"], ((0, 0), (0, Co_p - Cout)))
    b3 = jnp.pad(params["b3"], ((0, 0), (0, Co_p - Cout)))

    # Left/right image-edge masks for the flat row-shifted 3x3 taps.
    col_id = jnp.arange(HW, dtype=jnp.int32) % W
    edge_mask = jnp.stack([(col_id != 0), (col_id != W - 1)],
                          axis=1).astype(jnp.float32)                # (HW, 2)

    tm = _pick_tile(M)

    # --- stage 1: conv1 (1x1) + BN1 partial sums --------------------------- #
    y1, stats1 = _conv1_stats(x_bf, w1, tm)
    scale1, shift1 = _bn_affine(stats1, g1, b1, M)

    # --- stage 2: BN1+ReLU + 3x3 conv (9 accumulating dots) + BN2 sums ----- #
    y2, stats2 = _bn1_conv2_stats(y1, scale1, shift1, w2f, edge_mask, N, H, W)
    scale2, shift2 = _bn_affine(stats2, g2, b2, M)

    # --- stage 3: BN2+ReLU + conv3 -> BN3 partial sums (y3 never stored) --- #
    stats3 = _bn2_conv3_stats(y2, scale2, shift2, w3, tm)
    scale3, shift3 = _bn_affine(stats3, g3, b3, M)

    # --- stage 4: conv3 (recomputed) + BN3 + residual + ReLU ---------------- #
    out2d = _final_stage(y2, scale2, shift2, w3, scale3, shift3, xp, tm)

    out = out2d.reshape(N, H, W, Co_p)[:, :, :, :Cout]
    return jnp.transpose(out, (0, 3, 1, 2))                          # NCHW


# --------------------------------------------------------------------------- #
# pure-JAX reference (identical precision policy: bf16 matmul operands,
# f32 accumulate, bf16 storage of y1/y2, f32 BN / residual math)
# --------------------------------------------------------------------------- #

def _bf16_rt(x):
    return x.astype(jnp.bfloat16).astype(jnp.float32)


def _bn_ref(y, g, b):
    m = jnp.mean(y, axis=(0, 1, 2), keepdims=True)
    v = jnp.mean((y - m) ** 2, axis=(0, 1, 2), keepdims=True)
    return ((y - m) * lax.rsqrt(v + EPS) * g.reshape(1, 1, 1, -1)
            + b.reshape(1, 1, 1, -1))


def bottleneck_reference(x_nchw, params):
    bf = jnp.bfloat16
    x = jnp.transpose(x_nchw, (0, 2, 3, 1)).astype(jnp.float32)
    y1 = _bf16_rt(jnp.einsum("nhwc,co->nhwo", x.astype(bf),
                             params["w1"].astype(bf),
                             preferred_element_type=jnp.float32))
    h1 = jax.nn.relu(_bn_ref(y1, params["g1"], params["b1"]))
    y2 = _bf16_rt(lax.conv_general_dilated(
        h1.astype(bf), params["w2"].astype(bf), window_strides=(1, 1),
        padding="SAME", dimension_numbers=("NHWC", "HWIO", "NHWC"),
        preferred_element_type=jnp.float32))
    h2 = jax.nn.relu(_bn_ref(y2, params["g2"], params["b2"]))
    y3 = jnp.einsum("nhwc,co->nhwo", h2.astype(bf), params["w3"].astype(bf),
                    preferred_element_type=jnp.float32)
    o = jax.nn.relu(_bn_ref(y3, params["g3"], params["b3"]) + x)
    return jnp.transpose(o, (0, 3, 1, 2))


# --------------------------------------------------------------------------- #
# main
# --------------------------------------------------------------------------- #

if __name__ == "__main__":
    planes = 4
    inplanes = planes * 4          # downsample=None  =>  inplanes == planes*4
    N, H, W = 2, 16, 16

    key = jax.random.PRNGKey(0)
    ks = jax.random.split(key, 10)
    params = {
        # conv weights as (Cin, Cout) / (kh, kw, Cin, Cout): PyTorch
        # (Cout, Cin, kh, kw) with axes rearranged.
        "w1": jax.random.normal(ks[0], (inplanes, planes), jnp.float32) * 0.1,
        "w2": jax.random.normal(ks[1], (3, 3, planes, planes), jnp.float32) * 0.1,
        "w3": jax.random.normal(ks[2], (planes, planes * 4), jnp.float32) * 0.1,
        "g1": 1.0 + 0.1 * jax.random.normal(ks[3], (1, planes), jnp.float32),
        "b1": 0.1 * jax.random.normal(ks[4], (1, planes), jnp.float32),
        "g2": 1.0 + 0.1 * jax.random.normal(ks[5], (1, planes), jnp.float32),
        "b2": 0.1 * jax.random.normal(ks[6], (1, planes), jnp.float32),
        "g3": 1.0 + 0.1 * jax.random.normal(ks[7], (1, planes * 4), jnp.float32),
        "b3": 0.1 * jax.random.normal(ks[8], (1, planes * 4), jnp.float32),
    }
    x = jax.random.normal(ks[9], (N, inplanes, H, W), jnp.float32)   # NCHW

    out = jax.block_until_ready(jax.jit(bottleneck_forward)(x, params))
    ref = jax.block_until_ready(bottleneck_reference(x, params))

    # Tolerance covers bf16-operand / bf16-storage rounding (identical policy
    # in both paths) plus accumulation-order / variance-formula differences.
    np.testing.assert_allclose(np.asarray(out), np.asarray(ref),
                               rtol=5e-3, atol=5e-3)
    assert out.shape == (N, planes * 4, H, W)
    print("KERNEL_OK")
</pallas_src>

<mosaic_0001>
module attributes {stable_mosaic.version = 11 : i64} {
  func.func @_conv1_stats_kernel(%arg0: i32, %arg1: memref<256x128xbf16, #tpu.memory_space<vmem>>, %arg2: memref<128x128xbf16, #tpu.memory_space<vmem>>, %arg3: memref<256x128xbf16, #tpu.memory_space<vmem>>, %arg4: memref<1x8x128xf32, #tpu.memory_space<vmem>>) attributes {dimension_semantics = [#tpu.dimension_semantics<parallel>], iteration_bounds = array<i64: 2>, scalar_prefetch = 0 : i64, scratch_operands = 0 : i64, tpu.core_type = #tpu.core_type<tc>, window_params = [{transform_indices = @transform_0, window_bounds = array<i64: 256, 128>}, {pipeline_mode = #tpu.pipeline_mode<synchronous>, transform_indices = @transform_1, window_bounds = array<i64: 128, 128>}, {transform_indices = @transform_2, window_bounds = array<i64: 256, 128>}, {transform_indices = @transform_3, window_bounds = array<i64: 1, 8, 128>}]} {
    %c0 = arith.constant 0 : index
    %c0_0 = arith.constant 0 : index
    %0 = vector.load %arg1[%c0, %c0_0] : memref<256x128xbf16, #tpu.memory_space<vmem>>, vector<256x128xbf16>
    %c0_1 = arith.constant 0 : index
    %c0_2 = arith.constant 0 : index
    %1 = vector.load %arg2[%c0_1, %c0_2] : memref<128x128xbf16, #tpu.memory_space<vmem>>, vector<128x128xbf16>
    %cst = arith.constant dense<0.000000e+00> : vector<256x128xf32>
    %2 = tpu.matmul %0, %1, %cst {dimension_numbers = #tpu.dot_dimension_numbers<[1], [0], [0], [1], [0, 0, 1, 1], [], []>} : vector<256x128xbf16>, vector<128x128xbf16>, vector<256x128xf32> -> vector<256x128xf32>
    %3 = arith.truncf %2 : vector<256x128xf32> to vector<256x128xbf16>
    %c0_3 = arith.constant 0 : index
    %c0_4 = arith.constant 0 : index
    %4 = vector.load %arg3[%c0_3, %c0_4] : memref<256x128xbf16, #tpu.memory_space<vmem>>, vector<256x128xbf16>
    tpu.vector_store %arg3[%c0_3, %c0_4], %3 {strides = array<i32>} : memref<256x128xbf16, #tpu.memory_space<vmem>>, vector<256x128xbf16>,
    %5 = arith.extf %3 : vector<256x128xbf16> to vector<256x128xf32>
    %cst_5 = arith.constant dense<0.000000e+00> : vector<128xf32>
    %6 = vector.multi_reduction <add>, %5, %cst_5 [0] : vector<256x128xf32> to vector<128xf32>
    %7 = vector.shape_cast %6 : vector<128xf32> to vector<1x128xf32>
    %8 = arith.mulf %5, %5 : vector<256x128xf32>
    %cst_6 = arith.constant dense<0.000000e+00> : vector<128xf32>
    %9 = vector.multi_reduction <add>, %8, %cst_6 [0] : vector<256x128xf32> to vector<128xf32>
    %10 = vector.shape_cast %9 : vector<128xf32> to vector<1x128xf32>
    %11 = tpu.iota {dimensions = array<i32: 0>} : vector<8x128xi32>
    %c0_i32 = arith.constant 0 : i32
    %12 = vector.broadcast %c0_i32 : i32 to vector<8x128xi32>
    %13 = arith.cmpi eq, %11, %12 : vector<8x128xi32>
    %14 = vector.shape_cast %7 : vector<1x128xf32> to vector<1x128xf32>
    %15 = vector.broadcast %14 : vector<1x128xf32> to vector<8x128xf32>
    %c1_i32 = arith.constant 1 : i32
    %16 = vector.broadcast %c1_i32 : i32 to vector<8x128xi32>
    %17 = arith.cmpi eq, %11, %16 : vector<8x128xi32>
    %18 = vector.shape_cast %10 : vector<1x128xf32> to vector<1x128xf32>
    %19 = vector.broadcast %18 : vector<1x128xf32> to vector<8x128xf32>
    %cst_7 = arith.constant 0.000000e+00 : f32
    %20 = vector.broadcast %cst_7 : f32 to vector<8x128xf32>
    %21 = arith.select %17, %19, %20 : vector<8x128xi1>, vector<8x128xf32>
    %22 = arith.select %13, %15, %21 : vector<8x128xi1>, vector<8x128xf32>
    %c0_8 = arith.constant 0 : index
    %c0_9 = arith.constant 0 : index
    %c0_10 = arith.constant 0 : index
    %23 = vector.load %arg4[%c0_8, %c0_9, %c0_10] : memref<1x8x128xf32, #tpu.memory_space<vmem>>, vector<1x8x128xf32>
    %24 = vector.shape_cast %23 : vector<1x8x128xf32> to vector<8x128xf32>
    %25 = vector.shape_cast %22 : vector<8x128xf32> to vector<1x8x128xf32>
    tpu.vector_store %arg4[%c0_8, %c0_9, %c0_10], %25 {strides = array<i32>} : memref<1x8x128xf32, #tpu.memory_space<vmem>>, vector<1x8x128xf32>,
    return
  }
  func.func @transform_0(%arg0: i32) -> (i32, i32) {
    %c0_i32 = arith.constant 0 : i32
    %c0_i32_0 = arith.constant 0 : i32
    return %arg0, %c0_i32 : i32, i32
  }
  func.func @transform_1(%arg0: i32) -> (i32, i32) {
    %c0_i32 = arith.constant 0 : i32
    %c0_i32_0 = arith.constant 0 : i32
    %c0_i32_1 = arith.constant 0 : i32
    return %c0_i32, %c0_i32_0 : i32, i32
  }
  func.func @transform_2(%arg0: i32) -> (i32, i32) {
    %c0_i32 = arith.constant 0 : i32
    %c0_i32_0 = arith.constant 0 : i32
    return %arg0, %c0_i32 : i32, i32
  }
  func.func @transform_3(%arg0: i32) -> (i32, i32, i32) {
    %c0_i32 = arith.constant 0 : i32
    %c0_i32_0 = arith.constant 0 : i32
    %c0_i32_1 = arith.constant 0 : i32
    return %arg0, %c0_i32, %c0_i32_0 : i32, i32, i32
  }
}

module attributes {stable_mosaic.version = 11 : i64} {
  func.func @_bn2_conv3_stats_kernel(%arg0: i32, %arg1: memref<256x128xbf16, #tpu.memory_space<vmem>>, %arg2: memref<1x128xf32, #tpu.memory_space<vmem>>, %arg3: memref<1x128xf32, #tpu.memory_space<vmem>>, %arg4: memref<128x128xbf16, #tpu.memory_space<vmem>>, %arg5: memref<1x8x128xf32, #tpu.memory_space<vmem>>) attributes {dimension_semantics = [#tpu.dimension_semantics<parallel>], iteration_bounds = array<i64: 2>, scalar_prefetch = 0 : i64, scratch_operands = 0 : i64, tpu.core_type = #tpu.core_type<tc>, window_params = [{transform_indices = @transform_0, window_bounds = array<i64: 256, 128>}, {pipeline_mode = #tpu.pipeline_mode<synchronous>, transform_indices = @transform_1, window_bounds = array<i64: 1, 128>}, {pipeline_mode = #tpu.pipeline_mode<synchronous>, transform_indices = @transform_2, window_bounds = array<i64: 1, 128>}, {pipeline_mode = #tpu.pipeline_mode<synchronous>, transform_indices = @transform_3, window_bounds = array<i64: 128, 128>}, {transform_indices = @transform_4, window_bounds = array<i64: 1, 8, 128>}]} {
    %c0 = arith.constant 0 : index
    %c0_0 = arith.constant 0 : index
    %0 = vector.load %arg1[%c0, %c0_0] : memref<256x128xbf16, #tpu.memory_space<vmem>>, vector<256x128xbf16>
    %1 = arith.extf %0 : vector<256x128xbf16> to vector<256x128xf32>
    %c0_1 = arith.constant 0 : index
    %c0_2 = arith.constant 0 : index
    %2 = vector.load %arg2[%c0_1, %c0_2] : memref<1x128xf32, #tpu.memory_space<vmem>>, vector<1x128xf32>
    %3 = vector.broadcast %2 : vector<1x128xf32> to vector<256x128xf32>
    %4 = arith.mulf %1, %3 : vector<256x128xf32>
    %c0_3 = arith.constant 0 : index
    %c0_4 = arith.constant 0 : index
    %5 = vector.load %arg3[%c0_3, %c0_4] : memref<1x128xf32, #tpu.memory_space<vmem>>, vector<1x128xf32>
    %6 = vector.broadcast %5 : vector<1x128xf32> to vector<256x128xf32>
    %7 = arith.addf %4, %6 : vector<256x128xf32>
    %cst = arith.constant 0.000000e+00 : f32
    %8 = vector.broadcast %cst : f32 to vector<256x128xf32>
    %9 = arith.maximumf %7, %8 : vector<256x128xf32>
    %10 = arith.truncf %9 : vector<256x128xf32> to vector<256x128xbf16>
    %c0_5 = arith.constant 0 : index
    %c0_6 = arith.constant 0 : index
    %11 = vector.load %arg4[%c0_5, %c0_6] : memref<128x128xbf16, #tpu.memory_space<vmem>>, vector<128x128xbf16>
    %cst_7 = arith.constant dense<0.000000e+00> : vector<256x128xf32>
    %12 = tpu.matmul %10, %11, %cst_7 {dimension_numbers = #tpu.dot_dimension_numbers<[1], [0], [0], [1], [0, 0, 1, 1], [], []>} : vector<256x128xbf16>, vector<128x128xbf16>, vector<256x128xf32> -> vector<256x128xf32>
    %cst_8 = arith.constant dense<0.000000e+00> : vector<128xf32>
    %13 = vector.multi_reduction <add>, %12, %cst_8 [0] : vector<256x128xf32> to vector<128xf32>
    %14 = vector.shape_cast %13 : vector<128xf32> to vector<1x128xf32>
    %15 = arith.mulf %12, %12 : vector<256x128xf32>
    %cst_9 = arith.constant dense<0.000000e+00> : vector<128xf32>
    %16 = vector.multi_reduction <add>, %15, %cst_9 [0] : vector<256x128xf32> to vector<128xf32>
    %17 = vector.shape_cast %16 : vector<128xf32> to vector<1x128xf32>
    %18 = tpu.iota {dimensions = array<i32: 0>} : vector<8x128xi32>
    %c0_i32 = arith.constant 0 : i32
    %19 = vector.broadcast %c0_i32 : i32 to vector<8x128xi32>
    %20 = arith.cmpi eq, %18, %19 : vector<8x128xi32>
    %21 = vector.shape_cast %14 : vector<1x128xf32> to vector<1x128xf32>
    %22 = vector.broadcast %21 : vector<1x128xf32> to vector<8x128xf32>
    %c1_i32 = arith.constant 1 : i32
    %23 = vector.broadcast %c1_i32 : i32 to vector<8x128xi32>
    %24 = arith.cmpi eq, %18, %23 : vector<8x128xi32>
    %25 = vector.shape_cast %17 : vector<1x128xf32> to vector<1x128xf32>
    %26 = vector.broadcast %25 : vector<1x128xf32> to vector<8x128xf32>
    %cst_10 = arith.constant 0.000000e+00 : f32
    %27 = vector.broadcast %cst_10 : f32 to vector<8x128xf32>
    %28 = arith.select %24, %26, %27 : vector<8x128xi1>, vector<8x128xf32>
    %29 = arith.select %20, %22, %28 : vector<8x128xi1>, vector<8x128xf32>
    %c0_11 = arith.constant 0 : index
    %c0_12 = arith.constant 0 : index
    %c0_13 = arith.constant 0 : index
    %30 = vector.load %arg5[%c0_11, %c0_12, %c0_13] : memref<1x8x128xf32, #tpu.memory_space<vmem>>, vector<1x8x128xf32>
    %31 = vector.shape_cast %30 : vector<1x8x128xf32> to vector<8x128xf32>
    %32 = vector.shape_cast %29 : vector<8x128xf32> to vector<1x8x128xf32>
    tpu.vector_store %arg5[%c0_11, %c0_12, %c0_13], %32 {strides = array<i32>} : memref<1x8x128xf32, #tpu.memory_space<vmem>>, vector<1x8x128xf32>,
    return
  }
  func.func @transform_0(%arg0: i32) -> (i32, i32) {
    %c0_i32 = arith.constant 0 : i32
    %c0_i32_0 = arith.constant 0 : i32
    return %arg0, %c0_i32 : i32, i32
  }
  func.func @transform_1(%arg0: i32) -> (i32, i32) {
    %c0_i32 = arith.constant 0 : i32
    %c0_i32_0 = arith.constant 0 : i32
    %c0_i32_1 = arith.constant 0 : i32
    return %c0_i32, %c0_i32_0 : i32, i32
  }
  func.func @transform_2(%arg0: i32) -> (i32, i32) {
    %c0_i32 = arith.constant 0 : i32
    %c0_i32_0 = arith.constant 0 : i32
    %c0_i32_1 = arith.constant 0 : i32
    return %c0_i32, %c0_i32_0 : i32, i32
  }
  func.func @transform_3(%arg0: i32) -> (i32, i32) {
    %c0_i32 = arith.constant 0 : i32
    %c0_i32_0 = arith.constant 0 : i32
    %c0_i32_1 = arith.constant 0 : i32
    return %c0_i32, %c0_i32_0 : i32, i32
  }
  func.func @transform_4(%arg0: i32) -> (i32, i32, i32) {
    %c0_i32 = arith.constant 0 : i32
    %c0_i32_0 = arith.constant 0 : i32
    %c0_i32_1 = arith.constant 0 : i32
    return %arg0, %c0_i32, %c0_i32_0 : i32, i32, i32
  }
}

module attributes {stable_mosaic.version = 11 : i64} {
  func.func @_bn1_conv2_stats_kernel(%arg0: i32, %arg1: memref<256x128xbf16, #tpu.memory_space<vmem>>, %arg2: memref<1x128xf32, #tpu.memory_space<vmem>>, %arg3: memref<1x128xf32, #tpu.memory_space<vmem>>, %arg4: memref<1152x128xbf16, #tpu.memory_space<vmem>>, %arg5: memref<256x2xf32, #tpu.memory_space<vmem>>, %arg6: memref<256x128xbf16, #tpu.memory_space<vmem>>, %arg7: memref<1x8x128xf32, #tpu.memory_space<vmem>>, %arg8: memref<320x128xbf16, #tpu.memory_space<vmem>>) attributes {dimension_semantics = [#tpu.dimension_semantics<parallel>], iteration_bounds = array<i64: 2>, scalar_prefetch = 0 : i64, scratch_operands = 1 : i64, tpu.core_type = #tpu.core_type<tc>, window_params = [{transform_indices = @transform_0, window_bounds = array<i64: 256, 128>}, {pipeline_mode = #tpu.pipeline_mode<synchronous>, transform_indices = @transform_1, window_bounds = array<i64: 1, 128>}, {pipeline_mode = #tpu.pipeline_mode<synchronous>, transform_indices = @transform_2, window_bounds = array<i64: 1, 128>}, {pipeline_mode = #tpu.pipeline_mode<synchronous>, transform_indices = @transform_3, window_bounds = array<i64: 1152, 128>}, {pipeline_mode = #tpu.pipeline_mode<synchronous>, transform_indices = @transform_4, window_bounds = array<i64: 256, 2>}, {transform_indices = @transform_5, window_bounds = array<i64: 256, 128>}, {transform_indices = @transform_6, window_bounds = array<i64: 1, 8, 128>}]} {
    %c0 = arith.constant 0 : index
    %c0_0 = arith.constant 0 : index
    %0 = vector.load %arg1[%c0, %c0_0] : memref<256x128xbf16, #tpu.memory_space<vmem>>, vector<256x128xbf16>
    %1 = arith.extf %0 : vector<256x128xbf16> to vector<256x128xf32>
    %c0_1 = arith.constant 0 : index
    %c0_2 = arith.constant 0 : index
    %2 = vector.load %arg2[%c0_1, %c0_2] : memref<1x128xf32, #tpu.memory_space<vmem>>, vector<1x128xf32>
    %3 = vector.broadcast %2 : vector<1x128xf32> to vector<256x128xf32>
    %4 = arith.mulf %1, %3 : vector<256x128xf32>
    %c0_3 = arith.constant 0 : index
    %c0_4 = arith.constant 0 : index
    %5 = vector.load %arg3[%c0_3, %c0_4] : memref<1x128xf32, #tpu.memory_space<vmem>>, vector<1x128xf32>
    %6 = vector.broadcast %5 : vector<1x128xf32> to vector<256x128xf32>
    %7 = arith.addf %4, %6 : vector<256x128xf32>
    %cst = arith.constant 0.000000e+00 : f32
    %8 = vector.broadcast %cst : f32 to vector<256x128xf32>
    %9 = arith.maximumf %7, %8 : vector<256x128xf32>
    %cst_5 = arith.constant 0.000000e+00 : bf16
    %10 = vector.broadcast %cst_5 : bf16 to vector<32x128xbf16>
    %c0_6 = arith.constant 0 : index
    %c0_7 = arith.constant 0 : index
    %11 = vector.load %arg8[%c0_6, %c0_7] : memref<320x128xbf16, #tpu.memory_space<vmem>>, vector<32x128xbf16>
    tpu.vector_store %arg8[%c0_6, %c0_7], %10 {strides = array<i32>} : memref<320x128xbf16, #tpu.memory_space<vmem>>, vector<32x128xbf16>,
    %cst_8 = arith.constant 0.000000e+00 : bf16
    %12 = vector.broadcast %cst_8 : bf16 to vector<32x128xbf16>
    %c288 = arith.constant 288 : index
    %c0_9 = arith.constant 0 : index
    %13 = vector.load %arg8[%c288, %c0_9] : memref<320x128xbf16, #tpu.memory_space<vmem>>, vector<32x128xbf16>
    tpu.vector_store %arg8[%c288, %c0_9], %12 {strides = array<i32>} : memref<320x128xbf16, #tpu.memory_space<vmem>>, vector<32x128xbf16>,
    %14 = arith.truncf %9 : vector<256x128xf32> to vector<256x128xbf16>
    %c32 = arith.constant 32 : index
    %c0_10 = arith.constant 0 : index
    %15 = vector.load %arg8[%c32, %c0_10] : memref<320x128xbf16, #tpu.memory_space<vmem>>, vector<256x128xbf16>
    tpu.vector_store %arg8[%c32, %c0_10], %14 {strides = array<i32>} : memref<320x128xbf16, #tpu.memory_space<vmem>>, vector<256x128xbf16>,
    %c0_11 = arith.constant 0 : index
    %c0_12 = arith.constant 0 : index
    %16 = vector.load %arg5[%c0_11, %c0_12] : memref<256x2xf32, #tpu.memory_space<vmem>>, vector<256x1xf32>
    %17 = arith.truncf %16 : vector<256x1xf32> to vector<256x1xbf16>
    %c0_13 = arith.constant 0 : index
    %c1 = arith.constant 1 : index
    %18 = vector.load %arg5[%c0_13, %c1] : memref<256x2xf32, #tpu.memory_space<vmem>>, vector<256x1xf32>
    %19 = arith.truncf %18 : vector<256x1xf32> to vector<256x1xbf16>
    %c15 = arith.constant 15 : index
    %c0_14 = arith.constant 0 : index
    %20 = vector.load %arg8[%c15, %c0_14] : memref<320x128xbf16, #tpu.memory_space<vmem>>, vector<256x128xbf16>
    %21 = vector.broadcast %17 : vector<256x1xbf16> to vector<256x128xbf16>
    %22 = arith.mulf %20, %21 : vector<256x128xbf16>
    %c0_15 = arith.constant 0 : index
    %c0_16 = arith.constant 0 : index
    %23 = vector.load %arg4[%c0_15, %c0_16] : memref<1152x128xbf16, #tpu.memory_space<vmem>>, vector<128x128xbf16>
    %cst_17 = arith.constant dense<0.000000e+00> : vector<256x128xf32>
    %24 = tpu.matmul %22, %23, %cst_17 {dimension_numbers = #tpu.dot_dimension_numbers<[1], [0], [0], [1], [0, 0, 1, 1], [], []>} : vector<256x128xbf16>, vector<128x128xbf16>, vector<256x128xf32> -> vector<256x128xf32>
    %c16 = arith.constant 16 : index
    %c0_18 = arith.constant 0 : index
    %25 = vector.load %arg8[%c16, %c0_18] : memref<320x128xbf16, #tpu.memory_space<vmem>>, vector<256x128xbf16>
    %c128 = arith.constant 128 : index
    %c0_19 = arith.constant 0 : index
    %26 = vector.load %arg4[%c128, %c0_19] : memref<1152x128xbf16, #tpu.memory_space<vmem>>, vector<128x128xbf16>
    %cst_20 = arith.constant dense<0.000000e+00> : vector<256x128xf32>
    %27 = tpu.matmul %25, %26, %cst_20 {dimension_numbers = #tpu.dot_dimension_numbers<[1], [0], [0], [1], [0, 0, 1, 1], [], []>} : vector<256x128xbf16>, vector<128x128xbf16>, vector<256x128xf32> -> vector<256x128xf32>
    %28 = arith.addf %24, %27 : vector<256x128xf32>
    %c17 = arith.constant 17 : index
    %c0_21 = arith.constant 0 : index
    %29 = vector.load %arg8[%c17, %c0_21] : memref<320x128xbf16, #tpu.memory_space<vmem>>, vector<256x128xbf16>
    %30 = vector.broadcast %19 : vector<256x1xbf16> to vector<256x128xbf16>
    %31 = arith.mulf %29, %30 : vector<256x128xbf16>
    %c256 = arith.constant 256 : index
    %c0_22 = arith.constant 0 : index
    %32 = vector.load %arg4[%c256, %c0_22] : memref<1152x128xbf16, #tpu.memory_space<vmem>>, vector<128x128xbf16>
    %cst_23 = arith.constant dense<0.000000e+00> : vector<256x128xf32>
    %33 = tpu.matmul %31, %32, %cst_23 {dimension_numbers = #tpu.dot_dimension_numbers<[1], [0], [0], [1], [0, 0, 1, 1], [], []>} : vector<256x128xbf16>, vector<128x128xbf16>, vector<256x128xf32> -> vector<256x128xf32>
    %34 = arith.addf %28, %33 : vector<256x128xf32>
    %c31 = arith.constant 31 : index
    %c0_24 = arith.constant 0 : index
    %35 = vector.load %arg8[%c31, %c0_24] : memref<320x128xbf16, #tpu.memory_space<vmem>>, vector<256x128xbf16>
    %36 = vector.broadcast %17 : vector<256x1xbf16> to vector<256x128xbf16>
    %37 = arith.mulf %35, %36 : vector<256x128xbf16>
    %c384 = arith.constant 384 : index
    %c0_25 = arith.constant 0 : index
    %38 = vector.load %arg4[%c384, %c0_25] : memref<1152x128xbf16, #tpu.memory_space<vmem>>, vector<128x128xbf16>
    %cst_26 = arith.constant dense<0.000000e+00> : vector<256x128xf32>
    %39 = tpu.matmul %37, %38, %cst_26 {dimension_numbers = #tpu.dot_dimension_numbers<[1], [0], [0], [1], [0, 0, 1, 1], [], []>} : vector<256x128xbf16>, vector<128x128xbf16>, vector<256x128xf32> -> vector<256x128xf32>
    %40 = arith.addf %34, %39 : vector<256x128xf32>
    %c32_27 = arith.constant 32 : index
    %c0_28 = arith.constant 0 : index
    %41 = vector.load %arg8[%c32_27, %c0_28] : memref<320x128xbf16, #tpu.memory_space<vmem>>, vector<256x128xbf16>
    %c512 = arith.constant 512 : index
    %c0_29 = arith.constant 0 : index
    %42 = vector.load %arg4[%c512, %c0_29] : memref<1152x128xbf16, #tpu.memory_space<vmem>>, vector<128x128xbf16>
    %cst_30 = arith.constant dense<0.000000e+00> : vector<256x128xf32>
    %43 = tpu.matmul %41, %42, %cst_30 {dimension_numbers = #tpu.dot_dimension_numbers<[1], [0], [0], [1], [0, 0, 1, 1], [], []>} : vector<256x128xbf16>, vector<128x128xbf16>, vector<256x128xf32> -> vector<256x128xf32>
    %44 = arith.addf %40, %43 : vector<256x128xf32>
    %c33 = arith.constant 33 : index
    %c0_31 = arith.constant 0 : index
    %45 = vector.load %arg8[%c33, %c0_31] : memref<320x128xbf16, #tpu.memory_space<vmem>>, vector<256x128xbf16>
    %46 = vector.broadcast %19 : vector<256x1xbf16> to vector<256x128xbf16>
    %47 = arith.mulf %45, %46 : vector<256x128xbf16>
    %c640 = arith.constant 640 : index
    %c0_32 = arith.constant 0 : index
    %48 = vector.load %arg4[%c640, %c0_32] : memref<1152x128xbf16, #tpu.memory_space<vmem>>, vector<128x128xbf16>
    %cst_33 = arith.constant dense<0.000000e+00> : vector<256x128xf32>
    %49 = tpu.matmul %47, %48, %cst_33 {dimension_numbers = #tpu.dot_dimension_numbers<[1], [0], [0], [1], [0, 0, 1, 1], [], []>} : vector<256x128xbf16>, vector<128x128xbf16>, vector<256x128xf32> -> vector<256x128xf32>
    %50 = arith.addf %44, %49 : vector<256x128xf32>
    %c47 = arith.constant 47 : index
    %c0_34 = arith.constant 0 : index
    %51 = vector.load %arg8[%c47, %c0_34] : memref<320x128xbf16, #tpu.memory_space<vmem>>, vector<256x128xbf16>
    %52 = vector.broadcast %17 : vector<256x1xbf16> to vector<256x128xbf16>
    %53 = arith.mulf %51, %52 : vector<256x128xbf16>
    %c768 = arith.constant 768 : index
    %c0_35 = arith.constant 0 : index
    %54 = vector.load %arg4[%c768, %c0_35] : memref<1152x128xbf16, #tpu.memory_space<vmem>>, vector<128x128xbf16>
    %cst_36 = arith.constant dense<0.000000e+00> : vector<256x128xf32>
    %55 = tpu.matmul %53, %54, %cst_36 {dimension_numbers = #tpu.dot_dimension_numbers<[1], [0], [0], [1], [0, 0, 1, 1], [], []>} : vector<256x128xbf16>, vector<128x128xbf16>, vector<256x128xf32> -> vector<256x128xf32>
    %56 = arith.addf %50, %55 : vector<256x128xf32>
    %c48 = arith.constant 48 : index
    %c0_37 = arith.constant 0 : index
    %57 = vector.load %arg8[%c48, %c0_37] : memref<320x128xbf16, #tpu.memory_space<vmem>>, vector<256x128xbf16>
    %c896 = arith.constant 896 : index
    %c0_38 = arith.constant 0 : index
    %58 = vector.load %arg4[%c896, %c0_38] : memref<1152x128xbf16, #tpu.memory_space<vmem>>, vector<128x128xbf16>
    %cst_39 = arith.constant dense<0.000000e+00> : vector<256x128xf32>
    %59 = tpu.matmul %57, %58, %cst_39 {dimension_numbers = #tpu.dot_dimension_numbers<[1], [0], [0], [1], [0, 0, 1, 1], [], []>} : vector<256x128xbf16>, vector<128x128xbf16>, vector<256x128xf32> -> vector<256x128xf32>
    %60 = arith.addf %56, %59 : vector<256x128xf32>
    %c49 = arith.constant 49 : index
    %c0_40 = arith.constant 0 : index
    %61 = vector.load %arg8[%c49, %c0_40] : memref<320x128xbf16, #tpu.memory_space<vmem>>, vector<256x128xbf16>
    %62 = vector.broadcast %19 : vector<256x1xbf16> to vector<256x128xbf16>
    %63 = arith.mulf %61, %62 : vector<256x128xbf16>
    %c1024 = arith.constant 1024 : index
    %c0_41 = arith.constant 0 : index
    %64 = vector.load %arg4[%c1024, %c0_41] : memref<1152x128xbf16, #tpu.memory_space<vmem>>, vector<128x128xbf16>
    %cst_42 = arith.constant dense<0.000000e+00> : vector<256x128xf32>
    %65 = tpu.matmul %63, %64, %cst_42 {dimension_numbers = #tpu.dot_dimension_numbers<[1], [0], [0], [1], [0, 0, 1, 1], [], []>} : vector<256x128xbf16>, vector<128x128xbf16>, vector<256x128xf32> -> vector<256x128xf32>
    %66 = arith.addf %60, %65 : vector<256x128xf32>
    %67 = arith.truncf %66 : vector<256x128xf32> to vector<256x128xbf16>
    %c0_43 = arith.constant 0 : index
    %c0_44 = arith.constant 0 : index
    %68 = vector.load %arg6[%c0_43, %c0_44] : memref<256x128xbf16, #tpu.memory_space<vmem>>, vector<256x128xbf16>
    tpu.vector_store %arg6[%c0_43, %c0_44], %67 {strides = array<i32>} : memref<256x128xbf16, #tpu.memory_space<vmem>>, vector<256x128xbf16>,
    %69 = arith.extf %67 : vector<256x128xbf16> to vector<256x128xf32>
    %cst_45 = arith.constant dense<0.000000e+00> : vector<128xf32>
    %70 = vector.multi_reduction <add>, %69, %cst_45 [0] : vector<256x128xf32> to vector<128xf32>
    %71 = vector.shape_cast %70 : vector<128xf32> to vector<1x128xf32>
    %72 = arith.mulf %69, %69 : vector<256x128xf32>
    %cst_46 = arith.constant dense<0.000000e+00> : vector<128xf32>
    %73 = vector.multi_reduction <add>, %72, %cst_46 [0] : vector<256x128xf32> to vector<128xf32>
    %74 = vector.shape_cast %73 : vector<128xf32> to vector<1x128xf32>
    %75 = tpu.iota {dimensions = array<i32: 0>} : vector<8x128xi32>
    %c0_i32 = arith.constant 0 : i32
    %76 = vector.broadcast %c0_i32 : i32 to vector<8x128xi32>
    %77 = arith.cmpi eq, %75, %76 : vector<8x128xi32>
    %78 = vector.shape_cast %71 : vector<1x128xf32> to vector<1x128xf32>
    %79 = vector.broadcast %78 : vector<1x128xf32> to vector<8x128xf32>
    %c1_i32 = arith.constant 1 : i32
    %80 = vector.broadcast %c1_i32 : i32 to vector<8x128xi32>
    %81 = arith.cmpi eq, %75, %80 : vector<8x128xi32>
    %82 = vector.shape_cast %74 : vector<1x128xf32> to vector<1x128xf32>
    %83 = vector.broadcast %82 : vector<1x128xf32> to vector<8x128xf32>
    %cst_47 = arith.constant 0.000000e+00 : f32
    %84 = vector.broadcast %cst_47 : f32 to vector<8x128xf32>
    %85 = arith.select %81, %83, %84 : vector<8x128xi1>, vector<8x128xf32>
    %86 = arith.select %77, %79, %85 : vector<8x128xi1>, vector<8x128xf32>
    %c0_48 = arith.constant 0 : index
    %c0_49 = arith.constant 0 : index
    %c0_50 = arith.constant 0 : index
    %87 = vector.load %arg7[%c0_48, %c0_49, %c0_50] : memref<1x8x128xf32, #tpu.memory_space<vmem>>, vector<1x8x128xf32>
    %88 = vector.shape_cast %87 : vector<1x8x128xf32> to vector<8x128xf32>
    %89 = vector.shape_cast %86 : vector<8x128xf32> to vector<1x8x128xf32>
    tpu.vector_store %arg7[%c0_48, %c0_49, %c0_50], %89 {strides = array<i32>} : memref<1x8x128xf32, #tpu.memory_space<vmem>>, vector<1x8x128xf32>,
    return
  }
  func.func @transform_0(%arg0: i32) -> (i32, i32) {
    %c0_i32 = arith.constant 0 : i32
    %c0_i32_0 = arith.constant 0 : i32
    return %arg0, %c0_i32 : i32, i32
  }
  func.func @transform_1(%arg0: i32) -> (i32, i32) {
    %c0_i32 = arith.constant 0 : i32
    %c0_i32_0 = arith.constant 0 : i32
    %c0_i32_1 = arith.constant 0 : i32
    return %c0_i32, %c0_i32_0 : i32, i32
  }
  func.func @transform_2(%arg0: i32) -> (i32, i32) {
    %c0_i32 = arith.constant 0 : i32
    %c0_i32_0 = arith.constant 0 : i32
    %c0_i32_1 = arith.constant 0 : i32
    return %c0_i32, %c0_i32_0 : i32, i32
  }
  func.func @transform_3(%arg0: i32) -> (i32, i32) {
    %c0_i32 = arith.constant 0 : i32
    %c0_i32_0 = arith.constant 0 : i32
    %c0_i32_1 = arith.constant 0 : i32
    return %c0_i32, %c0_i32_0 : i32, i32
  }
  func.func @transform_4(%arg0: i32) -> (i32, i32) {
    %c0_i32 = arith.constant 0 : i32
    %c0_i32_0 = arith.constant 0 : i32
    %c0_i32_1 = arith.constant 0 : i32
    return %c0_i32, %c0_i32_0 : i32, i32
  }
  func.func @transform_5(%arg0: i32) -> (i32, i32) {
    %c0_i32 = arith.constant 0 : i32
    %c0_i32_0 = arith.constant 0 : i32
    return %arg0, %c0_i32 : i32, i32
  }
  func.func @transform_6(%arg0: i32) -> (i32, i32, i32) {
    %c0_i32 = arith.constant 0 : i32
    %c0_i32_0 = arith.constant 0 : i32
    %c0_i32_1 = arith.constant 0 : i32
    return %arg0, %c0_i32, %c0_i32_0 : i32, i32, i32
  }
}

module attributes {stable_mosaic.version = 11 : i64} {
  func.func @_bn2_conv3_bn3_residual_kernel(%arg0: i32, %arg1: memref<256x128xbf16, #tpu.memory_space<vmem>>, %arg2: memref<1x128xf32, #tpu.memory_space<vmem>>, %arg3: memref<1x128xf32, #tpu.memory_space<vmem>>, %arg4: memref<128x128xbf16, #tpu.memory_space<vmem>>, %arg5: memref<1x128xf32, #tpu.memory_space<vmem>>, %arg6: memref<1x128xf32, #tpu.memory_space<vmem>>, %arg7: memref<256x128xf32, #tpu.memory_space<vmem>>, %arg8: memref<256x128xf32, #tpu.memory_space<vmem>>) attributes {dimension_semantics = [#tpu.dimension_semantics<parallel>], iteration_bounds = array<i64: 2>, scalar_prefetch = 0 : i64, scratch_operands = 0 : i64, tpu.core_type = #tpu.core_type<tc>, window_params = [{transform_indices = @transform_0, window_bounds = array<i64: 256, 128>}, {pipeline_mode = #tpu.pipeline_mode<synchronous>, transform_indices = @transform_1, window_bounds = array<i64: 1, 128>}, {pipeline_mode = #tpu.pipeline_mode<synchronous>, transform_indices = @transform_2, window_bounds = array<i64: 1, 128>}, {pipeline_mode = #tpu.pipeline_mode<synchronous>, transform_indices = @transform_3, window_bounds = array<i64: 128, 128>}, {pipeline_mode = #tpu.pipeline_mode<synchronous>, transform_indices = @transform_4, window_bounds = array<i64: 1, 128>}, {pipeline_mode = #tpu.pipeline_mode<synchronous>, transform_indices = @transform_5, window_bounds = array<i64: 1, 128>}, {transform_indices = @transform_6, window_bounds = array<i64: 256, 128>}, {transform_indices = @transform_7, window_bounds = array<i64: 256, 128>}]} {
    %c0 = arith.constant 0 : index
    %c0_0 = arith.constant 0 : index
    %0 = vector.load %arg1[%c0, %c0_0] : memref<256x128xbf16, #tpu.memory_space<vmem>>, vector<256x128xbf16>
    %1 = arith.extf %0 : vector<256x128xbf16> to vector<256x128xf32>
    %c0_1 = arith.constant 0 : index
    %c0_2 = arith.constant 0 : index
    %2 = vector.load %arg2[%c0_1, %c0_2] : memref<1x128xf32, #tpu.memory_space<vmem>>, vector<1x128xf32>
    %3 = vector.broadcast %2 : vector<1x128xf32> to vector<256x128xf32>
    %4 = arith.mulf %1, %3 : vector<256x128xf32>
    %c0_3 = arith.constant 0 : index
    %c0_4 = arith.constant 0 : index
    %5 = vector.load %arg3[%c0_3, %c0_4] : memref<1x128xf32, #tpu.memory_space<vmem>>, vector<1x128xf32>
    %6 = vector.broadcast %5 : vector<1x128xf32> to vector<256x128xf32>
    %7 = arith.addf %4, %6 : vector<256x128xf32>
    %cst = arith.constant 0.000000e+00 : f32
    %8 = vector.broadcast %cst : f32 to vector<256x128xf32>
    %9 = arith.maximumf %7, %8 : vector<256x128xf32>
    %10 = arith.truncf %9 : vector<256x128xf32> to vector<256x128xbf16>
    %c0_5 = arith.constant 0 : index
    %c0_6 = arith.constant 0 : index
    %11 = vector.load %arg4[%c0_5, %c0_6] : memref<128x128xbf16, #tpu.memory_space<vmem>>, vector<128x128xbf16>
    %cst_7 = arith.constant dense<0.000000e+00> : vector<256x128xf32>
    %12 = tpu.matmul %10, %11, %cst_7 {dimension_numbers = #tpu.dot_dimension_numbers<[1], [0], [0], [1], [0, 0, 1, 1], [], []>} : vector<256x128xbf16>, vector<128x128xbf16>, vector<256x128xf32> -> vector<256x128xf32>
    %c0_8 = arith.constant 0 : index
    %c0_9 = arith.constant 0 : index
    %13 = vector.load %arg5[%c0_8, %c0_9] : memref<1x128xf32, #tpu.memory_space<vmem>>, vector<1x128xf32>
    %14 = vector.broadcast %13 : vector<1x128xf32> to vector<256x128xf32>
    %15 = arith.mulf %12, %14 : vector<256x128xf32>
    %c0_10 = arith.constant 0 : index
    %c0_11 = arith.constant 0 : index
    %16 = vector.load %arg6[%c0_10, %c0_11] : memref<1x128xf32, #tpu.memory_space<vmem>>, vector<1x128xf32>
    %17 = vector.broadcast %16 : vector<1x128xf32> to vector<256x128xf32>
    %18 = arith.addf %15, %17 : vector<256x128xf32>
    %c0_12 = arith.constant 0 : index
    %c0_13 = arith.constant 0 : index
    %19 = vector.load %arg7[%c0_12, %c0_13] : memref<256x128xf32, #tpu.memory_space<vmem>>, vector<256x128xf32>
    %20 = arith.addf %18, %19 : vector<256x128xf32>
    %cst_14 = arith.constant 0.000000e+00 : f32
    %21 = vector.broadcast %cst_14 : f32 to vector<256x128xf32>
    %22 = arith.maximumf %20, %21 : vector<256x128xf32>
    %c0_15 = arith.constant 0 : index
    %c0_16 = arith.constant 0 : index
    %23 = vector.load %arg8[%c0_15, %c0_16] : memref<256x128xf32, #tpu.memory_space<vmem>>, vector<256x128xf32>
    tpu.vector_store %arg8[%c0_15, %c0_16], %22 {strides = array<i32>} : memref<256x128xf32, #tpu.memory_space<vmem>>, vector<256x128xf32>,
    return
  }
  func.func @transform_0(%arg0: i32) -> (i32, i32) {
    %c0_i32 = arith.constant 0 : i32
    %c0_i32_0 = arith.constant 0 : i32
    return %arg0, %c0_i32 : i32, i32
  }
  func.func @transform_1(%arg0: i32) -> (i32, i32) {
    %c0_i32 = arith.constant 0 : i32
    %c0_i32_0 = arith.constant 0 : i32
    %c0_i32_1 = arith.constant 0 : i32
    return %c0_i32, %c0_i32_0 : i32, i32
  }
  func.func @transform_2(%arg0: i32) -> (i32, i32) {
    %c0_i32 = arith.constant 0 : i32
    %c0_i32_0 = arith.constant 0 : i32
    %c0_i32_1 = arith.constant 0 : i32
    return %c0_i32, %c0_i32_0 : i32, i32
  }
  func.func @transform_3(%arg0: i32) -> (i32, i32) {
    %c0_i32 = arith.constant 0 : i32
    %c0_i32_0 = arith.constant 0 : i32
    %c0_i32_1 = arith.constant 0 : i32
    return %c0_i32, %c0_i32_0 : i32, i32
  }
  func.func @transform_4(%arg0: i32) -> (i32, i32) {
    %c0_i32 = arith.constant 0 : i32
    %c0_i32_0 = arith.constant 0 : i32
    %c0_i32_1 = arith.constant 0 : i32
    return %c0_i32, %c0_i32_0 : i32, i32
  }
  func.func @transform_5(%arg0: i32) -> (i32, i32) {
    %c0_i32 = arith.constant 0 : i32
    %c0_i32_0 = arith.constant 0 : i32
    %c0_i32_1 = arith.constant 0 : i32
    return %c0_i32, %c0_i32_0 : i32, i32
  }
  func.func @transform_6(%arg0: i32) -> (i32, i32) {
    %c0_i32 = arith.constant 0 : i32
    %c0_i32_0 = arith.constant 0 : i32
    return %arg0, %c0_i32 : i32, i32
  }
  func.func @transform_7(%arg0: i32) -> (i32, i32) {
    %c0_i32 = arith.constant 0 : i32
    %c0_i32_0 = arith.constant 0 : i32
    return %arg0, %c0_i32 : i32, i32
  }
}

</mosaic_0001>

<llo_original>
// kernel: bottleneck_forward.4
$region0: #{bottleneck_forward.4}
  #allocation0 [shape = 'u32[]', space=smem, size = 0x4, offset = 0x4, fixed_abs, tag = 'smem constant byte address 0x4 - core index']
  #allocation1 [shape = 'u32[144,128]{1,0:T(1,128)}', space=vmem, size = 0x12000, scoped, tag = 'internal scratch']
  %s0 = inlined_call_operand.vmem [shape: bf16[512,128], index: 0, kind: input, shape index: {}]
  %s1 = inlined_call_operand.vmem [shape: bf16[128,128], index: 1, kind: input, shape index: {}]
  %s2 = inlined_call_operand.vmem [shape: bf16[512,128], index: 2, kind: output, shape index: {0}]
  %s3 = inlined_call_operand.vmem [shape: f32[2,8,128], index: 3, kind: output, shape index: {1}]
  %4 = xla_tuple %s2, %s3
  %s5 = sld [smem:[#allocation0]]
  $region49: #{bottleneck_forward.4} parent=0
    _
  %s7 = ssub.s32 1, %s5
  %s8 = scalar_select 0, %s7, %s5
  loop: start=0, step=1, limit=4
  $region2: #{bottleneck_forward.4} parent=0 // loop_pre_header
    _
  $region3: #{bottleneck_forward.4} parent=0 // loop_header
    %s10 = sphi 0, %s14
    %p11 = scmp.ge.s32.totalorder %s10, 4
    %s20 = sphi 0, %s22
    %s23 = sphi 0, %s20
    %s24 = sphi 0, %s23
    %s40 = sphi 0, %s24
    %s44 = sphi 0, %s44
    %s46 = sphi 0, %s44
    %s47 = sphi 0, %s46
    %s61 = sphi 0, %s47
    %s67 = sphi 0, %s69
    %s70 = sphi 0, %s67
    %s71 = sphi 0, %s70
    %s87 = sphi 0, %s71
    %s93 = sphi 0, %s95
    %s96 = sphi 0, %s93
    %s97 = sphi 0, %s96
    %s113 = sphi 0, %s97
  $region4: #{bottleneck_forward.4} parent=0 // loop_header_branch
    %13 = sbr.rel (%p11) target = $region8
  $region5: #{bottleneck_forward.4} parent=0 // loop_body
    %s15 = ssub.s32 %s10, 1
    %s16 = ssub.s32 %s10, 2
    %s17 = sadd.s32 %s10, 1
    %s18 = ssub.s32 %s10, %s17
    %p19 = scmp.eq.s32.totalorder %s18, 0
    %s21 = sadd.s32 %s20, 1
    %s22 = scalar_select %p19, %s20, %s21
    %p25 = pneg %p19
    %p26 = scmp.eq.s32.totalorder %s10, 1
    %p27 = por %p25, %p26
    %p28 = scmp.ne.s32.totalorder %s20, %s23
    %p29 = scmp.eq.s32.totalorder %s10, 0
    %p30 = por %p28, %p29
    %p31 = scmp.ne.s32.totalorder %s20, %s23
    %p32 = scmp.eq.s32.totalorder %s15, 1
    %p33 = por %p31, %p32
    %p34 = scmp.ne.s32.totalorder %s23, %s24
    %p35 = scmp.eq.s32.totalorder %s15, 0
    %p36 = por %p34, %p35
    %p37 = scmp.ne.s32.totalorder %s23, %s24
    %p38 = scmp.eq.s32.totalorder %s16, 1
    %p39 = por %p37, %p38
    %p41 = scmp.ne.s32.totalorder %s24, %s40
    %p42 = scmp.eq.s32.totalorder %s16, 0
    %p43 = por %p41, %p42
    %s45 = sadd.s32 %s44, 1
    %p48 = scmp.eq.s32.totalorder %s10, 1
    %p49 = scmp.ne.s32.totalorder %s44, %s46
    %p50 = scmp.eq.s32.totalorder %s10, 0
    %p51 = por %p49, %p50
    %p52 = scmp.ne.s32.totalorder %s44, %s46
    %p53 = scmp.eq.s32.totalorder %s15, 1
    %p54 = por %p52, %p53
    %p55 = scmp.ne.s32.totalorder %s46, %s47
    %p56 = scmp.eq.s32.totalorder %s15, 0
    %p57 = por %p55, %p56
    %p58 = scmp.ne.s32.totalorder %s46, %s47
    %p59 = scmp.eq.s32.totalorder %s16, 1
    %p60 = por %p58, %p59
    %p62 = scmp.ne.s32.totalorder %s47, %s61
    %p63 = scmp.eq.s32.totalorder %s16, 0
    %p64 = por %p62, %p63
    %s65 = ssub.s32 %s10, %s17
    %p66 = scmp.eq.s32.totalorder %s65, 0
    %s68 = sadd.s32 %s67, 1
    %s69 = scalar_select %p66, %s67, %s68
    %p72 = pneg %p66
    %p73 = scmp.eq.s32.totalorder %s10, 1
    %p74 = por %p72, %p73
    %p75 = scmp.ne.s32.totalorder %s67, %s70
    %p76 = scmp.eq.s32.totalorder %s10, 0
    %p77 = por %p75, %p76
    %p78 = scmp.ne.s32.totalorder %s67, %s70
    %p79 = scmp.eq.s32.totalorder %s15, 1
    %p80 = por %p78, %p79
    %p81 = scmp.ne.s32.totalorder %s70, %s71
    %p82 = scmp.eq.s32.totalorder %s15, 0
    %p83 = por %p81, %p82
    %p84 = scmp.ne.s32.totalorder %s70, %s71
    %p85 = scmp.eq.s32.totalorder %s16, 1
    %p86 = por %p84, %p85
    %p88 = scmp.ne.s32.totalorder %s71, %s87
    %p89 = scmp.eq.s32.totalorder %s16, 0
    %p90 = por %p88, %p89
    %s91 = ssub.s32 %s10, %s17
    %p92 = scmp.eq.s32.totalorder %s91, 0
    %s94 = sadd.s32 %s93, 1
    %s95 = scalar_select %p92, %s93, %s94
    %p98 = pneg %p92
    %p99 = scmp.eq.s32.totalorder %s10, 1
    %p100 = por %p98, %p99
    %p101 = scmp.ne.s32.totalorder %s93, %s96
    %p102 = scmp.eq.s32.totalorder %s10, 0
    %p103 = por %p101, %p102
    %p104 = scmp.ne.s32.totalorder %s93, %s96
    %p105 = scmp.eq.s32.totalorder %s15, 1
    %p106 = por %p104, %p105
    %p107 = scmp.ne.s32.totalorder %s96, %s97
    %p108 = scmp.eq.s32.totalorder %s15, 0
    %p109 = por %p107, %p108
    %p110 = scmp.ne.s32.totalorder %s96, %s97
    %p111 = scmp.eq.s32.totalorder %s16, 1
    %p112 = por %p110, %p111
    %p114 = scmp.ne.s32.totalorder %s97, %s113
    %p115 = scmp.eq.s32.totalorder %s16, 0
    %p116 = por %p114, %p115
    %p117 = scmp.le.s32.totalorder 1, %s10
    %p118 = scmp.lt.s32.totalorder %s10, 3
    %p119 = pnand %p117, %p118
    %p120 = pneg %p119
    // Predicated region
    $region9: #{bottleneck_forward.4} parent=5 // pred_check
      _
    $region10: #{bottleneck_forward.4} parent=5 // pred_check_branch
      %122 = sbr.rel (%p119) target = $region12
    $region11: #{bottleneck_forward.4} parent=5 // pred_region
      %s123 = ssub.s32 %s10, 1
      // Predicated region
      $region13: #{bottleneck_forward.4} parent=11 // pred_check
        %p124 = pneg %p57
      $region14: #{bottleneck_forward.4} parent=11 // pred_check_branch
        %126 = sbr.rel (%p124) target = $region16
      $region15: #{bottleneck_forward.4} parent=11 // pred_region
        _
      $region16: #{bottleneck_forward.4} parent=11 // pred_fallthru
        _
    $region12: #{bottleneck_forward.4} parent=5 // pred_fallthru
      _
    %p127 = scmp.lt.s32.totalorder %s10, 2
    // Predicated region
    $region17: #{bottleneck_forward.4} parent=5 // pred_check
      %p128 = pneg %p127
    $region18: #{bottleneck_forward.4} parent=5 // pred_check_branch
      %130 = sbr.rel (%p128) target = $region20
    $region19: #{bottleneck_forward.4} parent=5 // pred_region
      // Predicated region
      $region21: #{bottleneck_forward.4} parent=19 // pred_check
        %p131 = pneg %p30
      $region22: #{bottleneck_forward.4} parent=19 // pred_check_branch
        %133 = sbr.rel (%p131) target = $region24
      $region23: #{bottleneck_forward.4} parent=19 // pred_region
        %s134 = smul.u32 32, %s10
        %p135 = scmp.lt.s32.totalorder %s134, 63
        %s136 = scalar_select %p135, %s134, 63
        %s137 = smul.addr %s136, 4
        %s138 = scalar_lea.vmem %s0, %s137
        %s139 = smul.u32 32, %s10
      $region24: #{bottleneck_forward.4} parent=19 // pred_fallthru
        _
    $region20: #{bottleneck_forward.4} parent=5 // pred_fallthru
      _
    %p140 = scmp.le.s32.totalorder 1, %s10
    %p141 = scmp.lt.s32.totalorder %s10, 3
    %p142 = pnand %p140, %p141
    %p143 = pneg %p142
    // Predicated region
    $region25: #{bottleneck_forward.4} parent=5 // pred_check
      _
    $region26: #{bottleneck_forward.4} parent=5 // pred_check_branch
      %145 = sbr.rel (%p142) target = $region28
    $region27: #{bottleneck_forward.4} parent=5 // pred_region
      %s146 = ssub.s32 %s10, 1
      %s147 = smul.u32 32, %s15
      %p148 = scmp.lt.s32.totalorder %s147, 63
      %s149 = scalar_select %p148, %s147, 63
      %s150 = smul.addr %s149, 4
      %s151 = scalar_lea.vmem %s0, %s150
      %p152 = pneg %p36
      %p153 = pneg %p33
      %p154 = pneg %p57
      %p155 = pneg %p54
      %p156 = pneg %p83
      %p157 = pneg %p80
      %s158 = smul.u32 32, %s15
      %p159 = scmp.lt.s32.totalorder %s158, 63
      %s160 = scalar_select %p159, %s158, 63
      %s161 = smul.addr %s160, 4
      %s162 = scalar_lea.vmem %s2, %s161
      %p163 = pneg %p109
      %p164 = pneg %p106
      %p165 = scmp.lt.s32.totalorder %s15, 1
      %s166 = scalar_select %p165, %s15, 1
      %s167 = smul.addr %s166, 8
      %s168 = scalar_lea.vmem %s3, %s167
      %s169 = smul.u32 32, %s15
      %p170 = scmp.lt.s32.totalorder %s169, 63
      %s171 = scalar_select %p170, %s169, 63
      %s172 = smul.addr %s171, 4
      %s173 = scalar_lea.vmem %s0, %s172
      %s174 = smul.u32 32, %s15
      %s175 = smul.u32 32, %s15
      %p176 = scmp.lt.s32.totalorder %s175, 63
      %s177 = scalar_select %p176, %s175, 63
      %s178 = smul.addr %s177, 4
      %s179 = scalar_lea.vmem %s2, %s178
      %s180 = smul.u32 32, %s15
      %p181 = scmp.lt.s32.totalorder %s15, 1
      %s182 = scalar_select %p181, %s15, 1
      %s183 = smul.addr %s182, 8
      %s184 = scalar_lea.vmem %s3, %s183
      %v186 = vld [vmem:[%s173] sm:$0xf]
      %v187 = vld [vmem:[%s173 + $0x4] sm:$0xf]
      %v188 = vld [vmem:[%s173 + $0x8] sm:$0xf]
      %v189 = vld [vmem:[%s173 + $0xc] sm:$0xf]
      %v190 = vld [vmem:[%s173 + $0x10] sm:$0xf]
      %v191 = vld [vmem:[%s173 + $0x14] sm:$0xf]
      %v192 = vld [vmem:[%s173 + $0x18] sm:$0xf]
      %v193 = vld [vmem:[%s173 + $0x1c] sm:$0xf]
      %v194 = vld [vmem:[%s173 + $0x20] sm:$0xf]
      %v195 = vld [vmem:[%s173 + $0x24] sm:$0xf]
      %v196 = vld [vmem:[%s173 + $0x28] sm:$0xf]
      %v197 = vld [vmem:[%s173 + $0x2c] sm:$0xf]
      %v198 = vld [vmem:[%s173 + $0x30] sm:$0xf]
      %v199 = vld [vmem:[%s173 + $0x34] sm:$0xf]
      %v200 = vld [vmem:[%s173 + $0x38] sm:$0xf]
      %v201 = vld [vmem:[%s173 + $0x3c] sm:$0xf]
      %v202 = vld [vmem:[%s173 + $0x40] sm:$0xf]
      %v203 = vld [vmem:[%s173 + $0x44] sm:$0xf]
      %v204 = vld [vmem:[%s173 + $0x48] sm:$0xf]
      %v205 = vld [vmem:[%s173 + $0x4c] sm:$0xf]
      %v206 = vld [vmem:[%s173 + $0x50] sm:$0xf]
      %v207 = vld [vmem:[%s173 + $0x54] sm:$0xf]
      %v208 = vld [vmem:[%s173 + $0x58] sm:$0xf]
      %v209 = vld [vmem:[%s173 + $0x5c] sm:$0xf]
      %v210 = vld [vmem:[%s173 + $0x60] sm:$0xf]
      %v211 = vld [vmem:[%s173 + $0x64] sm:$0xf]
      %v212 = vld [vmem:[%s173 + $0x68] sm:$0xf]
      %v213 = vld [vmem:[%s173 + $0x6c] sm:$0xf]
      %v214 = vld [vmem:[%s173 + $0x70] sm:$0xf]
      %v215 = vld [vmem:[%s173 + $0x74] sm:$0xf]
      %v216 = vld [vmem:[%s173 + $0x78] sm:$0xf]
      %v217 = vld [vmem:[%s173 + $0x7c] sm:$0xf]
      %v218 = vld [vmem:[%s1] sm:$0xf]
      %v219 = vld [vmem:[%s1 + $0x4] sm:$0xf]
      %v220 = vld [vmem:[%s1 + $0x8] sm:$0xf]
      %v221 = vld [vmem:[%s1 + $0xc] sm:$0xf]
      %v222 = vld [vmem:[%s1 + $0x10] sm:$0xf]
      %v223 = vld [vmem:[%s1 + $0x14] sm:$0xf]
      %v224 = vld [vmem:[%s1 + $0x18] sm:$0xf]
      %v225 = vld [vmem:[%s1 + $0x1c] sm:$0xf]
      %v226 = vld [vmem:[%s1 + $0x20] sm:$0xf]
      %v227 = vld [vmem:[%s1 + $0x24] sm:$0xf]
      %v228 = vld [vmem:[%s1 + $0x28] sm:$0xf]
      %v229 = vld [vmem:[%s1 + $0x2c] sm:$0xf]
      %v230 = vld [vmem:[%s1 + $0x30] sm:$0xf]
      %v231 = vld [vmem:[%s1 + $0x34] sm:$0xf]
      %v232 = vld [vmem:[%s1 + $0x38] sm:$0xf]
      %v233 = vld [vmem:[%s1 + $0x3c] sm:$0xf]
      %v266 = vunpack.c.l.b16 %v186
      %v267 = vunpack.c.l.b16 %v187
      %v268 = vunpack.c.l.b16 %v188
      %v269 = vunpack.c.l.b16 %v189
      %v270 = vunpack.c.l.b16 %v190
      %v271 = vunpack.c.l.b16 %v191
      %v272 = vunpack.c.l.b16 %v192
      %v273 = vunpack.c.l.b16 %v193
      %v274 = vunpack.c.l.b16 %v194
      %v275 = vunpack.c.l.b16 %v195
      %v276 = vunpack.c.l.b16 %v196
      %v277 = vunpack.c.l.b16 %v197
      %v278 = vunpack.c.l.b16 %v198
      %v279 = vunpack.c.l.b16 %v199
      %v280 = vunpack.c.l.b16 %v200
      %v281 = vunpack.c.l.b16 %v201
      %v282 = vunpack.c.l.b16 %v202
      %v283 = vunpack.c.l.b16 %v203
      %v284 = vunpack.c.l.b16 %v204
      %v285 = vunpack.c.l.b16 %v205
      %v286 = vunpack.c.l.b16 %v206
      %v287 = vunpack.c.l.b16 %v207
      %v288 = vunpack.c.l.b16 %v208
      %v289 = vunpack.c.l.b16 %v209
      %v290 = vunpack.c.l.b16 %v210
      %v291 = vunpack.c.l.b16 %v211
      %v292 = vunpack.c.l.b16 %v212
      %v293 = vunpack.c.l.b16 %v213
      %v294 = vunpack.c.l.b16 %v214
      %v295 = vunpack.c.l.b16 %v215
      %v296 = vunpack.c.l.b16 %v216
      %v297 = vunpack.c.l.b16 %v217
      %v298 = vpack.c.b16 %v267, %v266
      %v299 = vpack.c.b16 %v269, %v268
      %v300 = vpack.c.b16 %v271, %v270
      %v301 = vpack.c.b16 %v273, %v272
      %v302 = vpack.c.b16 %v275, %v274
      %v303 = vpack.c.b16 %v277, %v276
      %v304 = vpack.c.b16 %v279, %v278
      %v305 = vpack.c.b16 %v281, %v280
      %v306 = vpack.c.b16 %v283, %v282
      %v307 = vpack.c.b16 %v285, %v284
      %v308 = vpack.c.b16 %v287, %v286
      %v309 = vpack.c.b16 %v289, %v288
      %v310 = vpack.c.b16 %v291, %v290
      %v311 = vpack.c.b16 %v293, %v292
      %v312 = vpack.c.b16 %v295, %v294
      %v313 = vpack.c.b16 %v297, %v296
      %v346 = vunpack.c.l.b16 %v218
      %v347 = vunpack.c.l.b16 %v219
      %v348 = vunpack.c.l.b16 %v220
      %v349 = vunpack.c.l.b16 %v221
      %v350 = vunpack.c.l.b16 %v222
      %v351 = vunpack.c.l.b16 %v223
      %v352 = vunpack.c.l.b16 %v224
      %v353 = vunpack.c.l.b16 %v225
      %v354 = vunpack.c.l.b16 %v226
      %v355 = vunpack.c.l.b16 %v227
      %v356 = vunpack.c.l.b16 %v228
      %v357 = vunpack.c.l.b16 %v229
      %v358 = vunpack.c.l.b16 %v230
      %v359 = vunpack.c.l.b16 %v231
      %v360 = vunpack.c.l.b16 %v232
      %v361 = vunpack.c.l.b16 %v233
      %v362 = vpack.c.b16 %v347, %v346
      %v363 = vpack.c.b16 %v349, %v348
      %v364 = vpack.c.b16 %v351, %v350
      %v365 = vpack.c.b16 %v353, %v352
      %v366 = vpack.c.b16 %v355, %v354
      %v367 = vpack.c.b16 %v357, %v356
      %v368 = vpack.c.b16 %v359, %v358
      %v369 = vpack.c.b16 %v361, %v360
      %378 = vmatprep.subr.bf16.mxu0 0
      %379 = vmatpush1.bf16.msra.mxu0 %v362
      %380 = vmatprep.subr.bf16.mxu0 0
      %381 = vmatpush1.bf16.msra.mxu0 %v363
      %382 = vmatprep.subr.bf16.mxu0 0
      %383 = vmatpush1.bf16.msra.mxu0 %v364
      %384 = vmatprep.subr.bf16.mxu0 0
      %385 = vmatpush1.bf16.msra.mxu0 %v365
      %386 = vmatprep.subr.bf16.mxu0 0
      %387 = vmatpush1.bf16.msra.mxu0 %v366
      %388 = vmatprep.subr.bf16.mxu0 0
      %389 = vmatpush1.bf16.msra.mxu0 %v367
      %390 = vmatprep.subr.bf16.mxu0 0
      %391 = vmatpush1.bf16.msra.mxu0 %v368
      %392 = vmatprep.subr.bf16.mxu0 0
      %393 = vmatpush1.bf16.msra.mxu0 %v369
      %394 = vmatprep.subr.bf16.mxu0 0
      %395 = vmatpush1.bf16.msra.mxu0 0
      %396 = vmatprep.subr.bf16.mxu0 0
      %397 = vmatpush1.bf16.msra.mxu0 0
      %398 = vmatprep.subr.bf16.mxu0 0
      %399 = vmatpush1.bf16.msra.mxu0 0
      %400 = vmatprep.subr.bf16.mxu0 0
      %401 = vmatpush1.bf16.msra.mxu0 0
      %402 = vmatprep.subr.bf16.mxu0 0
      %403 = vmatpush1.bf16.msra.mxu0 0
      %404 = vmatprep.subr.bf16.mxu0 0
      %405 = vmatpush1.bf16.msra.mxu0 0
      %406 = vmatprep.subr.bf16.mxu0 0
      %407 = vmatpush1.bf16.msra.mxu0 0
      %408 = vmatprep.subr.bf16.mxu0 0
      %409 = vmatpush1.bf16.msra.mxu0 0
      %410 = vmatprep.mubr.bf16.mxu0 0
      %411 = vmatmul.mubr.bf16.gmra.mrb[0].mxu0 %v298
      %v412 = vpop.f32.mrb[0].mxu0
      %v413 = vadd.f32 0.0, %v412
      %v414 = vpop.f32.mrb[0].mxu0
      %v415 = vpop.f32.mrb[0].mxu0
      %v416 = vadd.f32 0.0, %v415
      %v417 = vpop.f32.mrb[0].mxu0
      %418 = vmatprep.mubr.bf16.mxu0 0
      %419 = vmatmul.mubr.bf16.gmra.mrb[0].mxu0 %v299
      %v420 = vpop.f32.mrb[0].mxu0
      %v421 = vadd.f32 0.0, %v420
      %v422 = vpop.f32.mrb[0].mxu0
      %v423 = vpop.f32.mrb[0].mxu0
      %v424 = vadd.f32 0.0, %v423
      %v425 = vpop.f32.mrb[0].mxu0
      %426 = vmatprep.mubr.bf16.mxu0 0
      %427 = vmatmul.mubr.bf16.gmra.mrb[0].mxu0 %v300
      %v428 = vpop.f32.mrb[0].mxu0
      %v429 = vadd.f32 0.0, %v428
      %v430 = vpop.f32.mrb[0].mxu0
      %v431 = vpop.f32.mrb[0].mxu0
      %v432 = vadd.f32 0.0, %v431
      %v433 = vpop.f32.mrb[0].mxu0
      %434 = vmatprep.mubr.bf16.mxu0 0
      %435 = vmatmul.mubr.bf16.gmra.mrb[0].mxu0 %v301
      %v436 = vpop.f32.mrb[0].mxu0
      %v437 = vadd.f32 0.0, %v436
      %v438 = vpop.f32.mrb[0].mxu0
      %v439 = vpop.f32.mrb[0].mxu0
      %v440 = vadd.f32 0.0, %v439
      %v441 = vpop.f32.mrb[0].mxu0
      %442 = vmatprep.mubr.bf16.mxu0 0
      %443 = vmatmul.mubr.bf16.gmra.mrb[0].mxu0 %v302
      %v444 = vpop.f32.mrb[0].mxu0
      %v445 = vadd.f32 0.0, %v444
      %v446 = vpop.f32.mrb[0].mxu0
      %v447 = vpop.f32.mrb[0].mxu0
      %v448 = vadd.f32 0.0, %v447
      %v449 = vpop.f32.mrb[0].mxu0
      %450 = vmatprep.mubr.bf16.mxu0 0
      %451 = vmatmul.mubr.bf16.gmra.mrb[0].mxu0 %v303
      %v452 = vpop.f32.mrb[0].mxu0
      %v453 = vadd.f32 0.0, %v452
      %v454 = vpop.f32.mrb[0].mxu0
      %v455 = vpop.f32.mrb[0].mxu0
      %v456 = vadd.f32 0.0, %v455
      %v457 = vpop.f32.mrb[0].mxu0
      %458 = vmatprep.mubr.bf16.mxu0 0
      %459 = vmatmul.mubr.bf16.gmra.mrb[0].mxu0 %v304
      %v460 = vpop.f32.mrb[0].mxu0
      %v461 = vadd.f32 0.0, %v460
      %v462 = vpop.f32.mrb[0].mxu0
      %v463 = vpop.f32.mrb[0].mxu0
      %v464 = vadd.f32 0.0, %v463
      %v465 = vpop.f32.mrb[0].mxu0
      %466 = vmatprep.mubr.bf16.mxu0 0
      %467 = vmatmul.mubr.bf16.gmra.mrb[0].mxu0 %v305
      %v468 = vpop.f32.mrb[0].mxu0
      %v469 = vadd.f32 0.0, %v468
      %v470 = vpop.f32.mrb[0].mxu0
      %v471 = vpop.f32.mrb[0].mxu0
      %v472 = vadd.f32 0.0, %v471
      %v473 = vpop.f32.mrb[0].mxu0
      %474 = vmatprep.mubr.bf16.mxu0 0
      %475 = vmatmul.mubr.bf16.gmra.mrb[0].mxu0 %v306
      %v476 = vpop.f32.mrb[0].mxu0
      %v477 = vadd.f32 0.0, %v476
      %v478 = vpop.f32.mrb[0].mxu0
      %v479 = vpop.f32.mrb[0].mxu0
      %v480 = vadd.f32 0.0, %v479
      %v481 = vpop.f32.mrb[0].mxu0
      %482 = vmatprep.mubr.bf16.mxu0 0
      %483 = vmatmul.mubr.bf16.gmra.mrb[0].mxu0 %v307
      %v484 = vpop.f32.mrb[0].mxu0
      %v485 = vadd.f32 0.0, %v484
      %v486 = vpop.f32.mrb[0].mxu0
      %v487 = vpop.f32.mrb[0].mxu0
      %v488 = vadd.f32 0.0, %v487
      %v489 = vpop.f32.mrb[0].mxu0
      %490 = vmatprep.mubr.bf16.mxu0 0
      %491 = vmatmul.mubr.bf16.gmra.mrb[0].mxu0 %v308
      %v492 = vpop.f32.mrb[0].mxu0
      %v493 = vadd.f32 0.0, %v492
      %v494 = vpop.f32.mrb[0].mxu0
      %v495 = vpop.f32.mrb[0].mxu0
      %v496 = vadd.f32 0.0, %v495
      %v497 = vpop.f32.mrb[0].mxu0
      %498 = vmatprep.mubr.bf16.mxu0 0
      %499 = vmatmul.mubr.bf16.gmra.mrb[0].mxu0 %v309
      %v500 = vpop.f32.mrb[0].mxu0
      %v501 = vadd.f32 0.0, %v500
      %v502 = vpop.f32.mrb[0].mxu0
      %v503 = vpop.f32.mrb[0].mxu0
      %v504 = vadd.f32 0.0, %v503
      %v505 = vpop.f32.mrb[0].mxu0
      %506 = vmatprep.mubr.bf16.mxu0 0
      %507 = vmatmul.mubr.bf16.gmra.mrb[0].mxu0 %v310
      %v508 = vpop.f32.mrb[0].mxu0
      %v509 = vadd.f32 0.0, %v508
      %v510 = vpop.f32.mrb[0].mxu0
      %v511 = vpop.f32.mrb[0].mxu0
      %v512 = vadd.f32 0.0, %v511
      %v513 = vpop.f32.mrb[0].mxu0
      %514 = vmatprep.mubr.bf16.mxu0 0
      %515 = vmatmul.mubr.bf16.gmra.mrb[0].mxu0 %v311
      %v516 = vpop.f32.mrb[0].mxu0
      %v517 = vadd.f32 0.0, %v516
      %v518 = vpop.f32.mrb[0].mxu0
      %v519 = vpop.f32.mrb[0].mxu0
      %v520 = vadd.f32 0.0, %v519
      %v521 = vpop.f32.mrb[0].mxu0
      %522 = vmatprep.mubr.bf16.mxu0 0
      %523 = vmatmul.mubr.bf16.gmra.mrb[0].mxu0 %v312
      %v524 = vpop.f32.mrb[0].mxu0
      %v525 = vadd.f32 0.0, %v524
      %v526 = vpop.f32.mrb[0].mxu0
      %v527 = vpop.f32.mrb[0].mxu0
      %v528 = vadd.f32 0.0, %v527
      %v529 = vpop.f32.mrb[0].mxu0
      %530 = vmatprep.mubr.bf16.mxu0 0
      %531 = vmatmul.mubr.bf16.gmra.mrb[0].mxu0 %v313
      %v532 = vpop.f32.mrb[0].mxu0
      %v533 = vadd.f32 0.0, %v532
      %v534 = vpop.f32.mrb[0].mxu0
      %v535 = vpop.f32.mrb[0].mxu0
      %v536 = vadd.f32 0.0, %v535
      %v537 = vpop.f32.mrb[0].mxu0
      %538 = vdwg.mxu0
      %v539 = vpack.c.bf16 %v416, %v413
      %v540 = vpack.c.bf16 %v424, %v421
      %v541 = vpack.c.bf16 %v432, %v429
      %v542 = vpack.c.bf16 %v440, %v437
      %v543 = vpack.c.bf16 %v448, %v445
      %v544 = vpack.c.bf16 %v456, %v453
      %v545 = vpack.c.bf16 %v464, %v461
      %v546 = vpack.c.bf16 %v472, %v469
      %v547 = vpack.c.bf16 %v480, %v477
      %v548 = vpack.c.bf16 %v488, %v485
      %v549 = vpack.c.bf16 %v496, %v493
      %v550 = vpack.c.bf16 %v504, %v501
      %v551 = vpack.c.bf16 %v512, %v509
      %v552 = vpack.c.bf16 %v520, %v517
      %v553 = vpack.c.bf16 %v528, %v525
      %v554 = vpack.c.bf16 %v536, %v533
      %v571 = vunpack.c.l.b16 %v539
      %v572 = vunpack.c.h.b16 %v539
      %v573 = vunpack.c.l.b16 %v540
      %v574 = vunpack.c.h.b16 %v540
      %v575 = vunpack.c.l.b16 %v541
      %v576 = vunpack.c.h.b16 %v541
      %v577 = vunpack.c.l.b16 %v542
      %v578 = vunpack.c.h.b16 %v542
      %v579 = vunpack.c.l.b16 %v543
      %v580 = vunpack.c.h.b16 %v543
      %v581 = vunpack.c.l.b16 %v544
      %v582 = vunpack.c.h.b16 %v544
      %v583 = vunpack.c.l.b16 %v545
      %v584 = vunpack.c.h.b16 %v545
      %v585 = vunpack.c.l.b16 %v546
      %v586 = vunpack.c.h.b16 %v546
      %v587 = vunpack.c.l.b16 %v547
      %v588 = vunpack.c.h.b16 %v547
      %v589 = vunpack.c.l.b16 %v548
      %v590 = vunpack.c.h.b16 %v548
      %v591 = vunpack.c.l.b16 %v549
      %v592 = vunpack.c.h.b16 %v549
      %v593 = vunpack.c.l.b16 %v550
      %v594 = vunpack.c.h.b16 %v550
      %v595 = vunpack.c.l.b16 %v551
      %v596 = vunpack.c.h.b16 %v551
      %v597 = vunpack.c.l.b16 %v552
      %v598 = vunpack.c.h.b16 %v552
      %v599 = vunpack.c.l.b16 %v553
      %v600 = vunpack.c.h.b16 %v553
      %v601 = vunpack.c.l.b16 %v554
      %v602 = vunpack.c.h.b16 %v554
      %v603 = vpack.c.b16 %v571, %v571
      %v604 = vpack.c.b16 %v572, %v572
      %v605 = vpack.c.b16 %v573, %v573
      %v606 = vpack.c.b16 %v574, %v574
      %v607 = vpack.c.b16 %v575, %v575
      %v608 = vpack.c.b16 %v576, %v576
      %v609 = vpack.c.b16 %v577, %v577
      %v610 = vpack.c.b16 %v578, %v578
      %v611 = vpack.c.b16 %v579, %v579
      %v612 = vpack.c.b16 %v580, %v580
      %v613 = vpack.c.b16 %v581, %v581
      %v614 = vpack.c.b16 %v582, %v582
      %v615 = vpack.c.b16 %v583, %v583
      %v616 = vpack.c.b16 %v584, %v584
      %v617 = vpack.c.b16 %v585, %v585
      %v618 = vpack.c.b16 %v586, %v586
      %v619 = vpack.c.b16 %v587, %v587
      %v620 = vpack.c.b16 %v588, %v588
      %v621 = vpack.c.b16 %v589, %v589
      %v622 = vpack.c.b16 %v590, %v590
      %v623 = vpack.c.b16 %v591, %v591
      %v624 = vpack.c.b16 %v592, %v592
      %v625 = vpack.c.b16 %v593, %v593
      %v626 = vpack.c.b16 %v594, %v594
      %v627 = vpack.c.b16 %v595, %v595
      %v628 = vpack.c.b16 %v596, %v596
      %v629 = vpack.c.b16 %v597, %v597
      %v630 = vpack.c.b16 %v598, %v598
      %v631 = vpack.c.b16 %v599, %v599
      %v632 = vpack.c.b16 %v600, %v600
      %v633 = vpack.c.b16 %v601, %v601
      %v634 = vpack.c.b16 %v602, %v602
      %667 = vst [vmem:[%s179] sm:$0xf] %v603
      %668 = vst [vmem:[%s179 + $0x4] sm:$0xf] %v604
      %669 = vst [vmem:[%s179 + $0x8] sm:$0xf] %v605
      %670 = vst [vmem:[%s179 + $0xc] sm:$0xf] %v606
      %671 = vst [vmem:[%s179 + $0x10] sm:$0xf] %v607
      %672 = vst [vmem:[%s179 + $0x14] sm:$0xf] %v608
      %673 = vst [vmem:[%s179 + $0x18] sm:$0xf] %v609
      %674 = vst [vmem:[%s179 + $0x1c] sm:$0xf] %v610
      %675 = vst [vmem:[%s179 + $0x20] sm:$0xf] %v611
      %676 = vst [vmem:[%s179 + $0x24] sm:$0xf] %v612
      %677 = vst [vmem:[%s179 + $0x28] sm:$0xf] %v613
      %678 = vst [vmem:[%s179 + $0x2c] sm:$0xf] %v614
      %679 = vst [vmem:[%s179 + $0x30] sm:$0xf] %v615
      %680 = vst [vmem:[%s179 + $0x34] sm:$0xf] %v616
      %681 = vst [vmem:[%s179 + $0x38] sm:$0xf] %v617
      %682 = vst [vmem:[%s179 + $0x3c] sm:$0xf] %v618
      %683 = vst [vmem:[%s179 + $0x40] sm:$0xf] %v619
      %684 = vst [vmem:[%s179 + $0x44] sm:$0xf] %v620
      %685 = vst [vmem:[%s179 + $0x48] sm:$0xf] %v621
      %686 = vst [vmem:[%s179 + $0x4c] sm:$0xf] %v622
      %687 = vst [vmem:[%s179 + $0x50] sm:$0xf] %v623
      %688 = vst [vmem:[%s179 + $0x54] sm:$0xf] %v624
      %689 = vst [vmem:[%s179 + $0x58] sm:$0xf] %v625
      %690 = vst [vmem:[%s179 + $0x5c] sm:$0xf] %v626
      %691 = vst [vmem:[%s179 + $0x60] sm:$0xf] %v627
      %692 = vst [vmem:[%s179 + $0x64] sm:$0xf] %v628
      %693 = vst [vmem:[%s179 + $0x68] sm:$0xf] %v629
      %694 = vst [vmem:[%s179 + $0x6c] sm:$0xf] %v630
      %695 = vst [vmem:[%s179 + $0x70] sm:$0xf] %v631
      %696 = vst [vmem:[%s179 + $0x74] sm:$0xf] %v632
      %697 = vst [vmem:[%s179 + $0x78] sm:$0xf] %v633
      %698 = vst [vmem:[%s179 + $0x7c] sm:$0xf] %v634
      %v699 = vunpack.c.l.bf16 %v539
      %v700 = vunpack.c.h.bf16 %v539
      %v701 = vunpack.c.l.bf16 %v540
      %v702 = vunpack.c.h.bf16 %v540
      %v703 = vunpack.c.l.bf16 %v541
      %v704 = vunpack.c.h.bf16 %v541
      %v705 = vunpack.c.l.bf16 %v542
      %v706 = vunpack.c.h.bf16 %v542
      %v707 = vunpack.c.l.bf16 %v543
      %v708 = vunpack.c.h.bf16 %v543
      %v709 = vunpack.c.l.bf16 %v544
      %v710 = vunpack.c.h.bf16 %v544
      %v711 = vunpack.c.l.bf16 %v545
      %v712 = vunpack.c.h.bf16 %v545
      %v713 = vunpack.c.l.bf16 %v546
      %v714 = vunpack.c.h.bf16 %v546
      %v715 = vunpack.c.l.bf16 %v547
      %v716 = vunpack.c.h.bf16 %v547
      %v717 = vunpack.c.l.bf16 %v548
      %v718 = vunpack.c.h.bf16 %v548
      %v719 = vunpack.c.l.bf16 %v549
      %v720 = vunpack.c.h.bf16 %v549
      %v721 = vunpack.c.l.bf16 %v550
      %v722 = vunpack.c.h.bf16 %v550
      %v723 = vunpack.c.l.bf16 %v551
      %v724 = vunpack.c.h.bf16 %v551
      %v725 = vunpack.c.l.bf16 %v552
      %v726 = vunpack.c.h.bf16 %v552
      %v727 = vunpack.c.l.bf16 %v553
      %v728 = vunpack.c.h.bf16 %v553
      %v729 = vunpack.c.l.bf16 %v554
      %v730 = vunpack.c.h.bf16 %v554
      %v731 = vadd.f32 %v699, %v700
      %v732 = vadd.f32 %v731, %v701
      %v733 = vadd.f32 %v732, %v702
      %v734 = vadd.f32 %v733, %v703
      %v735 = vadd.f32 %v734, %v704
      %v736 = vadd.f32 %v735, %v705
      %v737 = vadd.f32 %v736, %v706
      %v738 = vadd.f32 %v737, %v707
      %v739 = vadd.f32 %v738, %v708
      %v740 = vadd.f32 %v739, %v709
      %v741 = vadd.f32 %v740, %v710
      %v742 = vadd.f32 %v741, %v711
      %v743 = vadd.f32 %v742, %v712
      %v744 = vadd.f32 %v743, %v713
      %v745 = vadd.f32 %v744, %v714
      %v746 = vadd.f32 %v745, %v715
      %v747 = vadd.f32 %v746, %v716
      %v748 = vadd.f32 %v747, %v717
      %v749 = vadd.f32 %v748, %v718
      %v750 = vadd.f32 %v749, %v719
      %v751 = vadd.f32 %v750, %v720
      %v752 = vadd.f32 %v751, %v721
      %v753 = vadd.f32 %v752, %v722
      %v754 = vadd.f32 %v753, %v723
      %v755 = vadd.f32 %v754, %v724
      %v756 = vadd.f32 %v755, %v725
      %v757 = vadd.f32 %v756, %v726
      %v758 = vadd.f32 %v757, %v727
      %v759 = vadd.f32 %v758, %v728
      %v760 = vadd.f32 %v759, %v729
      %v761 = vadd.f32 %v760, %v730
      %v762 = vrot.slane %v761, 4
      %v763 = vadd.f32 %v761, %v762
      %v764 = vrot.slane %v763, 2
      %v765 = vadd.f32 %v763, %v764
      %v766 = vrot.slane %v765, 1
      %v767 = vadd.f32 %v765, %v766
      %v768 = vmul.f32 %v699, %v699
      %v769 = vmul.f32 %v700, %v700
      %v770 = vmul.f32 %v701, %v701
      %v771 = vmul.f32 %v702, %v702
      %v772 = vmul.f32 %v703, %v703
      %v773 = vmul.f32 %v704, %v704
      %v774 = vmul.f32 %v705, %v705
      %v775 = vmul.f32 %v706, %v706
      %v776 = vmul.f32 %v707, %v707
      %v777 = vmul.f32 %v708, %v708
      %v778 = vmul.f32 %v709, %v709
      %v779 = vmul.f32 %v710, %v710
      %v780 = vmul.f32 %v711, %v711
      %v781 = vmul.f32 %v712, %v712
      %v782 = vmul.f32 %v713, %v713
      %v783 = vmul.f32 %v714, %v714
      %v784 = vmul.f32 %v715, %v715
      %v785 = vmul.f32 %v716, %v716
      %v786 = vmul.f32 %v717, %v717
      %v787 = vmul.f32 %v718, %v718
      %v788 = vmul.f32 %v719, %v719
      %v789 = vmul.f32 %v720, %v720
      %v790 = vmul.f32 %v721, %v721
      %v791 = vmul.f32 %v722, %v722
      %v792 = vmul.f32 %v723, %v723
      %v793 = vmul.f32 %v724, %v724
      %v794 = vmul.f32 %v725, %v725
      %v795 = vmul.f32 %v726, %v726
      %v796 = vmul.f32 %v727, %v727
      %v797 = vmul.f32 %v728, %v728
      %v798 = vmul.f32 %v729, %v729
      %v799 = vmul.f32 %v730, %v730
      %v800 = vadd.f32 %v768, %v769
      %v801 = vadd.f32 %v800, %v770
      %v802 = vadd.f32 %v801, %v771
      %v803 = vadd.f32 %v802, %v772
      %v804 = vadd.f32 %v803, %v773
      %v805 = vadd.f32 %v804, %v774
      %v806 = vadd.f32 %v805, %v775
      %v807 = vadd.f32 %v806, %v776
      %v808 = vadd.f32 %v807, %v777
      %v809 = vadd.f32 %v808, %v778
      %v810 = vadd.f32 %v809, %v779
      %v811 = vadd.f32 %v810, %v780
      %v812 = vadd.f32 %v811, %v781
      %v813 = vadd.f32 %v812, %v782
      %v814 = vadd.f32 %v813, %v783
      %v815 = vadd.f32 %v814, %v784
      %v816 = vadd.f32 %v815, %v785
      %v817 = vadd.f32 %v816, %v786
      %v818 = vadd.f32 %v817, %v787
      %v819 = vadd.f32 %v818, %v788
      %v820 = vadd.f32 %v819, %v789
      %v821 = vadd.f32 %v820, %v790
      %v822 = vadd.f32 %v821, %v791
      %v823 = vadd.f32 %v822, %v792
      %v824 = vadd.f32 %v823, %v793
      %v825 = vadd.f32 %v824, %v794
      %v826 = vadd.f32 %v825, %v795
      %v827 = vadd.f32 %v826, %v796
      %v828 = vadd.f32 %v827, %v797
      %v829 = vadd.f32 %v828, %v798
      %v830 = vadd.f32 %v829, %v799
      %v831 = vrot.slane %v830, 4
      %v832 = vadd.f32 %v830, %v831
      %v833 = vrot.slane %v832, 2
      %v834 = vadd.f32 %v832, %v833
      %v835 = vrot.slane %v834, 1
      %v836 = vadd.f32 %v834, %v835
      %v837 = vlaneseq
      %v838 = vshrl.u32 %v837, 7
      %vm839 = vcmp.eq.s32.totalorder %v838, 0
      %vm840 = vcmp.eq.s32.totalorder %v838, 1
      %v841 = vsel %vm840, %v836, 0.0
      %v842 = vsel %vm839, %v767, %v841
      %843 = vst [vmem:[%s184] sm:$0xff] %v842
      %s844 = smul.u32 32, %s15
      %p845 = scmp.lt.s32.totalorder %s844, 63
      %s846 = scalar_select %p845, %s844, 63
      %s847 = smul.addr %s846, 4
      %s848 = scalar_lea.vmem %s2, %s847
      %p849 = scmp.lt.s32.totalorder %s15, 1
      %s850 = scalar_select %p849, %s15, 1
      %s851 = smul.addr %s850, 8
      %s852 = scalar_lea.vmem %s3, %s851
      // Predicated region
      $region29: #{bottleneck_forward.4} parent=27 // pred_check
        %p853 = pneg %p80
      $region30: #{bottleneck_forward.4} parent=27 // pred_check_branch
        %855 = sbr.rel (%p853) target = $region32
      $region31: #{bottleneck_forward.4} parent=27 // pred_region
        %s856 = smul.u32 32, %s15
      $region32: #{bottleneck_forward.4} parent=27 // pred_fallthru
        _
      // Predicated region
      $region33: #{bottleneck_forward.4} parent=27 // pred_check
        %p857 = pneg %p106
      $region34: #{bottleneck_forward.4} parent=27 // pred_check_branch
        %859 = sbr.rel (%p857) target = $region36
      $region35: #{bottleneck_forward.4} parent=27 // pred_region
        _
      $region36: #{bottleneck_forward.4} parent=27 // pred_fallthru
        _
    $region28: #{bottleneck_forward.4} parent=5 // pred_fallthru
      _
    %p860 = scmp.le.s32.totalorder 2, %s10
    // Predicated region
    $region37: #{bottleneck_forward.4} parent=5 // pred_check
      %p861 = pneg %p860
    $region38: #{bottleneck_forward.4} parent=5 // pred_check_branch
      %863 = sbr.rel (%p861) target = $region40
    $region39: #{bottleneck_forward.4} parent=5 // pred_region
      %s864 = ssub.s32 %s10, 2
      // Predicated region
      $region41: #{bottleneck_forward.4} parent=39 // pred_check
        %p865 = pneg %p86
      $region42: #{bottleneck_forward.4} parent=39 // pred_check_branch
        %867 = sbr.rel (%p865) target = $region44
      $region43: #{bottleneck_forward.4} parent=39 // pred_region
        %s868 = smul.u32 32, %s16
        %p869 = scmp.lt.s32.totalorder %s868, 63
        %s870 = scalar_select %p869, %s868, 63
        %s871 = smul.addr %s870, 4
        %s872 = scalar_lea.vmem %s2, %s871
      $region44: #{bottleneck_forward.4} parent=39 // pred_fallthru
        _
      // Predicated region
      $region45: #{bottleneck_forward.4} parent=39 // pred_check
        %p873 = pneg %p112
      $region46: #{bottleneck_forward.4} parent=39 // pred_check_branch
        %875 = sbr.rel (%p873) target = $region48
      $region47: #{bottleneck_forward.4} parent=39 // pred_region
        %p876 = scmp.lt.s32.totalorder %s16, 1
        %s877 = scalar_select %p876, %s16, 1
        %s878 = smul.addr %s877, 8
        %s879 = scalar_lea.vmem %s3, %s878
      $region48: #{bottleneck_forward.4} parent=39 // pred_fallthru
        _
    $region40: #{bottleneck_forward.4} parent=5 // pred_fallthru
      _
  $region6: #{bottleneck_forward.4} parent=0 // loop_footer
    %s14 = sadd.s32 1, %s10
  $region7: #{bottleneck_forward.4} parent=0 // loop_footer_branch
    %9 = sbr.rel target = $region3
  $region8: #{bottleneck_forward.4} parent=0 // loop_exit
    _

// kernel: bottleneck_forward.6
$region0: #{bottleneck_forward.6}
  #allocation0 [shape = 'u32[]', space=smem, size = 0x4, offset = 0x4, fixed_abs, tag = 'smem constant byte address 0x4 - core index']
  #allocation1 [shape = 'u32[144,128]{1,0:T(1,128)}', space=vmem, size = 0x12000, scoped, tag = 'internal scratch']
  %s0 = inlined_call_operand.vmem [shape: bf16[512,128], index: 0, kind: input, shape index: {}]
  %s1 = inlined_call_operand.vmem [shape: f32[1,128], index: 1, kind: input, shape index: {}]
  %s2 = inlined_call_operand.vmem [shape: f32[1,128], index: 2, kind: input, shape index: {}]
  %s3 = inlined_call_operand.vmem [shape: bf16[128,128], index: 3, kind: input, shape index: {}]
  %s4 = inlined_call_operand.vmem [shape: f32[2,8,128], index: 4, kind: output, shape index: {}]
  %s5 = sld [smem:[#allocation0]]
  $region49: #{bottleneck_forward.6} parent=0
    _
  %s7 = ssub.s32 1, %s5
  %s8 = scalar_select 0, %s7, %s5
  loop: start=0, step=1, limit=4
  $region2: #{bottleneck_forward.6} parent=0 // loop_pre_header
    _
  $region3: #{bottleneck_forward.6} parent=0 // loop_header
    %s10 = sphi 0, %s14
    %p11 = scmp.ge.s32.totalorder %s10, 4
    %s20 = sphi 0, %s22
    %s23 = sphi 0, %s20
    %s24 = sphi 0, %s23
    %s40 = sphi 0, %s24
    %s44 = sphi 0, %s44
    %s46 = sphi 0, %s44
    %s47 = sphi 0, %s46
    %s61 = sphi 0, %s47
    %s65 = sphi 0, %s65
    %s67 = sphi 0, %s65
    %s68 = sphi 0, %s67
    %s82 = sphi 0, %s68
    %s86 = sphi 0, %s86
    %s88 = sphi 0, %s86
    %s89 = sphi 0, %s88
    %s103 = sphi 0, %s89
    %s109 = sphi 0, %s111
    %s112 = sphi 0, %s109
    %s113 = sphi 0, %s112
    %s129 = sphi 0, %s113
  $region4: #{bottleneck_forward.6} parent=0 // loop_header_branch
    %13 = sbr.rel (%p11) target = $region8
  $region5: #{bottleneck_forward.6} parent=0 // loop_body
    %s15 = ssub.s32 %s10, 1
    %s16 = ssub.s32 %s10, 2
    %s17 = sadd.s32 %s10, 1
    %s18 = ssub.s32 %s10, %s17
    %p19 = scmp.eq.s32.totalorder %s18, 0
    %s21 = sadd.s32 %s20, 1
    %s22 = scalar_select %p19, %s20, %s21
    %p25 = pneg %p19
    %p26 = scmp.eq.s32.totalorder %s10, 1
    %p27 = por %p25, %p26
    %p28 = scmp.ne.s32.totalorder %s20, %s23
    %p29 = scmp.eq.s32.totalorder %s10, 0
    %p30 = por %p28, %p29
    %p31 = scmp.ne.s32.totalorder %s20, %s23
    %p32 = scmp.eq.s32.totalorder %s15, 1
    %p33 = por %p31, %p32
    %p34 = scmp.ne.s32.totalorder %s23, %s24
    %p35 = scmp.eq.s32.totalorder %s15, 0
    %p36 = por %p34, %p35
    %p37 = scmp.ne.s32.totalorder %s23, %s24
    %p38 = scmp.eq.s32.totalorder %s16, 1
    %p39 = por %p37, %p38
    %p41 = scmp.ne.s32.totalorder %s24, %s40
    %p42 = scmp.eq.s32.totalorder %s16, 0
    %p43 = por %p41, %p42
    %s45 = sadd.s32 %s44, 1
    %p48 = scmp.eq.s32.totalorder %s10, 1
    %p49 = scmp.ne.s32.totalorder %s44, %s46
    %p50 = scmp.eq.s32.totalorder %s10, 0
    %p51 = por %p49, %p50
    %p52 = scmp.ne.s32.totalorder %s44, %s46
    %p53 = scmp.eq.s32.totalorder %s15, 1
    %p54 = por %p52, %p53
    %p55 = scmp.ne.s32.totalorder %s46, %s47
    %p56 = scmp.eq.s32.totalorder %s15, 0
    %p57 = por %p55, %p56
    %p58 = scmp.ne.s32.totalorder %s46, %s47
    %p59 = scmp.eq.s32.totalorder %s16, 1
    %p60 = por %p58, %p59
    %p62 = scmp.ne.s32.totalorder %s47, %s61
    %p63 = scmp.eq.s32.totalorder %s16, 0
    %p64 = por %p62, %p63
    %s66 = sadd.s32 %s65, 1
    %p69 = scmp.eq.s32.totalorder %s10, 1
    %p70 = scmp.ne.s32.totalorder %s65, %s67
    %p71 = scmp.eq.s32.totalorder %s10, 0
    %p72 = por %p70, %p71
    %p73 = scmp.ne.s32.totalorder %s65, %s67
    %p74 = scmp.eq.s32.totalorder %s15, 1
    %p75 = por %p73, %p74
    %p76 = scmp.ne.s32.totalorder %s67, %s68
    %p77 = scmp.eq.s32.totalorder %s15, 0
    %p78 = por %p76, %p77
    %p79 = scmp.ne.s32.totalorder %s67, %s68
    %p80 = scmp.eq.s32.totalorder %s16, 1
    %p81 = por %p79, %p80
    %p83 = scmp.ne.s32.totalorder %s68, %s82
    %p84 = scmp.eq.s32.totalorder %s16, 0
    %p85 = por %p83, %p84
    %s87 = sadd.s32 %s86, 1
    %p90 = scmp.eq.s32.totalorder %s10, 1
    %p91 = scmp.ne.s32.totalorder %s86, %s88
    %p92 = scmp.eq.s32.totalorder %s10, 0
    %p93 = por %p91, %p92
    %p94 = scmp.ne.s32.totalorder %s86, %s88
    %p95 = scmp.eq.s32.totalorder %s15, 1
    %p96 = por %p94, %p95
    %p97 = scmp.ne.s32.totalorder %s88, %s89
    %p98 = scmp.eq.s32.totalorder %s15, 0
    %p99 = por %p97, %p98
    %p100 = scmp.ne.s32.totalorder %s88, %s89
    %p101 = scmp.eq.s32.totalorder %s16, 1
    %p102 = por %p100, %p101
    %p104 = scmp.ne.s32.totalorder %s89, %s103
    %p105 = scmp.eq.s32.totalorder %s16, 0
    %p106 = por %p104, %p105
    %s107 = ssub.s32 %s10, %s17
    %p108 = scmp.eq.s32.totalorder %s107, 0
    %s110 = sadd.s32 %s109, 1
    %s111 = scalar_select %p108, %s109, %s110
    %p114 = pneg %p108
    %p115 = scmp.eq.s32.totalorder %s10, 1
    %p116 = por %p114, %p115
    %p117 = scmp.ne.s32.totalorder %s109, %s112
    %p118 = scmp.eq.s32.totalorder %s10, 0
    %p119 = por %p117, %p118
    %p120 = scmp.ne.s32.totalorder %s109, %s112
    %p121 = scmp.eq.s32.totalorder %s15, 1
    %p122 = por %p120, %p121
    %p123 = scmp.ne.s32.totalorder %s112, %s113
    %p124 = scmp.eq.s32.totalorder %s15, 0
    %p125 = por %p123, %p124
    %p126 = scmp.ne.s32.totalorder %s112, %s113
    %p127 = scmp.eq.s32.totalorder %s16, 1
    %p128 = por %p126, %p127
    %p130 = scmp.ne.s32.totalorder %s113, %s129
    %p131 = scmp.eq.s32.totalorder %s16, 0
    %p132 = por %p130, %p131
    %p133 = scmp.le.s32.totalorder 1, %s10
    %p134 = scmp.lt.s32.totalorder %s10, 3
    %p135 = pnand %p133, %p134
    %p136 = pneg %p135
    // Predicated region
    $region9: #{bottleneck_forward.6} parent=5 // pred_check
      _
    $region10: #{bottleneck_forward.6} parent=5 // pred_check_branch
      %138 = sbr.rel (%p135) target = $region12
    $region11: #{bottleneck_forward.6} parent=5 // pred_region
      %s139 = ssub.s32 %s10, 1
      // Predicated region
      $region13: #{bottleneck_forward.6} parent=11 // pred_check
        %p140 = pneg %p57
      $region14: #{bottleneck_forward.6} parent=11 // pred_check_branch
        %142 = sbr.rel (%p140) target = $region16
      $region15: #{bottleneck_forward.6} parent=11 // pred_region
        _
      $region16: #{bottleneck_forward.6} parent=11 // pred_fallthru
        _
      // Predicated region
      $region17: #{bottleneck_forward.6} parent=11 // pred_check
        %p143 = pneg %p78
      $region18: #{bottleneck_forward.6} parent=11 // pred_check_branch
        %145 = sbr.rel (%p143) target = $region20
      $region19: #{bottleneck_forward.6} parent=11 // pred_region
        _
      $region20: #{bottleneck_forward.6} parent=11 // pred_fallthru
        _
      // Predicated region
      $region21: #{bottleneck_forward.6} parent=11 // pred_check
        %p146 = pneg %p99
      $region22: #{bottleneck_forward.6} parent=11 // pred_check_branch
        %148 = sbr.rel (%p146) target = $region24
      $region23: #{bottleneck_forward.6} parent=11 // pred_region
        _
      $region24: #{bottleneck_forward.6} parent=11 // pred_fallthru
        _
    $region12: #{bottleneck_forward.6} parent=5 // pred_fallthru
      _
    %p149 = scmp.lt.s32.totalorder %s10, 2
    // Predicated region
    $region25: #{bottleneck_forward.6} parent=5 // pred_check
      %p150 = pneg %p149
    $region26: #{bottleneck_forward.6} parent=5 // pred_check_branch
      %152 = sbr.rel (%p150) target = $region28
    $region27: #{bottleneck_forward.6} parent=5 // pred_region
      // Predicated region
      $region29: #{bottleneck_forward.6} parent=27 // pred_check
        %p153 = pneg %p30
      $region30: #{bottleneck_forward.6} parent=27 // pred_check_branch
        %155 = sbr.rel (%p153) target = $region32
      $region31: #{bottleneck_forward.6} parent=27 // pred_region
        %s156 = smul.u32 32, %s10
        %p157 = scmp.lt.s32.totalorder %s156, 63
        %s158 = scalar_select %p157, %s156, 63
        %s159 = smul.addr %s158, 4
        %s160 = scalar_lea.vmem %s0, %s159
        %s161 = smul.u32 32, %s10
      $region32: #{bottleneck_forward.6} parent=27 // pred_fallthru
        _
    $region28: #{bottleneck_forward.6} parent=5 // pred_fallthru
      _
    %p162 = scmp.le.s32.totalorder 1, %s10
    %p163 = scmp.lt.s32.totalorder %s10, 3
    %p164 = pnand %p162, %p163
    %p165 = pneg %p164
    // Predicated region
    $region33: #{bottleneck_forward.6} parent=5 // pred_check
      _
    $region34: #{bottleneck_forward.6} parent=5 // pred_check_branch
      %167 = sbr.rel (%p164) target = $region36
    $region35: #{bottleneck_forward.6} parent=5 // pred_region
      %s168 = ssub.s32 %s10, 1
      %s169 = smul.u32 32, %s15
      %p170 = scmp.lt.s32.totalorder %s169, 63
      %s171 = scalar_select %p170, %s169, 63
      %s172 = smul.addr %s171, 4
      %s173 = scalar_lea.vmem %s0, %s172
      %p174 = pneg %p36
      %p175 = pneg %p33
      %p176 = pneg %p57
      %p177 = pneg %p54
      %p178 = pneg %p78
      %p179 = pneg %p75
      %p180 = pneg %p99
      %p181 = pneg %p96
      %p182 = pneg %p125
      %p183 = pneg %p122
      %p184 = scmp.lt.s32.totalorder %s15, 1
      %s185 = scalar_select %p184, %s15, 1
      %s186 = smul.addr %s185, 8
      %s187 = scalar_lea.vmem %s4, %s186
      %s188 = smul.u32 32, %s15
      %p189 = scmp.lt.s32.totalorder %s188, 63
      %s190 = scalar_select %p189, %s188, 63
      %s191 = smul.addr %s190, 4
      %s192 = scalar_lea.vmem %s0, %s191
      %s193 = smul.u32 32, %s15
      %p194 = scmp.lt.s32.totalorder %s15, 1
      %s195 = scalar_select %p194, %s15, 1
      %s196 = smul.addr %s195, 8
      %s197 = scalar_lea.vmem %s4, %s196
      %v199 = vld [vmem:[%s192] sm:$0xf]
      %v200 = vld [vmem:[%s192 + $0x4] sm:$0xf]
      %v201 = vld [vmem:[%s192 + $0x8] sm:$0xf]
      %v202 = vld [vmem:[%s192 + $0xc] sm:$0xf]
      %v203 = vld [vmem:[%s192 + $0x10] sm:$0xf]
      %v204 = vld [vmem:[%s192 + $0x14] sm:$0xf]
      %v205 = vld [vmem:[%s192 + $0x18] sm:$0xf]
      %v206 = vld [vmem:[%s192 + $0x1c] sm:$0xf]
      %v207 = vld [vmem:[%s192 + $0x20] sm:$0xf]
      %v208 = vld [vmem:[%s192 + $0x24] sm:$0xf]
      %v209 = vld [vmem:[%s192 + $0x28] sm:$0xf]
      %v210 = vld [vmem:[%s192 + $0x2c] sm:$0xf]
      %v211 = vld [vmem:[%s192 + $0x30] sm:$0xf]
      %v212 = vld [vmem:[%s192 + $0x34] sm:$0xf]
      %v213 = vld [vmem:[%s192 + $0x38] sm:$0xf]
      %v214 = vld [vmem:[%s192 + $0x3c] sm:$0xf]
      %v215 = vld [vmem:[%s192 + $0x40] sm:$0xf]
      %v216 = vld [vmem:[%s192 + $0x44] sm:$0xf]
      %v217 = vld [vmem:[%s192 + $0x48] sm:$0xf]
      %v218 = vld [vmem:[%s192 + $0x4c] sm:$0xf]
      %v219 = vld [vmem:[%s192 + $0x50] sm:$0xf]
      %v220 = vld [vmem:[%s192 + $0x54] sm:$0xf]
      %v221 = vld [vmem:[%s192 + $0x58] sm:$0xf]
      %v222 = vld [vmem:[%s192 + $0x5c] sm:$0xf]
      %v223 = vld [vmem:[%s192 + $0x60] sm:$0xf]
      %v224 = vld [vmem:[%s192 + $0x64] sm:$0xf]
      %v225 = vld [vmem:[%s192 + $0x68] sm:$0xf]
      %v226 = vld [vmem:[%s192 + $0x6c] sm:$0xf]
      %v227 = vld [vmem:[%s192 + $0x70] sm:$0xf]
      %v228 = vld [vmem:[%s192 + $0x74] sm:$0xf]
      %v229 = vld [vmem:[%s192 + $0x78] sm:$0xf]
      %v230 = vld [vmem:[%s192 + $0x7c] sm:$0xf]
      %v231 = vunpack.c.l.bf16 %v199
      %v232 = vunpack.c.l.bf16 %v200
      %v233 = vunpack.c.l.bf16 %v201
      %v234 = vunpack.c.l.bf16 %v202
      %v235 = vunpack.c.l.bf16 %v203
      %v236 = vunpack.c.l.bf16 %v204
      %v237 = vunpack.c.l.bf16 %v205
      %v238 = vunpack.c.l.bf16 %v206
      %v239 = vunpack.c.l.bf16 %v207
      %v240 = vunpack.c.l.bf16 %v208
      %v241 = vunpack.c.l.bf16 %v209
      %v242 = vunpack.c.l.bf16 %v210
      %v243 = vunpack.c.l.bf16 %v211
      %v244 = vunpack.c.l.bf16 %v212
      %v245 = vunpack.c.l.bf16 %v213
      %v246 = vunpack.c.l.bf16 %v214
      %v247 = vunpack.c.l.bf16 %v215
      %v248 = vunpack.c.l.bf16 %v216
      %v249 = vunpack.c.l.bf16 %v217
      %v250 = vunpack.c.l.bf16 %v218
      %v251 = vunpack.c.l.bf16 %v219
      %v252 = vunpack.c.l.bf16 %v220
      %v253 = vunpack.c.l.bf16 %v221
      %v254 = vunpack.c.l.bf16 %v222
      %v255 = vunpack.c.l.bf16 %v223
      %v256 = vunpack.c.l.bf16 %v224
      %v257 = vunpack.c.l.bf16 %v225
      %v258 = vunpack.c.l.bf16 %v226
      %v259 = vunpack.c.l.bf16 %v227
      %v260 = vunpack.c.l.bf16 %v228
      %v261 = vunpack.c.l.bf16 %v229
      %v262 = vunpack.c.l.bf16 %v230
      %v263 = vld [vmem:[%s1] sm:$0x1]
      %v265 = vlaneseq
      %v266 = vshrl.u32 %v265, 7
      %v267 = vsub.s32 0, %v266
      %v268 = vrot.slane %v263, %v267
      %v270 = vmul.f32 %v231, %v268
      %v271 = vmul.f32 %v232, %v268
      %v272 = vmul.f32 %v233, %v268
      %v273 = vmul.f32 %v234, %v268
      %v274 = vmul.f32 %v235, %v268
      %v275 = vmul.f32 %v236, %v268
      %v276 = vmul.f32 %v237, %v268
      %v277 = vmul.f32 %v238, %v268
      %v278 = vmul.f32 %v239, %v268
      %v279 = vmul.f32 %v240, %v268
      %v280 = vmul.f32 %v241, %v268
      %v281 = vmul.f32 %v242, %v268
      %v282 = vmul.f32 %v243, %v268
      %v283 = vmul.f32 %v244, %v268
      %v284 = vmul.f32 %v245, %v268
      %v285 = vmul.f32 %v246, %v268
      %v286 = vmul.f32 %v247, %v268
      %v287 = vmul.f32 %v248, %v268
      %v288 = vmul.f32 %v249, %v268
      %v289 = vmul.f32 %v250, %v268
      %v290 = vmul.f32 %v251, %v268
      %v291 = vmul.f32 %v252, %v268
      %v292 = vmul.f32 %v253, %v268
      %v293 = vmul.f32 %v254, %v268
      %v294 = vmul.f32 %v255, %v268
      %v295 = vmul.f32 %v256, %v268
      %v296 = vmul.f32 %v257, %v268
      %v297 = vmul.f32 %v258, %v268
      %v298 = vmul.f32 %v259, %v268
      %v299 = vmul.f32 %v260, %v268
      %v300 = vmul.f32 %v261, %v268
      %v301 = vmul.f32 %v262, %v268
      %v302 = vld [vmem:[%s2] sm:$0x1]
      %v304 = vlaneseq
      %v305 = vshrl.u32 %v304, 7
      %v306 = vsub.s32 0, %v305
      %v307 = vrot.slane %v302, %v306
      %v309 = vadd.f32 %v270, %v307
      %v310 = vadd.f32 %v271, %v307
      %v311 = vadd.f32 %v272, %v307
      %v312 = vadd.f32 %v273, %v307
      %v313 = vadd.f32 %v274, %v307
      %v314 = vadd.f32 %v275, %v307
      %v315 = vadd.f32 %v276, %v307
      %v316 = vadd.f32 %v277, %v307
      %v317 = vadd.f32 %v278, %v307
      %v318 = vadd.f32 %v279, %v307
      %v319 = vadd.f32 %v280, %v307
      %v320 = vadd.f32 %v281, %v307
      %v321 = vadd.f32 %v282, %v307
      %v322 = vadd.f32 %v283, %v307
      %v323 = vadd.f32 %v284, %v307
      %v324 = vadd.f32 %v285, %v307
      %v325 = vadd.f32 %v286, %v307
      %v326 = vadd.f32 %v287, %v307
      %v327 = vadd.f32 %v288, %v307
      %v328 = vadd.f32 %v289, %v307
      %v329 = vadd.f32 %v290, %v307
      %v330 = vadd.f32 %v291, %v307
      %v331 = vadd.f32 %v292, %v307
      %v332 = vadd.f32 %v293, %v307
      %v333 = vadd.f32 %v294, %v307
      %v334 = vadd.f32 %v295, %v307
      %v335 = vadd.f32 %v296, %v307
      %v336 = vadd.f32 %v297, %v307
      %v337 = vadd.f32 %v298, %v307
      %v338 = vadd.f32 %v299, %v307
      %v339 = vadd.f32 %v300, %v307
      %v340 = vadd.f32 %v301, %v307
      %v341 = vmax.f32 %v309, 0.0
      %v342 = vmax.f32 %v310, 0.0
      %v343 = vmax.f32 %v311, 0.0
      %v344 = vmax.f32 %v312, 0.0
      %v345 = vmax.f32 %v313, 0.0
      %v346 = vmax.f32 %v314, 0.0
      %v347 = vmax.f32 %v315, 0.0
      %v348 = vmax.f32 %v316, 0.0
      %v349 = vmax.f32 %v317, 0.0
      %v350 = vmax.f32 %v318, 0.0
      %v351 = vmax.f32 %v319, 0.0
      %v352 = vmax.f32 %v320, 0.0
      %v353 = vmax.f32 %v321, 0.0
      %v354 = vmax.f32 %v322, 0.0
      %v355 = vmax.f32 %v323, 0.0
      %v356 = vmax.f32 %v324, 0.0
      %v357 = vmax.f32 %v325, 0.0
      %v358 = vmax.f32 %v326, 0.0
      %v359 = vmax.f32 %v327, 0.0
      %v360 = vmax.f32 %v328, 0.0
      %v361 = vmax.f32 %v329, 0.0
      %v362 = vmax.f32 %v330, 0.0
      %v363 = vmax.f32 %v331, 0.0
      %v364 = vmax.f32 %v332, 0.0
      %v365 = vmax.f32 %v333, 0.0
      %v366 = vmax.f32 %v334, 0.0
      %v367 = vmax.f32 %v335, 0.0
      %v368 = vmax.f32 %v336, 0.0
      %v369 = vmax.f32 %v337, 0.0
      %v370 = vmax.f32 %v338, 0.0
      %v371 = vmax.f32 %v339, 0.0
      %v372 = vmax.f32 %v340, 0.0
      %v373 = vpack.c.bf16 %v342, %v341
      %v374 = vpack.c.bf16 %v344, %v343
      %v375 = vpack.c.bf16 %v346, %v345
      %v376 = vpack.c.bf16 %v348, %v347
      %v377 = vpack.c.bf16 %v350, %v349
      %v378 = vpack.c.bf16 %v352, %v351
      %v379 = vpack.c.bf16 %v354, %v353
      %v380 = vpack.c.bf16 %v356, %v355
      %v381 = vpack.c.bf16 %v358, %v357
      %v382 = vpack.c.bf16 %v360, %v359
      %v383 = vpack.c.bf16 %v362, %v361
      %v384 = vpack.c.bf16 %v364, %v363
      %v385 = vpack.c.bf16 %v366, %v365
      %v386 = vpack.c.bf16 %v368, %v367
      %v387 = vpack.c.bf16 %v370, %v369
      %v388 = vpack.c.bf16 %v372, %v371
      %v389 = vld [vmem:[%s3] sm:$0xf]
      %v390 = vld [vmem:[%s3 + $0x4] sm:$0xf]
      %v391 = vld [vmem:[%s3 + $0x8] sm:$0xf]
      %v392 = vld [vmem:[%s3 + $0xc] sm:$0xf]
      %v393 = vld [vmem:[%s3 + $0x10] sm:$0xf]
      %v394 = vld [vmem:[%s3 + $0x14] sm:$0xf]
      %v395 = vld [vmem:[%s3 + $0x18] sm:$0xf]
      %v396 = vld [vmem:[%s3 + $0x1c] sm:$0xf]
      %v397 = vld [vmem:[%s3 + $0x20] sm:$0xf]
      %v398 = vld [vmem:[%s3 + $0x24] sm:$0xf]
      %v399 = vld [vmem:[%s3 + $0x28] sm:$0xf]
      %v400 = vld [vmem:[%s3 + $0x2c] sm:$0xf]
      %v401 = vld [vmem:[%s3 + $0x30] sm:$0xf]
      %v402 = vld [vmem:[%s3 + $0x34] sm:$0xf]
      %v403 = vld [vmem:[%s3 + $0x38] sm:$0xf]
      %v404 = vld [vmem:[%s3 + $0x3c] sm:$0xf]
      %v421 = vunpack.c.l.b16 %v389
      %v422 = vunpack.c.l.b16 %v390
      %v423 = vunpack.c.l.b16 %v391
      %v424 = vunpack.c.l.b16 %v392
      %v425 = vunpack.c.l.b16 %v393
      %v426 = vunpack.c.l.b16 %v394
      %v427 = vunpack.c.l.b16 %v395
      %v428 = vunpack.c.l.b16 %v396
      %v429 = vunpack.c.l.b16 %v397
      %v430 = vunpack.c.l.b16 %v398
      %v431 = vunpack.c.l.b16 %v399
      %v432 = vunpack.c.l.b16 %v400
      %v433 = vunpack.c.l.b16 %v401
      %v434 = vunpack.c.l.b16 %v402
      %v435 = vunpack.c.l.b16 %v403
      %v436 = vunpack.c.l.b16 %v404
      %v437 = vpack.c.b16 %v422, %v421
      %v438 = vpack.c.b16 %v424, %v423
      %v439 = vpack.c.b16 %v426, %v425
      %v440 = vpack.c.b16 %v428, %v427
      %v441 = vpack.c.b16 %v430, %v429
      %v442 = vpack.c.b16 %v432, %v431
      %v443 = vpack.c.b16 %v434, %v433
      %v444 = vpack.c.b16 %v436, %v435
      %453 = vmatprep.subr.bf16.mxu0 0
      %454 = vmatpush1.bf16.msra.mxu0 %v437
      %455 = vmatprep.subr.bf16.mxu0 0
      %456 = vmatpush1.bf16.msra.mxu0 %v438
      %457 = vmatprep.subr.bf16.mxu0 0
      %458 = vmatpush1.bf16.msra.mxu0 %v439
      %459 = vmatprep.subr.bf16.mxu0 0
      %460 = vmatpush1.bf16.msra.mxu0 %v440
      %461 = vmatprep.subr.bf16.mxu0 0
      %462 = vmatpush1.bf16.msra.mxu0 %v441
      %463 = vmatprep.subr.bf16.mxu0 0
      %464 = vmatpush1.bf16.msra.mxu0 %v442
      %465 = vmatprep.subr.bf16.mxu0 0
      %466 = vmatpush1.bf16.msra.mxu0 %v443
      %467 = vmatprep.subr.bf16.mxu0 0
      %468 = vmatpush1.bf16.msra.mxu0 %v444
      %469 = vmatprep.subr.bf16.mxu0 0
      %470 = vmatpush1.bf16.msra.mxu0 0
      %471 = vmatprep.subr.bf16.mxu0 0
      %472 = vmatpush1.bf16.msra.mxu0 0
      %473 = vmatprep.subr.bf16.mxu0 0
      %474 = vmatpush1.bf16.msra.mxu0 0
      %475 = vmatprep.subr.bf16.mxu0 0
      %476 = vmatpush1.bf16.msra.mxu0 0
      %477 = vmatprep.subr.bf16.mxu0 0
      %478 = vmatpush1.bf16.msra.mxu0 0
      %479 = vmatprep.subr.bf16.mxu0 0
      %480 = vmatpush1.bf16.msra.mxu0 0
      %481 = vmatprep.subr.bf16.mxu0 0
      %482 = vmatpush1.bf16.msra.mxu0 0
      %483 = vmatprep.subr.bf16.mxu0 0
      %484 = vmatpush1.bf16.msra.mxu0 0
      %485 = vmatprep.mubr.bf16.mxu0 0
      %486 = vmatmul.mubr.bf16.gmra.mrb[0].mxu0 %v373
      %v487 = vpop.f32.mrb[0].mxu0
      %v488 = vadd.f32 0.0, %v487
      %v489 = vpop.f32.mrb[0].mxu0
      %v490 = vpop.f32.mrb[0].mxu0
      %v491 = vadd.f32 0.0, %v490
      %v492 = vpop.f32.mrb[0].mxu0
      %493 = vmatprep.mubr.bf16.mxu0 0
      %494 = vmatmul.mubr.bf16.gmra.mrb[0].mxu0 %v374
      %v495 = vpop.f32.mrb[0].mxu0
      %v496 = vadd.f32 0.0, %v495
      %v497 = vpop.f32.mrb[0].mxu0
      %v498 = vpop.f32.mrb[0].mxu0
      %v499 = vadd.f32 0.0, %v498
      %v500 = vpop.f32.mrb[0].mxu0
      %501 = vmatprep.mubr.bf16.mxu0 0
      %502 = vmatmul.mubr.bf16.gmra.mrb[0].mxu0 %v375
      %v503 = vpop.f32.mrb[0].mxu0
      %v504 = vadd.f32 0.0, %v503
      %v505 = vpop.f32.mrb[0].mxu0
      %v506 = vpop.f32.mrb[0].mxu0
      %v507 = vadd.f32 0.0, %v506
      %v508 = vpop.f32.mrb[0].mxu0
      %509 = vmatprep.mubr.bf16.mxu0 0
      %510 = vmatmul.mubr.bf16.gmra.mrb[0].mxu0 %v376
      %v511 = vpop.f32.mrb[0].mxu0
      %v512 = vadd.f32 0.0, %v511
      %v513 = vpop.f32.mrb[0].mxu0
      %v514 = vpop.f32.mrb[0].mxu0
      %v515 = vadd.f32 0.0, %v514
      %v516 = vpop.f32.mrb[0].mxu0
      %517 = vmatprep.mubr.bf16.mxu0 0
      %518 = vmatmul.mubr.bf16.gmra.mrb[0].mxu0 %v377
      %v519 = vpop.f32.mrb[0].mxu0
      %v520 = vadd.f32 0.0, %v519
      %v521 = vpop.f32.mrb[0].mxu0
      %v522 = vpop.f32.mrb[0].mxu0
      %v523 = vadd.f32 0.0, %v522
      %v524 = vpop.f32.mrb[0].mxu0
      %525 = vmatprep.mubr.bf16.mxu0 0
      %526 = vmatmul.mubr.bf16.gmra.mrb[0].mxu0 %v378
      %v527 = vpop.f32.mrb[0].mxu0
      %v528 = vadd.f32 0.0, %v527
      %v529 = vpop.f32.mrb[0].mxu0
      %v530 = vpop.f32.mrb[0].mxu0
      %v531 = vadd.f32 0.0, %v530
      %v532 = vpop.f32.mrb[0].mxu0
      %533 = vmatprep.mubr.bf16.mxu0 0
      %534 = vmatmul.mubr.bf16.gmra.mrb[0].mxu0 %v379
      %v535 = vpop.f32.mrb[0].mxu0
      %v536 = vadd.f32 0.0, %v535
      %v537 = vpop.f32.mrb[0].mxu0
      %v538 = vpop.f32.mrb[0].mxu0
      %v539 = vadd.f32 0.0, %v538
      %v540 = vpop.f32.mrb[0].mxu0
      %541 = vmatprep.mubr.bf16.mxu0 0
      %542 = vmatmul.mubr.bf16.gmra.mrb[0].mxu0 %v380
      %v543 = vpop.f32.mrb[0].mxu0
      %v544 = vadd.f32 0.0, %v543
      %v545 = vpop.f32.mrb[0].mxu0
      %v546 = vpop.f32.mrb[0].mxu0
      %v547 = vadd.f32 0.0, %v546
      %v548 = vpop.f32.mrb[0].mxu0
      %549 = vmatprep.mubr.bf16.mxu0 0
      %550 = vmatmul.mubr.bf16.gmra.mrb[0].mxu0 %v381
      %v551 = vpop.f32.mrb[0].mxu0
      %v552 = vadd.f32 0.0, %v551
      %v553 = vpop.f32.mrb[0].mxu0
      %v554 = vpop.f32.mrb[0].mxu0
      %v555 = vadd.f32 0.0, %v554
      %v556 = vpop.f32.mrb[0].mxu0
      %557 = vmatprep.mubr.bf16.mxu0 0
      %558 = vmatmul.mubr.bf16.gmra.mrb[0].mxu0 %v382
      %v559 = vpop.f32.mrb[0].mxu0
      %v560 = vadd.f32 0.0, %v559
      %v561 = vpop.f32.mrb[0].mxu0
      %v562 = vpop.f32.mrb[0].mxu0
      %v563 = vadd.f32 0.0, %v562
      %v564 = vpop.f32.mrb[0].mxu0
      %565 = vmatprep.mubr.bf16.mxu0 0
      %566 = vmatmul.mubr.bf16.gmra.mrb[0].mxu0 %v383
      %v567 = vpop.f32.mrb[0].mxu0
      %v568 = vadd.f32 0.0, %v567
      %v569 = vpop.f32.mrb[0].mxu0
      %v570 = vpop.f32.mrb[0].mxu0
      %v571 = vadd.f32 0.0, %v570
      %v572 = vpop.f32.mrb[0].mxu0
      %573 = vmatprep.mubr.bf16.mxu0 0
      %574 = vmatmul.mubr.bf16.gmra.mrb[0].mxu0 %v384
      %v575 = vpop.f32.mrb[0].mxu0
      %v576 = vadd.f32 0.0, %v575
      %v577 = vpop.f32.mrb[0].mxu0
      %v578 = vpop.f32.mrb[0].mxu0
      %v579 = vadd.f32 0.0, %v578
      %v580 = vpop.f32.mrb[0].mxu0
      %581 = vmatprep.mubr.bf16.mxu0 0
      %582 = vmatmul.mubr.bf16.gmra.mrb[0].mxu0 %v385
      %v583 = vpop.f32.mrb[0].mxu0
      %v584 = vadd.f32 0.0, %v583
      %v585 = vpop.f32.mrb[0].mxu0
      %v586 = vpop.f32.mrb[0].mxu0
      %v587 = vadd.f32 0.0, %v586
      %v588 = vpop.f32.mrb[0].mxu0
      %589 = vmatprep.mubr.bf16.mxu0 0
      %590 = vmatmul.mubr.bf16.gmra.mrb[0].mxu0 %v386
      %v591 = vpop.f32.mrb[0].mxu0
      %v592 = vadd.f32 0.0, %v591
      %v593 = vpop.f32.mrb[0].mxu0
      %v594 = vpop.f32.mrb[0].mxu0
      %v595 = vadd.f32 0.0, %v594
      %v596 = vpop.f32.mrb[0].mxu0
      %597 = vmatprep.mubr.bf16.mxu0 0
      %598 = vmatmul.mubr.bf16.gmra.mrb[0].mxu0 %v387
      %v599 = vpop.f32.mrb[0].mxu0
      %v600 = vadd.f32 0.0, %v599
      %v601 = vpop.f32.mrb[0].mxu0
      %v602 = vpop.f32.mrb[0].mxu0
      %v603 = vadd.f32 0.0, %v602
      %v604 = vpop.f32.mrb[0].mxu0
      %605 = vmatprep.mubr.bf16.mxu0 0
      %606 = vmatmul.mubr.bf16.gmra.mrb[0].mxu0 %v388
      %v607 = vpop.f32.mrb[0].mxu0
      %v608 = vadd.f32 0.0, %v607
      %v609 = vpop.f32.mrb[0].mxu0
      %v610 = vpop.f32.mrb[0].mxu0
      %v611 = vadd.f32 0.0, %v610
      %v612 = vpop.f32.mrb[0].mxu0
      %613 = vdwg.mxu0
      %v614 = vadd.f32 %v488, %v491
      %v615 = vadd.f32 %v614, %v496
      %v616 = vadd.f32 %v615, %v499
      %v617 = vadd.f32 %v616, %v504
      %v618 = vadd.f32 %v617, %v507
      %v619 = vadd.f32 %v618, %v512
      %v620 = vadd.f32 %v619, %v515
      %v621 = vadd.f32 %v620, %v520
      %v622 = vadd.f32 %v621, %v523
      %v623 = vadd.f32 %v622, %v528
      %v624 = vadd.f32 %v623, %v531
      %v625 = vadd.f32 %v624, %v536
      %v626 = vadd.f32 %v625, %v539
      %v627 = vadd.f32 %v626, %v544
      %v628 = vadd.f32 %v627, %v547
      %v629 = vadd.f32 %v628, %v552
      %v630 = vadd.f32 %v629, %v555
      %v631 = vadd.f32 %v630, %v560
      %v632 = vadd.f32 %v631, %v563
      %v633 = vadd.f32 %v632, %v568
      %v634 = vadd.f32 %v633, %v571
      %v635 = vadd.f32 %v634, %v576
      %v636 = vadd.f32 %v635, %v579
      %v637 = vadd.f32 %v636, %v584
      %v638 = vadd.f32 %v637, %v587
      %v639 = vadd.f32 %v638, %v592
      %v640 = vadd.f32 %v639, %v595
      %v641 = vadd.f32 %v640, %v600
      %v642 = vadd.f32 %v641, %v603
      %v643 = vadd.f32 %v642, %v608
      %v644 = vadd.f32 %v643, %v611
      %v645 = vrot.slane %v644, 4
      %v646 = vadd.f32 %v644, %v645
      %v647 = vrot.slane %v646, 2
      %v648 = vadd.f32 %v646, %v647
      %v649 = vrot.slane %v648, 1
      %v650 = vadd.f32 %v648, %v649
      %v651 = vmul.f32 %v488, %v488
      %v652 = vmul.f32 %v491, %v491
      %v653 = vmul.f32 %v496, %v496
      %v654 = vmul.f32 %v499, %v499
      %v655 = vmul.f32 %v504, %v504
      %v656 = vmul.f32 %v507, %v507
      %v657 = vmul.f32 %v512, %v512
      %v658 = vmul.f32 %v515, %v515
      %v659 = vmul.f32 %v520, %v520
      %v660 = vmul.f32 %v523, %v523
      %v661 = vmul.f32 %v528, %v528
      %v662 = vmul.f32 %v531, %v531
      %v663 = vmul.f32 %v536, %v536
      %v664 = vmul.f32 %v539, %v539
      %v665 = vmul.f32 %v544, %v544
      %v666 = vmul.f32 %v547, %v547
      %v667 = vmul.f32 %v552, %v552
      %v668 = vmul.f32 %v555, %v555
      %v669 = vmul.f32 %v560, %v560
      %v670 = vmul.f32 %v563, %v563
      %v671 = vmul.f32 %v568, %v568
      %v672 = vmul.f32 %v571, %v571
      %v673 = vmul.f32 %v576, %v576
      %v674 = vmul.f32 %v579, %v579
      %v675 = vmul.f32 %v584, %v584
      %v676 = vmul.f32 %v587, %v587
      %v677 = vmul.f32 %v592, %v592
      %v678 = vmul.f32 %v595, %v595
      %v679 = vmul.f32 %v600, %v600
      %v680 = vmul.f32 %v603, %v603
      %v681 = vmul.f32 %v608, %v608
      %v682 = vmul.f32 %v611, %v611
      %v683 = vadd.f32 %v651, %v652
      %v684 = vadd.f32 %v683, %v653
      %v685 = vadd.f32 %v684, %v654
      %v686 = vadd.f32 %v685, %v655
      %v687 = vadd.f32 %v686, %v656
      %v688 = vadd.f32 %v687, %v657
      %v689 = vadd.f32 %v688, %v658
      %v690 = vadd.f32 %v689, %v659
      %v691 = vadd.f32 %v690, %v660
      %v692 = vadd.f32 %v691, %v661
      %v693 = vadd.f32 %v692, %v662
      %v694 = vadd.f32 %v693, %v663
      %v695 = vadd.f32 %v694, %v664
      %v696 = vadd.f32 %v695, %v665
      %v697 = vadd.f32 %v696, %v666
      %v698 = vadd.f32 %v697, %v667
      %v699 = vadd.f32 %v698, %v668
      %v700 = vadd.f32 %v699, %v669
      %v701 = vadd.f32 %v700, %v670
      %v702 = vadd.f32 %v701, %v671
      %v703 = vadd.f32 %v702, %v672
      %v704 = vadd.f32 %v703, %v673
      %v705 = vadd.f32 %v704, %v674
      %v706 = vadd.f32 %v705, %v675
      %v707 = vadd.f32 %v706, %v676
      %v708 = vadd.f32 %v707, %v677
      %v709 = vadd.f32 %v708, %v678
      %v710 = vadd.f32 %v709, %v679
      %v711 = vadd.f32 %v710, %v680
      %v712 = vadd.f32 %v711, %v681
      %v713 = vadd.f32 %v712, %v682
      %v714 = vrot.slane %v713, 4
      %v715 = vadd.f32 %v713, %v714
      %v716 = vrot.slane %v715, 2
      %v717 = vadd.f32 %v715, %v716
      %v718 = vrot.slane %v717, 1
      %v719 = vadd.f32 %v717, %v718
      %v720 = vlaneseq
      %v721 = vshrl.u32 %v720, 7
      %vm722 = vcmp.eq.s32.totalorder %v721, 0
      %vm723 = vcmp.eq.s32.totalorder %v721, 1
      %v724 = vsel %vm723, %v719, 0.0
      %v725 = vsel %vm722, %v650, %v724
      %726 = vst [vmem:[%s197] sm:$0xff] %v725
      %p727 = scmp.lt.s32.totalorder %s15, 1
      %s728 = scalar_select %p727, %s15, 1
      %s729 = smul.addr %s728, 8
      %s730 = scalar_lea.vmem %s4, %s729
      // Predicated region
      $region37: #{bottleneck_forward.6} parent=35 // pred_check
        %p731 = pneg %p122
      $region38: #{bottleneck_forward.6} parent=35 // pred_check_branch
        %733 = sbr.rel (%p731) target = $region40
      $region39: #{bottleneck_forward.6} parent=35 // pred_region
        _
      $region40: #{bottleneck_forward.6} parent=35 // pred_fallthru
        _
    $region36: #{bottleneck_forward.6} parent=5 // pred_fallthru
      _
    %p734 = scmp.le.s32.totalorder 2, %s10
    // Predicated region
    $region41: #{bottleneck_forward.6} parent=5 // pred_check
      %p735 = pneg %p734
    $region42: #{bottleneck_forward.6} parent=5 // pred_check_branch
      %737 = sbr.rel (%p735) target = $region44
    $region43: #{bottleneck_forward.6} parent=5 // pred_region
      %s738 = ssub.s32 %s10, 2
      // Predicated region
      $region45: #{bottleneck_forward.6} parent=43 // pred_check
        %p739 = pneg %p128
      $region46: #{bottleneck_forward.6} parent=43 // pred_check_branch
        %741 = sbr.rel (%p739) target = $region48
      $region47: #{bottleneck_forward.6} parent=43 // pred_region
        %p742 = scmp.lt.s32.totalorder %s16, 1
        %s743 = scalar_select %p742, %s16, 1
        %s744 = smul.addr %s743, 8
        %s745 = scalar_lea.vmem %s4, %s744
      $region48: #{bottleneck_forward.6} parent=43 // pred_fallthru
        _
    $region44: #{bottleneck_forward.6} parent=5 // pred_fallthru
      _
  $region6: #{bottleneck_forward.6} parent=0 // loop_footer
    %s14 = sadd.s32 1, %s10
  $region7: #{bottleneck_forward.6} parent=0 // loop_footer_branch
    %9 = sbr.rel target = $region3
  $region8: #{bottleneck_forward.6} parent=0 // loop_exit
    _

// kernel: bottleneck_forward.7
$region0: #{bottleneck_forward.7}
  #allocation0 [shape = 'u32[]', space=smem, size = 0x4, offset = 0x4, fixed_abs, tag = 'smem constant byte address 0x4 - core index']
  #allocation1 [shape = 'u32[144,128]{1,0:T(1,128)}', space=vmem, size = 0x12000, scoped, tag = 'internal scratch']
  %s0 = inlined_call_operand.vmem [shape: bf16[512,128], index: 0, kind: input, shape index: {}]
  %s1 = inlined_call_operand.vmem [shape: f32[1,128], index: 1, kind: input, shape index: {}]
  %s2 = inlined_call_operand.vmem [shape: f32[1,128], index: 2, kind: input, shape index: {}]
  %s3 = inlined_call_operand.vmem [shape: bf16[128,128], index: 3, kind: input, shape index: {}]
  %s4 = inlined_call_operand.vmem [shape: f32[1,128], index: 4, kind: input, shape index: {}]
  %s5 = inlined_call_operand.vmem [shape: f32[1,128], index: 5, kind: input, shape index: {}]
  %s6 = inlined_call_operand.vmem [shape: f32[512,128], index: 6, kind: input, shape index: {}]
  %s7 = inlined_call_operand.vmem [shape: f32[512,128], index: 7, kind: output, shape index: {}]
  %s8 = sld [smem:[#allocation0]]
  $region61: #{bottleneck_forward.7} parent=0
    _
  %s10 = ssub.s32 1, %s8
  %s11 = scalar_select 0, %s10, %s8
  loop: start=0, step=1, limit=4
  $region2: #{bottleneck_forward.7} parent=0 // loop_pre_header
    _
  $region3: #{bottleneck_forward.7} parent=0 // loop_header
    %s13 = sphi 0, %s17
    %p14 = scmp.ge.s32.totalorder %s13, 4
    %s23 = sphi 0, %s25
    %s26 = sphi 0, %s23
    %s27 = sphi 0, %s26
    %s43 = sphi 0, %s27
    %s47 = sphi 0, %s47
    %s49 = sphi 0, %s47
    %s50 = sphi 0, %s49
    %s64 = sphi 0, %s50
    %s68 = sphi 0, %s68
    %s70 = sphi 0, %s68
    %s71 = sphi 0, %s70
    %s85 = sphi 0, %s71
    %s89 = sphi 0, %s89
    %s91 = sphi 0, %s89
    %s92 = sphi 0, %s91
    %s106 = sphi 0, %s92
    %s110 = sphi 0, %s110
    %s112 = sphi 0, %s110
    %s113 = sphi 0, %s112
    %s127 = sphi 0, %s113
    %s131 = sphi 0, %s131
    %s133 = sphi 0, %s131
    %s134 = sphi 0, %s133
    %s148 = sphi 0, %s134
    %s154 = sphi 0, %s156
    %s157 = sphi 0, %s154
    %s158 = sphi 0, %s157
    %s174 = sphi 0, %s158
    %s180 = sphi 0, %s182
    %s183 = sphi 0, %s180
    %s184 = sphi 0, %s183
    %s200 = sphi 0, %s184
  $region4: #{bottleneck_forward.7} parent=0 // loop_header_branch
    %16 = sbr.rel (%p14) target = $region8
  $region5: #{bottleneck_forward.7} parent=0 // loop_body
    %s18 = ssub.s32 %s13, 1
    %s19 = ssub.s32 %s13, 2
    %s20 = sadd.s32 %s13, 1
    %s21 = ssub.s32 %s13, %s20
    %p22 = scmp.eq.s32.totalorder %s21, 0
    %s24 = sadd.s32 %s23, 1
    %s25 = scalar_select %p22, %s23, %s24
    %p28 = pneg %p22
    %p29 = scmp.eq.s32.totalorder %s13, 1
    %p30 = por %p28, %p29
    %p31 = scmp.ne.s32.totalorder %s23, %s26
    %p32 = scmp.eq.s32.totalorder %s13, 0
    %p33 = por %p31, %p32
    %p34 = scmp.ne.s32.totalorder %s23, %s26
    %p35 = scmp.eq.s32.totalorder %s18, 1
    %p36 = por %p34, %p35
    %p37 = scmp.ne.s32.totalorder %s26, %s27
    %p38 = scmp.eq.s32.totalorder %s18, 0
    %p39 = por %p37, %p38
    %p40 = scmp.ne.s32.totalorder %s26, %s27
    %p41 = scmp.eq.s32.totalorder %s19, 1
    %p42 = por %p40, %p41
    %p44 = scmp.ne.s32.totalorder %s27, %s43
    %p45 = scmp.eq.s32.totalorder %s19, 0
    %p46 = por %p44, %p45
    %s48 = sadd.s32 %s47, 1
    %p51 = scmp.eq.s32.totalorder %s13, 1
    %p52 = scmp.ne.s32.totalorder %s47, %s49
    %p53 = scmp.eq.s32.totalorder %s13, 0
    %p54 = por %p52, %p53
    %p55 = scmp.ne.s32.totalorder %s47, %s49
    %p56 = scmp.eq.s32.totalorder %s18, 1
    %p57 = por %p55, %p56
    %p58 = scmp.ne.s32.totalorder %s49, %s50
    %p59 = scmp.eq.s32.totalorder %s18, 0
    %p60 = por %p58, %p59
    %p61 = scmp.ne.s32.totalorder %s49, %s50
    %p62 = scmp.eq.s32.totalorder %s19, 1
    %p63 = por %p61, %p62
    %p65 = scmp.ne.s32.totalorder %s50, %s64
    %p66 = scmp.eq.s32.totalorder %s19, 0
    %p67 = por %p65, %p66
    %s69 = sadd.s32 %s68, 1
    %p72 = scmp.eq.s32.totalorder %s13, 1
    %p73 = scmp.ne.s32.totalorder %s68, %s70
    %p74 = scmp.eq.s32.totalorder %s13, 0
    %p75 = por %p73, %p74
    %p76 = scmp.ne.s32.totalorder %s68, %s70
    %p77 = scmp.eq.s32.totalorder %s18, 1
    %p78 = por %p76, %p77
    %p79 = scmp.ne.s32.totalorder %s70, %s71
    %p80 = scmp.eq.s32.totalorder %s18, 0
    %p81 = por %p79, %p80
    %p82 = scmp.ne.s32.totalorder %s70, %s71
    %p83 = scmp.eq.s32.totalorder %s19, 1
    %p84 = por %p82, %p83
    %p86 = scmp.ne.s32.totalorder %s71, %s85
    %p87 = scmp.eq.s32.totalorder %s19, 0
    %p88 = por %p86, %p87
    %s90 = sadd.s32 %s89, 1
    %p93 = scmp.eq.s32.totalorder %s13, 1
    %p94 = scmp.ne.s32.totalorder %s89, %s91
    %p95 = scmp.eq.s32.totalorder %s13, 0
    %p96 = por %p94, %p95
    %p97 = scmp.ne.s32.totalorder %s89, %s91
    %p98 = scmp.eq.s32.totalorder %s18, 1
    %p99 = por %p97, %p98
    %p100 = scmp.ne.s32.totalorder %s91, %s92
    %p101 = scmp.eq.s32.totalorder %s18, 0
    %p102 = por %p100, %p101
    %p103 = scmp.ne.s32.totalorder %s91, %s92
    %p104 = scmp.eq.s32.totalorder %s19, 1
    %p105 = por %p103, %p104
    %p107 = scmp.ne.s32.totalorder %s92, %s106
    %p108 = scmp.eq.s32.totalorder %s19, 0
    %p109 = por %p107, %p108
    %s111 = sadd.s32 %s110, 1
    %p114 = scmp.eq.s32.totalorder %s13, 1
    %p115 = scmp.ne.s32.totalorder %s110, %s112
    %p116 = scmp.eq.s32.totalorder %s13, 0
    %p117 = por %p115, %p116
    %p118 = scmp.ne.s32.totalorder %s110, %s112
    %p119 = scmp.eq.s32.totalorder %s18, 1
    %p120 = por %p118, %p119
    %p121 = scmp.ne.s32.totalorder %s112, %s113
    %p122 = scmp.eq.s32.totalorder %s18, 0
    %p123 = por %p121, %p122
    %p124 = scmp.ne.s32.totalorder %s112, %s113
    %p125 = scmp.eq.s32.totalorder %s19, 1
    %p126 = por %p124, %p125
    %p128 = scmp.ne.s32.totalorder %s113, %s127
    %p129 = scmp.eq.s32.totalorder %s19, 0
    %p130 = por %p128, %p129
    %s132 = sadd.s32 %s131, 1
    %p135 = scmp.eq.s32.totalorder %s13, 1
    %p136 = scmp.ne.s32.totalorder %s131, %s133
    %p137 = scmp.eq.s32.totalorder %s13, 0
    %p138 = por %p136, %p137
    %p139 = scmp.ne.s32.totalorder %s131, %s133
    %p140 = scmp.eq.s32.totalorder %s18, 1
    %p141 = por %p139, %p140
    %p142 = scmp.ne.s32.totalorder %s133, %s134
    %p143 = scmp.eq.s32.totalorder %s18, 0
    %p144 = por %p142, %p143
    %p145 = scmp.ne.s32.totalorder %s133, %s134
    %p146 = scmp.eq.s32.totalorder %s19, 1
    %p147 = por %p145, %p146
    %p149 = scmp.ne.s32.totalorder %s134, %s148
    %p150 = scmp.eq.s32.totalorder %s19, 0
    %p151 = por %p149, %p150
    %s152 = ssub.s32 %s13, %s20
    %p153 = scmp.eq.s32.totalorder %s152, 0
    %s155 = sadd.s32 %s154, 1
    %s156 = scalar_select %p153, %s154, %s155
    %p159 = pneg %p153
    %p160 = scmp.eq.s32.totalorder %s13, 1
    %p161 = por %p159, %p160
    %p162 = scmp.ne.s32.totalorder %s154, %s157
    %p163 = scmp.eq.s32.totalorder %s13, 0
    %p164 = por %p162, %p163
    %p165 = scmp.ne.s32.totalorder %s154, %s157
    %p166 = scmp.eq.s32.totalorder %s18, 1
    %p167 = por %p165, %p166
    %p168 = scmp.ne.s32.totalorder %s157, %s158
    %p169 = scmp.eq.s32.totalorder %s18, 0
    %p170 = por %p168, %p169
    %p171 = scmp.ne.s32.totalorder %s157, %s158
    %p172 = scmp.eq.s32.totalorder %s19, 1
    %p173 = por %p171, %p172
    %p175 = scmp.ne.s32.totalorder %s158, %s174
    %p176 = scmp.eq.s32.totalorder %s19, 0
    %p177 = por %p175, %p176
    %s178 = ssub.s32 %s13, %s20
    %p179 = scmp.eq.s32.totalorder %s178, 0
    %s181 = sadd.s32 %s180, 1
    %s182 = scalar_select %p179, %s180, %s181
    %p185 = pneg %p179
    %p186 = scmp.eq.s32.totalorder %s13, 1
    %p187 = por %p185, %p186
    %p188 = scmp.ne.s32.totalorder %s180, %s183
    %p189 = scmp.eq.s32.totalorder %s13, 0
    %p190 = por %p188, %p189
    %p191 = scmp.ne.s32.totalorder %s180, %s183
    %p192 = scmp.eq.s32.totalorder %s18, 1
    %p193 = por %p191, %p192
    %p194 = scmp.ne.s32.totalorder %s183, %s184
    %p195 = scmp.eq.s32.totalorder %s18, 0
    %p196 = por %p194, %p195
    %p197 = scmp.ne.s32.totalorder %s183, %s184
    %p198 = scmp.eq.s32.totalorder %s19, 1
    %p199 = por %p197, %p198
    %p201 = scmp.ne.s32.totalorder %s184, %s200
    %p202 = scmp.eq.s32.totalorder %s19, 0
    %p203 = por %p201, %p202
    %p204 = scmp.le.s32.totalorder 1, %s13
    %p205 = scmp.lt.s32.totalorder %s13, 3
    %p206 = pnand %p204, %p205
    %p207 = pneg %p206
    // Predicated region
    $region9: #{bottleneck_forward.7} parent=5 // pred_check
      _
    $region10: #{bottleneck_forward.7} parent=5 // pred_check_branch
      %209 = sbr.rel (%p206) target = $region12
    $region11: #{bottleneck_forward.7} parent=5 // pred_region
      %s210 = ssub.s32 %s13, 1
      // Predicated region
      $region13: #{bottleneck_forward.7} parent=11 // pred_check
        %p211 = pneg %p60
      $region14: #{bottleneck_forward.7} parent=11 // pred_check_branch
        %213 = sbr.rel (%p211) target = $region16
      $region15: #{bottleneck_forward.7} parent=11 // pred_region
        _
      $region16: #{bottleneck_forward.7} parent=11 // pred_fallthru
        _
      // Predicated region
      $region17: #{bottleneck_forward.7} parent=11 // pred_check
        %p214 = pneg %p81
      $region18: #{bottleneck_forward.7} parent=11 // pred_check_branch
        %216 = sbr.rel (%p214) target = $region20
      $region19: #{bottleneck_forward.7} parent=11 // pred_region
        _
      $region20: #{bottleneck_forward.7} parent=11 // pred_fallthru
        _
      // Predicated region
      $region21: #{bottleneck_forward.7} parent=11 // pred_check
        %p217 = pneg %p102
      $region22: #{bottleneck_forward.7} parent=11 // pred_check_branch
        %219 = sbr.rel (%p217) target = $region24
      $region23: #{bottleneck_forward.7} parent=11 // pred_region
        _
      $region24: #{bottleneck_forward.7} parent=11 // pred_fallthru
        _
      // Predicated region
      $region25: #{bottleneck_forward.7} parent=11 // pred_check
        %p220 = pneg %p123
      $region26: #{bottleneck_forward.7} parent=11 // pred_check_branch
        %222 = sbr.rel (%p220) target = $region28
      $region27: #{bottleneck_forward.7} parent=11 // pred_region
        _
      $region28: #{bottleneck_forward.7} parent=11 // pred_fallthru
        _
      // Predicated region
      $region29: #{bottleneck_forward.7} parent=11 // pred_check
        %p223 = pneg %p144
      $region30: #{bottleneck_forward.7} parent=11 // pred_check_branch
        %225 = sbr.rel (%p223) target = $region32
      $region31: #{bottleneck_forward.7} parent=11 // pred_region
        _
      $region32: #{bottleneck_forward.7} parent=11 // pred_fallthru
        _
    $region12: #{bottleneck_forward.7} parent=5 // pred_fallthru
      _
    %p226 = scmp.lt.s32.totalorder %s13, 2
    // Predicated region
    $region33: #{bottleneck_forward.7} parent=5 // pred_check
      %p227 = pneg %p226
    $region34: #{bottleneck_forward.7} parent=5 // pred_check_branch
      %229 = sbr.rel (%p227) target = $region36
    $region35: #{bottleneck_forward.7} parent=5 // pred_region
      // Predicated region
      $region37: #{bottleneck_forward.7} parent=35 // pred_check
        %p230 = pneg %p33
      $region38: #{bottleneck_forward.7} parent=35 // pred_check_branch
        %232 = sbr.rel (%p230) target = $region40
      $region39: #{bottleneck_forward.7} parent=35 // pred_region
        %s233 = smul.u32 32, %s13
        %p234 = scmp.lt.s32.totalorder %s233, 63
        %s235 = scalar_select %p234, %s233, 63
        %s236 = smul.addr %s235, 4
        %s237 = scalar_lea.vmem %s0, %s236
        %s238 = smul.u32 32, %s13
      $region40: #{bottleneck_forward.7} parent=35 // pred_fallthru
        _
      // Predicated region
      $region41: #{bottleneck_forward.7} parent=35 // pred_check
        %p239 = pneg %p164
      $region42: #{bottleneck_forward.7} parent=35 // pred_check_branch
        %241 = sbr.rel (%p239) target = $region44
      $region43: #{bottleneck_forward.7} parent=35 // pred_region
        %s242 = smul.u32 32, %s13
        %p243 = scmp.lt.s32.totalorder %s242, 63
        %s244 = scalar_select %p243, %s242, 63
        %s245 = smul.addr %s244, 8
        %s246 = scalar_lea.vmem %s6, %s245
        %s247 = smul.u32 32, %s13
      $region44: #{bottleneck_forward.7} parent=35 // pred_fallthru
        _
    $region36: #{bottleneck_forward.7} parent=5 // pred_fallthru
      _
    %p248 = scmp.le.s32.totalorder 1, %s13
    %p249 = scmp.lt.s32.totalorder %s13, 3
    %p250 = pnand %p248, %p249
    %p251 = pneg %p250
    // Predicated region
    $region45: #{bottleneck_forward.7} parent=5 // pred_check
      _
    $region46: #{bottleneck_forward.7} parent=5 // pred_check_branch
      %253 = sbr.rel (%p250) target = $region48
    $region47: #{bottleneck_forward.7} parent=5 // pred_region
      %s254 = ssub.s32 %s13, 1
      %s255 = smul.u32 32, %s18
      %p256 = scmp.lt.s32.totalorder %s255, 63
      %s257 = scalar_select %p256, %s255, 63
      %s258 = smul.addr %s257, 4
      %s259 = scalar_lea.vmem %s0, %s258
      %p260 = pneg %p39
      %p261 = pneg %p36
      %p262 = pneg %p60
      %p263 = pneg %p57
      %p264 = pneg %p81
      %p265 = pneg %p78
      %p266 = pneg %p102
      %p267 = pneg %p99
      %p268 = pneg %p123
      %p269 = pneg %p120
      %p270 = pneg %p144
      %p271 = pneg %p141
      %s272 = smul.u32 32, %s18
      %p273 = scmp.lt.s32.totalorder %s272, 63
      %s274 = scalar_select %p273, %s272, 63
      %s275 = smul.addr %s274, 8
      %s276 = scalar_lea.vmem %s6, %s275
      %p277 = pneg %p170
      %p278 = pneg %p167
      %p279 = pneg %p196
      %p280 = pneg %p193
      %s281 = smul.u32 32, %s18
      %p282 = scmp.lt.s32.totalorder %s281, 63
      %s283 = scalar_select %p282, %s281, 63
      %s284 = smul.addr %s283, 8
      %s285 = scalar_lea.vmem %s7, %s284
      %s286 = smul.u32 32, %s18
      %p287 = scmp.lt.s32.totalorder %s286, 63
      %s288 = scalar_select %p287, %s286, 63
      %s289 = smul.addr %s288, 4
      %s290 = scalar_lea.vmem %s0, %s289
      %s291 = smul.u32 32, %s18
      %s292 = smul.u32 32, %s18
      %p293 = scmp.lt.s32.totalorder %s292, 63
      %s294 = scalar_select %p293, %s292, 63
      %s295 = smul.addr %s294, 8
      %s296 = scalar_lea.vmem %s6, %s295
      %s297 = smul.u32 32, %s18
      %s298 = smul.u32 32, %s18
      %p299 = scmp.lt.s32.totalorder %s298, 63
      %s300 = scalar_select %p299, %s298, 63
      %s301 = smul.addr %s300, 8
      %s302 = scalar_lea.vmem %s7, %s301
      %s303 = smul.u32 32, %s18
      %v305 = vld [vmem:[%s290] sm:$0xf]
      %v306 = vld [vmem:[%s290 + $0x4] sm:$0xf]
      %v307 = vld [vmem:[%s290 + $0x8] sm:$0xf]
      %v308 = vld [vmem:[%s290 + $0xc] sm:$0xf]
      %v309 = vld [vmem:[%s290 + $0x10] sm:$0xf]
      %v310 = vld [vmem:[%s290 + $0x14] sm:$0xf]
      %v311 = vld [vmem:[%s290 + $0x18] sm:$0xf]
      %v312 = vld [vmem:[%s290 + $0x1c] sm:$0xf]
      %v313 = vld [vmem:[%s290 + $0x20] sm:$0xf]
      %v314 = vld [vmem:[%s290 + $0x24] sm:$0xf]
      %v315 = vld [vmem:[%s290 + $0x28] sm:$0xf]
      %v316 = vld [vmem:[%s290 + $0x2c] sm:$0xf]
      %v317 = vld [vmem:[%s290 + $0x30] sm:$0xf]
      %v318 = vld [vmem:[%s290 + $0x34] sm:$0xf]
      %v319 = vld [vmem:[%s290 + $0x38] sm:$0xf]
      %v320 = vld [vmem:[%s290 + $0x3c] sm:$0xf]
      %v321 = vld [vmem:[%s290 + $0x40] sm:$0xf]
      %v322 = vld [vmem:[%s290 + $0x44] sm:$0xf]
      %v323 = vld [vmem:[%s290 + $0x48] sm:$0xf]
      %v324 = vld [vmem:[%s290 + $0x4c] sm:$0xf]
      %v325 = vld [vmem:[%s290 + $0x50] sm:$0xf]
      %v326 = vld [vmem:[%s290 + $0x54] sm:$0xf]
      %v327 = vld [vmem:[%s290 + $0x58] sm:$0xf]
      %v328 = vld [vmem:[%s290 + $0x5c] sm:$0xf]
      %v329 = vld [vmem:[%s290 + $0x60] sm:$0xf]
      %v330 = vld [vmem:[%s290 + $0x64] sm:$0xf]
      %v331 = vld [vmem:[%s290 + $0x68] sm:$0xf]
      %v332 = vld [vmem:[%s290 + $0x6c] sm:$0xf]
      %v333 = vld [vmem:[%s290 + $0x70] sm:$0xf]
      %v334 = vld [vmem:[%s290 + $0x74] sm:$0xf]
      %v335 = vld [vmem:[%s290 + $0x78] sm:$0xf]
      %v336 = vld [vmem:[%s290 + $0x7c] sm:$0xf]
      %v337 = vunpack.c.l.bf16 %v305
      %v338 = vunpack.c.l.bf16 %v306
      %v339 = vunpack.c.l.bf16 %v307
      %v340 = vunpack.c.l.bf16 %v308
      %v341 = vunpack.c.l.bf16 %v309
      %v342 = vunpack.c.l.bf16 %v310
      %v343 = vunpack.c.l.bf16 %v311
      %v344 = vunpack.c.l.bf16 %v312
      %v345 = vunpack.c.l.bf16 %v313
      %v346 = vunpack.c.l.bf16 %v314
      %v347 = vunpack.c.l.bf16 %v315
      %v348 = vunpack.c.l.bf16 %v316
      %v349 = vunpack.c.l.bf16 %v317
      %v350 = vunpack.c.l.bf16 %v318
      %v351 = vunpack.c.l.bf16 %v319
      %v352 = vunpack.c.l.bf16 %v320
      %v353 = vunpack.c.l.bf16 %v321
      %v354 = vunpack.c.l.bf16 %v322
      %v355 = vunpack.c.l.bf16 %v323
      %v356 = vunpack.c.l.bf16 %v324
      %v357 = vunpack.c.l.bf16 %v325
      %v358 = vunpack.c.l.bf16 %v326
      %v359 = vunpack.c.l.bf16 %v327
      %v360 = vunpack.c.l.bf16 %v328
      %v361 = vunpack.c.l.bf16 %v329
      %v362 = vunpack.c.l.bf16 %v330
      %v363 = vunpack.c.l.bf16 %v331
      %v364 = vunpack.c.l.bf16 %v332
      %v365 = vunpack.c.l.bf16 %v333
      %v366 = vunpack.c.l.bf16 %v334
      %v367 = vunpack.c.l.bf16 %v335
      %v368 = vunpack.c.l.bf16 %v336
      %v369 = vld [vmem:[%s1] sm:$0x1]
      %v371 = vlaneseq
      %v372 = vshrl.u32 %v371, 7
      %v373 = vsub.s32 0, %v372
      %v374 = vrot.slane %v369, %v373
      %v376 = vmul.f32 %v337, %v374
      %v377 = vmul.f32 %v338, %v374
      %v378 = vmul.f32 %v339, %v374
      %v379 = vmul.f32 %v340, %v374
      %v380 = vmul.f32 %v341, %v374
      %v381 = vmul.f32 %v342, %v374
      %v382 = vmul.f32 %v343, %v374
      %v383 = vmul.f32 %v344, %v374
      %v384 = vmul.f32 %v345, %v374
      %v385 = vmul.f32 %v346, %v374
      %v386 = vmul.f32 %v347, %v374
      %v387 = vmul.f32 %v348, %v374
      %v388 = vmul.f32 %v349, %v374
      %v389 = vmul.f32 %v350, %v374
      %v390 = vmul.f32 %v351, %v374
      %v391 = vmul.f32 %v352, %v374
      %v392 = vmul.f32 %v353, %v374
      %v393 = vmul.f32 %v354, %v374
      %v394 = vmul.f32 %v355, %v374
      %v395 = vmul.f32 %v356, %v374
      %v396 = vmul.f32 %v357, %v374
      %v397 = vmul.f32 %v358, %v374
      %v398 = vmul.f32 %v359, %v374
      %v399 = vmul.f32 %v360, %v374
      %v400 = vmul.f32 %v361, %v374
      %v401 = vmul.f32 %v362, %v374
      %v402 = vmul.f32 %v363, %v374
      %v403 = vmul.f32 %v364, %v374
      %v404 = vmul.f32 %v365, %v374
      %v405 = vmul.f32 %v366, %v374
      %v406 = vmul.f32 %v367, %v374
      %v407 = vmul.f32 %v368, %v374
      %v408 = vld [vmem:[%s2] sm:$0x1]
      %v410 = vlaneseq
      %v411 = vshrl.u32 %v410, 7
      %v412 = vsub.s32 0, %v411
      %v413 = vrot.slane %v408, %v412
      %v415 = vadd.f32 %v376, %v413
      %v416 = vadd.f32 %v377, %v413
      %v417 = vadd.f32 %v378, %v413
      %v418 = vadd.f32 %v379, %v413
      %v419 = vadd.f32 %v380, %v413
      %v420 = vadd.f32 %v381, %v413
      %v421 = vadd.f32 %v382, %v413
      %v422 = vadd.f32 %v383, %v413
      %v423 = vadd.f32 %v384, %v413
      %v424 = vadd.f32 %v385, %v413
      %v425 = vadd.f32 %v386, %v413
      %v426 = vadd.f32 %v387, %v413
      %v427 = vadd.f32 %v388, %v413
      %v428 = vadd.f32 %v389, %v413
      %v429 = vadd.f32 %v390, %v413
      %v430 = vadd.f32 %v391, %v413
      %v431 = vadd.f32 %v392, %v413
      %v432 = vadd.f32 %v393, %v413
      %v433 = vadd.f32 %v394, %v413
      %v434 = vadd.f32 %v395, %v413
      %v435 = vadd.f32 %v396, %v413
      %v436 = vadd.f32 %v397, %v413
      %v437 = vadd.f32 %v398, %v413
      %v438 = vadd.f32 %v399, %v413
      %v439 = vadd.f32 %v400, %v413
      %v440 = vadd.f32 %v401, %v413
      %v441 = vadd.f32 %v402, %v413
      %v442 = vadd.f32 %v403, %v413
      %v443 = vadd.f32 %v404, %v413
      %v444 = vadd.f32 %v405, %v413
      %v445 = vadd.f32 %v406, %v413
      %v446 = vadd.f32 %v407, %v413
      %v447 = vmax.f32 %v415, 0.0
      %v448 = vmax.f32 %v416, 0.0
      %v449 = vmax.f32 %v417, 0.0
      %v450 = vmax.f32 %v418, 0.0
      %v451 = vmax.f32 %v419, 0.0
      %v452 = vmax.f32 %v420, 0.0
      %v453 = vmax.f32 %v421, 0.0
      %v454 = vmax.f32 %v422, 0.0
      %v455 = vmax.f32 %v423, 0.0
      %v456 = vmax.f32 %v424, 0.0
      %v457 = vmax.f32 %v425, 0.0
      %v458 = vmax.f32 %v426, 0.0
      %v459 = vmax.f32 %v427, 0.0
      %v460 = vmax.f32 %v428, 0.0
      %v461 = vmax.f32 %v429, 0.0
      %v462 = vmax.f32 %v430, 0.0
      %v463 = vmax.f32 %v431, 0.0
      %v464 = vmax.f32 %v432, 0.0
      %v465 = vmax.f32 %v433, 0.0
      %v466 = vmax.f32 %v434, 0.0
      %v467 = vmax.f32 %v435, 0.0
      %v468 = vmax.f32 %v436, 0.0
      %v469 = vmax.f32 %v437, 0.0
      %v470 = vmax.f32 %v438, 0.0
      %v471 = vmax.f32 %v439, 0.0
      %v472 = vmax.f32 %v440, 0.0
      %v473 = vmax.f32 %v441, 0.0
      %v474 = vmax.f32 %v442, 0.0
      %v475 = vmax.f32 %v443, 0.0
      %v476 = vmax.f32 %v444, 0.0
      %v477 = vmax.f32 %v445, 0.0
      %v478 = vmax.f32 %v446, 0.0
      %v479 = vpack.c.bf16 %v448, %v447
      %v480 = vpack.c.bf16 %v450, %v449
      %v481 = vpack.c.bf16 %v452, %v451
      %v482 = vpack.c.bf16 %v454, %v453
      %v483 = vpack.c.bf16 %v456, %v455
      %v484 = vpack.c.bf16 %v458, %v457
      %v485 = vpack.c.bf16 %v460, %v459
      %v486 = vpack.c.bf16 %v462, %v461
      %v487 = vpack.c.bf16 %v464, %v463
      %v488 = vpack.c.bf16 %v466, %v465
      %v489 = vpack.c.bf16 %v468, %v467
      %v490 = vpack.c.bf16 %v470, %v469
      %v491 = vpack.c.bf16 %v472, %v471
      %v492 = vpack.c.bf16 %v474, %v473
      %v493 = vpack.c.bf16 %v476, %v475
      %v494 = vpack.c.bf16 %v478, %v477
      %v495 = vld [vmem:[%s3] sm:$0xf]
      %v496 = vld [vmem:[%s3 + $0x4] sm:$0xf]
      %v497 = vld [vmem:[%s3 + $0x8] sm:$0xf]
      %v498 = vld [vmem:[%s3 + $0xc] sm:$0xf]
      %v499 = vld [vmem:[%s3 + $0x10] sm:$0xf]
      %v500 = vld [vmem:[%s3 + $0x14] sm:$0xf]
      %v501 = vld [vmem:[%s3 + $0x18] sm:$0xf]
      %v502 = vld [vmem:[%s3 + $0x1c] sm:$0xf]
      %v503 = vld [vmem:[%s3 + $0x20] sm:$0xf]
      %v504 = vld [vmem:[%s3 + $0x24] sm:$0xf]
      %v505 = vld [vmem:[%s3 + $0x28] sm:$0xf]
      %v506 = vld [vmem:[%s3 + $0x2c] sm:$0xf]
      %v507 = vld [vmem:[%s3 + $0x30] sm:$0xf]
      %v508 = vld [vmem:[%s3 + $0x34] sm:$0xf]
      %v509 = vld [vmem:[%s3 + $0x38] sm:$0xf]
      %v510 = vld [vmem:[%s3 + $0x3c] sm:$0xf]
      %v527 = vunpack.c.l.b16 %v495
      %v528 = vunpack.c.l.b16 %v496
      %v529 = vunpack.c.l.b16 %v497
      %v530 = vunpack.c.l.b16 %v498
      %v531 = vunpack.c.l.b16 %v499
      %v532 = vunpack.c.l.b16 %v500
      %v533 = vunpack.c.l.b16 %v501
      %v534 = vunpack.c.l.b16 %v502
      %v535 = vunpack.c.l.b16 %v503
      %v536 = vunpack.c.l.b16 %v504
      %v537 = vunpack.c.l.b16 %v505
      %v538 = vunpack.c.l.b16 %v506
      %v539 = vunpack.c.l.b16 %v507
      %v540 = vunpack.c.l.b16 %v508
      %v541 = vunpack.c.l.b16 %v509
      %v542 = vunpack.c.l.b16 %v510
      %v543 = vpack.c.b16 %v528, %v527
      %v544 = vpack.c.b16 %v530, %v529
      %v545 = vpack.c.b16 %v532, %v531
      %v546 = vpack.c.b16 %v534, %v533
      %v547 = vpack.c.b16 %v536, %v535
      %v548 = vpack.c.b16 %v538, %v537
      %v549 = vpack.c.b16 %v540, %v539
      %v550 = vpack.c.b16 %v542, %v541
      %559 = vmatprep.subr.bf16.mxu0 0
      %560 = vmatpush1.bf16.msra.mxu0 %v543
      %561 = vmatprep.subr.bf16.mxu0 0
      %562 = vmatpush1.bf16.msra.mxu0 %v544
      %563 = vmatprep.subr.bf16.mxu0 0
      %564 = vmatpush1.bf16.msra.mxu0 %v545
      %565 = vmatprep.subr.bf16.mxu0 0
      %566 = vmatpush1.bf16.msra.mxu0 %v546
      %567 = vmatprep.subr.bf16.mxu0 0
      %568 = vmatpush1.bf16.msra.mxu0 %v547
      %569 = vmatprep.subr.bf16.mxu0 0
      %570 = vmatpush1.bf16.msra.mxu0 %v548
      %571 = vmatprep.subr.bf16.mxu0 0
      %572 = vmatpush1.bf16.msra.mxu0 %v549
      %573 = vmatprep.subr.bf16.mxu0 0
      %574 = vmatpush1.bf16.msra.mxu0 %v550
      %575 = vmatprep.subr.bf16.mxu0 0
      %576 = vmatpush1.bf16.msra.mxu0 0
      %577 = vmatprep.subr.bf16.mxu0 0
      %578 = vmatpush1.bf16.msra.mxu0 0
      %579 = vmatprep.subr.bf16.mxu0 0
      %580 = vmatpush1.bf16.msra.mxu0 0
      %581 = vmatprep.subr.bf16.mxu0 0
      %582 = vmatpush1.bf16.msra.mxu0 0
      %583 = vmatprep.subr.bf16.mxu0 0
      %584 = vmatpush1.bf16.msra.mxu0 0
      %585 = vmatprep.subr.bf16.mxu0 0
      %586 = vmatpush1.bf16.msra.mxu0 0
      %587 = vmatprep.subr.bf16.mxu0 0
      %588 = vmatpush1.bf16.msra.mxu0 0
      %589 = vmatprep.subr.bf16.mxu0 0
      %590 = vmatpush1.bf16.msra.mxu0 0
      %591 = vmatprep.mubr.bf16.mxu0 0
      %592 = vmatmul.mubr.bf16.gmra.mrb[0].mxu0 %v479
      %v593 = vpop.f32.mrb[0].mxu0
      %v594 = vadd.f32 0.0, %v593
      %v595 = vpop.f32.mrb[0].mxu0
      %v596 = vpop.f32.mrb[0].mxu0
      %v597 = vadd.f32 0.0, %v596
      %v598 = vpop.f32.mrb[0].mxu0
      %599 = vmatprep.mubr.bf16.mxu0 0
      %600 = vmatmul.mubr.bf16.gmra.mrb[0].mxu0 %v480
      %v601 = vpop.f32.mrb[0].mxu0
      %v602 = vadd.f32 0.0, %v601
      %v603 = vpop.f32.mrb[0].mxu0
      %v604 = vpop.f32.mrb[0].mxu0
      %v605 = vadd.f32 0.0, %v604
      %v606 = vpop.f32.mrb[0].mxu0
      %607 = vmatprep.mubr.bf16.mxu0 0
      %608 = vmatmul.mubr.bf16.gmra.mrb[0].mxu0 %v481
      %v609 = vpop.f32.mrb[0].mxu0
      %v610 = vadd.f32 0.0, %v609
      %v611 = vpop.f32.mrb[0].mxu0
      %v612 = vpop.f32.mrb[0].mxu0
      %v613 = vadd.f32 0.0, %v612
      %v614 = vpop.f32.mrb[0].mxu0
      %615 = vmatprep.mubr.bf16.mxu0 0
      %616 = vmatmul.mubr.bf16.gmra.mrb[0].mxu0 %v482
      %v617 = vpop.f32.mrb[0].mxu0
      %v618 = vadd.f32 0.0, %v617
      %v619 = vpop.f32.mrb[0].mxu0
      %v620 = vpop.f32.mrb[0].mxu0
      %v621 = vadd.f32 0.0, %v620
      %v622 = vpop.f32.mrb[0].mxu0
      %623 = vmatprep.mubr.bf16.mxu0 0
      %624 = vmatmul.mubr.bf16.gmra.mrb[0].mxu0 %v483
      %v625 = vpop.f32.mrb[0].mxu0
      %v626 = vadd.f32 0.0, %v625
      %v627 = vpop.f32.mrb[0].mxu0
      %v628 = vpop.f32.mrb[0].mxu0
      %v629 = vadd.f32 0.0, %v628
      %v630 = vpop.f32.mrb[0].mxu0
      %631 = vmatprep.mubr.bf16.mxu0 0
      %632 = vmatmul.mubr.bf16.gmra.mrb[0].mxu0 %v484
      %v633 = vpop.f32.mrb[0].mxu0
      %v634 = vadd.f32 0.0, %v633
      %v635 = vpop.f32.mrb[0].mxu0
      %v636 = vpop.f32.mrb[0].mxu0
      %v637 = vadd.f32 0.0, %v636
      %v638 = vpop.f32.mrb[0].mxu0
      %639 = vmatprep.mubr.bf16.mxu0 0
      %640 = vmatmul.mubr.bf16.gmra.mrb[0].mxu0 %v485
      %v641 = vpop.f32.mrb[0].mxu0
      %v642 = vadd.f32 0.0, %v641
      %v643 = vpop.f32.mrb[0].mxu0
      %v644 = vpop.f32.mrb[0].mxu0
      %v645 = vadd.f32 0.0, %v644
      %v646 = vpop.f32.mrb[0].mxu0
      %647 = vmatprep.mubr.bf16.mxu0 0
      %648 = vmatmul.mubr.bf16.gmra.mrb[0].mxu0 %v486
      %v649 = vpop.f32.mrb[0].mxu0
      %v650 = vadd.f32 0.0, %v649
      %v651 = vpop.f32.mrb[0].mxu0
      %v652 = vpop.f32.mrb[0].mxu0
      %v653 = vadd.f32 0.0, %v652
      %v654 = vpop.f32.mrb[0].mxu0
      %655 = vmatprep.mubr.bf16.mxu0 0
      %656 = vmatmul.mubr.bf16.gmra.mrb[0].mxu0 %v487
      %v657 = vpop.f32.mrb[0].mxu0
      %v658 = vadd.f32 0.0, %v657
      %v659 = vpop.f32.mrb[0].mxu0
      %v660 = vpop.f32.mrb[0].mxu0
      %v661 = vadd.f32 0.0, %v660
      %v662 = vpop.f32.mrb[0].mxu0
      %663 = vmatprep.mubr.bf16.mxu0 0
      %664 = vmatmul.mubr.bf16.gmra.mrb[0].mxu0 %v488
      %v665 = vpop.f32.mrb[0].mxu0
      %v666 = vadd.f32 0.0, %v665
      %v667 = vpop.f32.mrb[0].mxu0
      %v668 = vpop.f32.mrb[0].mxu0
      %v669 = vadd.f32 0.0, %v668
      %v670 = vpop.f32.mrb[0].mxu0
      %671 = vmatprep.mubr.bf16.mxu0 0
      %672 = vmatmul.mubr.bf16.gmra.mrb[0].mxu0 %v489
      %v673 = vpop.f32.mrb[0].mxu0
      %v674 = vadd.f32 0.0, %v673
      %v675 = vpop.f32.mrb[0].mxu0
      %v676 = vpop.f32.mrb[0].mxu0
      %v677 = vadd.f32 0.0, %v676
      %v678 = vpop.f32.mrb[0].mxu0
      %679 = vmatprep.mubr.bf16.mxu0 0
      %680 = vmatmul.mubr.bf16.gmra.mrb[0].mxu0 %v490
      %v681 = vpop.f32.mrb[0].mxu0
      %v682 = vadd.f32 0.0, %v681
      %v683 = vpop.f32.mrb[0].mxu0
      %v684 = vpop.f32.mrb[0].mxu0
      %v685 = vadd.f32 0.0, %v684
      %v686 = vpop.f32.mrb[0].mxu0
      %687 = vmatprep.mubr.bf16.mxu0 0
      %688 = vmatmul.mubr.bf16.gmra.mrb[0].mxu0 %v491
      %v689 = vpop.f32.mrb[0].mxu0
      %v690 = vadd.f32 0.0, %v689
      %v691 = vpop.f32.mrb[0].mxu0
      %v692 = vpop.f32.mrb[0].mxu0
      %v693 = vadd.f32 0.0, %v692
      %v694 = vpop.f32.mrb[0].mxu0
      %695 = vmatprep.mubr.bf16.mxu0 0
      %696 = vmatmul.mubr.bf16.gmra.mrb[0].mxu0 %v492
      %v697 = vpop.f32.mrb[0].mxu0
      %v698 = vadd.f32 0.0, %v697
      %v699 = vpop.f32.mrb[0].mxu0
      %v700 = vpop.f32.mrb[0].mxu0
      %v701 = vadd.f32 0.0, %v700
      %v702 = vpop.f32.mrb[0].mxu0
      %703 = vmatprep.mubr.bf16.mxu0 0
      %704 = vmatmul.mubr.bf16.gmra.mrb[0].mxu0 %v493
      %v705 = vpop.f32.mrb[0].mxu0
      %v706 = vadd.f32 0.0, %v705
      %v707 = vpop.f32.mrb[0].mxu0
      %v708 = vpop.f32.mrb[0].mxu0
      %v709 = vadd.f32 0.0, %v708
      %v710 = vpop.f32.mrb[0].mxu0
      %711 = vmatprep.mubr.bf16.mxu0 0
      %712 = vmatmul.mubr.bf16.gmra.mrb[0].mxu0 %v494
      %v713 = vpop.f32.mrb[0].mxu0
      %v714 = vadd.f32 0.0, %v713
      %v715 = vpop.f32.mrb[0].mxu0
      %v716 = vpop.f32.mrb[0].mxu0
      %v717 = vadd.f32 0.0, %v716
      %v718 = vpop.f32.mrb[0].mxu0
      %719 = vdwg.mxu0
      %v720 = vld [vmem:[%s4] sm:$0x1]
      %v722 = vlaneseq
      %v723 = vshrl.u32 %v722, 7
      %v724 = vsub.s32 0, %v723
      %v725 = vrot.slane %v720, %v724
      %v727 = vmul.f32 %v594, %v725
      %v728 = vmul.f32 %v597, %v725
      %v729 = vmul.f32 %v602, %v725
      %v730 = vmul.f32 %v605, %v725
      %v731 = vmul.f32 %v610, %v725
      %v732 = vmul.f32 %v613, %v725
      %v733 = vmul.f32 %v618, %v725
      %v734 = vmul.f32 %v621, %v725
      %v735 = vmul.f32 %v626, %v725
      %v736 = vmul.f32 %v629, %v725
      %v737 = vmul.f32 %v634, %v725
      %v738 = vmul.f32 %v637, %v725
      %v739 = vmul.f32 %v642, %v725
      %v740 = vmul.f32 %v645, %v725
      %v741 = vmul.f32 %v650, %v725
      %v742 = vmul.f32 %v653, %v725
      %v743 = vmul.f32 %v658, %v725
      %v744 = vmul.f32 %v661, %v725
      %v745 = vmul.f32 %v666, %v725
      %v746 = vmul.f32 %v669, %v725
      %v747 = vmul.f32 %v674, %v725
      %v748 = vmul.f32 %v677, %v725
      %v749 = vmul.f32 %v682, %v725
      %v750 = vmul.f32 %v685, %v725
      %v751 = vmul.f32 %v690, %v725
      %v752 = vmul.f32 %v693, %v725
      %v753 = vmul.f32 %v698, %v725
      %v754 = vmul.f32 %v701, %v725
      %v755 = vmul.f32 %v706, %v725
      %v756 = vmul.f32 %v709, %v725
      %v757 = vmul.f32 %v714, %v725
      %v758 = vmul.f32 %v717, %v725
      %v759 = vld [vmem:[%s5] sm:$0x1]
      %v761 = vlaneseq
      %v762 = vshrl.u32 %v761, 7
      %v763 = vsub.s32 0, %v762
      %v764 = vrot.slane %v759, %v763
      %v766 = vadd.f32 %v727, %v764
      %v767 = vadd.f32 %v728, %v764
      %v768 = vadd.f32 %v729, %v764
      %v769 = vadd.f32 %v730, %v764
      %v770 = vadd.f32 %v731, %v764
      %v771 = vadd.f32 %v732, %v764
      %v772 = vadd.f32 %v733, %v764
      %v773 = vadd.f32 %v734, %v764
      %v774 = vadd.f32 %v735, %v764
      %v775 = vadd.f32 %v736, %v764
      %v776 = vadd.f32 %v737, %v764
      %v777 = vadd.f32 %v738, %v764
      %v778 = vadd.f32 %v739, %v764
      %v779 = vadd.f32 %v740, %v764
      %v780 = vadd.f32 %v741, %v764
      %v781 = vadd.f32 %v742, %v764
      %v782 = vadd.f32 %v743, %v764
      %v783 = vadd.f32 %v744, %v764
      %v784 = vadd.f32 %v745, %v764
      %v785 = vadd.f32 %v746, %v764
      %v786 = vadd.f32 %v747, %v764
      %v787 = vadd.f32 %v748, %v764
      %v788 = vadd.f32 %v749, %v764
      %v789 = vadd.f32 %v750, %v764
      %v790 = vadd.f32 %v751, %v764
      %v791 = vadd.f32 %v752, %v764
      %v792 = vadd.f32 %v753, %v764
      %v793 = vadd.f32 %v754, %v764
      %v794 = vadd.f32 %v755, %v764
      %v795 = vadd.f32 %v756, %v764
      %v796 = vadd.f32 %v757, %v764
      %v797 = vadd.f32 %v758, %v764
      %v798 = vld [vmem:[%s296] sm:$0xff]
      %v799 = vld [vmem:[%s296 + $0x8] sm:$0xff]
      %v800 = vld [vmem:[%s296 + $0x10] sm:$0xff]
      %v801 = vld [vmem:[%s296 + $0x18] sm:$0xff]
      %v802 = vld [vmem:[%s296 + $0x20] sm:$0xff]
      %v803 = vld [vmem:[%s296 + $0x28] sm:$0xff]
      %v804 = vld [vmem:[%s296 + $0x30] sm:$0xff]
      %v805 = vld [vmem:[%s296 + $0x38] sm:$0xff]
      %v806 = vld [vmem:[%s296 + $0x40] sm:$0xff]
      %v807 = vld [vmem:[%s296 + $0x48] sm:$0xff]
      %v808 = vld [vmem:[%s296 + $0x50] sm:$0xff]
      %v809 = vld [vmem:[%s296 + $0x58] sm:$0xff]
      %v810 = vld [vmem:[%s296 + $0x60] sm:$0xff]
      %v811 = vld [vmem:[%s296 + $0x68] sm:$0xff]
      %v812 = vld [vmem:[%s296 + $0x70] sm:$0xff]
      %v813 = vld [vmem:[%s296 + $0x78] sm:$0xff]
      %v814 = vld [vmem:[%s296 + $0x80] sm:$0xff]
      %v815 = vld [vmem:[%s296 + $0x88] sm:$0xff]
      %v816 = vld [vmem:[%s296 + $0x90] sm:$0xff]
      %v817 = vld [vmem:[%s296 + $0x98] sm:$0xff]
      %v818 = vld [vmem:[%s296 + $0xa0] sm:$0xff]
      %v819 = vld [vmem:[%s296 + $0xa8] sm:$0xff]
      %v820 = vld [vmem:[%s296 + $0xb0] sm:$0xff]
      %v821 = vld [vmem:[%s296 + $0xb8] sm:$0xff]
      %v822 = vld [vmem:[%s296 + $0xc0] sm:$0xff]
      %v823 = vld [vmem:[%s296 + $0xc8] sm:$0xff]
      %v824 = vld [vmem:[%s296 + $0xd0] sm:$0xff]
      %v825 = vld [vmem:[%s296 + $0xd8] sm:$0xff]
      %v826 = vld [vmem:[%s296 + $0xe0] sm:$0xff]
      %v827 = vld [vmem:[%s296 + $0xe8] sm:$0xff]
      %v828 = vld [vmem:[%s296 + $0xf0] sm:$0xff]
      %v829 = vld [vmem:[%s296 + $0xf8] sm:$0xff]
      %v830 = vadd.f32 %v766, %v798
      %v831 = vadd.f32 %v767, %v799
      %v832 = vadd.f32 %v768, %v800
      %v833 = vadd.f32 %v769, %v801
      %v834 = vadd.f32 %v770, %v802
      %v835 = vadd.f32 %v771, %v803
      %v836 = vadd.f32 %v772, %v804
      %v837 = vadd.f32 %v773, %v805
      %v838 = vadd.f32 %v774, %v806
      %v839 = vadd.f32 %v775, %v807
      %v840 = vadd.f32 %v776, %v808
      %v841 = vadd.f32 %v777, %v809
      %v842 = vadd.f32 %v778, %v810
      %v843 = vadd.f32 %v779, %v811
      %v844 = vadd.f32 %v780, %v812
      %v845 = vadd.f32 %v781, %v813
      %v846 = vadd.f32 %v782, %v814
      %v847 = vadd.f32 %v783, %v815
      %v848 = vadd.f32 %v784, %v816
      %v849 = vadd.f32 %v785, %v817
      %v850 = vadd.f32 %v786, %v818
      %v851 = vadd.f32 %v787, %v819
      %v852 = vadd.f32 %v788, %v820
      %v853 = vadd.f32 %v789, %v821
      %v854 = vadd.f32 %v790, %v822
      %v855 = vadd.f32 %v791, %v823
      %v856 = vadd.f32 %v792, %v824
      %v857 = vadd.f32 %v793, %v825
      %v858 = vadd.f32 %v794, %v826
      %v859 = vadd.f32 %v795, %v827
      %v860 = vadd.f32 %v796, %v828
      %v861 = vadd.f32 %v797, %v829
      %v862 = vmax.f32 %v830, 0.0
      %v863 = vmax.f32 %v831, 0.0
      %v864 = vmax.f32 %v832, 0.0
      %v865 = vmax.f32 %v833, 0.0
      %v866 = vmax.f32 %v834, 0.0
      %v867 = vmax.f32 %v835, 0.0
      %v868 = vmax.f32 %v836, 0.0
      %v869 = vmax.f32 %v837, 0.0
      %v870 = vmax.f32 %v838, 0.0
      %v871 = vmax.f32 %v839, 0.0
      %v872 = vmax.f32 %v840, 0.0
      %v873 = vmax.f32 %v841, 0.0
      %v874 = vmax.f32 %v842, 0.0
      %v875 = vmax.f32 %v843, 0.0
      %v876 = vmax.f32 %v844, 0.0
      %v877 = vmax.f32 %v845, 0.0
      %v878 = vmax.f32 %v846, 0.0
      %v879 = vmax.f32 %v847, 0.0
      %v880 = vmax.f32 %v848, 0.0
      %v881 = vmax.f32 %v849, 0.0
      %v882 = vmax.f32 %v850, 0.0
      %v883 = vmax.f32 %v851, 0.0
      %v884 = vmax.f32 %v852, 0.0
      %v885 = vmax.f32 %v853, 0.0
      %v886 = vmax.f32 %v854, 0.0
      %v887 = vmax.f32 %v855, 0.0
      %v888 = vmax.f32 %v856, 0.0
      %v889 = vmax.f32 %v857, 0.0
      %v890 = vmax.f32 %v858, 0.0
      %v891 = vmax.f32 %v859, 0.0
      %v892 = vmax.f32 %v860, 0.0
      %v893 = vmax.f32 %v861, 0.0
      %894 = vst [vmem:[%s302] sm:$0xff] %v862
      %895 = vst [vmem:[%s302 + $0x8] sm:$0xff] %v863
      %896 = vst [vmem:[%s302 + $0x10] sm:$0xff] %v864
      %897 = vst [vmem:[%s302 + $0x18] sm:$0xff] %v865
      %898 = vst [vmem:[%s302 + $0x20] sm:$0xff] %v866
      %899 = vst [vmem:[%s302 + $0x28] sm:$0xff] %v867
      %900 = vst [vmem:[%s302 + $0x30] sm:$0xff] %v868
      %901 = vst [vmem:[%s302 + $0x38] sm:$0xff] %v869
      %902 = vst [vmem:[%s302 + $0x40] sm:$0xff] %v870
      %903 = vst [vmem:[%s302 + $0x48] sm:$0xff] %v871
      %904 = vst [vmem:[%s302 + $0x50] sm:$0xff] %v872
      %905 = vst [vmem:[%s302 + $0x58] sm:$0xff] %v873
      %906 = vst [vmem:[%s302 + $0x60] sm:$0xff] %v874
      %907 = vst [vmem:[%s302 + $0x68] sm:$0xff] %v875
      %908 = vst [vmem:[%s302 + $0x70] sm:$0xff] %v876
      %909 = vst [vmem:[%s302 + $0x78] sm:$0xff] %v877
      %910 = vst [vmem:[%s302 + $0x80] sm:$0xff] %v878
      %911 = vst [vmem:[%s302 + $0x88] sm:$0xff] %v879
      %912 = vst [vmem:[%s302 + $0x90] sm:$0xff] %v880
      %913 = vst [vmem:[%s302 + $0x98] sm:$0xff] %v881
      %914 = vst [vmem:[%s302 + $0xa0] sm:$0xff] %v882
      %915 = vst [vmem:[%s302 + $0xa8] sm:$0xff] %v883
      %916 = vst [vmem:[%s302 + $0xb0] sm:$0xff] %v884
      %917 = vst [vmem:[%s302 + $0xb8] sm:$0xff] %v885
      %918 = vst [vmem:[%s302 + $0xc0] sm:$0xff] %v886
      %919 = vst [vmem:[%s302 + $0xc8] sm:$0xff] %v887
      %920 = vst [vmem:[%s302 + $0xd0] sm:$0xff] %v888
      %921 = vst [vmem:[%s302 + $0xd8] sm:$0xff] %v889
      %922 = vst [vmem:[%s302 + $0xe0] sm:$0xff] %v890
      %923 = vst [vmem:[%s302 + $0xe8] sm:$0xff] %v891
      %924 = vst [vmem:[%s302 + $0xf0] sm:$0xff] %v892
      %925 = vst [vmem:[%s302 + $0xf8] sm:$0xff] %v893
      %s926 = smul.u32 32, %s18
      %p927 = scmp.lt.s32.totalorder %s926, 63
      %s928 = scalar_select %p927, %s926, 63
      %s929 = smul.addr %s928, 8
      %s930 = scalar_lea.vmem %s7, %s929
      // Predicated region
      $region49: #{bottleneck_forward.7} parent=47 // pred_check
        %p931 = pneg %p193
      $region50: #{bottleneck_forward.7} parent=47 // pred_check_branch
        %933 = sbr.rel (%p931) target = $region52
      $region51: #{bottleneck_forward.7} parent=47 // pred_region
        %s934 = smul.u32 32, %s18
      $region52: #{bottleneck_forward.7} parent=47 // pred_fallthru
        _
    $region48: #{bottleneck_forward.7} parent=5 // pred_fallthru
      _
    %p935 = scmp.le.s32.totalorder 2, %s13
    // Predicated region
    $region53: #{bottleneck_forward.7} parent=5 // pred_check
      %p936 = pneg %p935
    $region54: #{bottleneck_forward.7} parent=5 // pred_check_branch
      %938 = sbr.rel (%p936) target = $region56
    $region55: #{bottleneck_forward.7} parent=5 // pred_region
      %s939 = ssub.s32 %s13, 2
      // Predicated region
      $region57: #{bottleneck_forward.7} parent=55 // pred_check
        %p940 = pneg %p199
      $region58: #{bottleneck_forward.7} parent=55 // pred_check_branch
        %942 = sbr.rel (%p940) target = $region60
      $region59: #{bottleneck_forward.7} parent=55 // pred_region
        %s943 = smul.u32 32, %s19
        %p944 = scmp.lt.s32.totalorder %s943, 63
        %s945 = scalar_select %p944, %s943, 63
        %s946 = smul.addr %s945, 8
        %s947 = scalar_lea.vmem %s7, %s946
      $region60: #{bottleneck_forward.7} parent=55 // pred_fallthru
        _
    $region56: #{bottleneck_forward.7} parent=5 // pred_fallthru
      _
  $region6: #{bottleneck_forward.7} parent=0 // loop_footer
    %s17 = sadd.s32 1, %s13
  $region7: #{bottleneck_forward.7} parent=0 // loop_footer_branch
    %12 = sbr.rel target = $region3
  $region8: #{bottleneck_forward.7} parent=0 // loop_exit
    _

// kernel: bottleneck_forward.5
$region0: #{bottleneck_forward.5}
  #allocation0 [shape = 'u32[]', space=smem, size = 0x4, offset = 0x4, fixed_abs, tag = 'smem constant byte address 0x4 - core index']
  #allocation1 [shape = 'u32[144,128]{1,0:T(1,128)}', space=vmem, size = 0x12000, scoped, tag = 'internal scratch']
  #allocation2 [shape = 'bf16[320,128]{1,0:T(16,128)(2,1)}', space=vmem, size = 0x14000, scoped, tag = 'scratch operand']
  %s0 = inlined_call_operand.vmem [shape: bf16[512,128], index: 0, kind: input, shape index: {}]
  %s1 = inlined_call_operand.vmem [shape: f32[1,128], index: 1, kind: input, shape index: {}]
  %s2 = inlined_call_operand.vmem [shape: f32[1,128], index: 2, kind: input, shape index: {}]
  %s3 = inlined_call_operand.vmem [shape: bf16[1152,128], index: 3, kind: input, shape index: {}]
  %s4 = inlined_call_operand.vmem [shape: f32[256,2], index: 4, kind: input, shape index: {}]
  %s5 = inlined_call_operand.vmem [shape: bf16[512,128], index: 5, kind: output, shape index: {0}]
  %s6 = inlined_call_operand.vmem [shape: f32[2,8,128], index: 6, kind: output, shape index: {1}]
  %7 = xla_tuple %s5, %s6
  %s8 = sld [smem:[#allocation0]]
  $region61: #{bottleneck_forward.5} parent=0
    _
  %s10 = ssub.s32 1, %s8
  %s11 = scalar_select 0, %s10, %s8
  loop: start=0, step=1, limit=4
  $region2: #{bottleneck_forward.5} parent=0 // loop_pre_header
    _
  $region3: #{bottleneck_forward.5} parent=0 // loop_header
    %s13 = sphi 0, %s17
    %p14 = scmp.ge.s32.totalorder %s13, 4
    %s23 = sphi 0, %s25
    %s26 = sphi 0, %s23
    %s27 = sphi 0, %s26
    %s43 = sphi 0, %s27
    %s47 = sphi 0, %s47
    %s49 = sphi 0, %s47
    %s50 = sphi 0, %s49
    %s64 = sphi 0, %s50
    %s68 = sphi 0, %s68
    %s70 = sphi 0, %s68
    %s71 = sphi 0, %s70
    %s85 = sphi 0, %s71
    %s89 = sphi 0, %s89
    %s91 = sphi 0, %s89
    %s92 = sphi 0, %s91
    %s106 = sphi 0, %s92
    %s110 = sphi 0, %s110
    %s112 = sphi 0, %s110
    %s113 = sphi 0, %s112
    %s127 = sphi 0, %s113
    %s133 = sphi 0, %s135
    %s136 = sphi 0, %s133
    %s137 = sphi 0, %s136
    %s153 = sphi 0, %s137
    %s159 = sphi 0, %s161
    %s162 = sphi 0, %s159
    %s163 = sphi 0, %s162
    %s179 = sphi 0, %s163
  $region4: #{bottleneck_forward.5} parent=0 // loop_header_branch
    %16 = sbr.rel (%p14) target = $region8
  $region5: #{bottleneck_forward.5} parent=0 // loop_body
    %s18 = ssub.s32 %s13, 1
    %s19 = ssub.s32 %s13, 2
    %s20 = sadd.s32 %s13, 1
    %s21 = ssub.s32 %s13, %s20
    %p22 = scmp.eq.s32.totalorder %s21, 0
    %s24 = sadd.s32 %s23, 1
    %s25 = scalar_select %p22, %s23, %s24
    %p28 = pneg %p22
    %p29 = scmp.eq.s32.totalorder %s13, 1
    %p30 = por %p28, %p29
    %p31 = scmp.ne.s32.totalorder %s23, %s26
    %p32 = scmp.eq.s32.totalorder %s13, 0
    %p33 = por %p31, %p32
    %p34 = scmp.ne.s32.totalorder %s23, %s26
    %p35 = scmp.eq.s32.totalorder %s18, 1
    %p36 = por %p34, %p35
    %p37 = scmp.ne.s32.totalorder %s26, %s27
    %p38 = scmp.eq.s32.totalorder %s18, 0
    %p39 = por %p37, %p38
    %p40 = scmp.ne.s32.totalorder %s26, %s27
    %p41 = scmp.eq.s32.totalorder %s19, 1
    %p42 = por %p40, %p41
    %p44 = scmp.ne.s32.totalorder %s27, %s43
    %p45 = scmp.eq.s32.totalorder %s19, 0
    %p46 = por %p44, %p45
    %s48 = sadd.s32 %s47, 1
    %p51 = scmp.eq.s32.totalorder %s13, 1
    %p52 = scmp.ne.s32.totalorder %s47, %s49
    %p53 = scmp.eq.s32.totalorder %s13, 0
    %p54 = por %p52, %p53
    %p55 = scmp.ne.s32.totalorder %s47, %s49
    %p56 = scmp.eq.s32.totalorder %s18, 1
    %p57 = por %p55, %p56
    %p58 = scmp.ne.s32.totalorder %s49, %s50
    %p59 = scmp.eq.s32.totalorder %s18, 0
    %p60 = por %p58, %p59
    %p61 = scmp.ne.s32.totalorder %s49, %s50
    %p62 = scmp.eq.s32.totalorder %s19, 1
    %p63 = por %p61, %p62
    %p65 = scmp.ne.s32.totalorder %s50, %s64
    %p66 = scmp.eq.s32.totalorder %s19, 0
    %p67 = por %p65, %p66
    %s69 = sadd.s32 %s68, 1
    %p72 = scmp.eq.s32.totalorder %s13, 1
    %p73 = scmp.ne.s32.totalorder %s68, %s70
    %p74 = scmp.eq.s32.totalorder %s13, 0
    %p75 = por %p73, %p74
    %p76 = scmp.ne.s32.totalorder %s68, %s70
    %p77 = scmp.eq.s32.totalorder %s18, 1
    %p78 = por %p76, %p77
    %p79 = scmp.ne.s32.totalorder %s70, %s71
    %p80 = scmp.eq.s32.totalorder %s18, 0
    %p81 = por %p79, %p80
    %p82 = scmp.ne.s32.totalorder %s70, %s71
    %p83 = scmp.eq.s32.totalorder %s19, 1
    %p84 = por %p82, %p83
    %p86 = scmp.ne.s32.totalorder %s71, %s85
    %p87 = scmp.eq.s32.totalorder %s19, 0
    %p88 = por %p86, %p87
    %s90 = sadd.s32 %s89, 1
    %p93 = scmp.eq.s32.totalorder %s13, 1
    %p94 = scmp.ne.s32.totalorder %s89, %s91
    %p95 = scmp.eq.s32.totalorder %s13, 0
    %p96 = por %p94, %p95
    %p97 = scmp.ne.s32.totalorder %s89, %s91
    %p98 = scmp.eq.s32.totalorder %s18, 1
    %p99 = por %p97, %p98
    %p100 = scmp.ne.s32.totalorder %s91, %s92
    %p101 = scmp.eq.s32.totalorder %s18, 0
    %p102 = por %p100, %p101
    %p103 = scmp.ne.s32.totalorder %s91, %s92
    %p104 = scmp.eq.s32.totalorder %s19, 1
    %p105 = por %p103, %p104
    %p107 = scmp.ne.s32.totalorder %s92, %s106
    %p108 = scmp.eq.s32.totalorder %s19, 0
    %p109 = por %p107, %p108
    %s111 = sadd.s32 %s110, 1
    %p114 = scmp.eq.s32.totalorder %s13, 1
    %p115 = scmp.ne.s32.totalorder %s110, %s112
    %p116 = scmp.eq.s32.totalorder %s13, 0
    %p117 = por %p115, %p116
    %p118 = scmp.ne.s32.totalorder %s110, %s112
    %p119 = scmp.eq.s32.totalorder %s18, 1
    %p120 = por %p118, %p119
    %p121 = scmp.ne.s32.totalorder %s112, %s113
    %p122 = scmp.eq.s32.totalorder %s18, 0
    %p123 = por %p121, %p122
    %p124 = scmp.ne.s32.totalorder %s112, %s113
    %p125 = scmp.eq.s32.totalorder %s19, 1
    %p126 = por %p124, %p125
    %p128 = scmp.ne.s32.totalorder %s113, %s127
    %p129 = scmp.eq.s32.totalorder %s19, 0
    %p130 = por %p128, %p129
    %s131 = ssub.s32 %s13, %s20
    %p132 = scmp.eq.s32.totalorder %s131, 0
    %s134 = sadd.s32 %s133, 1
    %s135 = scalar_select %p132, %s133, %s134
    %p138 = pneg %p132
    %p139 = scmp.eq.s32.totalorder %s13, 1
    %p140 = por %p138, %p139
    %p141 = scmp.ne.s32.totalorder %s133, %s136
    %p142 = scmp.eq.s32.totalorder %s13, 0
    %p143 = por %p141, %p142
    %p144 = scmp.ne.s32.totalorder %s133, %s136
    %p145 = scmp.eq.s32.totalorder %s18, 1
    %p146 = por %p144, %p145
    %p147 = scmp.ne.s32.totalorder %s136, %s137
    %p148 = scmp.eq.s32.totalorder %s18, 0
    %p149 = por %p147, %p148
    %p150 = scmp.ne.s32.totalorder %s136, %s137
    %p151 = scmp.eq.s32.totalorder %s19, 1
    %p152 = por %p150, %p151
    %p154 = scmp.ne.s32.totalorder %s137, %s153
    %p155 = scmp.eq.s32.totalorder %s19, 0
    %p156 = por %p154, %p155
    %s157 = ssub.s32 %s13, %s20
    %p158 = scmp.eq.s32.totalorder %s157, 0
    %s160 = sadd.s32 %s159, 1
    %s161 = scalar_select %p158, %s159, %s160
    %p164 = pneg %p158
    %p165 = scmp.eq.s32.totalorder %s13, 1
    %p166 = por %p164, %p165
    %p167 = scmp.ne.s32.totalorder %s159, %s162
    %p168 = scmp.eq.s32.totalorder %s13, 0
    %p169 = por %p167, %p168
    %p170 = scmp.ne.s32.totalorder %s159, %s162
    %p171 = scmp.eq.s32.totalorder %s18, 1
    %p172 = por %p170, %p171
    %p173 = scmp.ne.s32.totalorder %s162, %s163
    %p174 = scmp.eq.s32.totalorder %s18, 0
    %p175 = por %p173, %p174
    %p176 = scmp.ne.s32.totalorder %s162, %s163
    %p177 = scmp.eq.s32.totalorder %s19, 1
    %p178 = por %p176, %p177
    %p180 = scmp.ne.s32.totalorder %s163, %s179
    %p181 = scmp.eq.s32.totalorder %s19, 0
    %p182 = por %p180, %p181
    %p183 = scmp.le.s32.totalorder 1, %s13
    %p184 = scmp.lt.s32.totalorder %s13, 3
    %p185 = pnand %p183, %p184
    %p186 = pneg %p185
    // Predicated region
    $region9: #{bottleneck_forward.5} parent=5 // pred_check
      _
    $region10: #{bottleneck_forward.5} parent=5 // pred_check_branch
      %188 = sbr.rel (%p185) target = $region12
    $region11: #{bottleneck_forward.5} parent=5 // pred_region
      %s189 = ssub.s32 %s13, 1
      // Predicated region
      $region13: #{bottleneck_forward.5} parent=11 // pred_check
        %p190 = pneg %p60
      $region14: #{bottleneck_forward.5} parent=11 // pred_check_branch
        %192 = sbr.rel (%p190) target = $region16
      $region15: #{bottleneck_forward.5} parent=11 // pred_region
        _
      $region16: #{bottleneck_forward.5} parent=11 // pred_fallthru
        _
      // Predicated region
      $region17: #{bottleneck_forward.5} parent=11 // pred_check
        %p193 = pneg %p81
      $region18: #{bottleneck_forward.5} parent=11 // pred_check_branch
        %195 = sbr.rel (%p193) target = $region20
      $region19: #{bottleneck_forward.5} parent=11 // pred_region
        _
      $region20: #{bottleneck_forward.5} parent=11 // pred_fallthru
        _
      // Predicated region
      $region21: #{bottleneck_forward.5} parent=11 // pred_check
        %p196 = pneg %p102
      $region22: #{bottleneck_forward.5} parent=11 // pred_check_branch
        %198 = sbr.rel (%p196) target = $region24
      $region23: #{bottleneck_forward.5} parent=11 // pred_region
        _
      $region24: #{bottleneck_forward.5} parent=11 // pred_fallthru
        _
      // Predicated region
      $region25: #{bottleneck_forward.5} parent=11 // pred_check
        %p199 = pneg %p123
      $region26: #{bottleneck_forward.5} parent=11 // pred_check_branch
        %201 = sbr.rel (%p199) target = $region28
      $region27: #{bottleneck_forward.5} parent=11 // pred_region
        _
      $region28: #{bottleneck_forward.5} parent=11 // pred_fallthru
        _
    $region12: #{bottleneck_forward.5} parent=5 // pred_fallthru
      _
    %p202 = scmp.lt.s32.totalorder %s13, 2
    // Predicated region
    $region29: #{bottleneck_forward.5} parent=5 // pred_check
      %p203 = pneg %p202
    $region30: #{bottleneck_forward.5} parent=5 // pred_check_branch
      %205 = sbr.rel (%p203) target = $region32
    $region31: #{bottleneck_forward.5} parent=5 // pred_region
      // Predicated region
      $region33: #{bottleneck_forward.5} parent=31 // pred_check
        %p206 = pneg %p33
      $region34: #{bottleneck_forward.5} parent=31 // pred_check_branch
        %208 = sbr.rel (%p206) target = $region36
      $region35: #{bottleneck_forward.5} parent=31 // pred_region
        %s209 = smul.u32 32, %s13
        %p210 = scmp.lt.s32.totalorder %s209, 63
        %s211 = scalar_select %p210, %s209, 63
        %s212 = smul.addr %s211, 4
        %s213 = scalar_lea.vmem %s0, %s212
        %s214 = smul.u32 32, %s13
      $region36: #{bottleneck_forward.5} parent=31 // pred_fallthru
        _
    $region32: #{bottleneck_forward.5} parent=5 // pred_fallthru
      _
    %p215 = scmp.le.s32.totalorder 1, %s13
    %p216 = scmp.lt.s32.totalorder %s13, 3
    %p217 = pnand %p215, %p216
    %p218 = pneg %p217
    // Predicated region
    $region37: #{bottleneck_forward.5} parent=5 // pred_check
      _
    $region38: #{bottleneck_forward.5} parent=5 // pred_check_branch
      %220 = sbr.rel (%p217) target = $region40
    $region39: #{bottleneck_forward.5} parent=5 // pred_region
      %s221 = ssub.s32 %s13, 1
      %s222 = smul.u32 32, %s18
      %p223 = scmp.lt.s32.totalorder %s222, 63
      %s224 = scalar_select %p223, %s222, 63
      %s225 = smul.addr %s224, 4
      %s226 = scalar_lea.vmem %s0, %s225
      %p227 = pneg %p39
      %p228 = pneg %p36
      %p229 = pneg %p60
      %p230 = pneg %p57
      %p231 = pneg %p81
      %p232 = pneg %p78
      %p233 = pneg %p102
      %p234 = pneg %p99
      %p235 = pneg %p123
      %p236 = pneg %p120
      %p237 = pneg %p149
      %p238 = pneg %p146
      %s239 = smul.u32 32, %s18
      %p240 = scmp.lt.s32.totalorder %s239, 63
      %s241 = scalar_select %p240, %s239, 63
      %s242 = smul.addr %s241, 4
      %s243 = scalar_lea.vmem %s5, %s242
      %p244 = pneg %p175
      %p245 = pneg %p172
      %p246 = scmp.lt.s32.totalorder %s18, 1
      %s247 = scalar_select %p246, %s18, 1
      %s248 = smul.addr %s247, 8
      %s249 = scalar_lea.vmem %s6, %s248
      %s250 = smul.u32 32, %s18
      %p251 = scmp.lt.s32.totalorder %s250, 63
      %s252 = scalar_select %p251, %s250, 63
      %s253 = smul.addr %s252, 4
      %s254 = scalar_lea.vmem %s0, %s253
      %s255 = smul.u32 32, %s18
      %s256 = smul.u32 32, %s18
      %p257 = scmp.lt.s32.totalorder %s256, 63
      %s258 = scalar_select %p257, %s256, 63
      %s259 = smul.addr %s258, 4
      %s260 = scalar_lea.vmem %s5, %s259
      %s261 = smul.u32 32, %s18
      %p262 = scmp.lt.s32.totalorder %s18, 1
      %s263 = scalar_select %p262, %s18, 1
      %s264 = smul.addr %s263, 8
      %s265 = scalar_lea.vmem %s6, %s264
      %v267 = vld [vmem:[%s254] sm:$0xf]
      %v268 = vld [vmem:[%s254 + $0x4] sm:$0xf]
      %v269 = vld [vmem:[%s254 + $0x8] sm:$0xf]
      %v270 = vld [vmem:[%s254 + $0xc] sm:$0xf]
      %v271 = vld [vmem:[%s254 + $0x10] sm:$0xf]
      %v272 = vld [vmem:[%s254 + $0x14] sm:$0xf]
      %v273 = vld [vmem:[%s254 + $0x18] sm:$0xf]
      %v274 = vld [vmem:[%s254 + $0x1c] sm:$0xf]
      %v275 = vld [vmem:[%s254 + $0x20] sm:$0xf]
      %v276 = vld [vmem:[%s254 + $0x24] sm:$0xf]
      %v277 = vld [vmem:[%s254 + $0x28] sm:$0xf]
      %v278 = vld [vmem:[%s254 + $0x2c] sm:$0xf]
      %v279 = vld [vmem:[%s254 + $0x30] sm:$0xf]
      %v280 = vld [vmem:[%s254 + $0x34] sm:$0xf]
      %v281 = vld [vmem:[%s254 + $0x38] sm:$0xf]
      %v282 = vld [vmem:[%s254 + $0x3c] sm:$0xf]
      %v283 = vld [vmem:[%s254 + $0x40] sm:$0xf]
      %v284 = vld [vmem:[%s254 + $0x44] sm:$0xf]
      %v285 = vld [vmem:[%s254 + $0x48] sm:$0xf]
      %v286 = vld [vmem:[%s254 + $0x4c] sm:$0xf]
      %v287 = vld [vmem:[%s254 + $0x50] sm:$0xf]
      %v288 = vld [vmem:[%s254 + $0x54] sm:$0xf]
      %v289 = vld [vmem:[%s254 + $0x58] sm:$0xf]
      %v290 = vld [vmem:[%s254 + $0x5c] sm:$0xf]
      %v291 = vld [vmem:[%s254 + $0x60] sm:$0xf]
      %v292 = vld [vmem:[%s254 + $0x64] sm:$0xf]
      %v293 = vld [vmem:[%s254 + $0x68] sm:$0xf]
      %v294 = vld [vmem:[%s254 + $0x6c] sm:$0xf]
      %v295 = vld [vmem:[%s254 + $0x70] sm:$0xf]
      %v296 = vld [vmem:[%s254 + $0x74] sm:$0xf]
      %v297 = vld [vmem:[%s254 + $0x78] sm:$0xf]
      %v298 = vld [vmem:[%s254 + $0x7c] sm:$0xf]
      %v299 = vunpack.c.l.bf16 %v267
      %v300 = vunpack.c.l.bf16 %v268
      %v301 = vunpack.c.l.bf16 %v269
      %v302 = vunpack.c.l.bf16 %v270
      %v303 = vunpack.c.l.bf16 %v271
      %v304 = vunpack.c.l.bf16 %v272
      %v305 = vunpack.c.l.bf16 %v273
      %v306 = vunpack.c.l.bf16 %v274
      %v307 = vunpack.c.l.bf16 %v275
      %v308 = vunpack.c.l.bf16 %v276
      %v309 = vunpack.c.l.bf16 %v277
      %v310 = vunpack.c.l.bf16 %v278
      %v311 = vunpack.c.l.bf16 %v279
      %v312 = vunpack.c.l.bf16 %v280
      %v313 = vunpack.c.l.bf16 %v281
      %v314 = vunpack.c.l.bf16 %v282
      %v315 = vunpack.c.l.bf16 %v283
      %v316 = vunpack.c.l.bf16 %v284
      %v317 = vunpack.c.l.bf16 %v285
      %v318 = vunpack.c.l.bf16 %v286
      %v319 = vunpack.c.l.bf16 %v287
      %v320 = vunpack.c.l.bf16 %v288
      %v321 = vunpack.c.l.bf16 %v289
      %v322 = vunpack.c.l.bf16 %v290
      %v323 = vunpack.c.l.bf16 %v291
      %v324 = vunpack.c.l.bf16 %v292
      %v325 = vunpack.c.l.bf16 %v293
      %v326 = vunpack.c.l.bf16 %v294
      %v327 = vunpack.c.l.bf16 %v295
      %v328 = vunpack.c.l.bf16 %v296
      %v329 = vunpack.c.l.bf16 %v297
      %v330 = vunpack.c.l.bf16 %v298
      %v331 = vld [vmem:[%s1] sm:$0x1]
      %v333 = vlaneseq
      %v334 = vshrl.u32 %v333, 7
      %v335 = vsub.s32 0, %v334
      %v336 = vrot.slane %v331, %v335
      %v338 = vmul.f32 %v299, %v336
      %v339 = vmul.f32 %v300, %v336
      %v340 = vmul.f32 %v301, %v336
      %v341 = vmul.f32 %v302, %v336
      %v342 = vmul.f32 %v303, %v336
      %v343 = vmul.f32 %v304, %v336
      %v344 = vmul.f32 %v305, %v336
      %v345 = vmul.f32 %v306, %v336
      %v346 = vmul.f32 %v307, %v336
      %v347 = vmul.f32 %v308, %v336
      %v348 = vmul.f32 %v309, %v336
      %v349 = vmul.f32 %v310, %v336
      %v350 = vmul.f32 %v311, %v336
      %v351 = vmul.f32 %v312, %v336
      %v352 = vmul.f32 %v313, %v336
      %v353 = vmul.f32 %v314, %v336
      %v354 = vmul.f32 %v315, %v336
      %v355 = vmul.f32 %v316, %v336
      %v356 = vmul.f32 %v317, %v336
      %v357 = vmul.f32 %v318, %v336
      %v358 = vmul.f32 %v319, %v336
      %v359 = vmul.f32 %v320, %v336
      %v360 = vmul.f32 %v321, %v336
      %v361 = vmul.f32 %v322, %v336
      %v362 = vmul.f32 %v323, %v336
      %v363 = vmul.f32 %v324, %v336
      %v364 = vmul.f32 %v325, %v336
      %v365 = vmul.f32 %v326, %v336
      %v366 = vmul.f32 %v327, %v336
      %v367 = vmul.f32 %v328, %v336
      %v368 = vmul.f32 %v329, %v336
      %v369 = vmul.f32 %v330, %v336
      %v370 = vld [vmem:[%s2] sm:$0x1]
      %v372 = vlaneseq
      %v373 = vshrl.u32 %v372, 7
      %v374 = vsub.s32 0, %v373
      %v375 = vrot.slane %v370, %v374
      %v377 = vadd.f32 %v338, %v375
      %v378 = vadd.f32 %v339, %v375
      %v379 = vadd.f32 %v340, %v375
      %v380 = vadd.f32 %v341, %v375
      %v381 = vadd.f32 %v342, %v375
      %v382 = vadd.f32 %v343, %v375
      %v383 = vadd.f32 %v344, %v375
      %v384 = vadd.f32 %v345, %v375
      %v385 = vadd.f32 %v346, %v375
      %v386 = vadd.f32 %v347, %v375
      %v387 = vadd.f32 %v348, %v375
      %v388 = vadd.f32 %v349, %v375
      %v389 = vadd.f32 %v350, %v375
      %v390 = vadd.f32 %v351, %v375
      %v391 = vadd.f32 %v352, %v375
      %v392 = vadd.f32 %v353, %v375
      %v393 = vadd.f32 %v354, %v375
      %v394 = vadd.f32 %v355, %v375
      %v395 = vadd.f32 %v356, %v375
      %v396 = vadd.f32 %v357, %v375
      %v397 = vadd.f32 %v358, %v375
      %v398 = vadd.f32 %v359, %v375
      %v399 = vadd.f32 %v360, %v375
      %v400 = vadd.f32 %v361, %v375
      %v401 = vadd.f32 %v362, %v375
      %v402 = vadd.f32 %v363, %v375
      %v403 = vadd.f32 %v364, %v375
      %v404 = vadd.f32 %v365, %v375
      %v405 = vadd.f32 %v366, %v375
      %v406 = vadd.f32 %v367, %v375
      %v407 = vadd.f32 %v368, %v375
      %v408 = vadd.f32 %v369, %v375
      %v409 = vmax.f32 %v377, 0.0
      %v410 = vmax.f32 %v378, 0.0
      %v411 = vmax.f32 %v379, 0.0
      %v412 = vmax.f32 %v380, 0.0
      %v413 = vmax.f32 %v381, 0.0
      %v414 = vmax.f32 %v382, 0.0
      %v415 = vmax.f32 %v383, 0.0
      %v416 = vmax.f32 %v384, 0.0
      %v417 = vmax.f32 %v385, 0.0
      %v418 = vmax.f32 %v386, 0.0
      %v419 = vmax.f32 %v387, 0.0
      %v420 = vmax.f32 %v388, 0.0
      %v421 = vmax.f32 %v389, 0.0
      %v422 = vmax.f32 %v390, 0.0
      %v423 = vmax.f32 %v391, 0.0
      %v424 = vmax.f32 %v392, 0.0
      %v425 = vmax.f32 %v393, 0.0
      %v426 = vmax.f32 %v394, 0.0
      %v427 = vmax.f32 %v395, 0.0
      %v428 = vmax.f32 %v396, 0.0
      %v429 = vmax.f32 %v397, 0.0
      %v430 = vmax.f32 %v398, 0.0
      %v431 = vmax.f32 %v399, 0.0
      %v432 = vmax.f32 %v400, 0.0
      %v433 = vmax.f32 %v401, 0.0
      %v434 = vmax.f32 %v402, 0.0
      %v435 = vmax.f32 %v403, 0.0
      %v436 = vmax.f32 %v404, 0.0
      %v437 = vmax.f32 %v405, 0.0
      %v438 = vmax.f32 %v406, 0.0
      %v439 = vmax.f32 %v407, 0.0
      %v440 = vmax.f32 %v408, 0.0
      %441 = vst [vmem:[#allocation2] sm:$0xff] 0
      %442 = vst [vmem:[#allocation2 + $0x8] sm:$0xff] 0
      %443 = vst [vmem:[#allocation2 + $0x90] sm:$0xff] 0
      %444 = vst [vmem:[#allocation2 + $0x98] sm:$0xff] 0
      %v445 = vpack.c.bf16 %v410, %v409
      %v446 = vpack.c.bf16 %v412, %v411
      %v447 = vpack.c.bf16 %v414, %v413
      %v448 = vpack.c.bf16 %v416, %v415
      %v449 = vpack.c.bf16 %v418, %v417
      %v450 = vpack.c.bf16 %v420, %v419
      %v451 = vpack.c.bf16 %v422, %v421
      %v452 = vpack.c.bf16 %v424, %v423
      %v453 = vpack.c.bf16 %v426, %v425
      %v454 = vpack.c.bf16 %v428, %v427
      %v455 = vpack.c.bf16 %v430, %v429
      %v456 = vpack.c.bf16 %v432, %v431
      %v457 = vpack.c.bf16 %v434, %v433
      %v458 = vpack.c.bf16 %v436, %v435
      %v459 = vpack.c.bf16 %v438, %v437
      %v460 = vpack.c.bf16 %v440, %v439
      %461 = vst [vmem:[#allocation2 + $0x10] sm:$0xff] %v445
      %462 = vst [vmem:[#allocation2 + $0x18] sm:$0xff] %v446
      %463 = vst [vmem:[#allocation2 + $0x20] sm:$0xff] %v447
      %464 = vst [vmem:[#allocation2 + $0x28] sm:$0xff] %v448
      %465 = vst [vmem:[#allocation2 + $0x30] sm:$0xff] %v449
      %466 = vst [vmem:[#allocation2 + $0x38] sm:$0xff] %v450
      %467 = vst [vmem:[#allocation2 + $0x40] sm:$0xff] %v451
      %468 = vst [vmem:[#allocation2 + $0x48] sm:$0xff] %v452
      %469 = vst [vmem:[#allocation2 + $0x50] sm:$0xff] %v453
      %470 = vst [vmem:[#allocation2 + $0x58] sm:$0xff] %v454
      %471 = vst [vmem:[#allocation2 + $0x60] sm:$0xff] %v455
      %472 = vst [vmem:[#allocation2 + $0x68] sm:$0xff] %v456
      %473 = vst [vmem:[#allocation2 + $0x70] sm:$0xff] %v457
      %474 = vst [vmem:[#allocation2 + $0x78] sm:$0xff] %v458
      %475 = vst [vmem:[#allocation2 + $0x80] sm:$0xff] %v459
      %476 = vst [vmem:[#allocation2 + $0x88] sm:$0xff] %v460
      %v477 = vld [vmem:[%s4] sm:$0xff]
      %v478 = vld [vmem:[%s4 + $0x8] sm:$0xff]
      %v479 = vld [vmem:[%s4 + $0x10] sm:$0xff]
      %v480 = vld [vmem:[%s4 + $0x18] sm:$0xff]
      %v481 = vld [vmem:[%s4 + $0x20] sm:$0xff]
      %v482 = vld [vmem:[%s4 + $0x28] sm:$0xff]
      %v483 = vld [vmem:[%s4 + $0x30] sm:$0xff]
      %v484 = vld [vmem:[%s4 + $0x38] sm:$0xff]
      %v485 = vld [vmem:[%s4 + $0x40] sm:$0xff]
      %v486 = vld [vmem:[%s4 + $0x48] sm:$0xff]
      %v487 = vld [vmem:[%s4 + $0x50] sm:$0xff]
      %v488 = vld [vmem:[%s4 + $0x58] sm:$0xff]
      %v489 = vld [vmem:[%s4 + $0x60] sm:$0xff]
      %v490 = vld [vmem:[%s4 + $0x68] sm:$0xff]
      %v491 = vld [vmem:[%s4 + $0x70] sm:$0xff]
      %v492 = vld [vmem:[%s4 + $0x78] sm:$0xff]
      %v493 = vld [vmem:[%s4 + $0x80] sm:$0xff]
      %v494 = vld [vmem:[%s4 + $0x88] sm:$0xff]
      %v495 = vld [vmem:[%s4 + $0x90] sm:$0xff]
      %v496 = vld [vmem:[%s4 + $0x98] sm:$0xff]
      %v497 = vld [vmem:[%s4 + $0xa0] sm:$0xff]
      %v498 = vld [vmem:[%s4 + $0xa8] sm:$0xff]
      %v499 = vld [vmem:[%s4 + $0xb0] sm:$0xff]
      %v500 = vld [vmem:[%s4 + $0xb8] sm:$0xff]
      %v501 = vld [vmem:[%s4 + $0xc0] sm:$0xff]
      %v502 = vld [vmem:[%s4 + $0xc8] sm:$0xff]
      %v503 = vld [vmem:[%s4 + $0xd0] sm:$0xff]
      %v504 = vld [vmem:[%s4 + $0xd8] sm:$0xff]
      %v505 = vld [vmem:[%s4 + $0xe0] sm:$0xff]
      %v506 = vld [vmem:[%s4 + $0xe8] sm:$0xff]
      %v507 = vld [vmem:[%s4 + $0xf0] sm:$0xff]
      %v508 = vld [vmem:[%s4 + $0xf8] sm:$0xff]
      %v509 = vpack.c.bf16 %v478, %v477
      %v510 = vpack.c.bf16 %v480, %v479
      %v511 = vpack.c.bf16 %v482, %v481
      %v512 = vpack.c.bf16 %v484, %v483
      %v513 = vpack.c.bf16 %v486, %v485
      %v514 = vpack.c.bf16 %v488, %v487
      %v515 = vpack.c.bf16 %v490, %v489
      %v516 = vpack.c.bf16 %v492, %v491
      %v517 = vpack.c.bf16 %v494, %v493
      %v518 = vpack.c.bf16 %v496, %v495
      %v519 = vpack.c.bf16 %v498, %v497
      %v520 = vpack.c.bf16 %v500, %v499
      %v521 = vpack.c.bf16 %v502, %v501
      %v522 = vpack.c.bf16 %v504, %v503
      %v523 = vpack.c.bf16 %v506, %v505
      %v524 = vpack.c.bf16 %v508, %v507
      %v525 = vld [vmem:[#allocation2] sm:$0x80]
      %v526 = vld [vmem:[#allocation2 + $0x8] sm:$0xff]
      %v527 = vld [vmem:[#allocation2 + $0x10] sm:$0xff]
      %v528 = vld [vmem:[#allocation2 + $0x18] sm:$0xff]
      %v529 = vld [vmem:[#allocation2 + $0x20] sm:$0xff]
      %v530 = vld [vmem:[#allocation2 + $0x28] sm:$0xff]
      %v531 = vld [vmem:[#allocation2 + $0x30] sm:$0xff]
      %v532 = vld [vmem:[#allocation2 + $0x38] sm:$0xff]
      %v533 = vld [vmem:[#allocation2 + $0x40] sm:$0xff]
      %v534 = vld [vmem:[#allocation2 + $0x48] sm:$0xff]
      %v535 = vld [vmem:[#allocation2 + $0x50] sm:$0xff]
      %v536 = vld [vmem:[#allocation2 + $0x58] sm:$0xff]
      %v537 = vld [vmem:[#allocation2 + $0x60] sm:$0xff]
      %v538 = vld [vmem:[#allocation2 + $0x68] sm:$0xff]
      %v539 = vld [vmem:[#allocation2 + $0x70] sm:$0xff]
      %v540 = vld [vmem:[#allocation2 + $0x78] sm:$0xff]
      %v541 = vld [vmem:[#allocation2 + $0x80] sm:$0xff]
      %543 = vset.pattern.permute.xlu0 0
      %544 = vperm.xlu0 %543, %v509
      %v545 = vpop.permute.xlu0 %544
      %547 = vset.pattern.permute.xlu0 0
      %548 = vperm.xlu0 %547, %v510
      %v549 = vpop.permute.xlu0 %548
      %551 = vset.pattern.permute.xlu0 0
      %552 = vperm.xlu0 %551, %v511
      %v553 = vpop.permute.xlu0 %552
      %555 = vset.pattern.permute.xlu0 0
      %556 = vperm.xlu0 %555, %v512
      %v557 = vpop.permute.xlu0 %556
      %559 = vset.pattern.permute.xlu0 0
      %560 = vperm.xlu0 %559, %v513
      %v561 = vpop.permute.xlu0 %560
      %563 = vset.pattern.permute.xlu0 0
      %564 = vperm.xlu0 %563, %v514
      %v565 = vpop.permute.xlu0 %564
      %567 = vset.pattern.permute.xlu0 0
      %568 = vperm.xlu0 %567, %v515
      %v569 = vpop.permute.xlu0 %568
      %571 = vset.pattern.permute.xlu0 0
      %572 = vperm.xlu0 %571, %v516
      %v573 = vpop.permute.xlu0 %572
      %575 = vset.pattern.permute.xlu0 0
      %576 = vperm.xlu0 %575, %v517
      %v577 = vpop.permute.xlu0 %576
      %579 = vset.pattern.permute.xlu0 0
      %580 = vperm.xlu0 %579, %v518
      %v581 = vpop.permute.xlu0 %580
      %583 = vset.pattern.permute.xlu0 0
      %584 = vperm.xlu0 %583, %v519
      %v585 = vpop.permute.xlu0 %584
      %587 = vset.pattern.permute.xlu0 0
      %588 = vperm.xlu0 %587, %v520
      %v589 = vpop.permute.xlu0 %588
      %591 = vset.pattern.permute.xlu0 0
      %592 = vperm.xlu0 %591, %v521
      %v593 = vpop.permute.xlu0 %592
      %595 = vset.pattern.permute.xlu0 0
      %596 = vperm.xlu0 %595, %v522
      %v597 = vpop.permute.xlu0 %596
      %599 = vset.pattern.permute.xlu0 0
      %600 = vperm.xlu0 %599, %v523
      %v601 = vpop.permute.xlu0 %600
      %603 = vset.pattern.permute.xlu0 0
      %604 = vperm.xlu0 %603, %v524
      %v605 = vpop.permute.xlu0 %604
      %vm606 = vsmask.f32 7424
      %v607 = vshll.u32 %v545, 16
      %v609 = vrot.slane %v607, 1
      %v610 = vshrl.u32 %v545, 16
      %v612 = vor.u32 %v610, %v609
      %v613 = vshll.u32 %v549, 16
      %v615 = vrot.slane %v613, 1
      %v616 = vsel %vm606, %v612, %v615
      %v617 = vshrl.u32 %v549, 16
      %v619 = vor.u32 %v617, %v615
      %v620 = vshll.u32 %v553, 16
      %v622 = vrot.slane %v620, 1
      %v623 = vsel %vm606, %v619, %v622
      %v624 = vshrl.u32 %v553, 16
      %v626 = vor.u32 %v624, %v622
      %v627 = vshll.u32 %v557, 16
      %v629 = vrot.slane %v627, 1
      %v630 = vsel %vm606, %v626, %v629
      %v631 = vshrl.u32 %v557, 16
      %v633 = vor.u32 %v631, %v629
      %v634 = vshll.u32 %v561, 16
      %v636 = vrot.slane %v634, 1
      %v637 = vsel %vm606, %v633, %v636
      %v638 = vshrl.u32 %v561, 16
      %v640 = vor.u32 %v638, %v636
      %v641 = vshll.u32 %v565, 16
      %v643 = vrot.slane %v641, 1
      %v644 = vsel %vm606, %v640, %v643
      %v645 = vshrl.u32 %v565, 16
      %v647 = vor.u32 %v645, %v643
      %v648 = vshll.u32 %v569, 16
      %v650 = vrot.slane %v648, 1
      %v651 = vsel %vm606, %v647, %v650
      %v652 = vshrl.u32 %v569, 16
      %v654 = vor.u32 %v652, %v650
      %v655 = vshll.u32 %v573, 16
      %v657 = vrot.slane %v655, 1
      %v658 = vsel %vm606, %v654, %v657
      %v659 = vshrl.u32 %v573, 16
      %v661 = vor.u32 %v659, %v657
      %v662 = vshll.u32 %v577, 16
      %v664 = vrot.slane %v662, 1
      %v665 = vsel %vm606, %v661, %v664
      %v666 = vshrl.u32 %v577, 16
      %v668 = vor.u32 %v666, %v664
      %v669 = vshll.u32 %v581, 16
      %v671 = vrot.slane %v669, 1
      %v672 = vsel %vm606, %v668, %v671
      %v673 = vshrl.u32 %v581, 16
      %v675 = vor.u32 %v673, %v671
      %v676 = vshll.u32 %v585, 16
      %v678 = vrot.slane %v676, 1
      %v679 = vsel %vm606, %v675, %v678
      %v680 = vshrl.u32 %v585, 16
      %v682 = vor.u32 %v680, %v678
      %v683 = vshll.u32 %v589, 16
      %v685 = vrot.slane %v683, 1
      %v686 = vsel %vm606, %v682, %v685
      %v687 = vshrl.u32 %v589, 16
      %v689 = vor.u32 %v687, %v685
      %v690 = vshll.u32 %v593, 16
      %v692 = vrot.slane %v690, 1
      %v693 = vsel %vm606, %v689, %v692
      %v694 = vshrl.u32 %v593, 16
      %v696 = vor.u32 %v694, %v692
      %v697 = vshll.u32 %v597, 16
      %v699 = vrot.slane %v697, 1
      %v700 = vsel %vm606, %v696, %v699
      %v701 = vshrl.u32 %v597, 16
      %v703 = vor.u32 %v701, %v699
      %v704 = vshll.u32 %v601, 16
      %v706 = vrot.slane %v704, 1
      %v707 = vsel %vm606, %v703, %v706
      %v708 = vshrl.u32 %v601, 16
      %v710 = vor.u32 %v708, %v706
      %v711 = vshll.u32 %v605, 16
      %v713 = vrot.slane %v711, 1
      %v714 = vsel %vm606, %v710, %v713
      %v715 = vshrl.u32 %v605, 16
      %v717 = vor.u32 %v715, %v713
      %v735 = vmul.bf16 %v525, %v609
      %v736 = vmul.bf16 %v526, %v616
      %v737 = vmul.bf16 %v527, %v623
      %v738 = vmul.bf16 %v528, %v630
      %v739 = vmul.bf16 %v529, %v637
      %v740 = vmul.bf16 %v530, %v644
      %v741 = vmul.bf16 %v531, %v651
      %v742 = vmul.bf16 %v532, %v658
      %v743 = vmul.bf16 %v533, %v665
      %v744 = vmul.bf16 %v534, %v672
      %v745 = vmul.bf16 %v535, %v679
      %v746 = vmul.bf16 %v536, %v686
      %v747 = vmul.bf16 %v537, %v693
      %v748 = vmul.bf16 %v538, %v700
      %v749 = vmul.bf16 %v539, %v707
      %v750 = vmul.bf16 %v540, %v714
      %v751 = vmul.bf16 %v541, %v717
      %v752 = vld [vmem:[%s3] sm:$0xf]
      %v753 = vld [vmem:[%s3 + $0x4] sm:$0xf]
      %v754 = vld [vmem:[%s3 + $0x8] sm:$0xf]
      %v755 = vld [vmem:[%s3 + $0xc] sm:$0xf]
      %v756 = vld [vmem:[%s3 + $0x10] sm:$0xf]
      %v757 = vld [vmem:[%s3 + $0x14] sm:$0xf]
      %v758 = vld [vmem:[%s3 + $0x18] sm:$0xf]
      %v759 = vld [vmem:[%s3 + $0x1c] sm:$0xf]
      %v760 = vld [vmem:[%s3 + $0x20] sm:$0xf]
      %v761 = vld [vmem:[%s3 + $0x24] sm:$0xf]
      %v762 = vld [vmem:[%s3 + $0x28] sm:$0xf]
      %v763 = vld [vmem:[%s3 + $0x2c] sm:$0xf]
      %v764 = vld [vmem:[%s3 + $0x30] sm:$0xf]
      %v765 = vld [vmem:[%s3 + $0x34] sm:$0xf]
      %v766 = vld [vmem:[%s3 + $0x38] sm:$0xf]
      %v767 = vld [vmem:[%s3 + $0x3c] sm:$0xf]
      %v768 = vld [vmem:[%s3 + $0x40] sm:$0xf]
      %v769 = vld [vmem:[%s3 + $0x44] sm:$0xf]
      %v770 = vld [vmem:[%s3 + $0x48] sm:$0xf]
      %v771 = vld [vmem:[%s3 + $0x4c] sm:$0xf]
      %v772 = vld [vmem:[%s3 + $0x50] sm:$0xf]
      %v773 = vld [vmem:[%s3 + $0x54] sm:$0xf]
      %v774 = vld [vmem:[%s3 + $0x58] sm:$0xf]
      %v775 = vld [vmem:[%s3 + $0x5c] sm:$0xf]
      %v776 = vld [vmem:[%s3 + $0x60] sm:$0xf]
      %v777 = vld [vmem:[%s3 + $0x64] sm:$0xf]
      %v778 = vld [vmem:[%s3 + $0x68] sm:$0xf]
      %v779 = vld [vmem:[%s3 + $0x6c] sm:$0xf]
      %v780 = vld [vmem:[%s3 + $0x70] sm:$0xf]
      %v781 = vld [vmem:[%s3 + $0x74] sm:$0xf]
      %v782 = vld [vmem:[%s3 + $0x78] sm:$0xf]
      %v783 = vld [vmem:[%s3 + $0x7c] sm:$0xf]
      %v800 = vunpack.c.l.b16 %v768
      %v801 = vunpack.c.l.b16 %v769
      %v802 = vunpack.c.l.b16 %v770
      %v803 = vunpack.c.l.b16 %v771
      %v804 = vunpack.c.l.b16 %v772
      %v805 = vunpack.c.l.b16 %v773
      %v806 = vunpack.c.l.b16 %v774
      %v807 = vunpack.c.l.b16 %v775
      %v808 = vunpack.c.l.b16 %v776
      %v809 = vunpack.c.l.b16 %v777
      %v810 = vunpack.c.l.b16 %v778
      %v811 = vunpack.c.l.b16 %v779
      %v812 = vunpack.c.l.b16 %v780
      %v813 = vunpack.c.l.b16 %v781
      %v814 = vunpack.c.l.b16 %v782
      %v815 = vunpack.c.l.b16 %v783
      %v816 = vpack.c.b16 %v801, %v800
      %v817 = vpack.c.b16 %v803, %v802
      %v818 = vpack.c.b16 %v805, %v804
      %v819 = vpack.c.b16 %v807, %v806
      %v820 = vpack.c.b16 %v809, %v808
      %v821 = vpack.c.b16 %v811, %v810
      %v822 = vpack.c.b16 %v813, %v812
      %v823 = vpack.c.b16 %v815, %v814
      %832 = vmatprep.subr.bf16.mxu0 0
      %833 = vmatpush1.bf16.msra.mxu0 %v816
      %834 = vmatprep.subr.bf16.mxu0 0
      %835 = vmatpush1.bf16.msra.mxu0 %v817
      %836 = vmatprep.subr.bf16.mxu0 0
      %837 = vmatpush1.bf16.msra.mxu0 %v818
      %838 = vmatprep.subr.bf16.mxu0 0
      %839 = vmatpush1.bf16.msra.mxu0 %v819
      %840 = vmatprep.subr.bf16.mxu0 0
      %841 = vmatpush1.bf16.msra.mxu0 %v820
      %842 = vmatprep.subr.bf16.mxu0 0
      %843 = vmatpush1.bf16.msra.mxu0 %v821
      %844 = vmatprep.subr.bf16.mxu0 0
      %845 = vmatpush1.bf16.msra.mxu0 %v822
      %846 = vmatprep.subr.bf16.mxu0 0
      %847 = vmatpush1.bf16.msra.mxu0 %v823
      %848 = vmatprep.subr.bf16.mxu0 0
      %849 = vmatpush1.bf16.msra.mxu0 0
      %850 = vmatprep.subr.bf16.mxu0 0
      %851 = vmatpush1.bf16.msra.mxu0 0
      %852 = vmatprep.subr.bf16.mxu0 0
      %853 = vmatpush1.bf16.msra.mxu0 0
      %854 = vmatprep.subr.bf16.mxu0 0
      %855 = vmatpush1.bf16.msra.mxu0 0
      %856 = vmatprep.subr.bf16.mxu0 0
      %857 = vmatpush1.bf16.msra.mxu0 0
      %858 = vmatprep.subr.bf16.mxu0 0
      %859 = vmatpush1.bf16.msra.mxu0 0
      %860 = vmatprep.subr.bf16.mxu0 0
      %861 = vmatpush1.bf16.msra.mxu0 0
      %862 = vmatprep.subr.bf16.mxu0 0
      %863 = vmatpush1.bf16.msra.mxu0 0
      %864 = vmatprep.mubr.bf16.mxu0 0
      %865 = vmatmul.mubr.bf16.gmra.mrb[0].mxu0 %v526
      %v866 = vpop.f32.mrb[0].mxu0
      %v867 = vadd.f32 0.0, %v866
      %v868 = vpop.f32.mrb[0].mxu0
      %v869 = vpop.f32.mrb[0].mxu0
      %v870 = vadd.f32 0.0, %v869
      %v871 = vpop.f32.mrb[0].mxu0
      %872 = vmatprep.mubr.bf16.mxu0 0
      %873 = vmatmul.mubr.bf16.gmra.mrb[0].mxu0 %v527
      %v874 = vpop.f32.mrb[0].mxu0
      %v875 = vadd.f32 0.0, %v874
      %v876 = vpop.f32.mrb[0].mxu0
      %v877 = vpop.f32.mrb[0].mxu0
      %v878 = vadd.f32 0.0, %v877
      %v879 = vpop.f32.mrb[0].mxu0
      %880 = vmatprep.mubr.bf16.mxu0 0
      %881 = vmatmul.mubr.bf16.gmra.mrb[0].mxu0 %v528
      %v882 = vpop.f32.mrb[0].mxu0
      %v883 = vadd.f32 0.0, %v882
      %v884 = vpop.f32.mrb[0].mxu0
      %v885 = vpop.f32.mrb[0].mxu0
      %v886 = vadd.f32 0.0, %v885
      %v887 = vpop.f32.mrb[0].mxu0
      %888 = vmatprep.mubr.bf16.mxu0 0
      %889 = vmatmul.mubr.bf16.gmra.mrb[0].mxu0 %v529
      %v890 = vpop.f32.mrb[0].mxu0
      %v891 = vadd.f32 0.0, %v890
      %v892 = vpop.f32.mrb[0].mxu0
      %v893 = vpop.f32.mrb[0].mxu0
      %v894 = vadd.f32 0.0, %v893
      %v895 = vpop.f32.mrb[0].mxu0
      %896 = vmatprep.mubr.bf16.mxu0 0
      %897 = vmatmul.mubr.bf16.gmra.mrb[0].mxu0 %v530
      %v898 = vpop.f32.mrb[0].mxu0
      %v899 = vadd.f32 0.0, %v898
      %v900 = vpop.f32.mrb[0].mxu0
      %v901 = vpop.f32.mrb[0].mxu0
      %v902 = vadd.f32 0.0, %v901
      %v903 = vpop.f32.mrb[0].mxu0
      %904 = vmatprep.mubr.bf16.mxu0 0
      %905 = vmatmul.mubr.bf16.gmra.mrb[0].mxu0 %v531
      %v906 = vpop.f32.mrb[0].mxu0
      %v907 = vadd.f32 0.0, %v906
      %v908 = vpop.f32.mrb[0].mxu0
      %v909 = vpop.f32.mrb[0].mxu0
      %v910 = vadd.f32 0.0, %v909
      %v911 = vpop.f32.mrb[0].mxu0
      %912 = vmatprep.mubr.bf16.mxu0 0
      %913 = vmatmul.mubr.bf16.gmra.mrb[0].mxu0 %v532
      %v914 = vpop.f32.mrb[0].mxu0
      %v915 = vadd.f32 0.0, %v914
      %v916 = vpop.f32.mrb[0].mxu0
      %v917 = vpop.f32.mrb[0].mxu0
      %v918 = vadd.f32 0.0, %v917
      %v919 = vpop.f32.mrb[0].mxu0
      %920 = vmatprep.mubr.bf16.mxu0 0
      %921 = vmatmul.mubr.bf16.gmra.mrb[0].mxu0 %v533
      %v922 = vpop.f32.mrb[0].mxu0
      %v923 = vadd.f32 0.0, %v922
      %v924 = vpop.f32.mrb[0].mxu0
      %v925 = vpop.f32.mrb[0].mxu0
      %v926 = vadd.f32 0.0, %v925
      %v927 = vpop.f32.mrb[0].mxu0
      %928 = vmatprep.mubr.bf16.mxu0 0
      %929 = vmatmul.mubr.bf16.gmra.mrb[0].mxu0 %v534
      %v930 = vpop.f32.mrb[0].mxu0
      %v931 = vadd.f32 0.0, %v930
      %v932 = vpop.f32.mrb[0].mxu0
      %v933 = vpop.f32.mrb[0].mxu0
      %v934 = vadd.f32 0.0, %v933
      %v935 = vpop.f32.mrb[0].mxu0
      %936 = vmatprep.mubr.bf16.mxu0 0
      %937 = vmatmul.mubr.bf16.gmra.mrb[0].mxu0 %v535
      %v938 = vpop.f32.mrb[0].mxu0
      %v939 = vadd.f32 0.0, %v938
      %v940 = vpop.f32.mrb[0].mxu0
      %v941 = vpop.f32.mrb[0].mxu0
      %v942 = vadd.f32 0.0, %v941
      %v943 = vpop.f32.mrb[0].mxu0
      %944 = vmatprep.mubr.bf16.mxu0 0
      %945 = vmatmul.mubr.bf16.gmra.mrb[0].mxu0 %v536
      %v946 = vpop.f32.mrb[0].mxu0
      %v947 = vadd.f32 0.0, %v946
      %v948 = vpop.f32.mrb[0].mxu0
      %v949 = vpop.f32.mrb[0].mxu0
      %v950 = vadd.f32 0.0, %v949
      %v951 = vpop.f32.mrb[0].mxu0
      %952 = vmatprep.mubr.bf16.mxu0 0
      %953 = vmatmul.mubr.bf16.gmra.mrb[0].mxu0 %v537
      %v954 = vpop.f32.mrb[0].mxu0
      %v955 = vadd.f32 0.0, %v954
      %v956 = vpop.f32.mrb[0].mxu0
      %v957 = vpop.f32.mrb[0].mxu0
      %v958 = vadd.f32 0.0, %v957
      %v959 = vpop.f32.mrb[0].mxu0
      %960 = vmatprep.mubr.bf16.mxu0 0
      %961 = vmatmul.mubr.bf16.gmra.mrb[0].mxu0 %v538
      %v962 = vpop.f32.mrb[0].mxu0
      %v963 = vadd.f32 0.0, %v962
      %v964 = vpop.f32.mrb[0].mxu0
      %v965 = vpop.f32.mrb[0].mxu0
      %v966 = vadd.f32 0.0, %v965
      %v967 = vpop.f32.mrb[0].mxu0
      %968 = vmatprep.mubr.bf16.mxu0 0
      %969 = vmatmul.mubr.bf16.gmra.mrb[0].mxu0 %v539
      %v970 = vpop.f32.mrb[0].mxu0
      %v971 = vadd.f32 0.0, %v970
      %v972 = vpop.f32.mrb[0].mxu0
      %v973 = vpop.f32.mrb[0].mxu0
      %v974 = vadd.f32 0.0, %v973
      %v975 = vpop.f32.mrb[0].mxu0
      %976 = vmatprep.mubr.bf16.mxu0 0
      %977 = vmatmul.mubr.bf16.gmra.mrb[0].mxu0 %v540
      %v978 = vpop.f32.mrb[0].mxu0
      %v979 = vadd.f32 0.0, %v978
      %v980 = vpop.f32.mrb[0].mxu0
      %v981 = vpop.f32.mrb[0].mxu0
      %v982 = vadd.f32 0.0, %v981
      %v983 = vpop.f32.mrb[0].mxu0
      %984 = vmatprep.mubr.bf16.mxu0 0
      %985 = vmatmul.mubr.bf16.gmra.mrb[0].mxu0 %v541
      %v986 = vpop.f32.mrb[0].mxu0
      %v987 = vadd.f32 0.0, %v986
      %v988 = vpop.f32.mrb[0].mxu0
      %v989 = vpop.f32.mrb[0].mxu0
      %v990 = vadd.f32 0.0, %v989
      %v991 = vpop.f32.mrb[0].mxu0
      %992 = vdwg.mxu0
      %vm993 = vsmask.f32 256
      %v995 = vshrl.u32 %v735, 16
      %v997 = vrot.slane %v995, 7
      %v999 = vshrl.u32 %v736, 16
      %v1001 = vrot.slane %v999, 7
      %v1002 = vshll.u32 %v736, 16
      %v1004 = vor.u32 %v1001, %v1002
      %v1005 = vsel %vm993, %v997, %v1004
      %v1007 = vshrl.u32 %v737, 16
      %v1009 = vrot.slane %v1007, 7
      %v1010 = vshll.u32 %v737, 16
      %v1012 = vor.u32 %v1009, %v1010
      %v1013 = vsel %vm993, %v1001, %v1012
      %v1015 = vshrl.u32 %v738, 16
      %v1017 = vrot.slane %v1015, 7
      %v1018 = vshll.u32 %v738, 16
      %v1020 = vor.u32 %v1017, %v1018
      %v1021 = vsel %vm993, %v1009, %v1020
      %v1023 = vshrl.u32 %v739, 16
      %v1025 = vrot.slane %v1023, 7
      %v1026 = vshll.u32 %v739, 16
      %v1028 = vor.u32 %v1025, %v1026
      %v1029 = vsel %vm993, %v1017, %v1028
      %v1031 = vshrl.u32 %v740, 16
      %v1033 = vrot.slane %v1031, 7
      %v1034 = vshll.u32 %v740, 16
      %v1036 = vor.u32 %v1033, %v1034
      %v1037 = vsel %vm993, %v1025, %v1036
      %v1039 = vshrl.u32 %v741, 16
      %v1041 = vrot.slane %v1039, 7
      %v1042 = vshll.u32 %v741, 16
      %v1044 = vor.u32 %v1041, %v1042
      %v1045 = vsel %vm993, %v1033, %v1044
      %v1047 = vshrl.u32 %v742, 16
      %v1049 = vrot.slane %v1047, 7
      %v1050 = vshll.u32 %v742, 16
      %v1052 = vor.u32 %v1049, %v1050
      %v1053 = vsel %vm993, %v1041, %v1052
      %v1055 = vshrl.u32 %v743, 16
      %v1057 = vrot.slane %v1055, 7
      %v1058 = vshll.u32 %v743, 16
      %v1060 = vor.u32 %v1057, %v1058
      %v1061 = vsel %vm993, %v1049, %v1060
      %v1063 = vshrl.u32 %v744, 16
      %v1065 = vrot.slane %v1063, 7
      %v1066 = vshll.u32 %v744, 16
      %v1068 = vor.u32 %v1065, %v1066
      %v1069 = vsel %vm993, %v1057, %v1068
      %v1071 = vshrl.u32 %v745, 16
      %v1073 = vrot.slane %v1071, 7
      %v1074 = vshll.u32 %v745, 16
      %v1076 = vor.u32 %v1073, %v1074
      %v1077 = vsel %vm993, %v1065, %v1076
      %v1079 = vshrl.u32 %v746, 16
      %v1081 = vrot.slane %v1079, 7
      %v1082 = vshll.u32 %v746, 16
      %v1084 = vor.u32 %v1081, %v1082
      %v1085 = vsel %vm993, %v1073, %v1084
      %v1087 = vshrl.u32 %v747, 16
      %v1089 = vrot.slane %v1087, 7
      %v1090 = vshll.u32 %v747, 16
      %v1092 = vor.u32 %v1089, %v1090
      %v1093 = vsel %vm993, %v1081, %v1092
      %v1095 = vshrl.u32 %v748, 16
      %v1097 = vrot.slane %v1095, 7
      %v1098 = vshll.u32 %v748, 16
      %v1100 = vor.u32 %v1097, %v1098
      %v1101 = vsel %vm993, %v1089, %v1100
      %v1103 = vshrl.u32 %v749, 16
      %v1105 = vrot.slane %v1103, 7
      %v1106 = vshll.u32 %v749, 16
      %v1108 = vor.u32 %v1105, %v1106
      %v1109 = vsel %vm993, %v1097, %v1108
      %v1111 = vshrl.u32 %v750, 16
      %v1113 = vrot.slane %v1111, 7
      %v1114 = vshll.u32 %v750, 16
      %v1116 = vor.u32 %v1113, %v1114
      %v1117 = vsel %vm993, %v1105, %v1116
      %v1119 = vshrl.u32 %v751, 16
      %v1121 = vrot.slane %v1119, 7
      %v1122 = vshll.u32 %v751, 16
      %v1124 = vor.u32 %v1121, %v1122
      %v1125 = vsel %vm993, %v1113, %v1124
      %v1158 = vunpack.c.l.b16 %v752
      %v1159 = vunpack.c.l.b16 %v753
      %v1160 = vunpack.c.l.b16 %v754
      %v1161 = vunpack.c.l.b16 %v755
      %v1162 = vunpack.c.l.b16 %v756
      %v1163 = vunpack.c.l.b16 %v757
      %v1164 = vunpack.c.l.b16 %v758
      %v1165 = vunpack.c.l.b16 %v759
      %v1166 = vunpack.c.l.b16 %v760
      %v1167 = vunpack.c.l.b16 %v761
      %v1168 = vunpack.c.l.b16 %v762
      %v1169 = vunpack.c.l.b16 %v763
      %v1170 = vunpack.c.l.b16 %v764
      %v1171 = vunpack.c.l.b16 %v765
      %v1172 = vunpack.c.l.b16 %v766
      %v1173 = vunpack.c.l.b16 %v767
      %v1174 = vpack.c.b16 %v1159, %v1158
      %v1175 = vpack.c.b16 %v1161, %v1160
      %v1176 = vpack.c.b16 %v1163, %v1162
      %v1177 = vpack.c.b16 %v1165, %v1164
      %v1178 = vpack.c.b16 %v1167, %v1166
      %v1179 = vpack.c.b16 %v1169, %v1168
      %v1180 = vpack.c.b16 %v1171, %v1170
      %v1181 = vpack.c.b16 %v1173, %v1172
      %1190 = vmatprep.subr.bf16.mxu0 0
      %1191 = vmatpush1.bf16.msra.mxu0 %v1174
      %1192 = vmatprep.subr.bf16.mxu0 0
      %1193 = vmatpush1.bf16.msra.mxu0 %v1175
      %1194 = vmatprep.subr.bf16.mxu0 0
      %1195 = vmatpush1.bf16.msra.mxu0 %v1176
      %1196 = vmatprep.subr.bf16.mxu0 0
      %1197 = vmatpush1.bf16.msra.mxu0 %v1177
      %1198 = vmatprep.subr.bf16.mxu0 0
      %1199 = vmatpush1.bf16.msra.mxu0 %v1178
      %1200 = vmatprep.subr.bf16.mxu0 0
      %1201 = vmatpush1.bf16.msra.mxu0 %v1179
      %1202 = vmatprep.subr.bf16.mxu0 0
      %1203 = vmatpush1.bf16.msra.mxu0 %v1180
      %1204 = vmatprep.subr.bf16.mxu0 0
      %1205 = vmatpush1.bf16.msra.mxu0 %v1181
      %1206 = vmatprep.subr.bf16.mxu0 0
      %1207 = vmatpush1.bf16.msra.mxu0 0
      %1208 = vmatprep.subr.bf16.mxu0 0
      %1209 = vmatpush1.bf16.msra.mxu0 0
      %1210 = vmatprep.subr.bf16.mxu0 0
      %1211 = vmatpush1.bf16.msra.mxu0 0
      %1212 = vmatprep.subr.bf16.mxu0 0
      %1213 = vmatpush1.bf16.msra.mxu0 0
      %1214 = vmatprep.subr.bf16.mxu0 0
      %1215 = vmatpush1.bf16.msra.mxu0 0
      %1216 = vmatprep.subr.bf16.mxu0 0
      %1217 = vmatpush1.bf16.msra.mxu0 0
      %1218 = vmatprep.subr.bf16.mxu0 0
      %1219 = vmatpush1.bf16.msra.mxu0 0
      %1220 = vmatprep.subr.bf16.mxu0 0
      %1221 = vmatpush1.bf16.msra.mxu0 0
      %1222 = vmatprep.mubr.bf16.mxu0 0
      %1223 = vmatmul.mubr.bf16.gmra.mrb[0].mxu0 %v1005
      %v1224 = vpop.f32.mrb[0].mxu0
      %v1225 = vadd.f32 %v867, %v1224
      %v1226 = vpop.f32.mrb[0].mxu0
      %v1227 = vpop.f32.mrb[0].mxu0
      %v1228 = vadd.f32 %v870, %v1227
      %v1229 = vpop.f32.mrb[0].mxu0
      %1230 = vmatprep.mubr.bf16.mxu0 0
      %1231 = vmatmul.mubr.bf16.gmra.mrb[0].mxu0 %v1013
      %v1232 = vpop.f32.mrb[0].mxu0
      %v1233 = vadd.f32 %v875, %v1232
      %v1234 = vpop.f32.mrb[0].mxu0
      %v1235 = vpop.f32.mrb[0].mxu0
      %v1236 = vadd.f32 %v878, %v1235
      %v1237 = vpop.f32.mrb[0].mxu0
      %1238 = vmatprep.mubr.bf16.mxu0 0
      %1239 = vmatmul.mubr.bf16.gmra.mrb[0].mxu0 %v1021
      %v1240 = vpop.f32.mrb[0].mxu0
      %v1241 = vadd.f32 %v883, %v1240
      %v1242 = vpop.f32.mrb[0].mxu0
      %v1243 = vpop.f32.mrb[0].mxu0
      %v1244 = vadd.f32 %v886, %v1243
      %v1245 = vpop.f32.mrb[0].mxu0
      %1246 = vmatprep.mubr.bf16.mxu0 0
      %1247 = vmatmul.mubr.bf16.gmra.mrb[0].mxu0 %v1029
      %v1248 = vpop.f32.mrb[0].mxu0
      %v1249 = vadd.f32 %v891, %v1248
      %v1250 = vpop.f32.mrb[0].mxu0
      %v1251 = vpop.f32.mrb[0].mxu0
      %v1252 = vadd.f32 %v894, %v1251
      %v1253 = vpop.f32.mrb[0].mxu0
      %1254 = vmatprep.mubr.bf16.mxu0 0
      %1255 = vmatmul.mubr.bf16.gmra.mrb[0].mxu0 %v1037
      %v1256 = vpop.f32.mrb[0].mxu0
      %v1257 = vadd.f32 %v899, %v1256
      %v1258 = vpop.f32.mrb[0].mxu0
      %v1259 = vpop.f32.mrb[0].mxu0
      %v1260 = vadd.f32 %v902, %v1259
      %v1261 = vpop.f32.mrb[0].mxu0
      %1262 = vmatprep.mubr.bf16.mxu0 0
      %1263 = vmatmul.mubr.bf16.gmra.mrb[0].mxu0 %v1045
      %v1264 = vpop.f32.mrb[0].mxu0
      %v1265 = vadd.f32 %v907, %v1264
      %v1266 = vpop.f32.mrb[0].mxu0
      %v1267 = vpop.f32.mrb[0].mxu0
      %v1268 = vadd.f32 %v910, %v1267
      %v1269 = vpop.f32.mrb[0].mxu0
      %1270 = vmatprep.mubr.bf16.mxu0 0
      %1271 = vmatmul.mubr.bf16.gmra.mrb[0].mxu0 %v1053
      %v1272 = vpop.f32.mrb[0].mxu0
      %v1273 = vadd.f32 %v915, %v1272
      %v1274 = vpop.f32.mrb[0].mxu0
      %v1275 = vpop.f32.mrb[0].mxu0
      %v1276 = vadd.f32 %v918, %v1275
      %v1277 = vpop.f32.mrb[0].mxu0
      %1278 = vmatprep.mubr.bf16.mxu0 0
      %1279 = vmatmul.mubr.bf16.gmra.mrb[0].mxu0 %v1061
      %v1280 = vpop.f32.mrb[0].mxu0
      %v1281 = vadd.f32 %v923, %v1280
      %v1282 = vpop.f32.mrb[0].mxu0
      %v1283 = vpop.f32.mrb[0].mxu0
      %v1284 = vadd.f32 %v926, %v1283
      %v1285 = vpop.f32.mrb[0].mxu0
      %1286 = vmatprep.mubr.bf16.mxu0 0
      %1287 = vmatmul.mubr.bf16.gmra.mrb[0].mxu0 %v1069
      %v1288 = vpop.f32.mrb[0].mxu0
      %v1289 = vadd.f32 %v931, %v1288
      %v1290 = vpop.f32.mrb[0].mxu0
      %v1291 = vpop.f32.mrb[0].mxu0
      %v1292 = vadd.f32 %v934, %v1291
      %v1293 = vpop.f32.mrb[0].mxu0
      %1294 = vmatprep.mubr.bf16.mxu0 0
      %1295 = vmatmul.mubr.bf16.gmra.mrb[0].mxu0 %v1077
      %v1296 = vpop.f32.mrb[0].mxu0
      %v1297 = vadd.f32 %v939, %v1296
      %v1298 = vpop.f32.mrb[0].mxu0
      %v1299 = vpop.f32.mrb[0].mxu0
      %v1300 = vadd.f32 %v942, %v1299
      %v1301 = vpop.f32.mrb[0].mxu0
      %1302 = vmatprep.mubr.bf16.mxu0 0
      %1303 = vmatmul.mubr.bf16.gmra.mrb[0].mxu0 %v1085
      %v1304 = vpop.f32.mrb[0].mxu0
      %v1305 = vadd.f32 %v947, %v1304
      %v1306 = vpop.f32.mrb[0].mxu0
      %v1307 = vpop.f32.mrb[0].mxu0
      %v1308 = vadd.f32 %v950, %v1307
      %v1309 = vpop.f32.mrb[0].mxu0
      %1310 = vmatprep.mubr.bf16.mxu0 0
      %1311 = vmatmul.mubr.bf16.gmra.mrb[0].mxu0 %v1093
      %v1312 = vpop.f32.mrb[0].mxu0
      %v1313 = vadd.f32 %v955, %v1312
      %v1314 = vpop.f32.mrb[0].mxu0
      %v1315 = vpop.f32.mrb[0].mxu0
      %v1316 = vadd.f32 %v958, %v1315
      %v1317 = vpop.f32.mrb[0].mxu0
      %1318 = vmatprep.mubr.bf16.mxu0 0
      %1319 = vmatmul.mubr.bf16.gmra.mrb[0].mxu0 %v1101
      %v1320 = vpop.f32.mrb[0].mxu0
      %v1321 = vadd.f32 %v963, %v1320
      %v1322 = vpop.f32.mrb[0].mxu0
      %v1323 = vpop.f32.mrb[0].mxu0
      %v1324 = vadd.f32 %v966, %v1323
      %v1325 = vpop.f32.mrb[0].mxu0
      %1326 = vmatprep.mubr.bf16.mxu0 0
      %1327 = vmatmul.mubr.bf16.gmra.mrb[0].mxu0 %v1109
      %v1328 = vpop.f32.mrb[0].mxu0
      %v1329 = vadd.f32 %v971, %v1328
      %v1330 = vpop.f32.mrb[0].mxu0
      %v1331 = vpop.f32.mrb[0].mxu0
      %v1332 = vadd.f32 %v974, %v1331
      %v1333 = vpop.f32.mrb[0].mxu0
      %1334 = vmatprep.mubr.bf16.mxu0 0
      %1335 = vmatmul.mubr.bf16.gmra.mrb[0].mxu0 %v1117
      %v1336 = vpop.f32.mrb[0].mxu0
      %v1337 = vadd.f32 %v979, %v1336
      %v1338 = vpop.f32.mrb[0].mxu0
      %v1339 = vpop.f32.mrb[0].mxu0
      %v1340 = vadd.f32 %v982, %v1339
      %v1341 = vpop.f32.mrb[0].mxu0
      %1342 = vmatprep.mubr.bf16.mxu0 0
      %1343 = vmatmul.mubr.bf16.gmra.mrb[0].mxu0 %v1125
      %v1344 = vpop.f32.mrb[0].mxu0
      %v1345 = vadd.f32 %v987, %v1344
      %v1346 = vpop.f32.mrb[0].mxu0
      %v1347 = vpop.f32.mrb[0].mxu0
      %v1348 = vadd.f32 %v990, %v1347
      %v1349 = vpop.f32.mrb[0].mxu0
      %1350 = vdwg.mxu0
      %v1351 = vld [vmem:[#allocation2 + $0x8] sm:$0xff]
      %v1352 = vld [vmem:[#allocation2 + $0x10] sm:$0xff]
      %v1353 = vld [vmem:[#allocation2 + $0x18] sm:$0xff]
      %v1354 = vld [vmem:[#allocation2 + $0x20] sm:$0xff]
      %v1355 = vld [vmem:[#allocation2 + $0x28] sm:$0xff]
      %v1356 = vld [vmem:[#allocation2 + $0x30] sm:$0xff]
      %v1357 = vld [vmem:[#allocation2 + $0x38] sm:$0xff]
      %v1358 = vld [vmem:[#allocation2 + $0x40] sm:$0xff]
      %v1359 = vld [vmem:[#allocation2 + $0x48] sm:$0xff]
      %v1360 = vld [vmem:[#allocation2 + $0x50] sm:$0xff]
      %v1361 = vld [vmem:[#allocation2 + $0x58] sm:$0xff]
      %v1362 = vld [vmem:[#allocation2 + $0x60] sm:$0xff]
      %v1363 = vld [vmem:[#allocation2 + $0x68] sm:$0xff]
      %v1364 = vld [vmem:[#allocation2 + $0x70] sm:$0xff]
      %v1365 = vld [vmem:[#allocation2 + $0x78] sm:$0xff]
      %v1366 = vld [vmem:[#allocation2 + $0x80] sm:$0xff]
      %v1367 = vld [vmem:[#allocation2 + $0x88] sm:$0x1]
      %1368 = vset.pattern.permute.xlu0 1
      %1369 = vperm.xlu0 %1368, %v509
      %v1370 = vpop.permute.xlu0 %1369
      %1371 = vset.pattern.permute.xlu0 1
      %1372 = vperm.xlu0 %1371, %v510
      %v1373 = vpop.permute.xlu0 %1372
      %1374 = vset.pattern.permute.xlu0 1
      %1375 = vperm.xlu0 %1374, %v511
      %v1376 = vpop.permute.xlu0 %1375
      %1377 = vset.pattern.permute.xlu0 1
      %1378 = vperm.xlu0 %1377, %v512
      %v1379 = vpop.permute.xlu0 %1378
      %1380 = vset.pattern.permute.xlu0 1
      %1381 = vperm.xlu0 %1380, %v513
      %v1382 = vpop.permute.xlu0 %1381
      %1383 = vset.pattern.permute.xlu0 1
      %1384 = vperm.xlu0 %1383, %v514
      %v1385 = vpop.permute.xlu0 %1384
      %1386 = vset.pattern.permute.xlu0 1
      %1387 = vperm.xlu0 %1386, %v515
      %v1388 = vpop.permute.xlu0 %1387
      %1389 = vset.pattern.permute.xlu0 1
      %1390 = vperm.xlu0 %1389, %v516
      %v1391 = vpop.permute.xlu0 %1390
      %1392 = vset.pattern.permute.xlu0 1
      %1393 = vperm.xlu0 %1392, %v517
      %v1394 = vpop.permute.xlu0 %1393
      %1395 = vset.pattern.permute.xlu0 1
      %1396 = vperm.xlu0 %1395, %v518
      %v1397 = vpop.permute.xlu0 %1396
      %1398 = vset.pattern.permute.xlu0 1
      %1399 = vperm.xlu0 %1398, %v519
      %v1400 = vpop.permute.xlu0 %1399
      %1401 = vset.pattern.permute.xlu0 1
      %1402 = vperm.xlu0 %1401, %v520
      %v1403 = vpop.permute.xlu0 %1402
      %1404 = vset.pattern.permute.xlu0 1
      %1405 = vperm.xlu0 %1404, %v521
      %v1406 = vpop.permute.xlu0 %1405
      %1407 = vset.pattern.permute.xlu0 1
      %1408 = vperm.xlu0 %1407, %v522
      %v1409 = vpop.permute.xlu0 %1408
      %1410 = vset.pattern.permute.xlu0 1
      %1411 = vperm.xlu0 %1410, %v523
      %v1412 = vpop.permute.xlu0 %1411
      %1413 = vset.pattern.permute.xlu0 1
      %1414 = vperm.xlu0 %1413, %v524
      %v1415 = vpop.permute.xlu0 %1414
      %v1416 = vshrl.u32 %v1370, 16
      %v1418 = vrot.slane %v1416, 7
      %v1419 = vshll.u32 %v1370, 16
      %v1421 = vor.u32 %v1418, %v1419
      %v1422 = vshrl.u32 %v1373, 16
      %v1424 = vrot.slane %v1422, 7
      %v1425 = vshll.u32 %v1373, 16
      %v1427 = vor.u32 %v1424, %v1425
      %v1428 = vsel %vm993, %v1418, %v1427
      %v1429 = vshrl.u32 %v1376, 16
      %v1431 = vrot.slane %v1429, 7
      %v1432 = vshll.u32 %v1376, 16
      %v1434 = vor.u32 %v1431, %v1432
      %v1435 = vsel %vm993, %v1424, %v1434
      %v1436 = vshrl.u32 %v1379, 16
      %v1438 = vrot.slane %v1436, 7
      %v1439 = vshll.u32 %v1379, 16
      %v1441 = vor.u32 %v1438, %v1439
      %v1442 = vsel %vm993, %v1431, %v1441
      %v1443 = vshrl.u32 %v1382, 16
      %v1445 = vrot.slane %v1443, 7
      %v1446 = vshll.u32 %v1382, 16
      %v1448 = vor.u32 %v1445, %v1446
      %v1449 = vsel %vm993, %v1438, %v1448
      %v1450 = vshrl.u32 %v1385, 16
      %v1452 = vrot.slane %v1450, 7
      %v1453 = vshll.u32 %v1385, 16
      %v1455 = vor.u32 %v1452, %v1453
      %v1456 = vsel %vm993, %v1445, %v1455
      %v1457 = vshrl.u32 %v1388, 16
      %v1459 = vrot.slane %v1457, 7
      %v1460 = vshll.u32 %v1388, 16
      %v1462 = vor.u32 %v1459, %v1460
      %v1463 = vsel %vm993, %v1452, %v1462
      %v1464 = vshrl.u32 %v1391, 16
      %v1466 = vrot.slane %v1464, 7
      %v1467 = vshll.u32 %v1391, 16
      %v1469 = vor.u32 %v1466, %v1467
      %v1470 = vsel %vm993, %v1459, %v1469
      %v1471 = vshrl.u32 %v1394, 16
      %v1473 = vrot.slane %v1471, 7
      %v1474 = vshll.u32 %v1394, 16
      %v1476 = vor.u32 %v1473, %v1474
      %v1477 = vsel %vm993, %v1466, %v1476
      %v1478 = vshrl.u32 %v1397, 16
      %v1480 = vrot.slane %v1478, 7
      %v1481 = vshll.u32 %v1397, 16
      %v1483 = vor.u32 %v1480, %v1481
      %v1484 = vsel %vm993, %v1473, %v1483
      %v1485 = vshrl.u32 %v1400, 16
      %v1487 = vrot.slane %v1485, 7
      %v1488 = vshll.u32 %v1400, 16
      %v1490 = vor.u32 %v1487, %v1488
      %v1491 = vsel %vm993, %v1480, %v1490
      %v1492 = vshrl.u32 %v1403, 16
      %v1494 = vrot.slane %v1492, 7
      %v1495 = vshll.u32 %v1403, 16
      %v1497 = vor.u32 %v1494, %v1495
      %v1498 = vsel %vm993, %v1487, %v1497
      %v1499 = vshrl.u32 %v1406, 16
      %v1501 = vrot.slane %v1499, 7
      %v1502 = vshll.u32 %v1406, 16
      %v1504 = vor.u32 %v1501, %v1502
      %v1505 = vsel %vm993, %v1494, %v1504
      %v1506 = vshrl.u32 %v1409, 16
      %v1508 = vrot.slane %v1506, 7
      %v1509 = vshll.u32 %v1409, 16
      %v1511 = vor.u32 %v1508, %v1509
      %v1512 = vsel %vm993, %v1501, %v1511
      %v1513 = vshrl.u32 %v1412, 16
      %v1515 = vrot.slane %v1513, 7
      %v1516 = vshll.u32 %v1412, 16
      %v1518 = vor.u32 %v1515, %v1516
      %v1519 = vsel %vm993, %v1508, %v1518
      %v1520 = vshrl.u32 %v1415, 16
      %v1522 = vrot.slane %v1520, 7
      %v1523 = vshll.u32 %v1415, 16
      %v1525 = vor.u32 %v1522, %v1523
      %v1526 = vsel %vm993, %v1515, %v1525
      %v1544 = vmul.bf16 %v1351, %v1421
      %v1545 = vmul.bf16 %v1352, %v1428
      %v1546 = vmul.bf16 %v1353, %v1435
      %v1547 = vmul.bf16 %v1354, %v1442
      %v1548 = vmul.bf16 %v1355, %v1449
      %v1549 = vmul.bf16 %v1356, %v1456
      %v1550 = vmul.bf16 %v1357, %v1463
      %v1551 = vmul.bf16 %v1358, %v1470
      %v1552 = vmul.bf16 %v1359, %v1477
      %v1553 = vmul.bf16 %v1360, %v1484
      %v1554 = vmul.bf16 %v1361, %v1491
      %v1555 = vmul.bf16 %v1362, %v1498
      %v1556 = vmul.bf16 %v1363, %v1505
      %v1557 = vmul.bf16 %v1364, %v1512
      %v1558 = vmul.bf16 %v1365, %v1519
      %v1559 = vmul.bf16 %v1366, %v1526
      %v1560 = vmul.bf16 %v1367, %v1522
      %v1561 = vld [vmem:[%s3 + $0x80] sm:$0xf]
      %v1562 = vld [vmem:[%s3 + $0x84] sm:$0xf]
      %v1563 = vld [vmem:[%s3 + $0x88] sm:$0xf]
      %v1564 = vld [vmem:[%s3 + $0x8c] sm:$0xf]
      %v1565 = vld [vmem:[%s3 + $0x90] sm:$0xf]
      %v1566 = vld [vmem:[%s3 + $0x94] sm:$0xf]
      %v1567 = vld [vmem:[%s3 + $0x98] sm:$0xf]
      %v1568 = vld [vmem:[%s3 + $0x9c] sm:$0xf]
      %v1569 = vld [vmem:[%s3 + $0xa0] sm:$0xf]
      %v1570 = vld [vmem:[%s3 + $0xa4] sm:$0xf]
      %v1571 = vld [vmem:[%s3 + $0xa8] sm:$0xf]
      %v1572 = vld [vmem:[%s3 + $0xac] sm:$0xf]
      %v1573 = vld [vmem:[%s3 + $0xb0] sm:$0xf]
      %v1574 = vld [vmem:[%s3 + $0xb4] sm:$0xf]
      %v1575 = vld [vmem:[%s3 + $0xb8] sm:$0xf]
      %v1576 = vld [vmem:[%s3 + $0xbc] sm:$0xf]
      %v1578 = vshrl.u32 %v1544, 16
      %v1580 = vshll.u32 %v1544, 16
      %v1582 = vrot.slane %v1580, 1
      %v1583 = vor.u32 %v1578, %v1582
      %v1585 = vshll.u32 %v1545, 16
      %v1587 = vrot.slane %v1585, 1
      %v1588 = vsel %vm606, %v1583, %v1587
      %v1589 = vshrl.u32 %v1545, 16
      %v1591 = vor.u32 %v1589, %v1587
      %v1593 = vshll.u32 %v1546, 16
      %v1595 = vrot.slane %v1593, 1
      %v1596 = vsel %vm606, %v1591, %v1595
      %v1597 = vshrl.u32 %v1546, 16
      %v1599 = vor.u32 %v1597, %v1595
      %v1601 = vshll.u32 %v1547, 16
      %v1603 = vrot.slane %v1601, 1
      %v1604 = vsel %vm606, %v1599, %v1603
      %v1605 = vshrl.u32 %v1547, 16
      %v1607 = vor.u32 %v1605, %v1603
      %v1609 = vshll.u32 %v1548, 16
      %v1611 = vrot.slane %v1609, 1
      %v1612 = vsel %vm606, %v1607, %v1611
      %v1613 = vshrl.u32 %v1548, 16
      %v1615 = vor.u32 %v1613, %v1611
      %v1617 = vshll.u32 %v1549, 16
      %v1619 = vrot.slane %v1617, 1
      %v1620 = vsel %vm606, %v1615, %v1619
      %v1621 = vshrl.u32 %v1549, 16
      %v1623 = vor.u32 %v1621, %v1619
      %v1625 = vshll.u32 %v1550, 16
      %v1627 = vrot.slane %v1625, 1
      %v1628 = vsel %vm606, %v1623, %v1627
      %v1629 = vshrl.u32 %v1550, 16
      %v1631 = vor.u32 %v1629, %v1627
      %v1633 = vshll.u32 %v1551, 16
      %v1635 = vrot.slane %v1633, 1
      %v1636 = vsel %vm606, %v1631, %v1635
      %v1637 = vshrl.u32 %v1551, 16
      %v1639 = vor.u32 %v1637, %v1635
      %v1641 = vshll.u32 %v1552, 16
      %v1643 = vrot.slane %v1641, 1
      %v1644 = vsel %vm606, %v1639, %v1643
      %v1645 = vshrl.u32 %v1552, 16
      %v1647 = vor.u32 %v1645, %v1643
      %v1649 = vshll.u32 %v1553, 16
      %v1651 = vrot.slane %v1649, 1
      %v1652 = vsel %vm606, %v1647, %v1651
      %v1653 = vshrl.u32 %v1553, 16
      %v1655 = vor.u32 %v1653, %v1651
      %v1657 = vshll.u32 %v1554, 16
      %v1659 = vrot.slane %v1657, 1
      %v1660 = vsel %vm606, %v1655, %v1659
      %v1661 = vshrl.u32 %v1554, 16
      %v1663 = vor.u32 %v1661, %v1659
      %v1665 = vshll.u32 %v1555, 16
      %v1667 = vrot.slane %v1665, 1
      %v1668 = vsel %vm606, %v1663, %v1667
      %v1669 = vshrl.u32 %v1555, 16
      %v1671 = vor.u32 %v1669, %v1667
      %v1673 = vshll.u32 %v1556, 16
      %v1675 = vrot.slane %v1673, 1
      %v1676 = vsel %vm606, %v1671, %v1675
      %v1677 = vshrl.u32 %v1556, 16
      %v1679 = vor.u32 %v1677, %v1675
      %v1681 = vshll.u32 %v1557, 16
      %v1683 = vrot.slane %v1681, 1
      %v1684 = vsel %vm606, %v1679, %v1683
      %v1685 = vshrl.u32 %v1557, 16
      %v1687 = vor.u32 %v1685, %v1683
      %v1689 = vshll.u32 %v1558, 16
      %v1691 = vrot.slane %v1689, 1
      %v1692 = vsel %vm606, %v1687, %v1691
      %v1693 = vshrl.u32 %v1558, 16
      %v1695 = vor.u32 %v1693, %v1691
      %v1697 = vshll.u32 %v1559, 16
      %v1699 = vrot.slane %v1697, 1
      %v1700 = vsel %vm606, %v1695, %v1699
      %v1701 = vshrl.u32 %v1559, 16
      %v1703 = vor.u32 %v1701, %v1699
      %v1705 = vshll.u32 %v1560, 16
      %v1707 = vrot.slane %v1705, 1
      %v1708 = vsel %vm606, %v1703, %v1707
      %v1741 = vunpack.c.l.b16 %v1561
      %v1742 = vunpack.c.l.b16 %v1562
      %v1743 = vunpack.c.l.b16 %v1563
      %v1744 = vunpack.c.l.b16 %v1564
      %v1745 = vunpack.c.l.b16 %v1565
      %v1746 = vunpack.c.l.b16 %v1566
      %v1747 = vunpack.c.l.b16 %v1567
      %v1748 = vunpack.c.l.b16 %v1568
      %v1749 = vunpack.c.l.b16 %v1569
      %v1750 = vunpack.c.l.b16 %v1570
      %v1751 = vunpack.c.l.b16 %v1571
      %v1752 = vunpack.c.l.b16 %v1572
      %v1753 = vunpack.c.l.b16 %v1573
      %v1754 = vunpack.c.l.b16 %v1574
      %v1755 = vunpack.c.l.b16 %v1575
      %v1756 = vunpack.c.l.b16 %v1576
      %v1757 = vpack.c.b16 %v1742, %v1741
      %v1758 = vpack.c.b16 %v1744, %v1743
      %v1759 = vpack.c.b16 %v1746, %v1745
      %v1760 = vpack.c.b16 %v1748, %v1747
      %v1761 = vpack.c.b16 %v1750, %v1749
      %v1762 = vpack.c.b16 %v1752, %v1751
      %v1763 = vpack.c.b16 %v1754, %v1753
      %v1764 = vpack.c.b16 %v1756, %v1755
      %1773 = vmatprep.subr.bf16.mxu0 0
      %1774 = vmatpush1.bf16.msra.mxu0 %v1757
      %1775 = vmatprep.subr.bf16.mxu0 0
      %1776 = vmatpush1.bf16.msra.mxu0 %v1758
      %1777 = vmatprep.subr.bf16.mxu0 0
      %1778 = vmatpush1.bf16.msra.mxu0 %v1759
      %1779 = vmatprep.subr.bf16.mxu0 0
      %1780 = vmatpush1.bf16.msra.mxu0 %v1760
      %1781 = vmatprep.subr.bf16.mxu0 0
      %1782 = vmatpush1.bf16.msra.mxu0 %v1761
      %1783 = vmatprep.subr.bf16.mxu0 0
      %1784 = vmatpush1.bf16.msra.mxu0 %v1762
      %1785 = vmatprep.subr.bf16.mxu0 0
      %1786 = vmatpush1.bf16.msra.mxu0 %v1763
      %1787 = vmatprep.subr.bf16.mxu0 0
      %1788 = vmatpush1.bf16.msra.mxu0 %v1764
      %1789 = vmatprep.subr.bf16.mxu0 0
      %1790 = vmatpush1.bf16.msra.mxu0 0
      %1791 = vmatprep.subr.bf16.mxu0 0
      %1792 = vmatpush1.bf16.msra.mxu0 0
      %1793 = vmatprep.subr.bf16.mxu0 0
      %1794 = vmatpush1.bf16.msra.mxu0 0
      %1795 = vmatprep.subr.bf16.mxu0 0
      %1796 = vmatpush1.bf16.msra.mxu0 0
      %1797 = vmatprep.subr.bf16.mxu0 0
      %1798 = vmatpush1.bf16.msra.mxu0 0
      %1799 = vmatprep.subr.bf16.mxu0 0
      %1800 = vmatpush1.bf16.msra.mxu0 0
      %1801 = vmatprep.subr.bf16.mxu0 0
      %1802 = vmatpush1.bf16.msra.mxu0 0
      %1803 = vmatprep.subr.bf16.mxu0 0
      %1804 = vmatpush1.bf16.msra.mxu0 0
      %1805 = vmatprep.mubr.bf16.mxu0 0
      %1806 = vmatmul.mubr.bf16.gmra.mrb[0].mxu0 %v1588
      %v1807 = vpop.f32.mrb[0].mxu0
      %v1808 = vadd.f32 0.0, %v1807
      %v1809 = vpop.f32.mrb[0].mxu0
      %v1810 = vpop.f32.mrb[0].mxu0
      %v1811 = vadd.f32 0.0, %v1810
      %v1812 = vpop.f32.mrb[0].mxu0
      %1813 = vmatprep.mubr.bf16.mxu0 0
      %1814 = vmatmul.mubr.bf16.gmra.mrb[0].mxu0 %v1596
      %v1815 = vpop.f32.mrb[0].mxu0
      %v1816 = vadd.f32 0.0, %v1815
      %v1817 = vpop.f32.mrb[0].mxu0
      %v1818 = vpop.f32.mrb[0].mxu0
      %v1819 = vadd.f32 0.0, %v1818
      %v1820 = vpop.f32.mrb[0].mxu0
      %1821 = vmatprep.mubr.bf16.mxu0 0
      %1822 = vmatmul.mubr.bf16.gmra.mrb[0].mxu0 %v1604
      %v1823 = vpop.f32.mrb[0].mxu0
      %v1824 = vadd.f32 0.0, %v1823
      %v1825 = vpop.f32.mrb[0].mxu0
      %v1826 = vpop.f32.mrb[0].mxu0
      %v1827 = vadd.f32 0.0, %v1826
      %v1828 = vpop.f32.mrb[0].mxu0
      %1829 = vmatprep.mubr.bf16.mxu0 0
      %1830 = vmatmul.mubr.bf16.gmra.mrb[0].mxu0 %v1612
      %v1831 = vpop.f32.mrb[0].mxu0
      %v1832 = vadd.f32 0.0, %v1831
      %v1833 = vpop.f32.mrb[0].mxu0
      %v1834 = vpop.f32.mrb[0].mxu0
      %v1835 = vadd.f32 0.0, %v1834
      %v1836 = vpop.f32.mrb[0].mxu0
      %1837 = vmatprep.mubr.bf16.mxu0 0
      %1838 = vmatmul.mubr.bf16.gmra.mrb[0].mxu0 %v1620
      %v1839 = vpop.f32.mrb[0].mxu0
      %v1840 = vadd.f32 0.0, %v1839
      %v1841 = vpop.f32.mrb[0].mxu0
      %v1842 = vpop.f32.mrb[0].mxu0
      %v1843 = vadd.f32 0.0, %v1842
      %v1844 = vpop.f32.mrb[0].mxu0
      %1845 = vmatprep.mubr.bf16.mxu0 0
      %1846 = vmatmul.mubr.bf16.gmra.mrb[0].mxu0 %v1628
      %v1847 = vpop.f32.mrb[0].mxu0
      %v1848 = vadd.f32 0.0, %v1847
      %v1849 = vpop.f32.mrb[0].mxu0
      %v1850 = vpop.f32.mrb[0].mxu0
      %v1851 = vadd.f32 0.0, %v1850
      %v1852 = vpop.f32.mrb[0].mxu0
      %1853 = vmatprep.mubr.bf16.mxu0 0
      %1854 = vmatmul.mubr.bf16.gmra.mrb[0].mxu0 %v1636
      %v1855 = vpop.f32.mrb[0].mxu0
      %v1856 = vadd.f32 0.0, %v1855
      %v1857 = vpop.f32.mrb[0].mxu0
      %v1858 = vpop.f32.mrb[0].mxu0
      %v1859 = vadd.f32 0.0, %v1858
      %v1860 = vpop.f32.mrb[0].mxu0
      %1861 = vmatprep.mubr.bf16.mxu0 0
      %1862 = vmatmul.mubr.bf16.gmra.mrb[0].mxu0 %v1644
      %v1863 = vpop.f32.mrb[0].mxu0
      %v1864 = vadd.f32 0.0, %v1863
      %v1865 = vpop.f32.mrb[0].mxu0
      %v1866 = vpop.f32.mrb[0].mxu0
      %v1867 = vadd.f32 0.0, %v1866
      %v1868 = vpop.f32.mrb[0].mxu0
      %1869 = vmatprep.mubr.bf16.mxu0 0
      %1870 = vmatmul.mubr.bf16.gmra.mrb[0].mxu0 %v1652
      %v1871 = vpop.f32.mrb[0].mxu0
      %v1872 = vadd.f32 0.0, %v1871
      %v1873 = vpop.f32.mrb[0].mxu0
      %v1874 = vpop.f32.mrb[0].mxu0
      %v1875 = vadd.f32 0.0, %v1874
      %v1876 = vpop.f32.mrb[0].mxu0
      %1877 = vmatprep.mubr.bf16.mxu0 0
      %1878 = vmatmul.mubr.bf16.gmra.mrb[0].mxu0 %v1660
      %v1879 = vpop.f32.mrb[0].mxu0
      %v1880 = vadd.f32 0.0, %v1879
      %v1881 = vpop.f32.mrb[0].mxu0
      %v1882 = vpop.f32.mrb[0].mxu0
      %v1883 = vadd.f32 0.0, %v1882
      %v1884 = vpop.f32.mrb[0].mxu0
      %1885 = vmatprep.mubr.bf16.mxu0 0
      %1886 = vmatmul.mubr.bf16.gmra.mrb[0].mxu0 %v1668
      %v1887 = vpop.f32.mrb[0].mxu0
      %v1888 = vadd.f32 0.0, %v1887
      %v1889 = vpop.f32.mrb[0].mxu0
      %v1890 = vpop.f32.mrb[0].mxu0
      %v1891 = vadd.f32 0.0, %v1890
      %v1892 = vpop.f32.mrb[0].mxu0
      %1893 = vmatprep.mubr.bf16.mxu0 0
      %1894 = vmatmul.mubr.bf16.gmra.mrb[0].mxu0 %v1676
      %v1895 = vpop.f32.mrb[0].mxu0
      %v1896 = vadd.f32 0.0, %v1895
      %v1897 = vpop.f32.mrb[0].mxu0
      %v1898 = vpop.f32.mrb[0].mxu0
      %v1899 = vadd.f32 0.0, %v1898
      %v1900 = vpop.f32.mrb[0].mxu0
      %1901 = vmatprep.mubr.bf16.mxu0 0
      %1902 = vmatmul.mubr.bf16.gmra.mrb[0].mxu0 %v1684
      %v1903 = vpop.f32.mrb[0].mxu0
      %v1904 = vadd.f32 0.0, %v1903
      %v1905 = vpop.f32.mrb[0].mxu0
      %v1906 = vpop.f32.mrb[0].mxu0
      %v1907 = vadd.f32 0.0, %v1906
      %v1908 = vpop.f32.mrb[0].mxu0
      %1909 = vmatprep.mubr.bf16.mxu0 0
      %1910 = vmatmul.mubr.bf16.gmra.mrb[0].mxu0 %v1692
      %v1911 = vpop.f32.mrb[0].mxu0
      %v1912 = vadd.f32 0.0, %v1911
      %v1913 = vpop.f32.mrb[0].mxu0
      %v1914 = vpop.f32.mrb[0].mxu0
      %v1915 = vadd.f32 0.0, %v1914
      %v1916 = vpop.f32.mrb[0].mxu0
      %1917 = vmatprep.mubr.bf16.mxu0 0
      %1918 = vmatmul.mubr.bf16.gmra.mrb[0].mxu0 %v1700
      %v1919 = vpop.f32.mrb[0].mxu0
      %v1920 = vadd.f32 0.0, %v1919
      %v1921 = vpop.f32.mrb[0].mxu0
      %v1922 = vpop.f32.mrb[0].mxu0
      %v1923 = vadd.f32 0.0, %v1922
      %v1924 = vpop.f32.mrb[0].mxu0
      %1925 = vmatprep.mubr.bf16.mxu0 0
      %1926 = vmatmul.mubr.bf16.gmra.mrb[0].mxu0 %v1708
      %v1927 = vpop.f32.mrb[0].mxu0
      %v1928 = vadd.f32 0.0, %v1927
      %v1929 = vpop.f32.mrb[0].mxu0
      %v1930 = vpop.f32.mrb[0].mxu0
      %v1931 = vadd.f32 0.0, %v1930
      %v1932 = vpop.f32.mrb[0].mxu0
      %1933 = vdwg.mxu0
      %v1934 = vadd.f32 %v1225, %v1808
      %v1935 = vadd.f32 %v1228, %v1811
      %v1936 = vadd.f32 %v1233, %v1816
      %v1937 = vadd.f32 %v1236, %v1819
      %v1938 = vadd.f32 %v1241, %v1824
      %v1939 = vadd.f32 %v1244, %v1827
      %v1940 = vadd.f32 %v1249, %v1832
      %v1941 = vadd.f32 %v1252, %v1835
      %v1942 = vadd.f32 %v1257, %v1840
      %v1943 = vadd.f32 %v1260, %v1843
      %v1944 = vadd.f32 %v1265, %v1848
      %v1945 = vadd.f32 %v1268, %v1851
      %v1946 = vadd.f32 %v1273, %v1856
      %v1947 = vadd.f32 %v1276, %v1859
      %v1948 = vadd.f32 %v1281, %v1864
      %v1949 = vadd.f32 %v1284, %v1867
      %v1950 = vadd.f32 %v1289, %v1872
      %v1951 = vadd.f32 %v1292, %v1875
      %v1952 = vadd.f32 %v1297, %v1880
      %v1953 = vadd.f32 %v1300, %v1883
      %v1954 = vadd.f32 %v1305, %v1888
      %v1955 = vadd.f32 %v1308, %v1891
      %v1956 = vadd.f32 %v1313, %v1896
      %v1957 = vadd.f32 %v1316, %v1899
      %v1958 = vadd.f32 %v1321, %v1904
      %v1959 = vadd.f32 %v1324, %v1907
      %v1960 = vadd.f32 %v1329, %v1912
      %v1961 = vadd.f32 %v1332, %v1915
      %v1962 = vadd.f32 %v1337, %v1920
      %v1963 = vadd.f32 %v1340, %v1923
      %v1964 = vadd.f32 %v1345, %v1928
      %v1965 = vadd.f32 %v1348, %v1931
      %v1966 = vld [vmem:[#allocation2 + $0x8] sm:$0x80]
      %v1967 = vld [vmem:[#allocation2 + $0x88] sm:$0xff]
      %v1968 = vmul.bf16 %v1966, %v609
      %v1969 = vmul.bf16 %v1352, %v616
      %v1970 = vmul.bf16 %v1353, %v623
      %v1971 = vmul.bf16 %v1354, %v630
      %v1972 = vmul.bf16 %v1355, %v637
      %v1973 = vmul.bf16 %v1356, %v644
      %v1974 = vmul.bf16 %v1357, %v651
      %v1975 = vmul.bf16 %v1358, %v658
      %v1976 = vmul.bf16 %v1359, %v665
      %v1977 = vmul.bf16 %v1360, %v672
      %v1978 = vmul.bf16 %v1361, %v679
      %v1979 = vmul.bf16 %v1362, %v686
      %v1980 = vmul.bf16 %v1363, %v693
      %v1981 = vmul.bf16 %v1364, %v700
      %v1982 = vmul.bf16 %v1365, %v707
      %v1983 = vmul.bf16 %v1366, %v714
      %v1984 = vmul.bf16 %v1967, %v717
      %v1985 = vld [vmem:[%s3 + $0xc0] sm:$0xf]
      %v1986 = vld [vmem:[%s3 + $0xc4] sm:$0xf]
      %v1987 = vld [vmem:[%s3 + $0xc8] sm:$0xf]
      %v1988 = vld [vmem:[%s3 + $0xcc] sm:$0xf]
      %v1989 = vld [vmem:[%s3 + $0xd0] sm:$0xf]
      %v1990 = vld [vmem:[%s3 + $0xd4] sm:$0xf]
      %v1991 = vld [vmem:[%s3 + $0xd8] sm:$0xf]
      %v1992 = vld [vmem:[%s3 + $0xdc] sm:$0xf]
      %v1993 = vld [vmem:[%s3 + $0xe0] sm:$0xf]
      %v1994 = vld [vmem:[%s3 + $0xe4] sm:$0xf]
      %v1995 = vld [vmem:[%s3 + $0xe8] sm:$0xf]
      %v1996 = vld [vmem:[%s3 + $0xec] sm:$0xf]
      %v1997 = vld [vmem:[%s3 + $0xf0] sm:$0xf]
      %v1998 = vld [vmem:[%s3 + $0xf4] sm:$0xf]
      %v1999 = vld [vmem:[%s3 + $0xf8] sm:$0xf]
      %v2000 = vld [vmem:[%s3 + $0xfc] sm:$0xf]
      %v2002 = vshrl.u32 %v1968, 16
      %v2004 = vrot.slane %v2002, 7
      %v2006 = vshrl.u32 %v1969, 16
      %v2008 = vrot.slane %v2006, 7
      %v2009 = vshll.u32 %v1969, 16
      %v2011 = vor.u32 %v2008, %v2009
      %v2012 = vsel %vm993, %v2004, %v2011
      %v2014 = vshrl.u32 %v1970, 16
      %v2016 = vrot.slane %v2014, 7
      %v2017 = vshll.u32 %v1970, 16
      %v2019 = vor.u32 %v2016, %v2017
      %v2020 = vsel %vm993, %v2008, %v2019
      %v2022 = vshrl.u32 %v1971, 16
      %v2024 = vrot.slane %v2022, 7
      %v2025 = vshll.u32 %v1971, 16
      %v2027 = vor.u32 %v2024, %v2025
      %v2028 = vsel %vm993, %v2016, %v2027
      %v2030 = vshrl.u32 %v1972, 16
      %v2032 = vrot.slane %v2030, 7
      %v2033 = vshll.u32 %v1972, 16
      %v2035 = vor.u32 %v2032, %v2033
      %v2036 = vsel %vm993, %v2024, %v2035
      %v2038 = vshrl.u32 %v1973, 16
      %v2040 = vrot.slane %v2038, 7
      %v2041 = vshll.u32 %v1973, 16
      %v2043 = vor.u32 %v2040, %v2041
      %v2044 = vsel %vm993, %v2032, %v2043
      %v2046 = vshrl.u32 %v1974, 16
      %v2048 = vrot.slane %v2046, 7
      %v2049 = vshll.u32 %v1974, 16
      %v2051 = vor.u32 %v2048, %v2049
      %v2052 = vsel %vm993, %v2040, %v2051
      %v2054 = vshrl.u32 %v1975, 16
      %v2056 = vrot.slane %v2054, 7
      %v2057 = vshll.u32 %v1975, 16
      %v2059 = vor.u32 %v2056, %v2057
      %v2060 = vsel %vm993, %v2048, %v2059
      %v2062 = vshrl.u32 %v1976, 16
      %v2064 = vrot.slane %v2062, 7
      %v2065 = vshll.u32 %v1976, 16
      %v2067 = vor.u32 %v2064, %v2065
      %v2068 = vsel %vm993, %v2056, %v2067
      %v2070 = vshrl.u32 %v1977, 16
      %v2072 = vrot.slane %v2070, 7
      %v2073 = vshll.u32 %v1977, 16
      %v2075 = vor.u32 %v2072, %v2073
      %v2076 = vsel %vm993, %v2064, %v2075
      %v2078 = vshrl.u32 %v1978, 16
      %v2080 = vrot.slane %v2078, 7
      %v2081 = vshll.u32 %v1978, 16
      %v2083 = vor.u32 %v2080, %v2081
      %v2084 = vsel %vm993, %v2072, %v2083
      %v2086 = vshrl.u32 %v1979, 16
      %v2088 = vrot.slane %v2086, 7
      %v2089 = vshll.u32 %v1979, 16
      %v2091 = vor.u32 %v2088, %v2089
      %v2092 = vsel %vm993, %v2080, %v2091
      %v2094 = vshrl.u32 %v1980, 16
      %v2096 = vrot.slane %v2094, 7
      %v2097 = vshll.u32 %v1980, 16
      %v2099 = vor.u32 %v2096, %v2097
      %v2100 = vsel %vm993, %v2088, %v2099
      %v2102 = vshrl.u32 %v1981, 16
      %v2104 = vrot.slane %v2102, 7
      %v2105 = vshll.u32 %v1981, 16
      %v2107 = vor.u32 %v2104, %v2105
      %v2108 = vsel %vm993, %v2096, %v2107
      %v2110 = vshrl.u32 %v1982, 16
      %v2112 = vrot.slane %v2110, 7
      %v2113 = vshll.u32 %v1982, 16
      %v2115 = vor.u32 %v2112, %v2113
      %v2116 = vsel %vm993, %v2104, %v2115
      %v2118 = vshrl.u32 %v1983, 16
      %v2120 = vrot.slane %v2118, 7
      %v2121 = vshll.u32 %v1983, 16
      %v2123 = vor.u32 %v2120, %v2121
      %v2124 = vsel %vm993, %v2112, %v2123
      %v2126 = vshrl.u32 %v1984, 16
      %v2128 = vrot.slane %v2126, 7
      %v2129 = vshll.u32 %v1984, 16
      %v2131 = vor.u32 %v2128, %v2129
      %v2132 = vsel %vm993, %v2120, %v2131
      %v2165 = vunpack.c.l.b16 %v1985
      %v2166 = vunpack.c.l.b16 %v1986
      %v2167 = vunpack.c.l.b16 %v1987
      %v2168 = vunpack.c.l.b16 %v1988
      %v2169 = vunpack.c.l.b16 %v1989
      %v2170 = vunpack.c.l.b16 %v1990
      %v2171 = vunpack.c.l.b16 %v1991
      %v2172 = vunpack.c.l.b16 %v1992
      %v2173 = vunpack.c.l.b16 %v1993
      %v2174 = vunpack.c.l.b16 %v1994
      %v2175 = vunpack.c.l.b16 %v1995
      %v2176 = vunpack.c.l.b16 %v1996
      %v2177 = vunpack.c.l.b16 %v1997
      %v2178 = vunpack.c.l.b16 %v1998
      %v2179 = vunpack.c.l.b16 %v1999
      %v2180 = vunpack.c.l.b16 %v2000
      %v2181 = vpack.c.b16 %v2166, %v2165
      %v2182 = vpack.c.b16 %v2168, %v2167
      %v2183 = vpack.c.b16 %v2170, %v2169
      %v2184 = vpack.c.b16 %v2172, %v2171
      %v2185 = vpack.c.b16 %v2174, %v2173
      %v2186 = vpack.c.b16 %v2176, %v2175
      %v2187 = vpack.c.b16 %v2178, %v2177
      %v2188 = vpack.c.b16 %v2180, %v2179
      %2197 = vmatprep.subr.bf16.mxu0 0
      %2198 = vmatpush1.bf16.msra.mxu0 %v2181
      %2199 = vmatprep.subr.bf16.mxu0 0
      %2200 = vmatpush1.bf16.msra.mxu0 %v2182
      %2201 = vmatprep.subr.bf16.mxu0 0
      %2202 = vmatpush1.bf16.msra.mxu0 %v2183
      %2203 = vmatprep.subr.bf16.mxu0 0
      %2204 = vmatpush1.bf16.msra.mxu0 %v2184
      %2205 = vmatprep.subr.bf16.mxu0 0
      %2206 = vmatpush1.bf16.msra.mxu0 %v2185
      %2207 = vmatprep.subr.bf16.mxu0 0
      %2208 = vmatpush1.bf16.msra.mxu0 %v2186
      %2209 = vmatprep.subr.bf16.mxu0 0
      %2210 = vmatpush1.bf16.msra.mxu0 %v2187
      %2211 = vmatprep.subr.bf16.mxu0 0
      %2212 = vmatpush1.bf16.msra.mxu0 %v2188
      %2213 = vmatprep.subr.bf16.mxu0 0
      %2214 = vmatpush1.bf16.msra.mxu0 0
      %2215 = vmatprep.subr.bf16.mxu0 0
      %2216 = vmatpush1.bf16.msra.mxu0 0
      %2217 = vmatprep.subr.bf16.mxu0 0
      %2218 = vmatpush1.bf16.msra.mxu0 0
      %2219 = vmatprep.subr.bf16.mxu0 0
      %2220 = vmatpush1.bf16.msra.mxu0 0
      %2221 = vmatprep.subr.bf16.mxu0 0
      %2222 = vmatpush1.bf16.msra.mxu0 0
      %2223 = vmatprep.subr.bf16.mxu0 0
      %2224 = vmatpush1.bf16.msra.mxu0 0
      %2225 = vmatprep.subr.bf16.mxu0 0
      %2226 = vmatpush1.bf16.msra.mxu0 0
      %2227 = vmatprep.subr.bf16.mxu0 0
      %2228 = vmatpush1.bf16.msra.mxu0 0
      %2229 = vmatprep.mubr.bf16.mxu0 0
      %2230 = vmatmul.mubr.bf16.gmra.mrb[0].mxu0 %v2012
      %v2231 = vpop.f32.mrb[0].mxu0
      %v2232 = vadd.f32 0.0, %v2231
      %v2233 = vpop.f32.mrb[0].mxu0
      %v2234 = vpop.f32.mrb[0].mxu0
      %v2235 = vadd.f32 0.0, %v2234
      %v2236 = vpop.f32.mrb[0].mxu0
      %2237 = vmatprep.mubr.bf16.mxu0 0
      %2238 = vmatmul.mubr.bf16.gmra.mrb[0].mxu0 %v2020
      %v2239 = vpop.f32.mrb[0].mxu0
      %v2240 = vadd.f32 0.0, %v2239
      %v2241 = vpop.f32.mrb[0].mxu0
      %v2242 = vpop.f32.mrb[0].mxu0
      %v2243 = vadd.f32 0.0, %v2242
      %v2244 = vpop.f32.mrb[0].mxu0
      %2245 = vmatprep.mubr.bf16.mxu0 0
      %2246 = vmatmul.mubr.bf16.gmra.mrb[0].mxu0 %v2028
      %v2247 = vpop.f32.mrb[0].mxu0
      %v2248 = vadd.f32 0.0, %v2247
      %v2249 = vpop.f32.mrb[0].mxu0
      %v2250 = vpop.f32.mrb[0].mxu0
      %v2251 = vadd.f32 0.0, %v2250
      %v2252 = vpop.f32.mrb[0].mxu0
      %2253 = vmatprep.mubr.bf16.mxu0 0
      %2254 = vmatmul.mubr.bf16.gmra.mrb[0].mxu0 %v2036
      %v2255 = vpop.f32.mrb[0].mxu0
      %v2256 = vadd.f32 0.0, %v2255
      %v2257 = vpop.f32.mrb[0].mxu0
      %v2258 = vpop.f32.mrb[0].mxu0
      %v2259 = vadd.f32 0.0, %v2258
      %v2260 = vpop.f32.mrb[0].mxu0
      %2261 = vmatprep.mubr.bf16.mxu0 0
      %2262 = vmatmul.mubr.bf16.gmra.mrb[0].mxu0 %v2044
      %v2263 = vpop.f32.mrb[0].mxu0
      %v2264 = vadd.f32 0.0, %v2263
      %v2265 = vpop.f32.mrb[0].mxu0
      %v2266 = vpop.f32.mrb[0].mxu0
      %v2267 = vadd.f32 0.0, %v2266
      %v2268 = vpop.f32.mrb[0].mxu0
      %2269 = vmatprep.mubr.bf16.mxu0 0
      %2270 = vmatmul.mubr.bf16.gmra.mrb[0].mxu0 %v2052
      %v2271 = vpop.f32.mrb[0].mxu0
      %v2272 = vadd.f32 0.0, %v2271
      %v2273 = vpop.f32.mrb[0].mxu0
      %v2274 = vpop.f32.mrb[0].mxu0
      %v2275 = vadd.f32 0.0, %v2274
      %v2276 = vpop.f32.mrb[0].mxu0
      %2277 = vmatprep.mubr.bf16.mxu0 0
      %2278 = vmatmul.mubr.bf16.gmra.mrb[0].mxu0 %v2060
      %v2279 = vpop.f32.mrb[0].mxu0
      %v2280 = vadd.f32 0.0, %v2279
      %v2281 = vpop.f32.mrb[0].mxu0
      %v2282 = vpop.f32.mrb[0].mxu0
      %v2283 = vadd.f32 0.0, %v2282
      %v2284 = vpop.f32.mrb[0].mxu0
      %2285 = vmatprep.mubr.bf16.mxu0 0
      %2286 = vmatmul.mubr.bf16.gmra.mrb[0].mxu0 %v2068
      %v2287 = vpop.f32.mrb[0].mxu0
      %v2288 = vadd.f32 0.0, %v2287
      %v2289 = vpop.f32.mrb[0].mxu0
      %v2290 = vpop.f32.mrb[0].mxu0
      %v2291 = vadd.f32 0.0, %v2290
      %v2292 = vpop.f32.mrb[0].mxu0
      %2293 = vmatprep.mubr.bf16.mxu0 0
      %2294 = vmatmul.mubr.bf16.gmra.mrb[0].mxu0 %v2076
      %v2295 = vpop.f32.mrb[0].mxu0
      %v2296 = vadd.f32 0.0, %v2295
      %v2297 = vpop.f32.mrb[0].mxu0
      %v2298 = vpop.f32.mrb[0].mxu0
      %v2299 = vadd.f32 0.0, %v2298
      %v2300 = vpop.f32.mrb[0].mxu0
      %2301 = vmatprep.mubr.bf16.mxu0 0
      %2302 = vmatmul.mubr.bf16.gmra.mrb[0].mxu0 %v2084
      %v2303 = vpop.f32.mrb[0].mxu0
      %v2304 = vadd.f32 0.0, %v2303
      %v2305 = vpop.f32.mrb[0].mxu0
      %v2306 = vpop.f32.mrb[0].mxu0
      %v2307 = vadd.f32 0.0, %v2306
      %v2308 = vpop.f32.mrb[0].mxu0
      %2309 = vmatprep.mubr.bf16.mxu0 0
      %2310 = vmatmul.mubr.bf16.gmra.mrb[0].mxu0 %v2092
      %v2311 = vpop.f32.mrb[0].mxu0
      %v2312 = vadd.f32 0.0, %v2311
      %v2313 = vpop.f32.mrb[0].mxu0
      %v2314 = vpop.f32.mrb[0].mxu0
      %v2315 = vadd.f32 0.0, %v2314
      %v2316 = vpop.f32.mrb[0].mxu0
      %2317 = vmatprep.mubr.bf16.mxu0 0
      %2318 = vmatmul.mubr.bf16.gmra.mrb[0].mxu0 %v2100
      %v2319 = vpop.f32.mrb[0].mxu0
      %v2320 = vadd.f32 0.0, %v2319
      %v2321 = vpop.f32.mrb[0].mxu0
      %v2322 = vpop.f32.mrb[0].mxu0
      %v2323 = vadd.f32 0.0, %v2322
      %v2324 = vpop.f32.mrb[0].mxu0
      %2325 = vmatprep.mubr.bf16.mxu0 0
      %2326 = vmatmul.mubr.bf16.gmra.mrb[0].mxu0 %v2108
      %v2327 = vpop.f32.mrb[0].mxu0
      %v2328 = vadd.f32 0.0, %v2327
      %v2329 = vpop.f32.mrb[0].mxu0
      %v2330 = vpop.f32.mrb[0].mxu0
      %v2331 = vadd.f32 0.0, %v2330
      %v2332 = vpop.f32.mrb[0].mxu0
      %2333 = vmatprep.mubr.bf16.mxu0 0
      %2334 = vmatmul.mubr.bf16.gmra.mrb[0].mxu0 %v2116
      %v2335 = vpop.f32.mrb[0].mxu0
      %v2336 = vadd.f32 0.0, %v2335
      %v2337 = vpop.f32.mrb[0].mxu0
      %v2338 = vpop.f32.mrb[0].mxu0
      %v2339 = vadd.f32 0.0, %v2338
      %v2340 = vpop.f32.mrb[0].mxu0
      %2341 = vmatprep.mubr.bf16.mxu0 0
      %2342 = vmatmul.mubr.bf16.gmra.mrb[0].mxu0 %v2124
      %v2343 = vpop.f32.mrb[0].mxu0
      %v2344 = vadd.f32 0.0, %v2343
      %v2345 = vpop.f32.mrb[0].mxu0
      %v2346 = vpop.f32.mrb[0].mxu0
      %v2347 = vadd.f32 0.0, %v2346
      %v2348 = vpop.f32.mrb[0].mxu0
      %2349 = vmatprep.mubr.bf16.mxu0 0
      %2350 = vmatmul.mubr.bf16.gmra.mrb[0].mxu0 %v2132
      %v2351 = vpop.f32.mrb[0].mxu0
      %v2352 = vadd.f32 0.0, %v2351
      %v2353 = vpop.f32.mrb[0].mxu0
      %v2354 = vpop.f32.mrb[0].mxu0
      %v2355 = vadd.f32 0.0, %v2354
      %v2356 = vpop.f32.mrb[0].mxu0
      %2357 = vdwg.mxu0
      %v2358 = vadd.f32 %v1934, %v2232
      %v2359 = vadd.f32 %v1935, %v2235
      %v2360 = vadd.f32 %v1936, %v2240
      %v2361 = vadd.f32 %v1937, %v2243
      %v2362 = vadd.f32 %v1938, %v2248
      %v2363 = vadd.f32 %v1939, %v2251
      %v2364 = vadd.f32 %v1940, %v2256
      %v2365 = vadd.f32 %v1941, %v2259
      %v2366 = vadd.f32 %v1942, %v2264
      %v2367 = vadd.f32 %v1943, %v2267
      %v2368 = vadd.f32 %v1944, %v2272
      %v2369 = vadd.f32 %v1945, %v2275
      %v2370 = vadd.f32 %v1946, %v2280
      %v2371 = vadd.f32 %v1947, %v2283
      %v2372 = vadd.f32 %v1948, %v2288
      %v2373 = vadd.f32 %v1949, %v2291
      %v2374 = vadd.f32 %v1950, %v2296
      %v2375 = vadd.f32 %v1951, %v2299
      %v2376 = vadd.f32 %v1952, %v2304
      %v2377 = vadd.f32 %v1953, %v2307
      %v2378 = vadd.f32 %v1954, %v2312
      %v2379 = vadd.f32 %v1955, %v2315
      %v2380 = vadd.f32 %v1956, %v2320
      %v2381 = vadd.f32 %v1957, %v2323
      %v2382 = vadd.f32 %v1958, %v2328
      %v2383 = vadd.f32 %v1959, %v2331
      %v2384 = vadd.f32 %v1960, %v2336
      %v2385 = vadd.f32 %v1961, %v2339
      %v2386 = vadd.f32 %v1962, %v2344
      %v2387 = vadd.f32 %v1963, %v2347
      %v2388 = vadd.f32 %v1964, %v2352
      %v2389 = vadd.f32 %v1965, %v2355
      %v2390 = vld [vmem:[%s3 + $0x100] sm:$0xf]
      %v2391 = vld [vmem:[%s3 + $0x104] sm:$0xf]
      %v2392 = vld [vmem:[%s3 + $0x108] sm:$0xf]
      %v2393 = vld [vmem:[%s3 + $0x10c] sm:$0xf]
      %v2394 = vld [vmem:[%s3 + $0x110] sm:$0xf]
      %v2395 = vld [vmem:[%s3 + $0x114] sm:$0xf]
      %v2396 = vld [vmem:[%s3 + $0x118] sm:$0xf]
      %v2397 = vld [vmem:[%s3 + $0x11c] sm:$0xf]
      %v2398 = vld [vmem:[%s3 + $0x120] sm:$0xf]
      %v2399 = vld [vmem:[%s3 + $0x124] sm:$0xf]
      %v2400 = vld [vmem:[%s3 + $0x128] sm:$0xf]
      %v2401 = vld [vmem:[%s3 + $0x12c] sm:$0xf]
      %v2402 = vld [vmem:[%s3 + $0x130] sm:$0xf]
      %v2403 = vld [vmem:[%s3 + $0x134] sm:$0xf]
      %v2404 = vld [vmem:[%s3 + $0x138] sm:$0xf]
      %v2405 = vld [vmem:[%s3 + $0x13c] sm:$0xf]
      %v2422 = vunpack.c.l.b16 %v2390
      %v2423 = vunpack.c.l.b16 %v2391
      %v2424 = vunpack.c.l.b16 %v2392
      %v2425 = vunpack.c.l.b16 %v2393
      %v2426 = vunpack.c.l.b16 %v2394
      %v2427 = vunpack.c.l.b16 %v2395
      %v2428 = vunpack.c.l.b16 %v2396
      %v2429 = vunpack.c.l.b16 %v2397
      %v2430 = vunpack.c.l.b16 %v2398
      %v2431 = vunpack.c.l.b16 %v2399
      %v2432 = vunpack.c.l.b16 %v2400
      %v2433 = vunpack.c.l.b16 %v2401
      %v2434 = vunpack.c.l.b16 %v2402
      %v2435 = vunpack.c.l.b16 %v2403
      %v2436 = vunpack.c.l.b16 %v2404
      %v2437 = vunpack.c.l.b16 %v2405
      %v2438 = vpack.c.b16 %v2423, %v2422
      %v2439 = vpack.c.b16 %v2425, %v2424
      %v2440 = vpack.c.b16 %v2427, %v2426
      %v2441 = vpack.c.b16 %v2429, %v2428
      %v2442 = vpack.c.b16 %v2431, %v2430
      %v2443 = vpack.c.b16 %v2433, %v2432
      %v2444 = vpack.c.b16 %v2435, %v2434
      %v2445 = vpack.c.b16 %v2437, %v2436
      %2454 = vmatprep.subr.bf16.mxu0 0
      %2455 = vmatpush1.bf16.msra.mxu0 %v2438
      %2456 = vmatprep.subr.bf16.mxu0 0
      %2457 = vmatpush1.bf16.msra.mxu0 %v2439
      %2458 = vmatprep.subr.bf16.mxu0 0
      %2459 = vmatpush1.bf16.msra.mxu0 %v2440
      %2460 = vmatprep.subr.bf16.mxu0 0
      %2461 = vmatpush1.bf16.msra.mxu0 %v2441
      %2462 = vmatprep.subr.bf16.mxu0 0
      %2463 = vmatpush1.bf16.msra.mxu0 %v2442
      %2464 = vmatprep.subr.bf16.mxu0 0
      %2465 = vmatpush1.bf16.msra.mxu0 %v2443
      %2466 = vmatprep.subr.bf16.mxu0 0
      %2467 = vmatpush1.bf16.msra.mxu0 %v2444
      %2468 = vmatprep.subr.bf16.mxu0 0
      %2469 = vmatpush1.bf16.msra.mxu0 %v2445
      %2470 = vmatprep.subr.bf16.mxu0 0
      %2471 = vmatpush1.bf16.msra.mxu0 0
      %2472 = vmatprep.subr.bf16.mxu0 0
      %2473 = vmatpush1.bf16.msra.mxu0 0
      %2474 = vmatprep.subr.bf16.mxu0 0
      %2475 = vmatpush1.bf16.msra.mxu0 0
      %2476 = vmatprep.subr.bf16.mxu0 0
      %2477 = vmatpush1.bf16.msra.mxu0 0
      %2478 = vmatprep.subr.bf16.mxu0 0
      %2479 = vmatpush1.bf16.msra.mxu0 0
      %2480 = vmatprep.subr.bf16.mxu0 0
      %2481 = vmatpush1.bf16.msra.mxu0 0
      %2482 = vmatprep.subr.bf16.mxu0 0
      %2483 = vmatpush1.bf16.msra.mxu0 0
      %2484 = vmatprep.subr.bf16.mxu0 0
      %2485 = vmatpush1.bf16.msra.mxu0 0
      %2486 = vmatprep.mubr.bf16.mxu0 0
      %2487 = vmatmul.mubr.bf16.gmra.mrb[0].mxu0 %v1352
      %v2488 = vpop.f32.mrb[0].mxu0
      %v2489 = vadd.f32 0.0, %v2488
      %v2490 = vpop.f32.mrb[0].mxu0
      %v2491 = vpop.f32.mrb[0].mxu0
      %v2492 = vadd.f32 0.0, %v2491
      %v2493 = vpop.f32.mrb[0].mxu0
      %2494 = vmatprep.mubr.bf16.mxu0 0
      %2495 = vmatmul.mubr.bf16.gmra.mrb[0].mxu0 %v1353
      %v2496 = vpop.f32.mrb[0].mxu0
      %v2497 = vadd.f32 0.0, %v2496
      %v2498 = vpop.f32.mrb[0].mxu0
      %v2499 = vpop.f32.mrb[0].mxu0
      %v2500 = vadd.f32 0.0, %v2499
      %v2501 = vpop.f32.mrb[0].mxu0
      %2502 = vmatprep.mubr.bf16.mxu0 0
      %2503 = vmatmul.mubr.bf16.gmra.mrb[0].mxu0 %v1354
      %v2504 = vpop.f32.mrb[0].mxu0
      %v2505 = vadd.f32 0.0, %v2504
      %v2506 = vpop.f32.mrb[0].mxu0
      %v2507 = vpop.f32.mrb[0].mxu0
      %v2508 = vadd.f32 0.0, %v2507
      %v2509 = vpop.f32.mrb[0].mxu0
      %2510 = vmatprep.mubr.bf16.mxu0 0
      %2511 = vmatmul.mubr.bf16.gmra.mrb[0].mxu0 %v1355
      %v2512 = vpop.f32.mrb[0].mxu0
      %v2513 = vadd.f32 0.0, %v2512
      %v2514 = vpop.f32.mrb[0].mxu0
      %v2515 = vpop.f32.mrb[0].mxu0
      %v2516 = vadd.f32 0.0, %v2515
      %v2517 = vpop.f32.mrb[0].mxu0
      %2518 = vmatprep.mubr.bf16.mxu0 0
      %2519 = vmatmul.mubr.bf16.gmra.mrb[0].mxu0 %v1356
      %v2520 = vpop.f32.mrb[0].mxu0
      %v2521 = vadd.f32 0.0, %v2520
      %v2522 = vpop.f32.mrb[0].mxu0
      %v2523 = vpop.f32.mrb[0].mxu0
      %v2524 = vadd.f32 0.0, %v2523
      %v2525 = vpop.f32.mrb[0].mxu0
      %2526 = vmatprep.mubr.bf16.mxu0 0
      %2527 = vmatmul.mubr.bf16.gmra.mrb[0].mxu0 %v1357
      %v2528 = vpop.f32.mrb[0].mxu0
      %v2529 = vadd.f32 0.0, %v2528
      %v2530 = vpop.f32.mrb[0].mxu0
      %v2531 = vpop.f32.mrb[0].mxu0
      %v2532 = vadd.f32 0.0, %v2531
      %v2533 = vpop.f32.mrb[0].mxu0
      %2534 = vmatprep.mubr.bf16.mxu0 0
      %2535 = vmatmul.mubr.bf16.gmra.mrb[0].mxu0 %v1358
      %v2536 = vpop.f32.mrb[0].mxu0
      %v2537 = vadd.f32 0.0, %v2536
      %v2538 = vpop.f32.mrb[0].mxu0
      %v2539 = vpop.f32.mrb[0].mxu0
      %v2540 = vadd.f32 0.0, %v2539
      %v2541 = vpop.f32.mrb[0].mxu0
      %2542 = vmatprep.mubr.bf16.mxu0 0
      %2543 = vmatmul.mubr.bf16.gmra.mrb[0].mxu0 %v1359
      %v2544 = vpop.f32.mrb[0].mxu0
      %v2545 = vadd.f32 0.0, %v2544
      %v2546 = vpop.f32.mrb[0].mxu0
      %v2547 = vpop.f32.mrb[0].mxu0
      %v2548 = vadd.f32 0.0, %v2547
      %v2549 = vpop.f32.mrb[0].mxu0
      %2550 = vmatprep.mubr.bf16.mxu0 0
      %2551 = vmatmul.mubr.bf16.gmra.mrb[0].mxu0 %v1360
      %v2552 = vpop.f32.mrb[0].mxu0
      %v2553 = vadd.f32 0.0, %v2552
      %v2554 = vpop.f32.mrb[0].mxu0
      %v2555 = vpop.f32.mrb[0].mxu0
      %v2556 = vadd.f32 0.0, %v2555
      %v2557 = vpop.f32.mrb[0].mxu0
      %2558 = vmatprep.mubr.bf16.mxu0 0
      %2559 = vmatmul.mubr.bf16.gmra.mrb[0].mxu0 %v1361
      %v2560 = vpop.f32.mrb[0].mxu0
      %v2561 = vadd.f32 0.0, %v2560
      %v2562 = vpop.f32.mrb[0].mxu0
      %v2563 = vpop.f32.mrb[0].mxu0
      %v2564 = vadd.f32 0.0, %v2563
      %v2565 = vpop.f32.mrb[0].mxu0
      %2566 = vmatprep.mubr.bf16.mxu0 0
      %2567 = vmatmul.mubr.bf16.gmra.mrb[0].mxu0 %v1362
      %v2568 = vpop.f32.mrb[0].mxu0
      %v2569 = vadd.f32 0.0, %v2568
      %v2570 = vpop.f32.mrb[0].mxu0
      %v2571 = vpop.f32.mrb[0].mxu0
      %v2572 = vadd.f32 0.0, %v2571
      %v2573 = vpop.f32.mrb[0].mxu0
      %2574 = vmatprep.mubr.bf16.mxu0 0
      %2575 = vmatmul.mubr.bf16.gmra.mrb[0].mxu0 %v1363
      %v2576 = vpop.f32.mrb[0].mxu0
      %v2577 = vadd.f32 0.0, %v2576
      %v2578 = vpop.f32.mrb[0].mxu0
      %v2579 = vpop.f32.mrb[0].mxu0
      %v2580 = vadd.f32 0.0, %v2579
      %v2581 = vpop.f32.mrb[0].mxu0
      %2582 = vmatprep.mubr.bf16.mxu0 0
      %2583 = vmatmul.mubr.bf16.gmra.mrb[0].mxu0 %v1364
      %v2584 = vpop.f32.mrb[0].mxu0
      %v2585 = vadd.f32 0.0, %v2584
      %v2586 = vpop.f32.mrb[0].mxu0
      %v2587 = vpop.f32.mrb[0].mxu0
      %v2588 = vadd.f32 0.0, %v2587
      %v2589 = vpop.f32.mrb[0].mxu0
      %2590 = vmatprep.mubr.bf16.mxu0 0
      %2591 = vmatmul.mubr.bf16.gmra.mrb[0].mxu0 %v1365
      %v2592 = vpop.f32.mrb[0].mxu0
      %v2593 = vadd.f32 0.0, %v2592
      %v2594 = vpop.f32.mrb[0].mxu0
      %v2595 = vpop.f32.mrb[0].mxu0
      %v2596 = vadd.f32 0.0, %v2595
      %v2597 = vpop.f32.mrb[0].mxu0
      %2598 = vmatprep.mubr.bf16.mxu0 0
      %2599 = vmatmul.mubr.bf16.gmra.mrb[0].mxu0 %v1366
      %v2600 = vpop.f32.mrb[0].mxu0
      %v2601 = vadd.f32 0.0, %v2600
      %v2602 = vpop.f32.mrb[0].mxu0
      %v2603 = vpop.f32.mrb[0].mxu0
      %v2604 = vadd.f32 0.0, %v2603
      %v2605 = vpop.f32.mrb[0].mxu0
      %2606 = vmatprep.mubr.bf16.mxu0 0
      %2607 = vmatmul.mubr.bf16.gmra.mrb[0].mxu0 %v1967
      %v2608 = vpop.f32.mrb[0].mxu0
      %v2609 = vadd.f32 0.0, %v2608
      %v2610 = vpop.f32.mrb[0].mxu0
      %v2611 = vpop.f32.mrb[0].mxu0
      %v2612 = vadd.f32 0.0, %v2611
      %v2613 = vpop.f32.mrb[0].mxu0
      %2614 = vdwg.mxu0
      %v2615 = vadd.f32 %v2358, %v2489
      %v2616 = vadd.f32 %v2359, %v2492
      %v2617 = vadd.f32 %v2360, %v2497
      %v2618 = vadd.f32 %v2361, %v2500
      %v2619 = vadd.f32 %v2362, %v2505
      %v2620 = vadd.f32 %v2363, %v2508
      %v2621 = vadd.f32 %v2364, %v2513
      %v2622 = vadd.f32 %v2365, %v2516
      %v2623 = vadd.f32 %v2366, %v2521
      %v2624 = vadd.f32 %v2367, %v2524
      %v2625 = vadd.f32 %v2368, %v2529
      %v2626 = vadd.f32 %v2369, %v2532
      %v2627 = vadd.f32 %v2370, %v2537
      %v2628 = vadd.f32 %v2371, %v2540
      %v2629 = vadd.f32 %v2372, %v2545
      %v2630 = vadd.f32 %v2373, %v2548
      %v2631 = vadd.f32 %v2374, %v2553
      %v2632 = vadd.f32 %v2375, %v2556
      %v2633 = vadd.f32 %v2376, %v2561
      %v2634 = vadd.f32 %v2377, %v2564
      %v2635 = vadd.f32 %v2378, %v2569
      %v2636 = vadd.f32 %v2379, %v2572
      %v2637 = vadd.f32 %v2380, %v2577
      %v2638 = vadd.f32 %v2381, %v2580
      %v2639 = vadd.f32 %v2382, %v2585
      %v2640 = vadd.f32 %v2383, %v2588
      %v2641 = vadd.f32 %v2384, %v2593
      %v2642 = vadd.f32 %v2385, %v2596
      %v2643 = vadd.f32 %v2386, %v2601
      %v2644 = vadd.f32 %v2387, %v2604
      %v2645 = vadd.f32 %v2388, %v2609
      %v2646 = vadd.f32 %v2389, %v2612
      %v2647 = vld [vmem:[#allocation2 + $0x10] sm:$0xff]
      %v2648 = vld [vmem:[#allocation2 + $0x18] sm:$0xff]
      %v2649 = vld [vmem:[#allocation2 + $0x20] sm:$0xff]
      %v2650 = vld [vmem:[#allocation2 + $0x28] sm:$0xff]
      %v2651 = vld [vmem:[#allocation2 + $0x30] sm:$0xff]
      %v2652 = vld [vmem:[#allocation2 + $0x38] sm:$0xff]
      %v2653 = vld [vmem:[#allocation2 + $0x40] sm:$0xff]
      %v2654 = vld [vmem:[#allocation2 + $0x48] sm:$0xff]
      %v2655 = vld [vmem:[#allocation2 + $0x50] sm:$0xff]
      %v2656 = vld [vmem:[#allocation2 + $0x58] sm:$0xff]
      %v2657 = vld [vmem:[#allocation2 + $0x60] sm:$0xff]
      %v2658 = vld [vmem:[#allocation2 + $0x68] sm:$0xff]
      %v2659 = vld [vmem:[#allocation2 + $0x70] sm:$0xff]
      %v2660 = vld [vmem:[#allocation2 + $0x78] sm:$0xff]
      %v2661 = vld [vmem:[#allocation2 + $0x80] sm:$0xff]
      %v2662 = vld [vmem:[#allocation2 + $0x88] sm:$0xff]
      %v2663 = vld [vmem:[#allocation2 + $0x90] sm:$0x1]
      %v2664 = vmul.bf16 %v2647, %v1421
      %v2665 = vmul.bf16 %v2648, %v1428
      %v2666 = vmul.bf16 %v2649, %v1435
      %v2667 = vmul.bf16 %v2650, %v1442
      %v2668 = vmul.bf16 %v2651, %v1449
      %v2669 = vmul.bf16 %v2652, %v1456
      %v2670 = vmul.bf16 %v2653, %v1463
      %v2671 = vmul.bf16 %v2654, %v1470
      %v2672 = vmul.bf16 %v2655, %v1477
      %v2673 = vmul.bf16 %v2656, %v1484
      %v2674 = vmul.bf16 %v2657, %v1491
      %v2675 = vmul.bf16 %v2658, %v1498
      %v2676 = vmul.bf16 %v2659, %v1505
      %v2677 = vmul.bf16 %v2660, %v1512
      %v2678 = vmul.bf16 %v2661, %v1519
      %v2679 = vmul.bf16 %v2662, %v1526
      %v2680 = vmul.bf16 %v2663, %v1522
      %v2681 = vld [vmem:[%s3 + $0x140] sm:$0xf]
      %v2682 = vld [vmem:[%s3 + $0x144] sm:$0xf]
      %v2683 = vld [vmem:[%s3 + $0x148] sm:$0xf]
      %v2684 = vld [vmem:[%s3 + $0x14c] sm:$0xf]
      %v2685 = vld [vmem:[%s3 + $0x150] sm:$0xf]
      %v2686 = vld [vmem:[%s3 + $0x154] sm:$0xf]
      %v2687 = vld [vmem:[%s3 + $0x158] sm:$0xf]
      %v2688 = vld [vmem:[%s3 + $0x15c] sm:$0xf]
      %v2689 = vld [vmem:[%s3 + $0x160] sm:$0xf]
      %v2690 = vld [vmem:[%s3 + $0x164] sm:$0xf]
      %v2691 = vld [vmem:[%s3 + $0x168] sm:$0xf]
      %v2692 = vld [vmem:[%s3 + $0x16c] sm:$0xf]
      %v2693 = vld [vmem:[%s3 + $0x170] sm:$0xf]
      %v2694 = vld [vmem:[%s3 + $0x174] sm:$0xf]
      %v2695 = vld [vmem:[%s3 + $0x178] sm:$0xf]
      %v2696 = vld [vmem:[%s3 + $0x17c] sm:$0xf]
      %v2698 = vshrl.u32 %v2664, 16
      %v2700 = vshll.u32 %v2664, 16
      %v2702 = vrot.slane %v2700, 1
      %v2703 = vor.u32 %v2698, %v2702
      %v2705 = vshll.u32 %v2665, 16
      %v2707 = vrot.slane %v2705, 1
      %v2708 = vsel %vm606, %v2703, %v2707
      %v2709 = vshrl.u32 %v2665, 16
      %v2711 = vor.u32 %v2709, %v2707
      %v2713 = vshll.u32 %v2666, 16
      %v2715 = vrot.slane %v2713, 1
      %v2716 = vsel %vm606, %v2711, %v2715
      %v2717 = vshrl.u32 %v2666, 16
      %v2719 = vor.u32 %v2717, %v2715
      %v2721 = vshll.u32 %v2667, 16
      %v2723 = vrot.slane %v2721, 1
      %v2724 = vsel %vm606, %v2719, %v2723
      %v2725 = vshrl.u32 %v2667, 16
      %v2727 = vor.u32 %v2725, %v2723
      %v2729 = vshll.u32 %v2668, 16
      %v2731 = vrot.slane %v2729, 1
      %v2732 = vsel %vm606, %v2727, %v2731
      %v2733 = vshrl.u32 %v2668, 16
      %v2735 = vor.u32 %v2733, %v2731
      %v2737 = vshll.u32 %v2669, 16
      %v2739 = vrot.slane %v2737, 1
      %v2740 = vsel %vm606, %v2735, %v2739
      %v2741 = vshrl.u32 %v2669, 16
      %v2743 = vor.u32 %v2741, %v2739
      %v2745 = vshll.u32 %v2670, 16
      %v2747 = vrot.slane %v2745, 1
      %v2748 = vsel %vm606, %v2743, %v2747
      %v2749 = vshrl.u32 %v2670, 16
      %v2751 = vor.u32 %v2749, %v2747
      %v2753 = vshll.u32 %v2671, 16
      %v2755 = vrot.slane %v2753, 1
      %v2756 = vsel %vm606, %v2751, %v2755
      %v2757 = vshrl.u32 %v2671, 16
      %v2759 = vor.u32 %v2757, %v2755
      %v2761 = vshll.u32 %v2672, 16
      %v2763 = vrot.slane %v2761, 1
      %v2764 = vsel %vm606, %v2759, %v2763
      %v2765 = vshrl.u32 %v2672, 16
      %v2767 = vor.u32 %v2765, %v2763
      %v2769 = vshll.u32 %v2673, 16
      %v2771 = vrot.slane %v2769, 1
      %v2772 = vsel %vm606, %v2767, %v2771
      %v2773 = vshrl.u32 %v2673, 16
      %v2775 = vor.u32 %v2773, %v2771
      %v2777 = vshll.u32 %v2674, 16
      %v2779 = vrot.slane %v2777, 1
      %v2780 = vsel %vm606, %v2775, %v2779
      %v2781 = vshrl.u32 %v2674, 16
      %v2783 = vor.u32 %v2781, %v2779
      %v2785 = vshll.u32 %v2675, 16
      %v2787 = vrot.slane %v2785, 1
      %v2788 = vsel %vm606, %v2783, %v2787
      %v2789 = vshrl.u32 %v2675, 16
      %v2791 = vor.u32 %v2789, %v2787
      %v2793 = vshll.u32 %v2676, 16
      %v2795 = vrot.slane %v2793, 1
      %v2796 = vsel %vm606, %v2791, %v2795
      %v2797 = vshrl.u32 %v2676, 16
      %v2799 = vor.u32 %v2797, %v2795
      %v2801 = vshll.u32 %v2677, 16
      %v2803 = vrot.slane %v2801, 1
      %v2804 = vsel %vm606, %v2799, %v2803
      %v2805 = vshrl.u32 %v2677, 16
      %v2807 = vor.u32 %v2805, %v2803
      %v2809 = vshll.u32 %v2678, 16
      %v2811 = vrot.slane %v2809, 1
      %v2812 = vsel %vm606, %v2807, %v2811
      %v2813 = vshrl.u32 %v2678, 16
      %v2815 = vor.u32 %v2813, %v2811
      %v2817 = vshll.u32 %v2679, 16
      %v2819 = vrot.slane %v2817, 1
      %v2820 = vsel %vm606, %v2815, %v2819
      %v2821 = vshrl.u32 %v2679, 16
      %v2823 = vor.u32 %v2821, %v2819
      %v2825 = vshll.u32 %v2680, 16
      %v2827 = vrot.slane %v2825, 1
      %v2828 = vsel %vm606, %v2823, %v2827
      %v2861 = vunpack.c.l.b16 %v2681
      %v2862 = vunpack.c.l.b16 %v2682
      %v2863 = vunpack.c.l.b16 %v2683
      %v2864 = vunpack.c.l.b16 %v2684
      %v2865 = vunpack.c.l.b16 %v2685
      %v2866 = vunpack.c.l.b16 %v2686
      %v2867 = vunpack.c.l.b16 %v2687
      %v2868 = vunpack.c.l.b16 %v2688
      %v2869 = vunpack.c.l.b16 %v2689
      %v2870 = vunpack.c.l.b16 %v2690
      %v2871 = vunpack.c.l.b16 %v2691
      %v2872 = vunpack.c.l.b16 %v2692
      %v2873 = vunpack.c.l.b16 %v2693
      %v2874 = vunpack.c.l.b16 %v2694
      %v2875 = vunpack.c.l.b16 %v2695
      %v2876 = vunpack.c.l.b16 %v2696
      %v2877 = vpack.c.b16 %v2862, %v2861
      %v2878 = vpack.c.b16 %v2864, %v2863
      %v2879 = vpack.c.b16 %v2866, %v2865
      %v2880 = vpack.c.b16 %v2868, %v2867
      %v2881 = vpack.c.b16 %v2870, %v2869
      %v2882 = vpack.c.b16 %v2872, %v2871
      %v2883 = vpack.c.b16 %v2874, %v2873
      %v2884 = vpack.c.b16 %v2876, %v2875
      %2893 = vmatprep.subr.bf16.mxu0 0
      %2894 = vmatpush1.bf16.msra.mxu0 %v2877
      %2895 = vmatprep.subr.bf16.mxu0 0
      %2896 = vmatpush1.bf16.msra.mxu0 %v2878
      %2897 = vmatprep.subr.bf16.mxu0 0
      %2898 = vmatpush1.bf16.msra.mxu0 %v2879
      %2899 = vmatprep.subr.bf16.mxu0 0
      %2900 = vmatpush1.bf16.msra.mxu0 %v2880
      %2901 = vmatprep.subr.bf16.mxu0 0
      %2902 = vmatpush1.bf16.msra.mxu0 %v2881
      %2903 = vmatprep.subr.bf16.mxu0 0
      %2904 = vmatpush1.bf16.msra.mxu0 %v2882
      %2905 = vmatprep.subr.bf16.mxu0 0
      %2906 = vmatpush1.bf16.msra.mxu0 %v2883
      %2907 = vmatprep.subr.bf16.mxu0 0
      %2908 = vmatpush1.bf16.msra.mxu0 %v2884
      %2909 = vmatprep.subr.bf16.mxu0 0
      %2910 = vmatpush1.bf16.msra.mxu0 0
      %2911 = vmatprep.subr.bf16.mxu0 0
      %2912 = vmatpush1.bf16.msra.mxu0 0
      %2913 = vmatprep.subr.bf16.mxu0 0
      %2914 = vmatpush1.bf16.msra.mxu0 0
      %2915 = vmatprep.subr.bf16.mxu0 0
      %2916 = vmatpush1.bf16.msra.mxu0 0
      %2917 = vmatprep.subr.bf16.mxu0 0
      %2918 = vmatpush1.bf16.msra.mxu0 0
      %2919 = vmatprep.subr.bf16.mxu0 0
      %2920 = vmatpush1.bf16.msra.mxu0 0
      %2921 = vmatprep.subr.bf16.mxu0 0
      %2922 = vmatpush1.bf16.msra.mxu0 0
      %2923 = vmatprep.subr.bf16.mxu0 0
      %2924 = vmatpush1.bf16.msra.mxu0 0
      %2925 = vmatprep.mubr.bf16.mxu0 0
      %2926 = vmatmul.mubr.bf16.gmra.mrb[0].mxu0 %v2708
      %v2927 = vpop.f32.mrb[0].mxu0
      %v2928 = vadd.f32 0.0, %v2927
      %v2929 = vpop.f32.mrb[0].mxu0
      %v2930 = vpop.f32.mrb[0].mxu0
      %v2931 = vadd.f32 0.0, %v2930
      %v2932 = vpop.f32.mrb[0].mxu0
      %2933 = vmatprep.mubr.bf16.mxu0 0
      %2934 = vmatmul.mubr.bf16.gmra.mrb[0].mxu0 %v2716
      %v2935 = vpop.f32.mrb[0].mxu0
      %v2936 = vadd.f32 0.0, %v2935
      %v2937 = vpop.f32.mrb[0].mxu0
      %v2938 = vpop.f32.mrb[0].mxu0
      %v2939 = vadd.f32 0.0, %v2938
      %v2940 = vpop.f32.mrb[0].mxu0
      %2941 = vmatprep.mubr.bf16.mxu0 0
      %2942 = vmatmul.mubr.bf16.gmra.mrb[0].mxu0 %v2724
      %v2943 = vpop.f32.mrb[0].mxu0
      %v2944 = vadd.f32 0.0, %v2943
      %v2945 = vpop.f32.mrb[0].mxu0
      %v2946 = vpop.f32.mrb[0].mxu0
      %v2947 = vadd.f32 0.0, %v2946
      %v2948 = vpop.f32.mrb[0].mxu0
      %2949 = vmatprep.mubr.bf16.mxu0 0
      %2950 = vmatmul.mubr.bf16.gmra.mrb[0].mxu0 %v2732
      %v2951 = vpop.f32.mrb[0].mxu0
      %v2952 = vadd.f32 0.0, %v2951
      %v2953 = vpop.f32.mrb[0].mxu0
      %v2954 = vpop.f32.mrb[0].mxu0
      %v2955 = vadd.f32 0.0, %v2954
      %v2956 = vpop.f32.mrb[0].mxu0
      %2957 = vmatprep.mubr.bf16.mxu0 0
      %2958 = vmatmul.mubr.bf16.gmra.mrb[0].mxu0 %v2740
      %v2959 = vpop.f32.mrb[0].mxu0
      %v2960 = vadd.f32 0.0, %v2959
      %v2961 = vpop.f32.mrb[0].mxu0
      %v2962 = vpop.f32.mrb[0].mxu0
      %v2963 = vadd.f32 0.0, %v2962
      %v2964 = vpop.f32.mrb[0].mxu0
      %2965 = vmatprep.mubr.bf16.mxu0 0
      %2966 = vmatmul.mubr.bf16.gmra.mrb[0].mxu0 %v2748
      %v2967 = vpop.f32.mrb[0].mxu0
      %v2968 = vadd.f32 0.0, %v2967
      %v2969 = vpop.f32.mrb[0].mxu0
      %v2970 = vpop.f32.mrb[0].mxu0
      %v2971 = vadd.f32 0.0, %v2970
      %v2972 = vpop.f32.mrb[0].mxu0
      %2973 = vmatprep.mubr.bf16.mxu0 0
      %2974 = vmatmul.mubr.bf16.gmra.mrb[0].mxu0 %v2756
      %v2975 = vpop.f32.mrb[0].mxu0
      %v2976 = vadd.f32 0.0, %v2975
      %v2977 = vpop.f32.mrb[0].mxu0
      %v2978 = vpop.f32.mrb[0].mxu0
      %v2979 = vadd.f32 0.0, %v2978
      %v2980 = vpop.f32.mrb[0].mxu0
      %2981 = vmatprep.mubr.bf16.mxu0 0
      %2982 = vmatmul.mubr.bf16.gmra.mrb[0].mxu0 %v2764
      %v2983 = vpop.f32.mrb[0].mxu0
      %v2984 = vadd.f32 0.0, %v2983
      %v2985 = vpop.f32.mrb[0].mxu0
      %v2986 = vpop.f32.mrb[0].mxu0
      %v2987 = vadd.f32 0.0, %v2986
      %v2988 = vpop.f32.mrb[0].mxu0
      %2989 = vmatprep.mubr.bf16.mxu0 0
      %2990 = vmatmul.mubr.bf16.gmra.mrb[0].mxu0 %v2772
      %v2991 = vpop.f32.mrb[0].mxu0
      %v2992 = vadd.f32 0.0, %v2991
      %v2993 = vpop.f32.mrb[0].mxu0
      %v2994 = vpop.f32.mrb[0].mxu0
      %v2995 = vadd.f32 0.0, %v2994
      %v2996 = vpop.f32.mrb[0].mxu0
      %2997 = vmatprep.mubr.bf16.mxu0 0
      %2998 = vmatmul.mubr.bf16.gmra.mrb[0].mxu0 %v2780
      %v2999 = vpop.f32.mrb[0].mxu0
      %v3000 = vadd.f32 0.0, %v2999
      %v3001 = vpop.f32.mrb[0].mxu0
      %v3002 = vpop.f32.mrb[0].mxu0
      %v3003 = vadd.f32 0.0, %v3002
      %v3004 = vpop.f32.mrb[0].mxu0
      %3005 = vmatprep.mubr.bf16.mxu0 0
      %3006 = vmatmul.mubr.bf16.gmra.mrb[0].mxu0 %v2788
      %v3007 = vpop.f32.mrb[0].mxu0
      %v3008 = vadd.f32 0.0, %v3007
      %v3009 = vpop.f32.mrb[0].mxu0
      %v3010 = vpop.f32.mrb[0].mxu0
      %v3011 = vadd.f32 0.0, %v3010
      %v3012 = vpop.f32.mrb[0].mxu0
      %3013 = vmatprep.mubr.bf16.mxu0 0
      %3014 = vmatmul.mubr.bf16.gmra.mrb[0].mxu0 %v2796
      %v3015 = vpop.f32.mrb[0].mxu0
      %v3016 = vadd.f32 0.0, %v3015
      %v3017 = vpop.f32.mrb[0].mxu0
      %v3018 = vpop.f32.mrb[0].mxu0
      %v3019 = vadd.f32 0.0, %v3018
      %v3020 = vpop.f32.mrb[0].mxu0
      %3021 = vmatprep.mubr.bf16.mxu0 0
      %3022 = vmatmul.mubr.bf16.gmra.mrb[0].mxu0 %v2804
      %v3023 = vpop.f32.mrb[0].mxu0
      %v3024 = vadd.f32 0.0, %v3023
      %v3025 = vpop.f32.mrb[0].mxu0
      %v3026 = vpop.f32.mrb[0].mxu0
      %v3027 = vadd.f32 0.0, %v3026
      %v3028 = vpop.f32.mrb[0].mxu0
      %3029 = vmatprep.mubr.bf16.mxu0 0
      %3030 = vmatmul.mubr.bf16.gmra.mrb[0].mxu0 %v2812
      %v3031 = vpop.f32.mrb[0].mxu0
      %v3032 = vadd.f32 0.0, %v3031
      %v3033 = vpop.f32.mrb[0].mxu0
      %v3034 = vpop.f32.mrb[0].mxu0
      %v3035 = vadd.f32 0.0, %v3034
      %v3036 = vpop.f32.mrb[0].mxu0
      %3037 = vmatprep.mubr.bf16.mxu0 0
      %3038 = vmatmul.mubr.bf16.gmra.mrb[0].mxu0 %v2820
      %v3039 = vpop.f32.mrb[0].mxu0
      %v3040 = vadd.f32 0.0, %v3039
      %v3041 = vpop.f32.mrb[0].mxu0
      %v3042 = vpop.f32.mrb[0].mxu0
      %v3043 = vadd.f32 0.0, %v3042
      %v3044 = vpop.f32.mrb[0].mxu0
      %3045 = vmatprep.mubr.bf16.mxu0 0
      %3046 = vmatmul.mubr.bf16.gmra.mrb[0].mxu0 %v2828
      %v3047 = vpop.f32.mrb[0].mxu0
      %v3048 = vadd.f32 0.0, %v3047
      %v3049 = vpop.f32.mrb[0].mxu0
      %v3050 = vpop.f32.mrb[0].mxu0
      %v3051 = vadd.f32 0.0, %v3050
      %v3052 = vpop.f32.mrb[0].mxu0
      %3053 = vdwg.mxu0
      %v3054 = vadd.f32 %v2615, %v2928
      %v3055 = vadd.f32 %v2616, %v2931
      %v3056 = vadd.f32 %v2617, %v2936
      %v3057 = vadd.f32 %v2618, %v2939
      %v3058 = vadd.f32 %v2619, %v2944
      %v3059 = vadd.f32 %v2620, %v2947
      %v3060 = vadd.f32 %v2621, %v2952
      %v3061 = vadd.f32 %v2622, %v2955
      %v3062 = vadd.f32 %v2623, %v2960
      %v3063 = vadd.f32 %v2624, %v2963
      %v3064 = vadd.f32 %v2625, %v2968
      %v3065 = vadd.f32 %v2626, %v2971
      %v3066 = vadd.f32 %v2627, %v2976
      %v3067 = vadd.f32 %v2628, %v2979
      %v3068 = vadd.f32 %v2629, %v2984
      %v3069 = vadd.f32 %v2630, %v2987
      %v3070 = vadd.f32 %v2631, %v2992
      %v3071 = vadd.f32 %v2632, %v2995
      %v3072 = vadd.f32 %v2633, %v3000
      %v3073 = vadd.f32 %v2634, %v3003
      %v3074 = vadd.f32 %v2635, %v3008
      %v3075 = vadd.f32 %v2636, %v3011
      %v3076 = vadd.f32 %v2637, %v3016
      %v3077 = vadd.f32 %v2638, %v3019
      %v3078 = vadd.f32 %v2639, %v3024
      %v3079 = vadd.f32 %v2640, %v3027
      %v3080 = vadd.f32 %v2641, %v3032
      %v3081 = vadd.f32 %v2642, %v3035
      %v3082 = vadd.f32 %v2643, %v3040
      %v3083 = vadd.f32 %v2644, %v3043
      %v3084 = vadd.f32 %v2645, %v3048
      %v3085 = vadd.f32 %v2646, %v3051
      %v3086 = vld [vmem:[#allocation2 + $0x10] sm:$0x80]
      %v3087 = vld [vmem:[#allocation2 + $0x90] sm:$0xff]
      %v3088 = vmul.bf16 %v3086, %v609
      %v3089 = vmul.bf16 %v2648, %v616
      %v3090 = vmul.bf16 %v2649, %v623
      %v3091 = vmul.bf16 %v2650, %v630
      %v3092 = vmul.bf16 %v2651, %v637
      %v3093 = vmul.bf16 %v2652, %v644
      %v3094 = vmul.bf16 %v2653, %v651
      %v3095 = vmul.bf16 %v2654, %v658
      %v3096 = vmul.bf16 %v2655, %v665
      %v3097 = vmul.bf16 %v2656, %v672
      %v3098 = vmul.bf16 %v2657, %v679
      %v3099 = vmul.bf16 %v2658, %v686
      %v3100 = vmul.bf16 %v2659, %v693
      %v3101 = vmul.bf16 %v2660, %v700
      %v3102 = vmul.bf16 %v2661, %v707
      %v3103 = vmul.bf16 %v2662, %v714
      %v3104 = vmul.bf16 %v3087, %v717
      %v3105 = vld [vmem:[%s3 + $0x180] sm:$0xf]
      %v3106 = vld [vmem:[%s3 + $0x184] sm:$0xf]
      %v3107 = vld [vmem:[%s3 + $0x188] sm:$0xf]
      %v3108 = vld [vmem:[%s3 + $0x18c] sm:$0xf]
      %v3109 = vld [vmem:[%s3 + $0x190] sm:$0xf]
      %v3110 = vld [vmem:[%s3 + $0x194] sm:$0xf]
      %v3111 = vld [vmem:[%s3 + $0x198] sm:$0xf]
      %v3112 = vld [vmem:[%s3 + $0x19c] sm:$0xf]
      %v3113 = vld [vmem:[%s3 + $0x1a0] sm:$0xf]
      %v3114 = vld [vmem:[%s3 + $0x1a4] sm:$0xf]
      %v3115 = vld [vmem:[%s3 + $0x1a8] sm:$0xf]
      %v3116 = vld [vmem:[%s3 + $0x1ac] sm:$0xf]
      %v3117 = vld [vmem:[%s3 + $0x1b0] sm:$0xf]
      %v3118 = vld [vmem:[%s3 + $0x1b4] sm:$0xf]
      %v3119 = vld [vmem:[%s3 + $0x1b8] sm:$0xf]
      %v3120 = vld [vmem:[%s3 + $0x1bc] sm:$0xf]
      %v3122 = vshrl.u32 %v3088, 16
      %v3124 = vrot.slane %v3122, 7
      %v3126 = vshrl.u32 %v3089, 16
      %v3128 = vrot.slane %v3126, 7
      %v3129 = vshll.u32 %v3089, 16
      %v3131 = vor.u32 %v3128, %v3129
      %v3132 = vsel %vm993, %v3124, %v3131
      %v3134 = vshrl.u32 %v3090, 16
      %v3136 = vrot.slane %v3134, 7
      %v3137 = vshll.u32 %v3090, 16
      %v3139 = vor.u32 %v3136, %v3137
      %v3140 = vsel %vm993, %v3128, %v3139
      %v3142 = vshrl.u32 %v3091, 16
      %v3144 = vrot.slane %v3142, 7
      %v3145 = vshll.u32 %v3091, 16
      %v3147 = vor.u32 %v3144, %v3145
      %v3148 = vsel %vm993, %v3136, %v3147
      %v3150 = vshrl.u32 %v3092, 16
      %v3152 = vrot.slane %v3150, 7
      %v3153 = vshll.u32 %v3092, 16
      %v3155 = vor.u32 %v3152, %v3153
      %v3156 = vsel %vm993, %v3144, %v3155
      %v3158 = vshrl.u32 %v3093, 16
      %v3160 = vrot.slane %v3158, 7
      %v3161 = vshll.u32 %v3093, 16
      %v3163 = vor.u32 %v3160, %v3161
      %v3164 = vsel %vm993, %v3152, %v3163
      %v3166 = vshrl.u32 %v3094, 16
      %v3168 = vrot.slane %v3166, 7
      %v3169 = vshll.u32 %v3094, 16
      %v3171 = vor.u32 %v3168, %v3169
      %v3172 = vsel %vm993, %v3160, %v3171
      %v3174 = vshrl.u32 %v3095, 16
      %v3176 = vrot.slane %v3174, 7
      %v3177 = vshll.u32 %v3095, 16
      %v3179 = vor.u32 %v3176, %v3177
      %v3180 = vsel %vm993, %v3168, %v3179
      %v3182 = vshrl.u32 %v3096, 16
      %v3184 = vrot.slane %v3182, 7
      %v3185 = vshll.u32 %v3096, 16
      %v3187 = vor.u32 %v3184, %v3185
      %v3188 = vsel %vm993, %v3176, %v3187
      %v3190 = vshrl.u32 %v3097, 16
      %v3192 = vrot.slane %v3190, 7
      %v3193 = vshll.u32 %v3097, 16
      %v3195 = vor.u32 %v3192, %v3193
      %v3196 = vsel %vm993, %v3184, %v3195
      %v3198 = vshrl.u32 %v3098, 16
      %v3200 = vrot.slane %v3198, 7
      %v3201 = vshll.u32 %v3098, 16
      %v3203 = vor.u32 %v3200, %v3201
      %v3204 = vsel %vm993, %v3192, %v3203
      %v3206 = vshrl.u32 %v3099, 16
      %v3208 = vrot.slane %v3206, 7
      %v3209 = vshll.u32 %v3099, 16
      %v3211 = vor.u32 %v3208, %v3209
      %v3212 = vsel %vm993, %v3200, %v3211
      %v3214 = vshrl.u32 %v3100, 16
      %v3216 = vrot.slane %v3214, 7
      %v3217 = vshll.u32 %v3100, 16
      %v3219 = vor.u32 %v3216, %v3217
      %v3220 = vsel %vm993, %v3208, %v3219
      %v3222 = vshrl.u32 %v3101, 16
      %v3224 = vrot.slane %v3222, 7
      %v3225 = vshll.u32 %v3101, 16
      %v3227 = vor.u32 %v3224, %v3225
      %v3228 = vsel %vm993, %v3216, %v3227
      %v3230 = vshrl.u32 %v3102, 16
      %v3232 = vrot.slane %v3230, 7
      %v3233 = vshll.u32 %v3102, 16
      %v3235 = vor.u32 %v3232, %v3233
      %v3236 = vsel %vm993, %v3224, %v3235
      %v3238 = vshrl.u32 %v3103, 16
      %v3240 = vrot.slane %v3238, 7
      %v3241 = vshll.u32 %v3103, 16
      %v3243 = vor.u32 %v3240, %v3241
      %v3244 = vsel %vm993, %v3232, %v3243
      %v3246 = vshrl.u32 %v3104, 16
      %v3248 = vrot.slane %v3246, 7
      %v3249 = vshll.u32 %v3104, 16
      %v3251 = vor.u32 %v3248, %v3249
      %v3252 = vsel %vm993, %v3240, %v3251
      %v3285 = vunpack.c.l.b16 %v3105
      %v3286 = vunpack.c.l.b16 %v3106
      %v3287 = vunpack.c.l.b16 %v3107
      %v3288 = vunpack.c.l.b16 %v3108
      %v3289 = vunpack.c.l.b16 %v3109
      %v3290 = vunpack.c.l.b16 %v3110
      %v3291 = vunpack.c.l.b16 %v3111
      %v3292 = vunpack.c.l.b16 %v3112
      %v3293 = vunpack.c.l.b16 %v3113
      %v3294 = vunpack.c.l.b16 %v3114
      %v3295 = vunpack.c.l.b16 %v3115
      %v3296 = vunpack.c.l.b16 %v3116
      %v3297 = vunpack.c.l.b16 %v3117
      %v3298 = vunpack.c.l.b16 %v3118
      %v3299 = vunpack.c.l.b16 %v3119
      %v3300 = vunpack.c.l.b16 %v3120
      %v3301 = vpack.c.b16 %v3286, %v3285
      %v3302 = vpack.c.b16 %v3288, %v3287
      %v3303 = vpack.c.b16 %v3290, %v3289
      %v3304 = vpack.c.b16 %v3292, %v3291
      %v3305 = vpack.c.b16 %v3294, %v3293
      %v3306 = vpack.c.b16 %v3296, %v3295
      %v3307 = vpack.c.b16 %v3298, %v3297
      %v3308 = vpack.c.b16 %v3300, %v3299
      %3317 = vmatprep.subr.bf16.mxu0 0
      %3318 = vmatpush1.bf16.msra.mxu0 %v3301
      %3319 = vmatprep.subr.bf16.mxu0 0
      %3320 = vmatpush1.bf16.msra.mxu0 %v3302
      %3321 = vmatprep.subr.bf16.mxu0 0
      %3322 = vmatpush1.bf16.msra.mxu0 %v3303
      %3323 = vmatprep.subr.bf16.mxu0 0
      %3324 = vmatpush1.bf16.msra.mxu0 %v3304
      %3325 = vmatprep.subr.bf16.mxu0 0
      %3326 = vmatpush1.bf16.msra.mxu0 %v3305
      %3327 = vmatprep.subr.bf16.mxu0 0
      %3328 = vmatpush1.bf16.msra.mxu0 %v3306
      %3329 = vmatprep.subr.bf16.mxu0 0
      %3330 = vmatpush1.bf16.msra.mxu0 %v3307
      %3331 = vmatprep.subr.bf16.mxu0 0
      %3332 = vmatpush1.bf16.msra.mxu0 %v3308
      %3333 = vmatprep.subr.bf16.mxu0 0
      %3334 = vmatpush1.bf16.msra.mxu0 0
      %3335 = vmatprep.subr.bf16.mxu0 0
      %3336 = vmatpush1.bf16.msra.mxu0 0
      %3337 = vmatprep.subr.bf16.mxu0 0
      %3338 = vmatpush1.bf16.msra.mxu0 0
      %3339 = vmatprep.subr.bf16.mxu0 0
      %3340 = vmatpush1.bf16.msra.mxu0 0
      %3341 = vmatprep.subr.bf16.mxu0 0
      %3342 = vmatpush1.bf16.msra.mxu0 0
      %3343 = vmatprep.subr.bf16.mxu0 0
      %3344 = vmatpush1.bf16.msra.mxu0 0
      %3345 = vmatprep.subr.bf16.mxu0 0
      %3346 = vmatpush1.bf16.msra.mxu0 0
      %3347 = vmatprep.subr.bf16.mxu0 0
      %3348 = vmatpush1.bf16.msra.mxu0 0
      %3349 = vmatprep.mubr.bf16.mxu0 0
      %3350 = vmatmul.mubr.bf16.gmra.mrb[0].mxu0 %v3132
      %v3351 = vpop.f32.mrb[0].mxu0
      %v3352 = vadd.f32 0.0, %v3351
      %v3353 = vpop.f32.mrb[0].mxu0
      %v3354 = vpop.f32.mrb[0].mxu0
      %v3355 = vadd.f32 0.0, %v3354
      %v3356 = vpop.f32.mrb[0].mxu0
      %3357 = vmatprep.mubr.bf16.mxu0 0
      %3358 = vmatmul.mubr.bf16.gmra.mrb[0].mxu0 %v3140
      %v3359 = vpop.f32.mrb[0].mxu0
      %v3360 = vadd.f32 0.0, %v3359
      %v3361 = vpop.f32.mrb[0].mxu0
      %v3362 = vpop.f32.mrb[0].mxu0
      %v3363 = vadd.f32 0.0, %v3362
      %v3364 = vpop.f32.mrb[0].mxu0
      %3365 = vmatprep.mubr.bf16.mxu0 0
      %3366 = vmatmul.mubr.bf16.gmra.mrb[0].mxu0 %v3148
      %v3367 = vpop.f32.mrb[0].mxu0
      %v3368 = vadd.f32 0.0, %v3367
      %v3369 = vpop.f32.mrb[0].mxu0
      %v3370 = vpop.f32.mrb[0].mxu0
      %v3371 = vadd.f32 0.0, %v3370
      %v3372 = vpop.f32.mrb[0].mxu0
      %3373 = vmatprep.mubr.bf16.mxu0 0
      %3374 = vmatmul.mubr.bf16.gmra.mrb[0].mxu0 %v3156
      %v3375 = vpop.f32.mrb[0].mxu0
      %v3376 = vadd.f32 0.0, %v3375
      %v3377 = vpop.f32.mrb[0].mxu0
      %v3378 = vpop.f32.mrb[0].mxu0
      %v3379 = vadd.f32 0.0, %v3378
      %v3380 = vpop.f32.mrb[0].mxu0
      %3381 = vmatprep.mubr.bf16.mxu0 0
      %3382 = vmatmul.mubr.bf16.gmra.mrb[0].mxu0 %v3164
      %v3383 = vpop.f32.mrb[0].mxu0
      %v3384 = vadd.f32 0.0, %v3383
      %v3385 = vpop.f32.mrb[0].mxu0
      %v3386 = vpop.f32.mrb[0].mxu0
      %v3387 = vadd.f32 0.0, %v3386
      %v3388 = vpop.f32.mrb[0].mxu0
      %3389 = vmatprep.mubr.bf16.mxu0 0
      %3390 = vmatmul.mubr.bf16.gmra.mrb[0].mxu0 %v3172
      %v3391 = vpop.f32.mrb[0].mxu0
      %v3392 = vadd.f32 0.0, %v3391
      %v3393 = vpop.f32.mrb[0].mxu0
      %v3394 = vpop.f32.mrb[0].mxu0
      %v3395 = vadd.f32 0.0, %v3394
      %v3396 = vpop.f32.mrb[0].mxu0
      %3397 = vmatprep.mubr.bf16.mxu0 0
      %3398 = vmatmul.mubr.bf16.gmra.mrb[0].mxu0 %v3180
      %v3399 = vpop.f32.mrb[0].mxu0
      %v3400 = vadd.f32 0.0, %v3399
      %v3401 = vpop.f32.mrb[0].mxu0
      %v3402 = vpop.f32.mrb[0].mxu0
      %v3403 = vadd.f32 0.0, %v3402
      %v3404 = vpop.f32.mrb[0].mxu0
      %3405 = vmatprep.mubr.bf16.mxu0 0
      %3406 = vmatmul.mubr.bf16.gmra.mrb[0].mxu0 %v3188
      %v3407 = vpop.f32.mrb[0].mxu0
      %v3408 = vadd.f32 0.0, %v3407
      %v3409 = vpop.f32.mrb[0].mxu0
      %v3410 = vpop.f32.mrb[0].mxu0
      %v3411 = vadd.f32 0.0, %v3410
      %v3412 = vpop.f32.mrb[0].mxu0
      %3413 = vmatprep.mubr.bf16.mxu0 0
      %3414 = vmatmul.mubr.bf16.gmra.mrb[0].mxu0 %v3196
      %v3415 = vpop.f32.mrb[0].mxu0
      %v3416 = vadd.f32 0.0, %v3415
      %v3417 = vpop.f32.mrb[0].mxu0
      %v3418 = vpop.f32.mrb[0].mxu0
      %v3419 = vadd.f32 0.0, %v3418
      %v3420 = vpop.f32.mrb[0].mxu0
      %3421 = vmatprep.mubr.bf16.mxu0 0
      %3422 = vmatmul.mubr.bf16.gmra.mrb[0].mxu0 %v3204
      %v3423 = vpop.f32.mrb[0].mxu0
      %v3424 = vadd.f32 0.0, %v3423
      %v3425 = vpop.f32.mrb[0].mxu0
      %v3426 = vpop.f32.mrb[0].mxu0
      %v3427 = vadd.f32 0.0, %v3426
      %v3428 = vpop.f32.mrb[0].mxu0
      %3429 = vmatprep.mubr.bf16.mxu0 0
      %3430 = vmatmul.mubr.bf16.gmra.mrb[0].mxu0 %v3212
      %v3431 = vpop.f32.mrb[0].mxu0
      %v3432 = vadd.f32 0.0, %v3431
      %v3433 = vpop.f32.mrb[0].mxu0
      %v3434 = vpop.f32.mrb[0].mxu0
      %v3435 = vadd.f32 0.0, %v3434
      %v3436 = vpop.f32.mrb[0].mxu0
      %3437 = vmatprep.mubr.bf16.mxu0 0
      %3438 = vmatmul.mubr.bf16.gmra.mrb[0].mxu0 %v3220
      %v3439 = vpop.f32.mrb[0].mxu0
      %v3440 = vadd.f32 0.0, %v3439
      %v3441 = vpop.f32.mrb[0].mxu0
      %v3442 = vpop.f32.mrb[0].mxu0
      %v3443 = vadd.f32 0.0, %v3442
      %v3444 = vpop.f32.mrb[0].mxu0
      %3445 = vmatprep.mubr.bf16.mxu0 0
      %3446 = vmatmul.mubr.bf16.gmra.mrb[0].mxu0 %v3228
      %v3447 = vpop.f32.mrb[0].mxu0
      %v3448 = vadd.f32 0.0, %v3447
      %v3449 = vpop.f32.mrb[0].mxu0
      %v3450 = vpop.f32.mrb[0].mxu0
      %v3451 = vadd.f32 0.0, %v3450
      %v3452 = vpop.f32.mrb[0].mxu0
      %3453 = vmatprep.mubr.bf16.mxu0 0
      %3454 = vmatmul.mubr.bf16.gmra.mrb[0].mxu0 %v3236
      %v3455 = vpop.f32.mrb[0].mxu0
      %v3456 = vadd.f32 0.0, %v3455
      %v3457 = vpop.f32.mrb[0].mxu0
      %v3458 = vpop.f32.mrb[0].mxu0
      %v3459 = vadd.f32 0.0, %v3458
      %v3460 = vpop.f32.mrb[0].mxu0
      %3461 = vmatprep.mubr.bf16.mxu0 0
      %3462 = vmatmul.mubr.bf16.gmra.mrb[0].mxu0 %v3244
      %v3463 = vpop.f32.mrb[0].mxu0
      %v3464 = vadd.f32 0.0, %v3463
      %v3465 = vpop.f32.mrb[0].mxu0
      %v3466 = vpop.f32.mrb[0].mxu0
      %v3467 = vadd.f32 0.0, %v3466
      %v3468 = vpop.f32.mrb[0].mxu0
      %3469 = vmatprep.mubr.bf16.mxu0 0
      %3470 = vmatmul.mubr.bf16.gmra.mrb[0].mxu0 %v3252
      %v3471 = vpop.f32.mrb[0].mxu0
      %v3472 = vadd.f32 0.0, %v3471
      %v3473 = vpop.f32.mrb[0].mxu0
      %v3474 = vpop.f32.mrb[0].mxu0
      %v3475 = vadd.f32 0.0, %v3474
      %v3476 = vpop.f32.mrb[0].mxu0
      %3477 = vdwg.mxu0
      %v3478 = vadd.f32 %v3054, %v3352
      %v3479 = vadd.f32 %v3055, %v3355
      %v3480 = vadd.f32 %v3056, %v3360
      %v3481 = vadd.f32 %v3057, %v3363
      %v3482 = vadd.f32 %v3058, %v3368
      %v3483 = vadd.f32 %v3059, %v3371
      %v3484 = vadd.f32 %v3060, %v3376
      %v3485 = vadd.f32 %v3061, %v3379
      %v3486 = vadd.f32 %v3062, %v3384
      %v3487 = vadd.f32 %v3063, %v3387
      %v3488 = vadd.f32 %v3064, %v3392
      %v3489 = vadd.f32 %v3065, %v3395
      %v3490 = vadd.f32 %v3066, %v3400
      %v3491 = vadd.f32 %v3067, %v3403
      %v3492 = vadd.f32 %v3068, %v3408
      %v3493 = vadd.f32 %v3069, %v3411
      %v3494 = vadd.f32 %v3070, %v3416
      %v3495 = vadd.f32 %v3071, %v3419
      %v3496 = vadd.f32 %v3072, %v3424
      %v3497 = vadd.f32 %v3073, %v3427
      %v3498 = vadd.f32 %v3074, %v3432
      %v3499 = vadd.f32 %v3075, %v3435
      %v3500 = vadd.f32 %v3076, %v3440
      %v3501 = vadd.f32 %v3077, %v3443
      %v3502 = vadd.f32 %v3078, %v3448
      %v3503 = vadd.f32 %v3079, %v3451
      %v3504 = vadd.f32 %v3080, %v3456
      %v3505 = vadd.f32 %v3081, %v3459
      %v3506 = vadd.f32 %v3082, %v3464
      %v3507 = vadd.f32 %v3083, %v3467
      %v3508 = vadd.f32 %v3084, %v3472
      %v3509 = vadd.f32 %v3085, %v3475
      %v3510 = vld [vmem:[%s3 + $0x1c0] sm:$0xf]
      %v3511 = vld [vmem:[%s3 + $0x1c4] sm:$0xf]
      %v3512 = vld [vmem:[%s3 + $0x1c8] sm:$0xf]
      %v3513 = vld [vmem:[%s3 + $0x1cc] sm:$0xf]
      %v3514 = vld [vmem:[%s3 + $0x1d0] sm:$0xf]
      %v3515 = vld [vmem:[%s3 + $0x1d4] sm:$0xf]
      %v3516 = vld [vmem:[%s3 + $0x1d8] sm:$0xf]
      %v3517 = vld [vmem:[%s3 + $0x1dc] sm:$0xf]
      %v3518 = vld [vmem:[%s3 + $0x1e0] sm:$0xf]
      %v3519 = vld [vmem:[%s3 + $0x1e4] sm:$0xf]
      %v3520 = vld [vmem:[%s3 + $0x1e8] sm:$0xf]
      %v3521 = vld [vmem:[%s3 + $0x1ec] sm:$0xf]
      %v3522 = vld [vmem:[%s3 + $0x1f0] sm:$0xf]
      %v3523 = vld [vmem:[%s3 + $0x1f4] sm:$0xf]
      %v3524 = vld [vmem:[%s3 + $0x1f8] sm:$0xf]
      %v3525 = vld [vmem:[%s3 + $0x1fc] sm:$0xf]
      %v3542 = vunpack.c.l.b16 %v3510
      %v3543 = vunpack.c.l.b16 %v3511
      %v3544 = vunpack.c.l.b16 %v3512
      %v3545 = vunpack.c.l.b16 %v3513
      %v3546 = vunpack.c.l.b16 %v3514
      %v3547 = vunpack.c.l.b16 %v3515
      %v3548 = vunpack.c.l.b16 %v3516
      %v3549 = vunpack.c.l.b16 %v3517
      %v3550 = vunpack.c.l.b16 %v3518
      %v3551 = vunpack.c.l.b16 %v3519
      %v3552 = vunpack.c.l.b16 %v3520
      %v3553 = vunpack.c.l.b16 %v3521
      %v3554 = vunpack.c.l.b16 %v3522
      %v3555 = vunpack.c.l.b16 %v3523
      %v3556 = vunpack.c.l.b16 %v3524
      %v3557 = vunpack.c.l.b16 %v3525
      %v3558 = vpack.c.b16 %v3543, %v3542
      %v3559 = vpack.c.b16 %v3545, %v3544
      %v3560 = vpack.c.b16 %v3547, %v3546
      %v3561 = vpack.c.b16 %v3549, %v3548
      %v3562 = vpack.c.b16 %v3551, %v3550
      %v3563 = vpack.c.b16 %v3553, %v3552
      %v3564 = vpack.c.b16 %v3555, %v3554
      %v3565 = vpack.c.b16 %v3557, %v3556
      %3574 = vmatprep.subr.bf16.mxu0 0
      %3575 = vmatpush1.bf16.msra.mxu0 %v3558
      %3576 = vmatprep.subr.bf16.mxu0 0
      %3577 = vmatpush1.bf16.msra.mxu0 %v3559
      %3578 = vmatprep.subr.bf16.mxu0 0
      %3579 = vmatpush1.bf16.msra.mxu0 %v3560
      %3580 = vmatprep.subr.bf16.mxu0 0
      %3581 = vmatpush1.bf16.msra.mxu0 %v3561
      %3582 = vmatprep.subr.bf16.mxu0 0
      %3583 = vmatpush1.bf16.msra.mxu0 %v3562
      %3584 = vmatprep.subr.bf16.mxu0 0
      %3585 = vmatpush1.bf16.msra.mxu0 %v3563
      %3586 = vmatprep.subr.bf16.mxu0 0
      %3587 = vmatpush1.bf16.msra.mxu0 %v3564
      %3588 = vmatprep.subr.bf16.mxu0 0
      %3589 = vmatpush1.bf16.msra.mxu0 %v3565
      %3590 = vmatprep.subr.bf16.mxu0 0
      %3591 = vmatpush1.bf16.msra.mxu0 0
      %3592 = vmatprep.subr.bf16.mxu0 0
      %3593 = vmatpush1.bf16.msra.mxu0 0
      %3594 = vmatprep.subr.bf16.mxu0 0
      %3595 = vmatpush1.bf16.msra.mxu0 0
      %3596 = vmatprep.subr.bf16.mxu0 0
      %3597 = vmatpush1.bf16.msra.mxu0 0
      %3598 = vmatprep.subr.bf16.mxu0 0
      %3599 = vmatpush1.bf16.msra.mxu0 0
      %3600 = vmatprep.subr.bf16.mxu0 0
      %3601 = vmatpush1.bf16.msra.mxu0 0
      %3602 = vmatprep.subr.bf16.mxu0 0
      %3603 = vmatpush1.bf16.msra.mxu0 0
      %3604 = vmatprep.subr.bf16.mxu0 0
      %3605 = vmatpush1.bf16.msra.mxu0 0
      %3606 = vmatprep.mubr.bf16.mxu0 0
      %3607 = vmatmul.mubr.bf16.gmra.mrb[0].mxu0 %v2648
      %v3608 = vpop.f32.mrb[0].mxu0
      %v3609 = vadd.f32 0.0, %v3608
      %v3610 = vpop.f32.mrb[0].mxu0
      %v3611 = vpop.f32.mrb[0].mxu0
      %v3612 = vadd.f32 0.0, %v3611
      %v3613 = vpop.f32.mrb[0].mxu0
      %3614 = vmatprep.mubr.bf16.mxu0 0
      %3615 = vmatmul.mubr.bf16.gmra.mrb[0].mxu0 %v2649
      %v3616 = vpop.f32.mrb[0].mxu0
      %v3617 = vadd.f32 0.0, %v3616
      %v3618 = vpop.f32.mrb[0].mxu0
      %v3619 = vpop.f32.mrb[0].mxu0
      %v3620 = vadd.f32 0.0, %v3619
      %v3621 = vpop.f32.mrb[0].mxu0
      %3622 = vmatprep.mubr.bf16.mxu0 0
      %3623 = vmatmul.mubr.bf16.gmra.mrb[0].mxu0 %v2650
      %v3624 = vpop.f32.mrb[0].mxu0
      %v3625 = vadd.f32 0.0, %v3624
      %v3626 = vpop.f32.mrb[0].mxu0
      %v3627 = vpop.f32.mrb[0].mxu0
      %v3628 = vadd.f32 0.0, %v3627
      %v3629 = vpop.f32.mrb[0].mxu0
      %3630 = vmatprep.mubr.bf16.mxu0 0
      %3631 = vmatmul.mubr.bf16.gmra.mrb[0].mxu0 %v2651
      %v3632 = vpop.f32.mrb[0].mxu0
      %v3633 = vadd.f32 0.0, %v3632
      %v3634 = vpop.f32.mrb[0].mxu0
      %v3635 = vpop.f32.mrb[0].mxu0
      %v3636 = vadd.f32 0.0, %v3635
      %v3637 = vpop.f32.mrb[0].mxu0
      %3638 = vmatprep.mubr.bf16.mxu0 0
      %3639 = vmatmul.mubr.bf16.gmra.mrb[0].mxu0 %v2652
      %v3640 = vpop.f32.mrb[0].mxu0
      %v3641 = vadd.f32 0.0, %v3640
      %v3642 = vpop.f32.mrb[0].mxu0
      %v3643 = vpop.f32.mrb[0].mxu0
      %v3644 = vadd.f32 0.0, %v3643
      %v3645 = vpop.f32.mrb[0].mxu0
      %3646 = vmatprep.mubr.bf16.mxu0 0
      %3647 = vmatmul.mubr.bf16.gmra.mrb[0].mxu0 %v2653
      %v3648 = vpop.f32.mrb[0].mxu0
      %v3649 = vadd.f32 0.0, %v3648
      %v3650 = vpop.f32.mrb[0].mxu0
      %v3651 = vpop.f32.mrb[0].mxu0
      %v3652 = vadd.f32 0.0, %v3651
      %v3653 = vpop.f32.mrb[0].mxu0
      %3654 = vmatprep.mubr.bf16.mxu0 0
      %3655 = vmatmul.mubr.bf16.gmra.mrb[0].mxu0 %v2654
      %v3656 = vpop.f32.mrb[0].mxu0
      %v3657 = vadd.f32 0.0, %v3656
      %v3658 = vpop.f32.mrb[0].mxu0
      %v3659 = vpop.f32.mrb[0].mxu0
      %v3660 = vadd.f32 0.0, %v3659
      %v3661 = vpop.f32.mrb[0].mxu0
      %3662 = vmatprep.mubr.bf16.mxu0 0
      %3663 = vmatmul.mubr.bf16.gmra.mrb[0].mxu0 %v2655
      %v3664 = vpop.f32.mrb[0].mxu0
      %v3665 = vadd.f32 0.0, %v3664
      %v3666 = vpop.f32.mrb[0].mxu0
      %v3667 = vpop.f32.mrb[0].mxu0
      %v3668 = vadd.f32 0.0, %v3667
      %v3669 = vpop.f32.mrb[0].mxu0
      %3670 = vmatprep.mubr.bf16.mxu0 0
      %3671 = vmatmul.mubr.bf16.gmra.mrb[0].mxu0 %v2656
      %v3672 = vpop.f32.mrb[0].mxu0
      %v3673 = vadd.f32 0.0, %v3672
      %v3674 = vpop.f32.mrb[0].mxu0
      %v3675 = vpop.f32.mrb[0].mxu0
      %v3676 = vadd.f32 0.0, %v3675
      %v3677 = vpop.f32.mrb[0].mxu0
      %3678 = vmatprep.mubr.bf16.mxu0 0
      %3679 = vmatmul.mubr.bf16.gmra.mrb[0].mxu0 %v2657
      %v3680 = vpop.f32.mrb[0].mxu0
      %v3681 = vadd.f32 0.0, %v3680
      %v3682 = vpop.f32.mrb[0].mxu0
      %v3683 = vpop.f32.mrb[0].mxu0
      %v3684 = vadd.f32 0.0, %v3683
      %v3685 = vpop.f32.mrb[0].mxu0
      %3686 = vmatprep.mubr.bf16.mxu0 0
      %3687 = vmatmul.mubr.bf16.gmra.mrb[0].mxu0 %v2658
      %v3688 = vpop.f32.mrb[0].mxu0
      %v3689 = vadd.f32 0.0, %v3688
      %v3690 = vpop.f32.mrb[0].mxu0
      %v3691 = vpop.f32.mrb[0].mxu0
      %v3692 = vadd.f32 0.0, %v3691
      %v3693 = vpop.f32.mrb[0].mxu0
      %3694 = vmatprep.mubr.bf16.mxu0 0
      %3695 = vmatmul.mubr.bf16.gmra.mrb[0].mxu0 %v2659
      %v3696 = vpop.f32.mrb[0].mxu0
      %v3697 = vadd.f32 0.0, %v3696
      %v3698 = vpop.f32.mrb[0].mxu0
      %v3699 = vpop.f32.mrb[0].mxu0
      %v3700 = vadd.f32 0.0, %v3699
      %v3701 = vpop.f32.mrb[0].mxu0
      %3702 = vmatprep.mubr.bf16.mxu0 0
      %3703 = vmatmul.mubr.bf16.gmra.mrb[0].mxu0 %v2660
      %v3704 = vpop.f32.mrb[0].mxu0
      %v3705 = vadd.f32 0.0, %v3704
      %v3706 = vpop.f32.mrb[0].mxu0
      %v3707 = vpop.f32.mrb[0].mxu0
      %v3708 = vadd.f32 0.0, %v3707
      %v3709 = vpop.f32.mrb[0].mxu0
      %3710 = vmatprep.mubr.bf16.mxu0 0
      %3711 = vmatmul.mubr.bf16.gmra.mrb[0].mxu0 %v2661
      %v3712 = vpop.f32.mrb[0].mxu0
      %v3713 = vadd.f32 0.0, %v3712
      %v3714 = vpop.f32.mrb[0].mxu0
      %v3715 = vpop.f32.mrb[0].mxu0
      %v3716 = vadd.f32 0.0, %v3715
      %v3717 = vpop.f32.mrb[0].mxu0
      %3718 = vmatprep.mubr.bf16.mxu0 0
      %3719 = vmatmul.mubr.bf16.gmra.mrb[0].mxu0 %v2662
      %v3720 = vpop.f32.mrb[0].mxu0
      %v3721 = vadd.f32 0.0, %v3720
      %v3722 = vpop.f32.mrb[0].mxu0
      %v3723 = vpop.f32.mrb[0].mxu0
      %v3724 = vadd.f32 0.0, %v3723
      %v3725 = vpop.f32.mrb[0].mxu0
      %3726 = vmatprep.mubr.bf16.mxu0 0
      %3727 = vmatmul.mubr.bf16.gmra.mrb[0].mxu0 %v3087
      %v3728 = vpop.f32.mrb[0].mxu0
      %v3729 = vadd.f32 0.0, %v3728
      %v3730 = vpop.f32.mrb[0].mxu0
      %v3731 = vpop.f32.mrb[0].mxu0
      %v3732 = vadd.f32 0.0, %v3731
      %v3733 = vpop.f32.mrb[0].mxu0
      %3734 = vdwg.mxu0
      %v3735 = vadd.f32 %v3478, %v3609
      %v3736 = vadd.f32 %v3479, %v3612
      %v3737 = vadd.f32 %v3480, %v3617
      %v3738 = vadd.f32 %v3481, %v3620
      %v3739 = vadd.f32 %v3482, %v3625
      %v3740 = vadd.f32 %v3483, %v3628
      %v3741 = vadd.f32 %v3484, %v3633
      %v3742 = vadd.f32 %v3485, %v3636
      %v3743 = vadd.f32 %v3486, %v3641
      %v3744 = vadd.f32 %v3487, %v3644
      %v3745 = vadd.f32 %v3488, %v3649
      %v3746 = vadd.f32 %v3489, %v3652
      %v3747 = vadd.f32 %v3490, %v3657
      %v3748 = vadd.f32 %v3491, %v3660
      %v3749 = vadd.f32 %v3492, %v3665
      %v3750 = vadd.f32 %v3493, %v3668
      %v3751 = vadd.f32 %v3494, %v3673
      %v3752 = vadd.f32 %v3495, %v3676
      %v3753 = vadd.f32 %v3496, %v3681
      %v3754 = vadd.f32 %v3497, %v3684
      %v3755 = vadd.f32 %v3498, %v3689
      %v3756 = vadd.f32 %v3499, %v3692
      %v3757 = vadd.f32 %v3500, %v3697
      %v3758 = vadd.f32 %v3501, %v3700
      %v3759 = vadd.f32 %v3502, %v3705
      %v3760 = vadd.f32 %v3503, %v3708
      %v3761 = vadd.f32 %v3504, %v3713
      %v3762 = vadd.f32 %v3505, %v3716
      %v3763 = vadd.f32 %v3506, %v3721
      %v3764 = vadd.f32 %v3507, %v3724
      %v3765 = vadd.f32 %v3508, %v3729
      %v3766 = vadd.f32 %v3509, %v3732
      %v3767 = vld [vmem:[#allocation2 + $0x18] sm:$0xff]
      %v3768 = vld [vmem:[#allocation2 + $0x20] sm:$0xff]
      %v3769 = vld [vmem:[#allocation2 + $0x28] sm:$0xff]
      %v3770 = vld [vmem:[#allocation2 + $0x30] sm:$0xff]
      %v3771 = vld [vmem:[#allocation2 + $0x38] sm:$0xff]
      %v3772 = vld [vmem:[#allocation2 + $0x40] sm:$0xff]
      %v3773 = vld [vmem:[#allocation2 + $0x48] sm:$0xff]
      %v3774 = vld [vmem:[#allocation2 + $0x50] sm:$0xff]
      %v3775 = vld [vmem:[#allocation2 + $0x58] sm:$0xff]
      %v3776 = vld [vmem:[#allocation2 + $0x60] sm:$0xff]
      %v3777 = vld [vmem:[#allocation2 + $0x68] sm:$0xff]
      %v3778 = vld [vmem:[#allocation2 + $0x70] sm:$0xff]
      %v3779 = vld [vmem:[#allocation2 + $0x78] sm:$0xff]
      %v3780 = vld [vmem:[#allocation2 + $0x80] sm:$0xff]
      %v3781 = vld [vmem:[#allocation2 + $0x88] sm:$0xff]
      %v3782 = vld [vmem:[#allocation2 + $0x90] sm:$0xff]
      %v3783 = vld [vmem:[#allocation2 + $0x98] sm:$0x1]
      %v3784 = vmul.bf16 %v3767, %v1421
      %v3785 = vmul.bf16 %v3768, %v1428
      %v3786 = vmul.bf16 %v3769, %v1435
      %v3787 = vmul.bf16 %v3770, %v1442
      %v3788 = vmul.bf16 %v3771, %v1449
      %v3789 = vmul.bf16 %v3772, %v1456
      %v3790 = vmul.bf16 %v3773, %v1463
      %v3791 = vmul.bf16 %v3774, %v1470
      %v3792 = vmul.bf16 %v3775, %v1477
      %v3793 = vmul.bf16 %v3776, %v1484
      %v3794 = vmul.bf16 %v3777, %v1491
      %v3795 = vmul.bf16 %v3778, %v1498
      %v3796 = vmul.bf16 %v3779, %v1505
      %v3797 = vmul.bf16 %v3780, %v1512
      %v3798 = vmul.bf16 %v3781, %v1519
      %v3799 = vmul.bf16 %v3782, %v1526
      %v3800 = vmul.bf16 %v3783, %v1522
      %v3801 = vld [vmem:[%s3 + $0x200] sm:$0xf]
      %v3802 = vld [vmem:[%s3 + $0x204] sm:$0xf]
      %v3803 = vld [vmem:[%s3 + $0x208] sm:$0xf]
      %v3804 = vld [vmem:[%s3 + $0x20c] sm:$0xf]
      %v3805 = vld [vmem:[%s3 + $0x210] sm:$0xf]
      %v3806 = vld [vmem:[%s3 + $0x214] sm:$0xf]
      %v3807 = vld [vmem:[%s3 + $0x218] sm:$0xf]
      %v3808 = vld [vmem:[%s3 + $0x21c] sm:$0xf]
      %v3809 = vld [vmem:[%s3 + $0x220] sm:$0xf]
      %v3810 = vld [vmem:[%s3 + $0x224] sm:$0xf]
      %v3811 = vld [vmem:[%s3 + $0x228] sm:$0xf]
      %v3812 = vld [vmem:[%s3 + $0x22c] sm:$0xf]
      %v3813 = vld [vmem:[%s3 + $0x230] sm:$0xf]
      %v3814 = vld [vmem:[%s3 + $0x234] sm:$0xf]
      %v3815 = vld [vmem:[%s3 + $0x238] sm:$0xf]
      %v3816 = vld [vmem:[%s3 + $0x23c] sm:$0xf]
      %v3818 = vshrl.u32 %v3784, 16
      %v3820 = vshll.u32 %v3784, 16
      %v3822 = vrot.slane %v3820, 1
      %v3823 = vor.u32 %v3818, %v3822
      %v3825 = vshll.u32 %v3785, 16
      %v3827 = vrot.slane %v3825, 1
      %v3828 = vsel %vm606, %v3823, %v3827
      %v3829 = vshrl.u32 %v3785, 16
      %v3831 = vor.u32 %v3829, %v3827
      %v3833 = vshll.u32 %v3786, 16
      %v3835 = vrot.slane %v3833, 1
      %v3836 = vsel %vm606, %v3831, %v3835
      %v3837 = vshrl.u32 %v3786, 16
      %v3839 = vor.u32 %v3837, %v3835
      %v3841 = vshll.u32 %v3787, 16
      %v3843 = vrot.slane %v3841, 1
      %v3844 = vsel %vm606, %v3839, %v3843
      %v3845 = vshrl.u32 %v3787, 16
      %v3847 = vor.u32 %v3845, %v3843
      %v3849 = vshll.u32 %v3788, 16
      %v3851 = vrot.slane %v3849, 1
      %v3852 = vsel %vm606, %v3847, %v3851
      %v3853 = vshrl.u32 %v3788, 16
      %v3855 = vor.u32 %v3853, %v3851
      %v3857 = vshll.u32 %v3789, 16
      %v3859 = vrot.slane %v3857, 1
      %v3860 = vsel %vm606, %v3855, %v3859
      %v3861 = vshrl.u32 %v3789, 16
      %v3863 = vor.u32 %v3861, %v3859
      %v3865 = vshll.u32 %v3790, 16
      %v3867 = vrot.slane %v3865, 1
      %v3868 = vsel %vm606, %v3863, %v3867
      %v3869 = vshrl.u32 %v3790, 16
      %v3871 = vor.u32 %v3869, %v3867
      %v3873 = vshll.u32 %v3791, 16
      %v3875 = vrot.slane %v3873, 1
      %v3876 = vsel %vm606, %v3871, %v3875
      %v3877 = vshrl.u32 %v3791, 16
      %v3879 = vor.u32 %v3877, %v3875
      %v3881 = vshll.u32 %v3792, 16
      %v3883 = vrot.slane %v3881, 1
      %v3884 = vsel %vm606, %v3879, %v3883
      %v3885 = vshrl.u32 %v3792, 16
      %v3887 = vor.u32 %v3885, %v3883
      %v3889 = vshll.u32 %v3793, 16
      %v3891 = vrot.slane %v3889, 1
      %v3892 = vsel %vm606, %v3887, %v3891
      %v3893 = vshrl.u32 %v3793, 16
      %v3895 = vor.u32 %v3893, %v3891
      %v3897 = vshll.u32 %v3794, 16
      %v3899 = vrot.slane %v3897, 1
      %v3900 = vsel %vm606, %v3895, %v3899
      %v3901 = vshrl.u32 %v3794, 16
      %v3903 = vor.u32 %v3901, %v3899
      %v3905 = vshll.u32 %v3795, 16
      %v3907 = vrot.slane %v3905, 1
      %v3908 = vsel %vm606, %v3903, %v3907
      %v3909 = vshrl.u32 %v3795, 16
      %v3911 = vor.u32 %v3909, %v3907
      %v3913 = vshll.u32 %v3796, 16
      %v3915 = vrot.slane %v3913, 1
      %v3916 = vsel %vm606, %v3911, %v3915
      %v3917 = vshrl.u32 %v3796, 16
      %v3919 = vor.u32 %v3917, %v3915
      %v3921 = vshll.u32 %v3797, 16
      %v3923 = vrot.slane %v3921, 1
      %v3924 = vsel %vm606, %v3919, %v3923
      %v3925 = vshrl.u32 %v3797, 16
      %v3927 = vor.u32 %v3925, %v3923
      %v3929 = vshll.u32 %v3798, 16
      %v3931 = vrot.slane %v3929, 1
      %v3932 = vsel %vm606, %v3927, %v3931
      %v3933 = vshrl.u32 %v3798, 16
      %v3935 = vor.u32 %v3933, %v3931
      %v3937 = vshll.u32 %v3799, 16
      %v3939 = vrot.slane %v3937, 1
      %v3940 = vsel %vm606, %v3935, %v3939
      %v3941 = vshrl.u32 %v3799, 16
      %v3943 = vor.u32 %v3941, %v3939
      %v3945 = vshll.u32 %v3800, 16
      %v3947 = vrot.slane %v3945, 1
      %v3948 = vsel %vm606, %v3943, %v3947
      %v3981 = vunpack.c.l.b16 %v3801
      %v3982 = vunpack.c.l.b16 %v3802
      %v3983 = vunpack.c.l.b16 %v3803
      %v3984 = vunpack.c.l.b16 %v3804
      %v3985 = vunpack.c.l.b16 %v3805
      %v3986 = vunpack.c.l.b16 %v3806
      %v3987 = vunpack.c.l.b16 %v3807
      %v3988 = vunpack.c.l.b16 %v3808
      %v3989 = vunpack.c.l.b16 %v3809
      %v3990 = vunpack.c.l.b16 %v3810
      %v3991 = vunpack.c.l.b16 %v3811
      %v3992 = vunpack.c.l.b16 %v3812
      %v3993 = vunpack.c.l.b16 %v3813
      %v3994 = vunpack.c.l.b16 %v3814
      %v3995 = vunpack.c.l.b16 %v3815
      %v3996 = vunpack.c.l.b16 %v3816
      %v3997 = vpack.c.b16 %v3982, %v3981
      %v3998 = vpack.c.b16 %v3984, %v3983
      %v3999 = vpack.c.b16 %v3986, %v3985
      %v4000 = vpack.c.b16 %v3988, %v3987
      %v4001 = vpack.c.b16 %v3990, %v3989
      %v4002 = vpack.c.b16 %v3992, %v3991
      %v4003 = vpack.c.b16 %v3994, %v3993
      %v4004 = vpack.c.b16 %v3996, %v3995
      %4013 = vmatprep.subr.bf16.mxu0 0
      %4014 = vmatpush1.bf16.msra.mxu0 %v3997
      %4015 = vmatprep.subr.bf16.mxu0 0
      %4016 = vmatpush1.bf16.msra.mxu0 %v3998
      %4017 = vmatprep.subr.bf16.mxu0 0
      %4018 = vmatpush1.bf16.msra.mxu0 %v3999
      %4019 = vmatprep.subr.bf16.mxu0 0
      %4020 = vmatpush1.bf16.msra.mxu0 %v4000
      %4021 = vmatprep.subr.bf16.mxu0 0
      %4022 = vmatpush1.bf16.msra.mxu0 %v4001
      %4023 = vmatprep.subr.bf16.mxu0 0
      %4024 = vmatpush1.bf16.msra.mxu0 %v4002
      %4025 = vmatprep.subr.bf16.mxu0 0
      %4026 = vmatpush1.bf16.msra.mxu0 %v4003
      %4027 = vmatprep.subr.bf16.mxu0 0
      %4028 = vmatpush1.bf16.msra.mxu0 %v4004
      %4029 = vmatprep.subr.bf16.mxu0 0
      %4030 = vmatpush1.bf16.msra.mxu0 0
      %4031 = vmatprep.subr.bf16.mxu0 0
      %4032 = vmatpush1.bf16.msra.mxu0 0
      %4033 = vmatprep.subr.bf16.mxu0 0
      %4034 = vmatpush1.bf16.msra.mxu0 0
      %4035 = vmatprep.subr.bf16.mxu0 0
      %4036 = vmatpush1.bf16.msra.mxu0 0
      %4037 = vmatprep.subr.bf16.mxu0 0
      %4038 = vmatpush1.bf16.msra.mxu0 0
      %4039 = vmatprep.subr.bf16.mxu0 0
      %4040 = vmatpush1.bf16.msra.mxu0 0
      %4041 = vmatprep.subr.bf16.mxu0 0
      %4042 = vmatpush1.bf16.msra.mxu0 0
      %4043 = vmatprep.subr.bf16.mxu0 0
      %4044 = vmatpush1.bf16.msra.mxu0 0
      %4045 = vmatprep.mubr.bf16.mxu0 0
      %4046 = vmatmul.mubr.bf16.gmra.mrb[0].mxu0 %v3828
      %v4047 = vpop.f32.mrb[0].mxu0
      %v4048 = vadd.f32 0.0, %v4047
      %v4049 = vpop.f32.mrb[0].mxu0
      %v4050 = vpop.f32.mrb[0].mxu0
      %v4051 = vadd.f32 0.0, %v4050
      %v4052 = vpop.f32.mrb[0].mxu0
      %4053 = vmatprep.mubr.bf16.mxu0 0
      %4054 = vmatmul.mubr.bf16.gmra.mrb[0].mxu0 %v3836
      %v4055 = vpop.f32.mrb[0].mxu0
      %v4056 = vadd.f32 0.0, %v4055
      %v4057 = vpop.f32.mrb[0].mxu0
      %v4058 = vpop.f32.mrb[0].mxu0
      %v4059 = vadd.f32 0.0, %v4058
      %v4060 = vpop.f32.mrb[0].mxu0
      %4061 = vmatprep.mubr.bf16.mxu0 0
      %4062 = vmatmul.mubr.bf16.gmra.mrb[0].mxu0 %v3844
      %v4063 = vpop.f32.mrb[0].mxu0
      %v4064 = vadd.f32 0.0, %v4063
      %v4065 = vpop.f32.mrb[0].mxu0
      %v4066 = vpop.f32.mrb[0].mxu0
      %v4067 = vadd.f32 0.0, %v4066
      %v4068 = vpop.f32.mrb[0].mxu0
      %4069 = vmatprep.mubr.bf16.mxu0 0
      %4070 = vmatmul.mubr.bf16.gmra.mrb[0].mxu0 %v3852
      %v4071 = vpop.f32.mrb[0].mxu0
      %v4072 = vadd.f32 0.0, %v4071
      %v4073 = vpop.f32.mrb[0].mxu0
      %v4074 = vpop.f32.mrb[0].mxu0
      %v4075 = vadd.f32 0.0, %v4074
      %v4076 = vpop.f32.mrb[0].mxu0
      %4077 = vmatprep.mubr.bf16.mxu0 0
      %4078 = vmatmul.mubr.bf16.gmra.mrb[0].mxu0 %v3860
      %v4079 = vpop.f32.mrb[0].mxu0
      %v4080 = vadd.f32 0.0, %v4079
      %v4081 = vpop.f32.mrb[0].mxu0
      %v4082 = vpop.f32.mrb[0].mxu0
      %v4083 = vadd.f32 0.0, %v4082
      %v4084 = vpop.f32.mrb[0].mxu0
      %4085 = vmatprep.mubr.bf16.mxu0 0
      %4086 = vmatmul.mubr.bf16.gmra.mrb[0].mxu0 %v3868
      %v4087 = vpop.f32.mrb[0].mxu0
      %v4088 = vadd.f32 0.0, %v4087
      %v4089 = vpop.f32.mrb[0].mxu0
      %v4090 = vpop.f32.mrb[0].mxu0
      %v4091 = vadd.f32 0.0, %v4090
      %v4092 = vpop.f32.mrb[0].mxu0
      %4093 = vmatprep.mubr.bf16.mxu0 0
      %4094 = vmatmul.mubr.bf16.gmra.mrb[0].mxu0 %v3876
      %v4095 = vpop.f32.mrb[0].mxu0
      %v4096 = vadd.f32 0.0, %v4095
      %v4097 = vpop.f32.mrb[0].mxu0
      %v4098 = vpop.f32.mrb[0].mxu0
      %v4099 = vadd.f32 0.0, %v4098
      %v4100 = vpop.f32.mrb[0].mxu0
      %4101 = vmatprep.mubr.bf16.mxu0 0
      %4102 = vmatmul.mubr.bf16.gmra.mrb[0].mxu0 %v3884
      %v4103 = vpop.f32.mrb[0].mxu0
      %v4104 = vadd.f32 0.0, %v4103
      %v4105 = vpop.f32.mrb[0].mxu0
      %v4106 = vpop.f32.mrb[0].mxu0
      %v4107 = vadd.f32 0.0, %v4106
      %v4108 = vpop.f32.mrb[0].mxu0
      %4109 = vmatprep.mubr.bf16.mxu0 0
      %4110 = vmatmul.mubr.bf16.gmra.mrb[0].mxu0 %v3892
      %v4111 = vpop.f32.mrb[0].mxu0
      %v4112 = vadd.f32 0.0, %v4111
      %v4113 = vpop.f32.mrb[0].mxu0
      %v4114 = vpop.f32.mrb[0].mxu0
      %v4115 = vadd.f32 0.0, %v4114
      %v4116 = vpop.f32.mrb[0].mxu0
      %4117 = vmatprep.mubr.bf16.mxu0 0
      %4118 = vmatmul.mubr.bf16.gmra.mrb[0].mxu0 %v3900
      %v4119 = vpop.f32.mrb[0].mxu0
      %v4120 = vadd.f32 0.0, %v4119
      %v4121 = vpop.f32.mrb[0].mxu0
      %v4122 = vpop.f32.mrb[0].mxu0
      %v4123 = vadd.f32 0.0, %v4122
      %v4124 = vpop.f32.mrb[0].mxu0
      %4125 = vmatprep.mubr.bf16.mxu0 0
      %4126 = vmatmul.mubr.bf16.gmra.mrb[0].mxu0 %v3908
      %v4127 = vpop.f32.mrb[0].mxu0
      %v4128 = vadd.f32 0.0, %v4127
      %v4129 = vpop.f32.mrb[0].mxu0
      %v4130 = vpop.f32.mrb[0].mxu0
      %v4131 = vadd.f32 0.0, %v4130
      %v4132 = vpop.f32.mrb[0].mxu0
      %4133 = vmatprep.mubr.bf16.mxu0 0
      %4134 = vmatmul.mubr.bf16.gmra.mrb[0].mxu0 %v3916
      %v4135 = vpop.f32.mrb[0].mxu0
      %v4136 = vadd.f32 0.0, %v4135
      %v4137 = vpop.f32.mrb[0].mxu0
      %v4138 = vpop.f32.mrb[0].mxu0
      %v4139 = vadd.f32 0.0, %v4138
      %v4140 = vpop.f32.mrb[0].mxu0
      %4141 = vmatprep.mubr.bf16.mxu0 0
      %4142 = vmatmul.mubr.bf16.gmra.mrb[0].mxu0 %v3924
      %v4143 = vpop.f32.mrb[0].mxu0
      %v4144 = vadd.f32 0.0, %v4143
      %v4145 = vpop.f32.mrb[0].mxu0
      %v4146 = vpop.f32.mrb[0].mxu0
      %v4147 = vadd.f32 0.0, %v4146
      %v4148 = vpop.f32.mrb[0].mxu0
      %4149 = vmatprep.mubr.bf16.mxu0 0
      %4150 = vmatmul.mubr.bf16.gmra.mrb[0].mxu0 %v3932
      %v4151 = vpop.f32.mrb[0].mxu0
      %v4152 = vadd.f32 0.0, %v4151
      %v4153 = vpop.f32.mrb[0].mxu0
      %v4154 = vpop.f32.mrb[0].mxu0
      %v4155 = vadd.f32 0.0, %v4154
      %v4156 = vpop.f32.mrb[0].mxu0
      %4157 = vmatprep.mubr.bf16.mxu0 0
      %4158 = vmatmul.mubr.bf16.gmra.mrb[0].mxu0 %v3940
      %v4159 = vpop.f32.mrb[0].mxu0
      %v4160 = vadd.f32 0.0, %v4159
      %v4161 = vpop.f32.mrb[0].mxu0
      %v4162 = vpop.f32.mrb[0].mxu0
      %v4163 = vadd.f32 0.0, %v4162
      %v4164 = vpop.f32.mrb[0].mxu0
      %4165 = vmatprep.mubr.bf16.mxu0 0
      %4166 = vmatmul.mubr.bf16.gmra.mrb[0].mxu0 %v3948
      %v4167 = vpop.f32.mrb[0].mxu0
      %v4168 = vadd.f32 0.0, %v4167
      %v4169 = vpop.f32.mrb[0].mxu0
      %v4170 = vpop.f32.mrb[0].mxu0
      %v4171 = vadd.f32 0.0, %v4170
      %v4172 = vpop.f32.mrb[0].mxu0
      %4173 = vdwg.mxu0
      %v4174 = vadd.f32 %v3735, %v4048
      %v4175 = vadd.f32 %v3736, %v4051
      %v4176 = vadd.f32 %v3737, %v4056
      %v4177 = vadd.f32 %v3738, %v4059
      %v4178 = vadd.f32 %v3739, %v4064
      %v4179 = vadd.f32 %v3740, %v4067
      %v4180 = vadd.f32 %v3741, %v4072
      %v4181 = vadd.f32 %v3742, %v4075
      %v4182 = vadd.f32 %v3743, %v4080
      %v4183 = vadd.f32 %v3744, %v4083
      %v4184 = vadd.f32 %v3745, %v4088
      %v4185 = vadd.f32 %v3746, %v4091
      %v4186 = vadd.f32 %v3747, %v4096
      %v4187 = vadd.f32 %v3748, %v4099
      %v4188 = vadd.f32 %v3749, %v4104
      %v4189 = vadd.f32 %v3750, %v4107
      %v4190 = vadd.f32 %v3751, %v4112
      %v4191 = vadd.f32 %v3752, %v4115
      %v4192 = vadd.f32 %v3753, %v4120
      %v4193 = vadd.f32 %v3754, %v4123
      %v4194 = vadd.f32 %v3755, %v4128
      %v4195 = vadd.f32 %v3756, %v4131
      %v4196 = vadd.f32 %v3757, %v4136
      %v4197 = vadd.f32 %v3758, %v4139
      %v4198 = vadd.f32 %v3759, %v4144
      %v4199 = vadd.f32 %v3760, %v4147
      %v4200 = vadd.f32 %v3761, %v4152
      %v4201 = vadd.f32 %v3762, %v4155
      %v4202 = vadd.f32 %v3763, %v4160
      %v4203 = vadd.f32 %v3764, %v4163
      %v4204 = vadd.f32 %v3765, %v4168
      %v4205 = vadd.f32 %v3766, %v4171
      %v4206 = vpack.c.bf16 %v4175, %v4174
      %v4207 = vpack.c.bf16 %v4177, %v4176
      %v4208 = vpack.c.bf16 %v4179, %v4178
      %v4209 = vpack.c.bf16 %v4181, %v4180
      %v4210 = vpack.c.bf16 %v4183, %v4182
      %v4211 = vpack.c.bf16 %v4185, %v4184
      %v4212 = vpack.c.bf16 %v4187, %v4186
      %v4213 = vpack.c.bf16 %v4189, %v4188
      %v4214 = vpack.c.bf16 %v4191, %v4190
      %v4215 = vpack.c.bf16 %v4193, %v4192
      %v4216 = vpack.c.bf16 %v4195, %v4194
      %v4217 = vpack.c.bf16 %v4197, %v4196
      %v4218 = vpack.c.bf16 %v4199, %v4198
      %v4219 = vpack.c.bf16 %v4201, %v4200
      %v4220 = vpack.c.bf16 %v4203, %v4202
      %v4221 = vpack.c.bf16 %v4205, %v4204
      %v4238 = vunpack.c.l.b16 %v4206
      %v4239 = vunpack.c.h.b16 %v4206
      %v4240 = vunpack.c.l.b16 %v4207
      %v4241 = vunpack.c.h.b16 %v4207
      %v4242 = vunpack.c.l.b16 %v4208
      %v4243 = vunpack.c.h.b16 %v4208
      %v4244 = vunpack.c.l.b16 %v4209
      %v4245 = vunpack.c.h.b16 %v4209
      %v4246 = vunpack.c.l.b16 %v4210
      %v4247 = vunpack.c.h.b16 %v4210
      %v4248 = vunpack.c.l.b16 %v4211
      %v4249 = vunpack.c.h.b16 %v4211
      %v4250 = vunpack.c.l.b16 %v4212
      %v4251 = vunpack.c.h.b16 %v4212
      %v4252 = vunpack.c.l.b16 %v4213
      %v4253 = vunpack.c.h.b16 %v4213
      %v4254 = vunpack.c.l.b16 %v4214
      %v4255 = vunpack.c.h.b16 %v4214
      %v4256 = vunpack.c.l.b16 %v4215
      %v4257 = vunpack.c.h.b16 %v4215
      %v4258 = vunpack.c.l.b16 %v4216
      %v4259 = vunpack.c.h.b16 %v4216
      %v4260 = vunpack.c.l.b16 %v4217
      %v4261 = vunpack.c.h.b16 %v4217
      %v4262 = vunpack.c.l.b16 %v4218
      %v4263 = vunpack.c.h.b16 %v4218
      %v4264 = vunpack.c.l.b16 %v4219
      %v4265 = vunpack.c.h.b16 %v4219
      %v4266 = vunpack.c.l.b16 %v4220
      %v4267 = vunpack.c.h.b16 %v4220
      %v4268 = vunpack.c.l.b16 %v4221
      %v4269 = vunpack.c.h.b16 %v4221
      %v4270 = vpack.c.b16 %v4238, %v4238
      %v4271 = vpack.c.b16 %v4239, %v4239
      %v4272 = vpack.c.b16 %v4240, %v4240
      %v4273 = vpack.c.b16 %v4241, %v4241
      %v4274 = vpack.c.b16 %v4242, %v4242
      %v4275 = vpack.c.b16 %v4243, %v4243
      %v4276 = vpack.c.b16 %v4244, %v4244
      %v4277 = vpack.c.b16 %v4245, %v4245
      %v4278 = vpack.c.b16 %v4246, %v4246
      %v4279 = vpack.c.b16 %v4247, %v4247
      %v4280 = vpack.c.b16 %v4248, %v4248
      %v4281 = vpack.c.b16 %v4249, %v4249
      %v4282 = vpack.c.b16 %v4250, %v4250
      %v4283 = vpack.c.b16 %v4251, %v4251
      %v4284 = vpack.c.b16 %v4252, %v4252
      %v4285 = vpack.c.b16 %v4253, %v4253
      %v4286 = vpack.c.b16 %v4254, %v4254
      %v4287 = vpack.c.b16 %v4255, %v4255
      %v4288 = vpack.c.b16 %v4256, %v4256
      %v4289 = vpack.c.b16 %v4257, %v4257
      %v4290 = vpack.c.b16 %v4258, %v4258
      %v4291 = vpack.c.b16 %v4259, %v4259
      %v4292 = vpack.c.b16 %v4260, %v4260
      %v4293 = vpack.c.b16 %v4261, %v4261
      %v4294 = vpack.c.b16 %v4262, %v4262
      %v4295 = vpack.c.b16 %v4263, %v4263
      %v4296 = vpack.c.b16 %v4264, %v4264
      %v4297 = vpack.c.b16 %v4265, %v4265
      %v4298 = vpack.c.b16 %v4266, %v4266
      %v4299 = vpack.c.b16 %v4267, %v4267
      %v4300 = vpack.c.b16 %v4268, %v4268
      %v4301 = vpack.c.b16 %v4269, %v4269
      %4334 = vst [vmem:[%s260] sm:$0xf] %v4270
      %4335 = vst [vmem:[%s260 + $0x4] sm:$0xf] %v4271
      %4336 = vst [vmem:[%s260 + $0x8] sm:$0xf] %v4272
      %4337 = vst [vmem:[%s260 + $0xc] sm:$0xf] %v4273
      %4338 = vst [vmem:[%s260 + $0x10] sm:$0xf] %v4274
      %4339 = vst [vmem:[%s260 + $0x14] sm:$0xf] %v4275
      %4340 = vst [vmem:[%s260 + $0x18] sm:$0xf] %v4276
      %4341 = vst [vmem:[%s260 + $0x1c] sm:$0xf] %v4277
      %4342 = vst [vmem:[%s260 + $0x20] sm:$0xf] %v4278
      %4343 = vst [vmem:[%s260 + $0x24] sm:$0xf] %v4279
      %4344 = vst [vmem:[%s260 + $0x28] sm:$0xf] %v4280
      %4345 = vst [vmem:[%s260 + $0x2c] sm:$0xf] %v4281
      %4346 = vst [vmem:[%s260 + $0x30] sm:$0xf] %v4282
      %4347 = vst [vmem:[%s260 + $0x34] sm:$0xf] %v4283
      %4348 = vst [vmem:[%s260 + $0x38] sm:$0xf] %v4284
      %4349 = vst [vmem:[%s260 + $0x3c] sm:$0xf] %v4285
      %4350 = vst [vmem:[%s260 + $0x40] sm:$0xf] %v4286
      %4351 = vst [vmem:[%s260 + $0x44] sm:$0xf] %v4287
      %4352 = vst [vmem:[%s260 + $0x48] sm:$0xf] %v4288
      %4353 = vst [vmem:[%s260 + $0x4c] sm:$0xf] %v4289
      %4354 = vst [vmem:[%s260 + $0x50] sm:$0xf] %v4290
      %4355 = vst [vmem:[%s260 + $0x54] sm:$0xf] %v4291
      %4356 = vst [vmem:[%s260 + $0x58] sm:$0xf] %v4292
      %4357 = vst [vmem:[%s260 + $0x5c] sm:$0xf] %v4293
      %4358 = vst [vmem:[%s260 + $0x60] sm:$0xf] %v4294
      %4359 = vst [vmem:[%s260 + $0x64] sm:$0xf] %v4295
      %4360 = vst [vmem:[%s260 + $0x68] sm:$0xf] %v4296
      %4361 = vst [vmem:[%s260 + $0x6c] sm:$0xf] %v4297
      %4362 = vst [vmem:[%s260 + $0x70] sm:$0xf] %v4298
      %4363 = vst [vmem:[%s260 + $0x74] sm:$0xf] %v4299
      %4364 = vst [vmem:[%s260 + $0x78] sm:$0xf] %v4300
      %4365 = vst [vmem:[%s260 + $0x7c] sm:$0xf] %v4301
      %v4366 = vunpack.c.l.bf16 %v4206
      %v4367 = vunpack.c.h.bf16 %v4206
      %v4368 = vunpack.c.l.bf16 %v4207
      %v4369 = vunpack.c.h.bf16 %v4207
      %v4370 = vunpack.c.l.bf16 %v4208
      %v4371 = vunpack.c.h.bf16 %v4208
      %v4372 = vunpack.c.l.bf16 %v4209
      %v4373 = vunpack.c.h.bf16 %v4209
      %v4374 = vunpack.c.l.bf16 %v4210
      %v4375 = vunpack.c.h.bf16 %v4210
      %v4376 = vunpack.c.l.bf16 %v4211
      %v4377 = vunpack.c.h.bf16 %v4211
      %v4378 = vunpack.c.l.bf16 %v4212
      %v4379 = vunpack.c.h.bf16 %v4212
      %v4380 = vunpack.c.l.bf16 %v4213
      %v4381 = vunpack.c.h.bf16 %v4213
      %v4382 = vunpack.c.l.bf16 %v4214
      %v4383 = vunpack.c.h.bf16 %v4214
      %v4384 = vunpack.c.l.bf16 %v4215
      %v4385 = vunpack.c.h.bf16 %v4215
      %v4386 = vunpack.c.l.bf16 %v4216
      %v4387 = vunpack.c.h.bf16 %v4216
      %v4388 = vunpack.c.l.bf16 %v4217
      %v4389 = vunpack.c.h.bf16 %v4217
      %v4390 = vunpack.c.l.bf16 %v4218
      %v4391 = vunpack.c.h.bf16 %v4218
      %v4392 = vunpack.c.l.bf16 %v4219
      %v4393 = vunpack.c.h.bf16 %v4219
      %v4394 = vunpack.c.l.bf16 %v4220
      %v4395 = vunpack.c.h.bf16 %v4220
      %v4396 = vunpack.c.l.bf16 %v4221
      %v4397 = vunpack.c.h.bf16 %v4221
      %v4398 = vadd.f32 %v4366, %v4367
      %v4399 = vadd.f32 %v4398, %v4368
      %v4400 = vadd.f32 %v4399, %v4369
      %v4401 = vadd.f32 %v4400, %v4370
      %v4402 = vadd.f32 %v4401, %v4371
      %v4403 = vadd.f32 %v4402, %v4372
      %v4404 = vadd.f32 %v4403, %v4373
      %v4405 = vadd.f32 %v4404, %v4374
      %v4406 = vadd.f32 %v4405, %v4375
      %v4407 = vadd.f32 %v4406, %v4376
      %v4408 = vadd.f32 %v4407, %v4377
      %v4409 = vadd.f32 %v4408, %v4378
      %v4410 = vadd.f32 %v4409, %v4379
      %v4411 = vadd.f32 %v4410, %v4380
      %v4412 = vadd.f32 %v4411, %v4381
      %v4413 = vadd.f32 %v4412, %v4382
      %v4414 = vadd.f32 %v4413, %v4383
      %v4415 = vadd.f32 %v4414, %v4384
      %v4416 = vadd.f32 %v4415, %v4385
      %v4417 = vadd.f32 %v4416, %v4386
      %v4418 = vadd.f32 %v4417, %v4387
      %v4419 = vadd.f32 %v4418, %v4388
      %v4420 = vadd.f32 %v4419, %v4389
      %v4421 = vadd.f32 %v4420, %v4390
      %v4422 = vadd.f32 %v4421, %v4391
      %v4423 = vadd.f32 %v4422, %v4392
      %v4424 = vadd.f32 %v4423, %v4393
      %v4425 = vadd.f32 %v4424, %v4394
      %v4426 = vadd.f32 %v4425, %v4395
      %v4427 = vadd.f32 %v4426, %v4396
      %v4428 = vadd.f32 %v4427, %v4397
      %v4429 = vrot.slane %v4428, 4
      %v4430 = vadd.f32 %v4428, %v4429
      %v4431 = vrot.slane %v4430, 2
      %v4432 = vadd.f32 %v4430, %v4431
      %v4433 = vrot.slane %v4432, 1
      %v4434 = vadd.f32 %v4432, %v4433
      %v4435 = vmul.f32 %v4366, %v4366
      %v4436 = vmul.f32 %v4367, %v4367
      %v4437 = vmul.f32 %v4368, %v4368
      %v4438 = vmul.f32 %v4369, %v4369
      %v4439 = vmul.f32 %v4370, %v4370
      %v4440 = vmul.f32 %v4371, %v4371
      %v4441 = vmul.f32 %v4372, %v4372
      %v4442 = vmul.f32 %v4373, %v4373
      %v4443 = vmul.f32 %v4374, %v4374
      %v4444 = vmul.f32 %v4375, %v4375
      %v4445 = vmul.f32 %v4376, %v4376
      %v4446 = vmul.f32 %v4377, %v4377
      %v4447 = vmul.f32 %v4378, %v4378
      %v4448 = vmul.f32 %v4379, %v4379
      %v4449 = vmul.f32 %v4380, %v4380
      %v4450 = vmul.f32 %v4381, %v4381
      %v4451 = vmul.f32 %v4382, %v4382
      %v4452 = vmul.f32 %v4383, %v4383
      %v4453 = vmul.f32 %v4384, %v4384
      %v4454 = vmul.f32 %v4385, %v4385
      %v4455 = vmul.f32 %v4386, %v4386
      %v4456 = vmul.f32 %v4387, %v4387
      %v4457 = vmul.f32 %v4388, %v4388
      %v4458 = vmul.f32 %v4389, %v4389
      %v4459 = vmul.f32 %v4390, %v4390
      %v4460 = vmul.f32 %v4391, %v4391
      %v4461 = vmul.f32 %v4392, %v4392
      %v4462 = vmul.f32 %v4393, %v4393
      %v4463 = vmul.f32 %v4394, %v4394
      %v4464 = vmul.f32 %v4395, %v4395
      %v4465 = vmul.f32 %v4396, %v4396
      %v4466 = vmul.f32 %v4397, %v4397
      %v4467 = vadd.f32 %v4435, %v4436
      %v4468 = vadd.f32 %v4467, %v4437
      %v4469 = vadd.f32 %v4468, %v4438
      %v4470 = vadd.f32 %v4469, %v4439
      %v4471 = vadd.f32 %v4470, %v4440
      %v4472 = vadd.f32 %v4471, %v4441
      %v4473 = vadd.f32 %v4472, %v4442
      %v4474 = vadd.f32 %v4473, %v4443
      %v4475 = vadd.f32 %v4474, %v4444
      %v4476 = vadd.f32 %v4475, %v4445
      %v4477 = vadd.f32 %v4476, %v4446
      %v4478 = vadd.f32 %v4477, %v4447
      %v4479 = vadd.f32 %v4478, %v4448
      %v4480 = vadd.f32 %v4479, %v4449
      %v4481 = vadd.f32 %v4480, %v4450
      %v4482 = vadd.f32 %v4481, %v4451
      %v4483 = vadd.f32 %v4482, %v4452
      %v4484 = vadd.f32 %v4483, %v4453
      %v4485 = vadd.f32 %v4484, %v4454
      %v4486 = vadd.f32 %v4485, %v4455
      %v4487 = vadd.f32 %v4486, %v4456
      %v4488 = vadd.f32 %v4487, %v4457
      %v4489 = vadd.f32 %v4488, %v4458
      %v4490 = vadd.f32 %v4489, %v4459
      %v4491 = vadd.f32 %v4490, %v4460
      %v4492 = vadd.f32 %v4491, %v4461
      %v4493 = vadd.f32 %v4492, %v4462
      %v4494 = vadd.f32 %v4493, %v4463
      %v4495 = vadd.f32 %v4494, %v4464
      %v4496 = vadd.f32 %v4495, %v4465
      %v4497 = vadd.f32 %v4496, %v4466
      %v4498 = vrot.slane %v4497, 4
      %v4499 = vadd.f32 %v4497, %v4498
      %v4500 = vrot.slane %v4499, 2
      %v4501 = vadd.f32 %v4499, %v4500
      %v4502 = vrot.slane %v4501, 1
      %v4503 = vadd.f32 %v4501, %v4502
      %v4504 = vlaneseq
      %v4505 = vshrl.u32 %v4504, 7
      %vm4506 = vcmp.eq.s32.totalorder %v4505, 0
      %vm4507 = vcmp.eq.s32.totalorder %v4505, 1
      %v4508 = vsel %vm4507, %v4503, 0.0
      %v4509 = vsel %vm4506, %v4434, %v4508
      %4510 = vst [vmem:[%s265] sm:$0xff] %v4509
      %s4511 = smul.u32 32, %s18
      %p4512 = scmp.lt.s32.totalorder %s4511, 63
      %s4513 = scalar_select %p4512, %s4511, 63
      %s4514 = smul.addr %s4513, 4
      %s4515 = scalar_lea.vmem %s5, %s4514
      %p4516 = scmp.lt.s32.totalorder %s18, 1
      %s4517 = scalar_select %p4516, %s18, 1
      %s4518 = smul.addr %s4517, 8
      %s4519 = scalar_lea.vmem %s6, %s4518
      // Predicated region
      $region41: #{bottleneck_forward.5} parent=39 // pred_check
        %p4520 = pneg %p146
      $region42: #{bottleneck_forward.5} parent=39 // pred_check_branch
        %4522 = sbr.rel (%p4520) target = $region44
      $region43: #{bottleneck_forward.5} parent=39 // pred_region
        %s4523 = smul.u32 32, %s18
      $region44: #{bottleneck_forward.5} parent=39 // pred_fallthru
        _
      // Predicated region
      $region45: #{bottleneck_forward.5} parent=39 // pred_check
        %p4524 = pneg %p172
      $region46: #{bottleneck_forward.5} parent=39 // pred_check_branch
        %4526 = sbr.rel (%p4524) target = $region48
      $region47: #{bottleneck_forward.5} parent=39 // pred_region
        _
      $region48: #{bottleneck_forward.5} parent=39 // pred_fallthru
        _
    $region40: #{bottleneck_forward.5} parent=5 // pred_fallthru
      _
    %p4527 = scmp.le.s32.totalorder 2, %s13
    // Predicated region
    $region49: #{bottleneck_forward.5} parent=5 // pred_check
      %p4528 = pneg %p4527
    $region50: #{bottleneck_forward.5} parent=5 // pred_check_branch
      %4530 = sbr.rel (%p4528) target = $region52
    $region51: #{bottleneck_forward.5} parent=5 // pred_region
      %s4531 = ssub.s32 %s13, 2
      // Predicated region
      $region53: #{bottleneck_forward.5} parent=51 // pred_check
        %p4532 = pneg %p152
      $region54: #{bottleneck_forward.5} parent=51 // pred_check_branch
        %4534 = sbr.rel (%p4532) target = $region56
      $region55: #{bottleneck_forward.5} parent=51 // pred_region
        %s4535 = smul.u32 32, %s19
        %p4536 = scmp.lt.s32.totalorder %s4535, 63
        %s4537 = scalar_select %p4536, %s4535, 63
        %s4538 = smul.addr %s4537, 4
        %s4539 = scalar_lea.vmem %s5, %s4538
      $region56: #{bottleneck_forward.5} parent=51 // pred_fallthru
        _
      // Predicated region
      $region57: #{bottleneck_forward.5} parent=51 // pred_check
        %p4540 = pneg %p178
      $region58: #{bottleneck_forward.5} parent=51 // pred_check_branch
        %4542 = sbr.rel (%p4540) target = $region60
      $region59: #{bottleneck_forward.5} parent=51 // pred_region
        %p4543 = scmp.lt.s32.totalorder %s19, 1
        %s4544 = scalar_select %p4543, %s19, 1
        %s4545 = smul.addr %s4544, 8
        %s4546 = scalar_lea.vmem %s6, %s4545
      $region60: #{bottleneck_forward.5} parent=51 // pred_fallthru
        _
    $region52: #{bottleneck_forward.5} parent=5 // pred_fallthru
      _
  $region6: #{bottleneck_forward.5} parent=0 // loop_footer
    %s17 = sadd.s32 1, %s13
  $region7: #{bottleneck_forward.5} parent=0 // loop_footer_branch
    %12 = sbr.rel target = $region3
  $region8: #{bottleneck_forward.5} parent=0 // loop_exit
    _

</llo_original>
